<compile_context>
chip_gen: v7x
topology: tpu7x:2x2x1
jax: 0.10.0
libtpu: 0.0.40
codegen_flags: <defaults>
</compile_context>

<pallas_src>
import functools

import jax
import jax.numpy as jnp
from jax.experimental import pallas as pl
from jax.experimental.pallas import tpu as pltpu

GN_EPS = 1e-5
LRELU_SLOPE = 0.2
NUM_GROUPS = 2


def stride_generator(n_s, reverse=False):
    strides = [1, 2] * 10
    return list(reversed(strides[:n_s])) if reverse else strides[:n_s]


# ----------------------------------------------------------------------------
# Fused encoder kernel: all layers, whole batch, one grid step
# ----------------------------------------------------------------------------
def _make_encoder_kernel(layer_meta):
    """layer_meta: list of dicts with static ints ho, wo, cout, nb per layer."""
    n_layers = len(layer_meta)

    def kernel(*refs):
        x_ref = refs[0]
        m_refs = refs[1 + 0 * n_layers:1 + 1 * n_layers]   # (Wi*Cin, 3*Wo*Cout)
        a_refs = refs[1 + 1 * n_layers:1 + 2 * n_layers]   # (3, nb*Ho, nb*Hi)
        p_refs = refs[1 + 2 * n_layers:1 + 3 * n_layers]   # (8, Wo*Cout)
        i_refs = refs[1 + 3 * n_layers:1 + 4 * n_layers]   # (nb, nb*Ho)
        e_refs = refs[1 + 4 * n_layers:1 + 5 * n_layers]   # (nb*Ho, nb)
        enc1_ref, latent_ref = refs[1 + 5 * n_layers:]

        x = x_ref[...].astype(jnp.float32)                 # (nb*Hi, Wi*Cin)
        for l, meta in enumerate(layer_meta):
            ho, wo, cout, nb = meta["ho"], meta["wo"], meta["cout"], meta["nb"]
            c = wo * cout
            cnt = float(ho * wo * (cout // NUM_GROUPS))

            p = p_refs[l][...]                             # (8, c)
            bias_row, gamma_row = p[0:1, :], p[1:2, :]
            beta_row, g1_row = p[2:3, :], p[3:4, :]

            # ---- 3x3 conv via selection-matrix matmuls, kh taps interleaved
            # y = sum_kh A_kh @ (X @ M_kh) + b; lane slices of M at multiples
            # of c (512/256/128) are lane-aligned, so the slice is free.
            y = None
            for kh in range(3):
                t_kh = jnp.dot(x, m_refs[l][:, kh * c:(kh + 1) * c],
                               preferred_element_type=jnp.float32)
                yk = jnp.dot(a_refs[l][kh], t_kh,
                             preferred_element_type=jnp.float32)
                y = yk if kh == 0 else y + yk
            y = y + bias_row                               # (nb*ho, c)

            # ---- GroupNorm(2): per-sample row-sums on the MXU -------------
            ind = i_refs[l][...]                           # (nb, nb*ho)
            S = jnp.dot(ind, y, preferred_element_type=jnp.float32)      # (nb,c)
            Q = jnp.dot(ind, y * y, preferred_element_type=jnp.float32)  # (nb,c)
            s1 = jnp.sum(S * g1_row, axis=1, keepdims=True)              # (nb,1)
            q1 = jnp.sum(Q * g1_row, axis=1, keepdims=True)
            s0 = jnp.sum(S, axis=1, keepdims=True) - s1
            q0 = jnp.sum(Q, axis=1, keepdims=True) - q1
            m0, m1 = s0 / cnt, s1 / cnt
            v0 = jnp.maximum(q0 / cnt - m0 * m0, 0.0)
            v1 = jnp.maximum(q1 / cnt - m1 * m1, 0.0)
            r0 = jax.lax.rsqrt(v0 + GN_EPS)                # EUP slot (free)
            r1 = jax.lax.rsqrt(v1 + GN_EPS)

            rstd_ps = r0 + (r1 - r0) * g1_row              # (nb, c)
            mean_ps = m0 + (m1 - m0) * g1_row              # (nb, c)
            scale_ps = gamma_row * rstd_ps                 # gamma * inv_std
            shift_ps = beta_row - mean_ps * scale_ps       # beta - mean*scale

            # broadcast per-sample rows back to all (ho) rows of that sample
            expd = e_refs[l][...]                          # (nb*ho, nb)
            scale_full = jnp.dot(expd, scale_ps,
                                 preferred_element_type=jnp.float32)
            shift_full = jnp.dot(expd, shift_ps,
                                 preferred_element_type=jnp.float32)

            z = y * scale_full + shift_full                # single FMA pass
            x = jnp.where(z >= 0.0, z, LRELU_SLOPE * z)    # LeakyReLU(0.2)

            if l == 0:
                enc1_ref[...] = x.astype(enc1_ref.dtype)

        latent_ref[...] = x.astype(latent_ref.dtype)

    return kernel


# ----------------------------------------------------------------------------
# Host-side, one-time weight re-layout (done at "model load" time)
# ----------------------------------------------------------------------------
def init_encoder_params(key, c_in, c_hid, n_s):
    strides = stride_generator(n_s)
    params = []
    for i in range(n_s):
        cin_i = c_in if i == 0 else c_hid
        key, k1, k2, k3, k4 = jax.random.split(key, 5)
        fan_in = cin_i * 9
        bound = 1.0 / (fan_in ** 0.5)
        params.append(dict(
            w=jax.random.uniform(k1, (c_hid, cin_i, 3, 3), jnp.float32,
                                 -bound, bound),
            b=jax.random.uniform(k2, (c_hid,), jnp.float32, -bound, bound),
            gamma=1.0 + 0.05 * jax.random.normal(k3, (c_hid,), jnp.float32),
            beta=0.05 * jax.random.normal(k4, (c_hid,), jnp.float32),
        ))
    return params, strides


def prepare_kernel_params(params, strides, h, w, nb):
    """Precompute, per layer:
       M   (Wi*Cin, 3*Wo*Cout)  width-tap/stride/pad + conv weights folded
       A   (3, nb*Ho, nb*Hi)    block-diagonal height-tap selection (per sample)
       P   (8, Wo*Cout)         rows = [bias, gamma, beta, group1-mask, 0...]
       IND (nb, nb*Ho)          per-sample row-sum indicator
       EXP (nb*Ho, nb)          per-sample row broadcast (= IND^T)
    Zero-padding and stride are folded into M/A, so the in-kernel conv is
    exact and purely matmul-based."""
    kp = {"m": [], "a": [], "p": [], "ind": [], "exp": []}
    eye = jnp.eye(nb, dtype=jnp.float32)
    hi, wi = h, w
    for p_l, s in zip(params, strides):
        w_oihw = p_l["w"]
        cout, cin = w_oihw.shape[0], w_oihw.shape[1]
        cg = cout // NUM_GROUPS
        ho = (hi + 2 - 3) // s + 1
        wo = (wi + 2 - 3) // s + 1
        c = wo * cout
        wt = jnp.transpose(w_oihw, (2, 3, 1, 0))                 # (kh,kw,ci,co)

        # width selection: sel[kw, w, wo] = 1 iff w == s*wo + kw - 1 (pad=1)
        kw_i = jnp.arange(3)[:, None, None]
        w_i = jnp.arange(wi)[None, :, None]
        wo_i = jnp.arange(wo)[None, None, :]
        sel = (w_i == s * wo_i + kw_i - 1).astype(jnp.float32)   # (3, wi, wo)

        m_parts = []
        for kh in range(3):
            m_kh = jnp.einsum("kwv,kio->wivo", sel, wt[kh])      # (wi,ci,wo,co)
            m_parts.append(m_kh.reshape(wi * cin, c))
        m_cat = jnp.concatenate(m_parts, axis=1)                 # (wi*ci, 3*c)

        # height selection: a[kh, ho, h] = 1 iff h == s*ho + kh - 1 (pad=1)
        kh_i = jnp.arange(3)[:, None, None]
        ho_i = jnp.arange(ho)[None, :, None]
        h_i = jnp.arange(hi)[None, None, :]
        a1 = (h_i == s * ho_i + kh_i - 1).astype(jnp.float32)    # (3, ho, hi)
        a_bd = jnp.stack([jnp.kron(eye, a1[kh]) for kh in range(3)], axis=0)

        # per-layer parameter block, 8 sublanes (tile-aligned)
        g1 = ((jnp.arange(c) % cout) >= cg).astype(jnp.float32)
        rows = jnp.stack([jnp.tile(p_l["b"], wo),
                          jnp.tile(p_l["gamma"], wo),
                          jnp.tile(p_l["beta"], wo),
                          g1], axis=0)
        rows = jnp.concatenate([rows, jnp.zeros((4, c), jnp.float32)], axis=0)

        ind = jnp.kron(eye, jnp.ones((1, ho), jnp.float32))      # (nb, nb*ho)
        expd = jnp.kron(eye, jnp.ones((ho, 1), jnp.float32))     # (nb*ho, nb)

        kp["m"].append(m_cat)
        kp["a"].append(a_bd)
        kp["p"].append(rows)
        kp["ind"].append(ind)
        kp["exp"].append(expd)
        hi, wi = ho, wo
    return jax.device_put(kp)


# ----------------------------------------------------------------------------
# Fused forward pass (single pallas_call, whole batch in one step)
# ----------------------------------------------------------------------------
def encoder_forward(x_nchw, kp, *, c_hid):
    """Returns (latent, enc1), both NCHW, matching the PyTorch Encoder."""
    n, c_in, h, w = x_nchw.shape
    nb = n  # whole batch folded into the sublane axis -> grid=(1,)
    # NCHW -> (N*H, W*C): batch+rows stacked on sublanes, channels-last lanes
    x2 = jnp.transpose(x_nchw, (0, 2, 3, 1)).reshape(n * h, w * c_in)

    m_list, a_list, p_list = kp["m"], kp["a"], kp["p"]
    i_list, e_list = kp["ind"], kp["exp"]
    n_layers = len(m_list)

    layer_meta = []
    for l in range(n_layers):
        ho = a_list[l].shape[1] // nb
        wo = p_list[l].shape[1] // c_hid
        layer_meta.append(dict(ho=ho, wo=wo, cout=c_hid, nb=nb))

    ho0, wo0 = layer_meta[0]["ho"], layer_meta[0]["wo"]
    hoL, woL = layer_meta[-1]["ho"], layer_meta[-1]["wo"]

    # advisory cost estimate for XLA scheduling
    flops = 0
    hi, wi, ci = h, w, c_in
    rows_in = nb * hi
    for meta in layer_meta:
        ho, wo, co = meta["ho"], meta["wo"], meta["cout"]
        c = wo * co
        rows_out = nb * ho
        flops += 2 * rows_in * (wi * ci) * (3 * c)      # X @ M_kh
        flops += 2 * 3 * rows_out * rows_in * c         # A_kh @ t_kh
        flops += 2 * 2 * nb * rows_out * c              # IND sums (S, Q)
        flops += 2 * 2 * rows_out * nb * c              # EXP broadcasts
        hi, wi, ci = ho, wo, co
        rows_in = rows_out
    bytes_accessed = 4 * (x2.size
                          + sum(int(a.size) for a in m_list)
                          + sum(int(a.size) for a in a_list)
                          + sum(int(a.size) for a in p_list)
                          + sum(int(a.size) for a in i_list)
                          + sum(int(a.size) for a in e_list)
                          + n * ho0 * wo0 * c_hid + n * hoL * woL * c_hid)

    kernel = _make_encoder_kernel(layer_meta)

    in_specs = [pl.BlockSpec((nb * h, w * c_in), lambda i: (i, 0))]
    in_specs += [pl.BlockSpec(m.shape, lambda i: (0, 0)) for m in m_list]
    in_specs += [pl.BlockSpec(a.shape, lambda i: (0, 0, 0)) for a in a_list]
    in_specs += [pl.BlockSpec(p.shape, lambda i: (0, 0)) for p in p_list]
    in_specs += [pl.BlockSpec(t.shape, lambda i: (0, 0)) for t in i_list]
    in_specs += [pl.BlockSpec(t.shape, lambda i: (0, 0)) for t in e_list]

    out_specs = [
        pl.BlockSpec((nb * ho0, wo0 * c_hid), lambda i: (i, 0)),   # enc1
        pl.BlockSpec((nb * hoL, woL * c_hid), lambda i: (i, 0)),   # latent
    ]
    out_shape = (
        jax.ShapeDtypeStruct((n * ho0, wo0 * c_hid), jnp.float32),
        jax.ShapeDtypeStruct((n * hoL, woL * c_hid), jnp.float32),
    )

    enc1_2d, latent_2d = pl.pallas_call(
        kernel,
        out_shape=out_shape,
        grid_spec=pltpu.PrefetchScalarGridSpec(
            num_scalar_prefetch=0,
            grid=(n // nb,),
            in_specs=in_specs,
            out_specs=out_specs,
        ),
        compiler_params=pltpu.CompilerParams(
            dimension_semantics=("arbitrary",),
            vmem_limit_bytes=32 * 1024 * 1024),
        cost_estimate=pl.CostEstimate(
            flops=int(flops),
            transcendentals=int(2 * n * n_layers),
            bytes_accessed=int(bytes_accessed)),
    )(x2, *m_list, *a_list, *p_list, *i_list, *e_list)

    # NHWC -> NCHW to match the PyTorch interface (drop if the downstream
    # consumer accepts the lane-dense layout).
    enc1 = jnp.transpose(enc1_2d.reshape(n, ho0, wo0, c_hid), (0, 3, 1, 2))
    latent = jnp.transpose(latent_2d.reshape(n, hoL, woL, c_hid), (0, 3, 1, 2))
    return latent, enc1


# ----------------------------------------------------------------------------
# Pure-JAX reference (for correctness check)
# ----------------------------------------------------------------------------
def _ref_encoder(x_nchw, params, strides):
    latent = x_nchw
    enc1 = None
    for i, (p, s) in enumerate(zip(params, strides)):
        y = jax.lax.conv_general_dilated(
            latent, p["w"], (s, s), ((1, 1), (1, 1)),
            dimension_numbers=("NCHW", "OIHW", "NCHW"))
        y = y + p["b"][None, :, None, None]
        n, c, hh, ww = y.shape
        cg = c // NUM_GROUPS
        yg = y.reshape(n, NUM_GROUPS, cg, hh, ww)
        m = jnp.mean(yg, axis=(2, 3, 4), keepdims=True)
        v = jnp.mean((yg - m) ** 2, axis=(2, 3, 4), keepdims=True)
        yn = ((yg - m) / jnp.sqrt(v + GN_EPS)).reshape(n, c, hh, ww)
        yn = yn * p["gamma"][None, :, None, None] + p["beta"][None, :, None, None]
        latent = jnp.where(yn >= 0, yn, LRELU_SLOPE * yn)
        if i == 0:
            enc1 = latent
    return latent, enc1


# ----------------------------------------------------------------------------
if __name__ == "__main__":
    N, C_in, H, W = 2, 4, 16, 16
    C_hid, N_S = 32, 4

    key = jax.random.PRNGKey(0)
    key, kx, kparam = jax.random.split(key, 3)

    # PyTorch-style NCHW input
    x_nchw = jax.random.normal(kx, (N, C_in, H, W), jnp.float32)

    params, strides = init_encoder_params(kparam, C_in, C_hid, N_S)

    # one-time weight re-layout (analogous to model-load time)
    kparams = jax.block_until_ready(
        prepare_kernel_params(params, strides, H, W, nb=N))

    fwd = jax.jit(functools.partial(encoder_forward, c_hid=C_hid))
    latent, enc1 = fwd(x_nchw, kparams)
    latent = jax.block_until_ready(latent)
    enc1 = jax.block_until_ready(enc1)

    assert latent.shape == (N, C_hid, H // 4, W // 4)
    assert enc1.shape == (N, C_hid, H, W)

    # correctness check against pure-JAX reference
    ref_latent, ref_enc1 = _ref_encoder(x_nchw, params, strides)
    assert jnp.allclose(latent, ref_latent, atol=1e-4, rtol=1e-4), \
        float(jnp.max(jnp.abs(latent - ref_latent)))
    assert jnp.allclose(enc1, ref_enc1, atol=1e-4, rtol=1e-4), \
        float(jnp.max(jnp.abs(enc1 - ref_enc1)))

    print("KERNEL_OK")
</pallas_src>

<mosaic_0001>
module attributes {stable_mosaic.version = 11 : i64} {
  func.func @kernel(%arg0: i32, %arg1: memref<32x64xf32, #tpu.memory_space<vmem>>, %arg2: memref<64x1536xf32, #tpu.memory_space<vmem>>, %arg3: memref<512x768xf32, #tpu.memory_space<vmem>>, %arg4: memref<256x768xf32, #tpu.memory_space<vmem>>, %arg5: memref<256x384xf32, #tpu.memory_space<vmem>>, %arg6: memref<3x32x32xf32, #tpu.memory_space<vmem>>, %arg7: memref<3x16x32xf32, #tpu.memory_space<vmem>>, %arg8: memref<3x16x16xf32, #tpu.memory_space<vmem>>, %arg9: memref<3x8x16xf32, #tpu.memory_space<vmem>>, %arg10: memref<8x512xf32, #tpu.memory_space<vmem>>, %arg11: memref<8x256xf32, #tpu.memory_space<vmem>>, %arg12: memref<8x256xf32, #tpu.memory_space<vmem>>, %arg13: memref<8x128xf32, #tpu.memory_space<vmem>>, %arg14: memref<2x32xf32, #tpu.memory_space<vmem>>, %arg15: memref<2x16xf32, #tpu.memory_space<vmem>>, %arg16: memref<2x16xf32, #tpu.memory_space<vmem>>, %arg17: memref<2x8xf32, #tpu.memory_space<vmem>>, %arg18: memref<32x2xf32, #tpu.memory_space<vmem>>, %arg19: memref<16x2xf32, #tpu.memory_space<vmem>>, %arg20: memref<16x2xf32, #tpu.memory_space<vmem>>, %arg21: memref<8x2xf32, #tpu.memory_space<vmem>>, %arg22: memref<32x512xf32, #tpu.memory_space<vmem>>, %arg23: memref<8x128xf32, #tpu.memory_space<vmem>>) attributes {dimension_semantics = [#tpu.dimension_semantics<arbitrary>], iteration_bounds = array<i64: 1>, scalar_prefetch = 0 : i64, scratch_operands = 0 : i64, tpu.core_type = #tpu.core_type<tc>, window_params = [{transform_indices = @transform_0, window_bounds = array<i64: 32, 64>}, {pipeline_mode = #tpu.pipeline_mode<synchronous>, transform_indices = @transform_1, window_bounds = array<i64: 64, 1536>}, {pipeline_mode = #tpu.pipeline_mode<synchronous>, transform_indices = @transform_2, window_bounds = array<i64: 512, 768>}, {pipeline_mode = #tpu.pipeline_mode<synchronous>, transform_indices = @transform_3, window_bounds = array<i64: 256, 768>}, {pipeline_mode = #tpu.pipeline_mode<synchronous>, transform_indices = @transform_4, window_bounds = array<i64: 256, 384>}, {pipeline_mode = #tpu.pipeline_mode<synchronous>, transform_indices = @transform_5, window_bounds = array<i64: 3, 32, 32>}, {pipeline_mode = #tpu.pipeline_mode<synchronous>, transform_indices = @transform_6, window_bounds = array<i64: 3, 16, 32>}, {pipeline_mode = #tpu.pipeline_mode<synchronous>, transform_indices = @transform_7, window_bounds = array<i64: 3, 16, 16>}, {pipeline_mode = #tpu.pipeline_mode<synchronous>, transform_indices = @transform_8, window_bounds = array<i64: 3, 8, 16>}, {pipeline_mode = #tpu.pipeline_mode<synchronous>, transform_indices = @transform_9, window_bounds = array<i64: 8, 512>}, {pipeline_mode = #tpu.pipeline_mode<synchronous>, transform_indices = @transform_10, window_bounds = array<i64: 8, 256>}, {pipeline_mode = #tpu.pipeline_mode<synchronous>, transform_indices = @transform_11, window_bounds = array<i64: 8, 256>}, {pipeline_mode = #tpu.pipeline_mode<synchronous>, transform_indices = @transform_12, window_bounds = array<i64: 8, 128>}, {pipeline_mode = #tpu.pipeline_mode<synchronous>, transform_indices = @transform_13, window_bounds = array<i64: 2, 32>}, {pipeline_mode = #tpu.pipeline_mode<synchronous>, transform_indices = @transform_14, window_bounds = array<i64: 2, 16>}, {pipeline_mode = #tpu.pipeline_mode<synchronous>, transform_indices = @transform_15, window_bounds = array<i64: 2, 16>}, {pipeline_mode = #tpu.pipeline_mode<synchronous>, transform_indices = @transform_16, window_bounds = array<i64: 2, 8>}, {pipeline_mode = #tpu.pipeline_mode<synchronous>, transform_indices = @transform_17, window_bounds = array<i64: 32, 2>}, {pipeline_mode = #tpu.pipeline_mode<synchronous>, transform_indices = @transform_18, window_bounds = array<i64: 16, 2>}, {pipeline_mode = #tpu.pipeline_mode<synchronous>, transform_indices = @transform_19, window_bounds = array<i64: 16, 2>}, {pipeline_mode = #tpu.pipeline_mode<synchronous>, transform_indices = @transform_20, window_bounds = array<i64: 8, 2>}, {transform_indices = @transform_21, window_bounds = array<i64: 32, 512>}, {transform_indices = @transform_22, window_bounds = array<i64: 8, 128>}]} {
    %c0 = arith.constant 0 : index
    %c0_0 = arith.constant 0 : index
    %0 = vector.load %arg1[%c0, %c0_0] : memref<32x64xf32, #tpu.memory_space<vmem>>, vector<32x64xf32>
    %c0_1 = arith.constant 0 : index
    %c0_2 = arith.constant 0 : index
    %1 = vector.load %arg10[%c0_1, %c0_2] : memref<8x512xf32, #tpu.memory_space<vmem>>, vector<8x512xf32>
    %2 = vector.extract_strided_slice %1 {offsets = [0, 0], sizes = [1, 512], strides = [1, 1]} : vector<8x512xf32> to vector<1x512xf32>
    %3 = vector.extract_strided_slice %1 {offsets = [1, 0], sizes = [1, 512], strides = [1, 1]} : vector<8x512xf32> to vector<1x512xf32>
    %4 = vector.extract_strided_slice %1 {offsets = [2, 0], sizes = [1, 512], strides = [1, 1]} : vector<8x512xf32> to vector<1x512xf32>
    %5 = vector.extract_strided_slice %1 {offsets = [3, 0], sizes = [1, 512], strides = [1, 1]} : vector<8x512xf32> to vector<1x512xf32>
    %c0_3 = arith.constant 0 : index
    %c0_4 = arith.constant 0 : index
    %6 = vector.load %arg2[%c0_3, %c0_4] : memref<64x1536xf32, #tpu.memory_space<vmem>>, vector<64x512xf32>
    %cst = arith.constant dense<0.000000e+00> : vector<32x512xf32>
    %7 = tpu.matmul %0, %6, %cst {dimension_numbers = #tpu.dot_dimension_numbers<[1], [0], [0], [1], [0, 0, 1, 1], [], []>} : vector<32x64xf32>, vector<64x512xf32>, vector<32x512xf32> -> vector<32x512xf32>
    %c0_5 = arith.constant 0 : index
    %c0_6 = arith.constant 0 : index
    %c0_7 = arith.constant 0 : index
    %8 = vector.load %arg6[%c0_5, %c0_6, %c0_7] : memref<3x32x32xf32, #tpu.memory_space<vmem>>, vector<1x32x32xf32>
    %9 = vector.shape_cast %8 : vector<1x32x32xf32> to vector<32x32xf32>
    %cst_8 = arith.constant dense<0.000000e+00> : vector<32x512xf32>
    %10 = tpu.matmul %9, %7, %cst_8 {dimension_numbers = #tpu.dot_dimension_numbers<[1], [0], [0], [1], [0, 0, 1, 1], [], []>} : vector<32x32xf32>, vector<32x512xf32>, vector<32x512xf32> -> vector<32x512xf32>
    %c0_9 = arith.constant 0 : index
    %c512 = arith.constant 512 : index
    %11 = vector.load %arg2[%c0_9, %c512] : memref<64x1536xf32, #tpu.memory_space<vmem>>, vector<64x512xf32>
    %cst_10 = arith.constant dense<0.000000e+00> : vector<32x512xf32>
    %12 = tpu.matmul %0, %11, %cst_10 {dimension_numbers = #tpu.dot_dimension_numbers<[1], [0], [0], [1], [0, 0, 1, 1], [], []>} : vector<32x64xf32>, vector<64x512xf32>, vector<32x512xf32> -> vector<32x512xf32>
    %c1 = arith.constant 1 : index
    %c0_11 = arith.constant 0 : index
    %c0_12 = arith.constant 0 : index
    %13 = vector.load %arg6[%c1, %c0_11, %c0_12] : memref<3x32x32xf32, #tpu.memory_space<vmem>>, vector<1x32x32xf32>
    %14 = vector.shape_cast %13 : vector<1x32x32xf32> to vector<32x32xf32>
    %cst_13 = arith.constant dense<0.000000e+00> : vector<32x512xf32>
    %15 = tpu.matmul %14, %12, %cst_13 {dimension_numbers = #tpu.dot_dimension_numbers<[1], [0], [0], [1], [0, 0, 1, 1], [], []>} : vector<32x32xf32>, vector<32x512xf32>, vector<32x512xf32> -> vector<32x512xf32>
    %16 = arith.addf %10, %15 : vector<32x512xf32>
    %c0_14 = arith.constant 0 : index
    %c1024 = arith.constant 1024 : index
    %17 = vector.load %arg2[%c0_14, %c1024] : memref<64x1536xf32, #tpu.memory_space<vmem>>, vector<64x512xf32>
    %cst_15 = arith.constant dense<0.000000e+00> : vector<32x512xf32>
    %18 = tpu.matmul %0, %17, %cst_15 {dimension_numbers = #tpu.dot_dimension_numbers<[1], [0], [0], [1], [0, 0, 1, 1], [], []>} : vector<32x64xf32>, vector<64x512xf32>, vector<32x512xf32> -> vector<32x512xf32>
    %c2 = arith.constant 2 : index
    %c0_16 = arith.constant 0 : index
    %c0_17 = arith.constant 0 : index
    %19 = vector.load %arg6[%c2, %c0_16, %c0_17] : memref<3x32x32xf32, #tpu.memory_space<vmem>>, vector<1x32x32xf32>
    %20 = vector.shape_cast %19 : vector<1x32x32xf32> to vector<32x32xf32>
    %cst_18 = arith.constant dense<0.000000e+00> : vector<32x512xf32>
    %21 = tpu.matmul %20, %18, %cst_18 {dimension_numbers = #tpu.dot_dimension_numbers<[1], [0], [0], [1], [0, 0, 1, 1], [], []>} : vector<32x32xf32>, vector<32x512xf32>, vector<32x512xf32> -> vector<32x512xf32>
    %22 = arith.addf %16, %21 : vector<32x512xf32>
    %23 = vector.broadcast %2 : vector<1x512xf32> to vector<32x512xf32>
    %24 = arith.addf %22, %23 : vector<32x512xf32>
    %c0_19 = arith.constant 0 : index
    %c0_20 = arith.constant 0 : index
    %25 = vector.load %arg14[%c0_19, %c0_20] : memref<2x32xf32, #tpu.memory_space<vmem>>, vector<2x32xf32>
    %cst_21 = arith.constant dense<0.000000e+00> : vector<2x512xf32>
    %26 = tpu.matmul %25, %24, %cst_21 {dimension_numbers = #tpu.dot_dimension_numbers<[1], [0], [0], [1], [0, 0, 1, 1], [], []>} : vector<2x32xf32>, vector<32x512xf32>, vector<2x512xf32> -> vector<2x512xf32>
    %27 = arith.mulf %24, %24 : vector<32x512xf32>
    %cst_22 = arith.constant dense<0.000000e+00> : vector<2x512xf32>
    %28 = tpu.matmul %25, %27, %cst_22 {dimension_numbers = #tpu.dot_dimension_numbers<[1], [0], [0], [1], [0, 0, 1, 1], [], []>} : vector<2x32xf32>, vector<32x512xf32>, vector<2x512xf32> -> vector<2x512xf32>
    %29 = vector.broadcast %5 : vector<1x512xf32> to vector<2x512xf32>
    %30 = arith.mulf %26, %29 : vector<2x512xf32>
    %cst_23 = arith.constant dense<0.000000e+00> : vector<2xf32>
    %31 = vector.multi_reduction <add>, %30, %cst_23 [1] : vector<2x512xf32> to vector<2xf32>
    %32 = vector.shape_cast %31 : vector<2xf32> to vector<2x1xf32>
    %33 = vector.broadcast %5 : vector<1x512xf32> to vector<2x512xf32>
    %34 = arith.mulf %28, %33 : vector<2x512xf32>
    %cst_24 = arith.constant dense<0.000000e+00> : vector<2xf32>
    %35 = vector.multi_reduction <add>, %34, %cst_24 [1] : vector<2x512xf32> to vector<2xf32>
    %36 = vector.shape_cast %35 : vector<2xf32> to vector<2x1xf32>
    %cst_25 = arith.constant dense<0.000000e+00> : vector<2xf32>
    %37 = vector.multi_reduction <add>, %26, %cst_25 [1] : vector<2x512xf32> to vector<2xf32>
    %38 = vector.shape_cast %37 : vector<2xf32> to vector<2x1xf32>
    %39 = arith.subf %38, %32 : vector<2x1xf32>
    %cst_26 = arith.constant dense<0.000000e+00> : vector<2xf32>
    %40 = vector.multi_reduction <add>, %28, %cst_26 [1] : vector<2x512xf32> to vector<2xf32>
    %41 = vector.shape_cast %40 : vector<2xf32> to vector<2x1xf32>
    %42 = arith.subf %41, %36 : vector<2x1xf32>
    %cst_27 = arith.constant 4.096000e+03 : f32
    %43 = vector.broadcast %cst_27 : f32 to vector<2x1xf32>
    %44 = arith.divf %39, %43 : vector<2x1xf32>
    %cst_28 = arith.constant 4.096000e+03 : f32
    %45 = vector.broadcast %cst_28 : f32 to vector<2x1xf32>
    %46 = arith.divf %32, %45 : vector<2x1xf32>
    %cst_29 = arith.constant 4.096000e+03 : f32
    %47 = vector.broadcast %cst_29 : f32 to vector<2x1xf32>
    %48 = arith.divf %42, %47 : vector<2x1xf32>
    %49 = arith.mulf %44, %44 : vector<2x1xf32>
    %50 = arith.subf %48, %49 : vector<2x1xf32>
    %cst_30 = arith.constant 0.000000e+00 : f32
    %51 = vector.broadcast %cst_30 : f32 to vector<2x1xf32>
    %52 = arith.maximumf %50, %51 : vector<2x1xf32>
    %cst_31 = arith.constant 4.096000e+03 : f32
    %53 = vector.broadcast %cst_31 : f32 to vector<2x1xf32>
    %54 = arith.divf %36, %53 : vector<2x1xf32>
    %55 = arith.mulf %46, %46 : vector<2x1xf32>
    %56 = arith.subf %54, %55 : vector<2x1xf32>
    %cst_32 = arith.constant 0.000000e+00 : f32
    %57 = vector.broadcast %cst_32 : f32 to vector<2x1xf32>
    %58 = arith.maximumf %56, %57 : vector<2x1xf32>
    %cst_33 = arith.constant 9.99999974E-6 : f32
    %59 = vector.broadcast %cst_33 : f32 to vector<2x1xf32>
    %60 = arith.addf %52, %59 : vector<2x1xf32>
    %61 = math.rsqrt %60 : vector<2x1xf32>
    %cst_34 = arith.constant 9.99999974E-6 : f32
    %62 = vector.broadcast %cst_34 : f32 to vector<2x1xf32>
    %63 = arith.addf %58, %62 : vector<2x1xf32>
    %64 = math.rsqrt %63 : vector<2x1xf32>
    %65 = arith.subf %64, %61 : vector<2x1xf32>
    %66 = vector.broadcast %65 : vector<2x1xf32> to vector<2x512xf32>
    %67 = vector.broadcast %5 : vector<1x512xf32> to vector<2x512xf32>
    %68 = arith.mulf %66, %67 : vector<2x512xf32>
    %69 = vector.broadcast %61 : vector<2x1xf32> to vector<2x512xf32>
    %70 = arith.addf %69, %68 : vector<2x512xf32>
    %71 = arith.subf %46, %44 : vector<2x1xf32>
    %72 = vector.broadcast %71 : vector<2x1xf32> to vector<2x512xf32>
    %73 = vector.broadcast %5 : vector<1x512xf32> to vector<2x512xf32>
    %74 = arith.mulf %72, %73 : vector<2x512xf32>
    %75 = vector.broadcast %44 : vector<2x1xf32> to vector<2x512xf32>
    %76 = arith.addf %75, %74 : vector<2x512xf32>
    %77 = vector.broadcast %3 : vector<1x512xf32> to vector<2x512xf32>
    %78 = arith.mulf %77, %70 : vector<2x512xf32>
    %79 = arith.mulf %76, %78 : vector<2x512xf32>
    %80 = vector.broadcast %4 : vector<1x512xf32> to vector<2x512xf32>
    %81 = arith.subf %80, %79 : vector<2x512xf32>
    %c0_35 = arith.constant 0 : index
    %c0_36 = arith.constant 0 : index
    %82 = vector.load %arg18[%c0_35, %c0_36] : memref<32x2xf32, #tpu.memory_space<vmem>>, vector<32x2xf32>
    %cst_37 = arith.constant dense<0.000000e+00> : vector<32x512xf32>
    %83 = tpu.matmul %82, %78, %cst_37 {dimension_numbers = #tpu.dot_dimension_numbers<[1], [0], [0], [1], [0, 0, 1, 1], [], []>} : vector<32x2xf32>, vector<2x512xf32>, vector<32x512xf32> -> vector<32x512xf32>
    %cst_38 = arith.constant dense<0.000000e+00> : vector<32x512xf32>
    %84 = tpu.matmul %82, %81, %cst_38 {dimension_numbers = #tpu.dot_dimension_numbers<[1], [0], [0], [1], [0, 0, 1, 1], [], []>} : vector<32x2xf32>, vector<2x512xf32>, vector<32x512xf32> -> vector<32x512xf32>
    %85 = arith.mulf %24, %83 : vector<32x512xf32>
    %86 = arith.addf %85, %84 : vector<32x512xf32>
    %cst_39 = arith.constant 0.000000e+00 : f32
    %87 = vector.broadcast %cst_39 : f32 to vector<32x512xf32>
    %88 = arith.cmpf oge, %86, %87 : vector<32x512xf32>
    %cst_40 = arith.constant 2.000000e-01 : f32
    %89 = vector.broadcast %cst_40 : f32 to vector<32x512xf32>
    %90 = arith.mulf %89, %86 : vector<32x512xf32>
    %91 = arith.select %88, %86, %90 : vector<32x512xi1>, vector<32x512xf32>
    %c0_41 = arith.constant 0 : index
    %c0_42 = arith.constant 0 : index
    %92 = vector.load %arg22[%c0_41, %c0_42] : memref<32x512xf32, #tpu.memory_space<vmem>>, vector<32x512xf32>
    tpu.vector_store %arg22[%c0_41, %c0_42], %91 {strides = array<i32>} : memref<32x512xf32, #tpu.memory_space<vmem>>, vector<32x512xf32>,
    %c0_43 = arith.constant 0 : index
    %c0_44 = arith.constant 0 : index
    %93 = vector.load %arg11[%c0_43, %c0_44] : memref<8x256xf32, #tpu.memory_space<vmem>>, vector<8x256xf32>
    %94 = vector.extract_strided_slice %93 {offsets = [0, 0], sizes = [1, 256], strides = [1, 1]} : vector<8x256xf32> to vector<1x256xf32>
    %95 = vector.extract_strided_slice %93 {offsets = [1, 0], sizes = [1, 256], strides = [1, 1]} : vector<8x256xf32> to vector<1x256xf32>
    %96 = vector.extract_strided_slice %93 {offsets = [2, 0], sizes = [1, 256], strides = [1, 1]} : vector<8x256xf32> to vector<1x256xf32>
    %97 = vector.extract_strided_slice %93 {offsets = [3, 0], sizes = [1, 256], strides = [1, 1]} : vector<8x256xf32> to vector<1x256xf32>
    %c0_45 = arith.constant 0 : index
    %c0_46 = arith.constant 0 : index
    %98 = vector.load %arg3[%c0_45, %c0_46] : memref<512x768xf32, #tpu.memory_space<vmem>>, vector<512x256xf32>
    %cst_47 = arith.constant dense<0.000000e+00> : vector<32x256xf32>
    %99 = tpu.matmul %91, %98, %cst_47 {dimension_numbers = #tpu.dot_dimension_numbers<[1], [0], [0], [1], [0, 0, 1, 1], [], []>} : vector<32x512xf32>, vector<512x256xf32>, vector<32x256xf32> -> vector<32x256xf32>
    %c0_48 = arith.constant 0 : index
    %c0_49 = arith.constant 0 : index
    %c0_50 = arith.constant 0 : index
    %100 = vector.load %arg7[%c0_48, %c0_49, %c0_50] : memref<3x16x32xf32, #tpu.memory_space<vmem>>, vector<1x16x32xf32>
    %101 = vector.shape_cast %100 : vector<1x16x32xf32> to vector<16x32xf32>
    %cst_51 = arith.constant dense<0.000000e+00> : vector<16x256xf32>
    %102 = tpu.matmul %101, %99, %cst_51 {dimension_numbers = #tpu.dot_dimension_numbers<[1], [0], [0], [1], [0, 0, 1, 1], [], []>} : vector<16x32xf32>, vector<32x256xf32>, vector<16x256xf32> -> vector<16x256xf32>
    %c0_52 = arith.constant 0 : index
    %c256 = arith.constant 256 : index
    %103 = vector.load %arg3[%c0_52, %c256] : memref<512x768xf32, #tpu.memory_space<vmem>>, vector<512x256xf32>
    %cst_53 = arith.constant dense<0.000000e+00> : vector<32x256xf32>
    %104 = tpu.matmul %91, %103, %cst_53 {dimension_numbers = #tpu.dot_dimension_numbers<[1], [0], [0], [1], [0, 0, 1, 1], [], []>} : vector<32x512xf32>, vector<512x256xf32>, vector<32x256xf32> -> vector<32x256xf32>
    %c1_54 = arith.constant 1 : index
    %c0_55 = arith.constant 0 : index
    %c0_56 = arith.constant 0 : index
    %105 = vector.load %arg7[%c1_54, %c0_55, %c0_56] : memref<3x16x32xf32, #tpu.memory_space<vmem>>, vector<1x16x32xf32>
    %106 = vector.shape_cast %105 : vector<1x16x32xf32> to vector<16x32xf32>
    %cst_57 = arith.constant dense<0.000000e+00> : vector<16x256xf32>
    %107 = tpu.matmul %106, %104, %cst_57 {dimension_numbers = #tpu.dot_dimension_numbers<[1], [0], [0], [1], [0, 0, 1, 1], [], []>} : vector<16x32xf32>, vector<32x256xf32>, vector<16x256xf32> -> vector<16x256xf32>
    %108 = arith.addf %102, %107 : vector<16x256xf32>
    %c0_58 = arith.constant 0 : index
    %c512_59 = arith.constant 512 : index
    %109 = vector.load %arg3[%c0_58, %c512_59] : memref<512x768xf32, #tpu.memory_space<vmem>>, vector<512x256xf32>
    %cst_60 = arith.constant dense<0.000000e+00> : vector<32x256xf32>
    %110 = tpu.matmul %91, %109, %cst_60 {dimension_numbers = #tpu.dot_dimension_numbers<[1], [0], [0], [1], [0, 0, 1, 1], [], []>} : vector<32x512xf32>, vector<512x256xf32>, vector<32x256xf32> -> vector<32x256xf32>
    %c2_61 = arith.constant 2 : index
    %c0_62 = arith.constant 0 : index
    %c0_63 = arith.constant 0 : index
    %111 = vector.load %arg7[%c2_61, %c0_62, %c0_63] : memref<3x16x32xf32, #tpu.memory_space<vmem>>, vector<1x16x32xf32>
    %112 = vector.shape_cast %111 : vector<1x16x32xf32> to vector<16x32xf32>
    %cst_64 = arith.constant dense<0.000000e+00> : vector<16x256xf32>
    %113 = tpu.matmul %112, %110, %cst_64 {dimension_numbers = #tpu.dot_dimension_numbers<[1], [0], [0], [1], [0, 0, 1, 1], [], []>} : vector<16x32xf32>, vector<32x256xf32>, vector<16x256xf32> -> vector<16x256xf32>
    %114 = arith.addf %108, %113 : vector<16x256xf32>
    %115 = vector.broadcast %94 : vector<1x256xf32> to vector<16x256xf32>
    %116 = arith.addf %114, %115 : vector<16x256xf32>
    %c0_65 = arith.constant 0 : index
    %c0_66 = arith.constant 0 : index
    %117 = vector.load %arg15[%c0_65, %c0_66] : memref<2x16xf32, #tpu.memory_space<vmem>>, vector<2x16xf32>
    %cst_67 = arith.constant dense<0.000000e+00> : vector<2x256xf32>
    %118 = tpu.matmul %117, %116, %cst_67 {dimension_numbers = #tpu.dot_dimension_numbers<[1], [0], [0], [1], [0, 0, 1, 1], [], []>} : vector<2x16xf32>, vector<16x256xf32>, vector<2x256xf32> -> vector<2x256xf32>
    %119 = arith.mulf %116, %116 : vector<16x256xf32>
    %cst_68 = arith.constant dense<0.000000e+00> : vector<2x256xf32>
    %120 = tpu.matmul %117, %119, %cst_68 {dimension_numbers = #tpu.dot_dimension_numbers<[1], [0], [0], [1], [0, 0, 1, 1], [], []>} : vector<2x16xf32>, vector<16x256xf32>, vector<2x256xf32> -> vector<2x256xf32>
    %121 = vector.broadcast %97 : vector<1x256xf32> to vector<2x256xf32>
    %122 = arith.mulf %118, %121 : vector<2x256xf32>
    %cst_69 = arith.constant dense<0.000000e+00> : vector<2xf32>
    %123 = vector.multi_reduction <add>, %122, %cst_69 [1] : vector<2x256xf32> to vector<2xf32>
    %124 = vector.shape_cast %123 : vector<2xf32> to vector<2x1xf32>
    %125 = vector.broadcast %97 : vector<1x256xf32> to vector<2x256xf32>
    %126 = arith.mulf %120, %125 : vector<2x256xf32>
    %cst_70 = arith.constant dense<0.000000e+00> : vector<2xf32>
    %127 = vector.multi_reduction <add>, %126, %cst_70 [1] : vector<2x256xf32> to vector<2xf32>
    %128 = vector.shape_cast %127 : vector<2xf32> to vector<2x1xf32>
    %cst_71 = arith.constant dense<0.000000e+00> : vector<2xf32>
    %129 = vector.multi_reduction <add>, %118, %cst_71 [1] : vector<2x256xf32> to vector<2xf32>
    %130 = vector.shape_cast %129 : vector<2xf32> to vector<2x1xf32>
    %131 = arith.subf %130, %124 : vector<2x1xf32>
    %cst_72 = arith.constant dense<0.000000e+00> : vector<2xf32>
    %132 = vector.multi_reduction <add>, %120, %cst_72 [1] : vector<2x256xf32> to vector<2xf32>
    %133 = vector.shape_cast %132 : vector<2xf32> to vector<2x1xf32>
    %134 = arith.subf %133, %128 : vector<2x1xf32>
    %cst_73 = arith.constant 1.024000e+03 : f32
    %135 = vector.broadcast %cst_73 : f32 to vector<2x1xf32>
    %136 = arith.divf %131, %135 : vector<2x1xf32>
    %cst_74 = arith.constant 1.024000e+03 : f32
    %137 = vector.broadcast %cst_74 : f32 to vector<2x1xf32>
    %138 = arith.divf %124, %137 : vector<2x1xf32>
    %cst_75 = arith.constant 1.024000e+03 : f32
    %139 = vector.broadcast %cst_75 : f32 to vector<2x1xf32>
    %140 = arith.divf %134, %139 : vector<2x1xf32>
    %141 = arith.mulf %136, %136 : vector<2x1xf32>
    %142 = arith.subf %140, %141 : vector<2x1xf32>
    %cst_76 = arith.constant 0.000000e+00 : f32
    %143 = vector.broadcast %cst_76 : f32 to vector<2x1xf32>
    %144 = arith.maximumf %142, %143 : vector<2x1xf32>
    %cst_77 = arith.constant 1.024000e+03 : f32
    %145 = vector.broadcast %cst_77 : f32 to vector<2x1xf32>
    %146 = arith.divf %128, %145 : vector<2x1xf32>
    %147 = arith.mulf %138, %138 : vector<2x1xf32>
    %148 = arith.subf %146, %147 : vector<2x1xf32>
    %cst_78 = arith.constant 0.000000e+00 : f32
    %149 = vector.broadcast %cst_78 : f32 to vector<2x1xf32>
    %150 = arith.maximumf %148, %149 : vector<2x1xf32>
    %cst_79 = arith.constant 9.99999974E-6 : f32
    %151 = vector.broadcast %cst_79 : f32 to vector<2x1xf32>
    %152 = arith.addf %144, %151 : vector<2x1xf32>
    %153 = math.rsqrt %152 : vector<2x1xf32>
    %cst_80 = arith.constant 9.99999974E-6 : f32
    %154 = vector.broadcast %cst_80 : f32 to vector<2x1xf32>
    %155 = arith.addf %150, %154 : vector<2x1xf32>
    %156 = math.rsqrt %155 : vector<2x1xf32>
    %157 = arith.subf %156, %153 : vector<2x1xf32>
    %158 = vector.broadcast %157 : vector<2x1xf32> to vector<2x256xf32>
    %159 = vector.broadcast %97 : vector<1x256xf32> to vector<2x256xf32>
    %160 = arith.mulf %158, %159 : vector<2x256xf32>
    %161 = vector.broadcast %153 : vector<2x1xf32> to vector<2x256xf32>
    %162 = arith.addf %161, %160 : vector<2x256xf32>
    %163 = arith.subf %138, %136 : vector<2x1xf32>
    %164 = vector.broadcast %163 : vector<2x1xf32> to vector<2x256xf32>
    %165 = vector.broadcast %97 : vector<1x256xf32> to vector<2x256xf32>
    %166 = arith.mulf %164, %165 : vector<2x256xf32>
    %167 = vector.broadcast %136 : vector<2x1xf32> to vector<2x256xf32>
    %168 = arith.addf %167, %166 : vector<2x256xf32>
    %169 = vector.broadcast %95 : vector<1x256xf32> to vector<2x256xf32>
    %170 = arith.mulf %169, %162 : vector<2x256xf32>
    %171 = arith.mulf %168, %170 : vector<2x256xf32>
    %172 = vector.broadcast %96 : vector<1x256xf32> to vector<2x256xf32>
    %173 = arith.subf %172, %171 : vector<2x256xf32>
    %c0_81 = arith.constant 0 : index
    %c0_82 = arith.constant 0 : index
    %174 = vector.load %arg19[%c0_81, %c0_82] : memref<16x2xf32, #tpu.memory_space<vmem>>, vector<16x2xf32>
    %cst_83 = arith.constant dense<0.000000e+00> : vector<16x256xf32>
    %175 = tpu.matmul %174, %170, %cst_83 {dimension_numbers = #tpu.dot_dimension_numbers<[1], [0], [0], [1], [0, 0, 1, 1], [], []>} : vector<16x2xf32>, vector<2x256xf32>, vector<16x256xf32> -> vector<16x256xf32>
    %cst_84 = arith.constant dense<0.000000e+00> : vector<16x256xf32>
    %176 = tpu.matmul %174, %173, %cst_84 {dimension_numbers = #tpu.dot_dimension_numbers<[1], [0], [0], [1], [0, 0, 1, 1], [], []>} : vector<16x2xf32>, vector<2x256xf32>, vector<16x256xf32> -> vector<16x256xf32>
    %177 = arith.mulf %116, %175 : vector<16x256xf32>
    %178 = arith.addf %177, %176 : vector<16x256xf32>
    %cst_85 = arith.constant 0.000000e+00 : f32
    %179 = vector.broadcast %cst_85 : f32 to vector<16x256xf32>
    %180 = arith.cmpf oge, %178, %179 : vector<16x256xf32>
    %cst_86 = arith.constant 2.000000e-01 : f32
    %181 = vector.broadcast %cst_86 : f32 to vector<16x256xf32>
    %182 = arith.mulf %181, %178 : vector<16x256xf32>
    %183 = arith.select %180, %178, %182 : vector<16x256xi1>, vector<16x256xf32>
    %c0_87 = arith.constant 0 : index
    %c0_88 = arith.constant 0 : index
    %184 = vector.load %arg12[%c0_87, %c0_88] : memref<8x256xf32, #tpu.memory_space<vmem>>, vector<8x256xf32>
    %185 = vector.extract_strided_slice %184 {offsets = [0, 0], sizes = [1, 256], strides = [1, 1]} : vector<8x256xf32> to vector<1x256xf32>
    %186 = vector.extract_strided_slice %184 {offsets = [1, 0], sizes = [1, 256], strides = [1, 1]} : vector<8x256xf32> to vector<1x256xf32>
    %187 = vector.extract_strided_slice %184 {offsets = [2, 0], sizes = [1, 256], strides = [1, 1]} : vector<8x256xf32> to vector<1x256xf32>
    %188 = vector.extract_strided_slice %184 {offsets = [3, 0], sizes = [1, 256], strides = [1, 1]} : vector<8x256xf32> to vector<1x256xf32>
    %c0_89 = arith.constant 0 : index
    %c0_90 = arith.constant 0 : index
    %189 = vector.load %arg4[%c0_89, %c0_90] : memref<256x768xf32, #tpu.memory_space<vmem>>, vector<256x256xf32>
    %cst_91 = arith.constant dense<0.000000e+00> : vector<16x256xf32>
    %190 = tpu.matmul %183, %189, %cst_91 {dimension_numbers = #tpu.dot_dimension_numbers<[1], [0], [0], [1], [0, 0, 1, 1], [], []>} : vector<16x256xf32>, vector<256x256xf32>, vector<16x256xf32> -> vector<16x256xf32>
    %c0_92 = arith.constant 0 : index
    %c0_93 = arith.constant 0 : index
    %c0_94 = arith.constant 0 : index
    %191 = vector.load %arg8[%c0_92, %c0_93, %c0_94] : memref<3x16x16xf32, #tpu.memory_space<vmem>>, vector<1x16x16xf32>
    %192 = vector.shape_cast %191 : vector<1x16x16xf32> to vector<16x16xf32>
    %cst_95 = arith.constant dense<0.000000e+00> : vector<16x256xf32>
    %193 = tpu.matmul %192, %190, %cst_95 {dimension_numbers = #tpu.dot_dimension_numbers<[1], [0], [0], [1], [0, 0, 1, 1], [], []>} : vector<16x16xf32>, vector<16x256xf32>, vector<16x256xf32> -> vector<16x256xf32>
    %c0_96 = arith.constant 0 : index
    %c256_97 = arith.constant 256 : index
    %194 = vector.load %arg4[%c0_96, %c256_97] : memref<256x768xf32, #tpu.memory_space<vmem>>, vector<256x256xf32>
    %cst_98 = arith.constant dense<0.000000e+00> : vector<16x256xf32>
    %195 = tpu.matmul %183, %194, %cst_98 {dimension_numbers = #tpu.dot_dimension_numbers<[1], [0], [0], [1], [0, 0, 1, 1], [], []>} : vector<16x256xf32>, vector<256x256xf32>, vector<16x256xf32> -> vector<16x256xf32>
    %c1_99 = arith.constant 1 : index
    %c0_100 = arith.constant 0 : index
    %c0_101 = arith.constant 0 : index
    %196 = vector.load %arg8[%c1_99, %c0_100, %c0_101] : memref<3x16x16xf32, #tpu.memory_space<vmem>>, vector<1x16x16xf32>
    %197 = vector.shape_cast %196 : vector<1x16x16xf32> to vector<16x16xf32>
    %cst_102 = arith.constant dense<0.000000e+00> : vector<16x256xf32>
    %198 = tpu.matmul %197, %195, %cst_102 {dimension_numbers = #tpu.dot_dimension_numbers<[1], [0], [0], [1], [0, 0, 1, 1], [], []>} : vector<16x16xf32>, vector<16x256xf32>, vector<16x256xf32> -> vector<16x256xf32>
    %199 = arith.addf %193, %198 : vector<16x256xf32>
    %c0_103 = arith.constant 0 : index
    %c512_104 = arith.constant 512 : index
    %200 = vector.load %arg4[%c0_103, %c512_104] : memref<256x768xf32, #tpu.memory_space<vmem>>, vector<256x256xf32>
    %cst_105 = arith.constant dense<0.000000e+00> : vector<16x256xf32>
    %201 = tpu.matmul %183, %200, %cst_105 {dimension_numbers = #tpu.dot_dimension_numbers<[1], [0], [0], [1], [0, 0, 1, 1], [], []>} : vector<16x256xf32>, vector<256x256xf32>, vector<16x256xf32> -> vector<16x256xf32>
    %c2_106 = arith.constant 2 : index
    %c0_107 = arith.constant 0 : index
    %c0_108 = arith.constant 0 : index
    %202 = vector.load %arg8[%c2_106, %c0_107, %c0_108] : memref<3x16x16xf32, #tpu.memory_space<vmem>>, vector<1x16x16xf32>
    %203 = vector.shape_cast %202 : vector<1x16x16xf32> to vector<16x16xf32>
    %cst_109 = arith.constant dense<0.000000e+00> : vector<16x256xf32>
    %204 = tpu.matmul %203, %201, %cst_109 {dimension_numbers = #tpu.dot_dimension_numbers<[1], [0], [0], [1], [0, 0, 1, 1], [], []>} : vector<16x16xf32>, vector<16x256xf32>, vector<16x256xf32> -> vector<16x256xf32>
    %205 = arith.addf %199, %204 : vector<16x256xf32>
    %206 = vector.broadcast %185 : vector<1x256xf32> to vector<16x256xf32>
    %207 = arith.addf %205, %206 : vector<16x256xf32>
    %c0_110 = arith.constant 0 : index
    %c0_111 = arith.constant 0 : index
    %208 = vector.load %arg16[%c0_110, %c0_111] : memref<2x16xf32, #tpu.memory_space<vmem>>, vector<2x16xf32>
    %cst_112 = arith.constant dense<0.000000e+00> : vector<2x256xf32>
    %209 = tpu.matmul %208, %207, %cst_112 {dimension_numbers = #tpu.dot_dimension_numbers<[1], [0], [0], [1], [0, 0, 1, 1], [], []>} : vector<2x16xf32>, vector<16x256xf32>, vector<2x256xf32> -> vector<2x256xf32>
    %210 = arith.mulf %207, %207 : vector<16x256xf32>
    %cst_113 = arith.constant dense<0.000000e+00> : vector<2x256xf32>
    %211 = tpu.matmul %208, %210, %cst_113 {dimension_numbers = #tpu.dot_dimension_numbers<[1], [0], [0], [1], [0, 0, 1, 1], [], []>} : vector<2x16xf32>, vector<16x256xf32>, vector<2x256xf32> -> vector<2x256xf32>
    %212 = vector.broadcast %188 : vector<1x256xf32> to vector<2x256xf32>
    %213 = arith.mulf %209, %212 : vector<2x256xf32>
    %cst_114 = arith.constant dense<0.000000e+00> : vector<2xf32>
    %214 = vector.multi_reduction <add>, %213, %cst_114 [1] : vector<2x256xf32> to vector<2xf32>
    %215 = vector.shape_cast %214 : vector<2xf32> to vector<2x1xf32>
    %216 = vector.broadcast %188 : vector<1x256xf32> to vector<2x256xf32>
    %217 = arith.mulf %211, %216 : vector<2x256xf32>
    %cst_115 = arith.constant dense<0.000000e+00> : vector<2xf32>
    %218 = vector.multi_reduction <add>, %217, %cst_115 [1] : vector<2x256xf32> to vector<2xf32>
    %219 = vector.shape_cast %218 : vector<2xf32> to vector<2x1xf32>
    %cst_116 = arith.constant dense<0.000000e+00> : vector<2xf32>
    %220 = vector.multi_reduction <add>, %209, %cst_116 [1] : vector<2x256xf32> to vector<2xf32>
    %221 = vector.shape_cast %220 : vector<2xf32> to vector<2x1xf32>
    %222 = arith.subf %221, %215 : vector<2x1xf32>
    %cst_117 = arith.constant dense<0.000000e+00> : vector<2xf32>
    %223 = vector.multi_reduction <add>, %211, %cst_117 [1] : vector<2x256xf32> to vector<2xf32>
    %224 = vector.shape_cast %223 : vector<2xf32> to vector<2x1xf32>
    %225 = arith.subf %224, %219 : vector<2x1xf32>
    %cst_118 = arith.constant 1.024000e+03 : f32
    %226 = vector.broadcast %cst_118 : f32 to vector<2x1xf32>
    %227 = arith.divf %222, %226 : vector<2x1xf32>
    %cst_119 = arith.constant 1.024000e+03 : f32
    %228 = vector.broadcast %cst_119 : f32 to vector<2x1xf32>
    %229 = arith.divf %215, %228 : vector<2x1xf32>
    %cst_120 = arith.constant 1.024000e+03 : f32
    %230 = vector.broadcast %cst_120 : f32 to vector<2x1xf32>
    %231 = arith.divf %225, %230 : vector<2x1xf32>
    %232 = arith.mulf %227, %227 : vector<2x1xf32>
    %233 = arith.subf %231, %232 : vector<2x1xf32>
    %cst_121 = arith.constant 0.000000e+00 : f32
    %234 = vector.broadcast %cst_121 : f32 to vector<2x1xf32>
    %235 = arith.maximumf %233, %234 : vector<2x1xf32>
    %cst_122 = arith.constant 1.024000e+03 : f32
    %236 = vector.broadcast %cst_122 : f32 to vector<2x1xf32>
    %237 = arith.divf %219, %236 : vector<2x1xf32>
    %238 = arith.mulf %229, %229 : vector<2x1xf32>
    %239 = arith.subf %237, %238 : vector<2x1xf32>
    %cst_123 = arith.constant 0.000000e+00 : f32
    %240 = vector.broadcast %cst_123 : f32 to vector<2x1xf32>
    %241 = arith.maximumf %239, %240 : vector<2x1xf32>
    %cst_124 = arith.constant 9.99999974E-6 : f32
    %242 = vector.broadcast %cst_124 : f32 to vector<2x1xf32>
    %243 = arith.addf %235, %242 : vector<2x1xf32>
    %244 = math.rsqrt %243 : vector<2x1xf32>
    %cst_125 = arith.constant 9.99999974E-6 : f32
    %245 = vector.broadcast %cst_125 : f32 to vector<2x1xf32>
    %246 = arith.addf %241, %245 : vector<2x1xf32>
    %247 = math.rsqrt %246 : vector<2x1xf32>
    %248 = arith.subf %247, %244 : vector<2x1xf32>
    %249 = vector.broadcast %248 : vector<2x1xf32> to vector<2x256xf32>
    %250 = vector.broadcast %188 : vector<1x256xf32> to vector<2x256xf32>
    %251 = arith.mulf %249, %250 : vector<2x256xf32>
    %252 = vector.broadcast %244 : vector<2x1xf32> to vector<2x256xf32>
    %253 = arith.addf %252, %251 : vector<2x256xf32>
    %254 = arith.subf %229, %227 : vector<2x1xf32>
    %255 = vector.broadcast %254 : vector<2x1xf32> to vector<2x256xf32>
    %256 = vector.broadcast %188 : vector<1x256xf32> to vector<2x256xf32>
    %257 = arith.mulf %255, %256 : vector<2x256xf32>
    %258 = vector.broadcast %227 : vector<2x1xf32> to vector<2x256xf32>
    %259 = arith.addf %258, %257 : vector<2x256xf32>
    %260 = vector.broadcast %186 : vector<1x256xf32> to vector<2x256xf32>
    %261 = arith.mulf %260, %253 : vector<2x256xf32>
    %262 = arith.mulf %259, %261 : vector<2x256xf32>
    %263 = vector.broadcast %187 : vector<1x256xf32> to vector<2x256xf32>
    %264 = arith.subf %263, %262 : vector<2x256xf32>
    %c0_126 = arith.constant 0 : index
    %c0_127 = arith.constant 0 : index
    %265 = vector.load %arg20[%c0_126, %c0_127] : memref<16x2xf32, #tpu.memory_space<vmem>>, vector<16x2xf32>
    %cst_128 = arith.constant dense<0.000000e+00> : vector<16x256xf32>
    %266 = tpu.matmul %265, %261, %cst_128 {dimension_numbers = #tpu.dot_dimension_numbers<[1], [0], [0], [1], [0, 0, 1, 1], [], []>} : vector<16x2xf32>, vector<2x256xf32>, vector<16x256xf32> -> vector<16x256xf32>
    %cst_129 = arith.constant dense<0.000000e+00> : vector<16x256xf32>
    %267 = tpu.matmul %265, %264, %cst_129 {dimension_numbers = #tpu.dot_dimension_numbers<[1], [0], [0], [1], [0, 0, 1, 1], [], []>} : vector<16x2xf32>, vector<2x256xf32>, vector<16x256xf32> -> vector<16x256xf32>
    %268 = arith.mulf %207, %266 : vector<16x256xf32>
    %269 = arith.addf %268, %267 : vector<16x256xf32>
    %cst_130 = arith.constant 0.000000e+00 : f32
    %270 = vector.broadcast %cst_130 : f32 to vector<16x256xf32>
    %271 = arith.cmpf oge, %269, %270 : vector<16x256xf32>
    %cst_131 = arith.constant 2.000000e-01 : f32
    %272 = vector.broadcast %cst_131 : f32 to vector<16x256xf32>
    %273 = arith.mulf %272, %269 : vector<16x256xf32>
    %274 = arith.select %271, %269, %273 : vector<16x256xi1>, vector<16x256xf32>
    %c0_132 = arith.constant 0 : index
    %c0_133 = arith.constant 0 : index
    %275 = vector.load %arg13[%c0_132, %c0_133] : memref<8x128xf32, #tpu.memory_space<vmem>>, vector<8x128xf32>
    %276 = vector.extract_strided_slice %275 {offsets = [0, 0], sizes = [1, 128], strides = [1, 1]} : vector<8x128xf32> to vector<1x128xf32>
    %277 = vector.extract_strided_slice %275 {offsets = [1, 0], sizes = [1, 128], strides = [1, 1]} : vector<8x128xf32> to vector<1x128xf32>
    %278 = vector.extract_strided_slice %275 {offsets = [2, 0], sizes = [1, 128], strides = [1, 1]} : vector<8x128xf32> to vector<1x128xf32>
    %279 = vector.extract_strided_slice %275 {offsets = [3, 0], sizes = [1, 128], strides = [1, 1]} : vector<8x128xf32> to vector<1x128xf32>
    %c0_134 = arith.constant 0 : index
    %c0_135 = arith.constant 0 : index
    %280 = vector.load %arg5[%c0_134, %c0_135] : memref<256x384xf32, #tpu.memory_space<vmem>>, vector<256x128xf32>
    %cst_136 = arith.constant dense<0.000000e+00> : vector<16x128xf32>
    %281 = tpu.matmul %274, %280, %cst_136 {dimension_numbers = #tpu.dot_dimension_numbers<[1], [0], [0], [1], [0, 0, 1, 1], [], []>} : vector<16x256xf32>, vector<256x128xf32>, vector<16x128xf32> -> vector<16x128xf32>
    %c0_137 = arith.constant 0 : index
    %c0_138 = arith.constant 0 : index
    %c0_139 = arith.constant 0 : index
    %282 = vector.load %arg9[%c0_137, %c0_138, %c0_139] : memref<3x8x16xf32, #tpu.memory_space<vmem>>, vector<1x8x16xf32>
    %283 = vector.shape_cast %282 : vector<1x8x16xf32> to vector<8x16xf32>
    %cst_140 = arith.constant dense<0.000000e+00> : vector<8x128xf32>
    %284 = tpu.matmul %283, %281, %cst_140 {dimension_numbers = #tpu.dot_dimension_numbers<[1], [0], [0], [1], [0, 0, 1, 1], [], []>} : vector<8x16xf32>, vector<16x128xf32>, vector<8x128xf32> -> vector<8x128xf32>
    %c0_141 = arith.constant 0 : index
    %c128 = arith.constant 128 : index
    %285 = vector.load %arg5[%c0_141, %c128] : memref<256x384xf32, #tpu.memory_space<vmem>>, vector<256x128xf32>
    %cst_142 = arith.constant dense<0.000000e+00> : vector<16x128xf32>
    %286 = tpu.matmul %274, %285, %cst_142 {dimension_numbers = #tpu.dot_dimension_numbers<[1], [0], [0], [1], [0, 0, 1, 1], [], []>} : vector<16x256xf32>, vector<256x128xf32>, vector<16x128xf32> -> vector<16x128xf32>
    %c1_143 = arith.constant 1 : index
    %c0_144 = arith.constant 0 : index
    %c0_145 = arith.constant 0 : index
    %287 = vector.load %arg9[%c1_143, %c0_144, %c0_145] : memref<3x8x16xf32, #tpu.memory_space<vmem>>, vector<1x8x16xf32>
    %288 = vector.shape_cast %287 : vector<1x8x16xf32> to vector<8x16xf32>
    %cst_146 = arith.constant dense<0.000000e+00> : vector<8x128xf32>
    %289 = tpu.matmul %288, %286, %cst_146 {dimension_numbers = #tpu.dot_dimension_numbers<[1], [0], [0], [1], [0, 0, 1, 1], [], []>} : vector<8x16xf32>, vector<16x128xf32>, vector<8x128xf32> -> vector<8x128xf32>
    %290 = arith.addf %284, %289 : vector<8x128xf32>
    %c0_147 = arith.constant 0 : index
    %c256_148 = arith.constant 256 : index
    %291 = vector.load %arg5[%c0_147, %c256_148] : memref<256x384xf32, #tpu.memory_space<vmem>>, vector<256x128xf32>
    %cst_149 = arith.constant dense<0.000000e+00> : vector<16x128xf32>
    %292 = tpu.matmul %274, %291, %cst_149 {dimension_numbers = #tpu.dot_dimension_numbers<[1], [0], [0], [1], [0, 0, 1, 1], [], []>} : vector<16x256xf32>, vector<256x128xf32>, vector<16x128xf32> -> vector<16x128xf32>
    %c2_150 = arith.constant 2 : index
    %c0_151 = arith.constant 0 : index
    %c0_152 = arith.constant 0 : index
    %293 = vector.load %arg9[%c2_150, %c0_151, %c0_152] : memref<3x8x16xf32, #tpu.memory_space<vmem>>, vector<1x8x16xf32>
    %294 = vector.shape_cast %293 : vector<1x8x16xf32> to vector<8x16xf32>
    %cst_153 = arith.constant dense<0.000000e+00> : vector<8x128xf32>
    %295 = tpu.matmul %294, %292, %cst_153 {dimension_numbers = #tpu.dot_dimension_numbers<[1], [0], [0], [1], [0, 0, 1, 1], [], []>} : vector<8x16xf32>, vector<16x128xf32>, vector<8x128xf32> -> vector<8x128xf32>
    %296 = arith.addf %290, %295 : vector<8x128xf32>
    %297 = vector.broadcast %276 : vector<1x128xf32> to vector<8x128xf32>
    %298 = arith.addf %296, %297 : vector<8x128xf32>
    %c0_154 = arith.constant 0 : index
    %c0_155 = arith.constant 0 : index
    %299 = vector.load %arg17[%c0_154, %c0_155] : memref<2x8xf32, #tpu.memory_space<vmem>>, vector<2x8xf32>
    %cst_156 = arith.constant dense<0.000000e+00> : vector<2x128xf32>
    %300 = tpu.matmul %299, %298, %cst_156 {dimension_numbers = #tpu.dot_dimension_numbers<[1], [0], [0], [1], [0, 0, 1, 1], [], []>} : vector<2x8xf32>, vector<8x128xf32>, vector<2x128xf32> -> vector<2x128xf32>
    %301 = arith.mulf %298, %298 : vector<8x128xf32>
    %cst_157 = arith.constant dense<0.000000e+00> : vector<2x128xf32>
    %302 = tpu.matmul %299, %301, %cst_157 {dimension_numbers = #tpu.dot_dimension_numbers<[1], [0], [0], [1], [0, 0, 1, 1], [], []>} : vector<2x8xf32>, vector<8x128xf32>, vector<2x128xf32> -> vector<2x128xf32>
    %303 = vector.broadcast %279 : vector<1x128xf32> to vector<2x128xf32>
    %304 = arith.mulf %300, %303 : vector<2x128xf32>
    %cst_158 = arith.constant dense<0.000000e+00> : vector<2xf32>
    %305 = vector.multi_reduction <add>, %304, %cst_158 [1] : vector<2x128xf32> to vector<2xf32>
    %306 = vector.shape_cast %305 : vector<2xf32> to vector<2x1xf32>
    %307 = vector.broadcast %279 : vector<1x128xf32> to vector<2x128xf32>
    %308 = arith.mulf %302, %307 : vector<2x128xf32>
    %cst_159 = arith.constant dense<0.000000e+00> : vector<2xf32>
    %309 = vector.multi_reduction <add>, %308, %cst_159 [1] : vector<2x128xf32> to vector<2xf32>
    %310 = vector.shape_cast %309 : vector<2xf32> to vector<2x1xf32>
    %cst_160 = arith.constant dense<0.000000e+00> : vector<2xf32>
    %311 = vector.multi_reduction <add>, %300, %cst_160 [1] : vector<2x128xf32> to vector<2xf32>
    %312 = vector.shape_cast %311 : vector<2xf32> to vector<2x1xf32>
    %313 = arith.subf %312, %306 : vector<2x1xf32>
    %cst_161 = arith.constant dense<0.000000e+00> : vector<2xf32>
    %314 = vector.multi_reduction <add>, %302, %cst_161 [1] : vector<2x128xf32> to vector<2xf32>
    %315 = vector.shape_cast %314 : vector<2xf32> to vector<2x1xf32>
    %316 = arith.subf %315, %310 : vector<2x1xf32>
    %cst_162 = arith.constant 2.560000e+02 : f32
    %317 = vector.broadcast %cst_162 : f32 to vector<2x1xf32>
    %318 = arith.divf %313, %317 : vector<2x1xf32>
    %cst_163 = arith.constant 2.560000e+02 : f32
    %319 = vector.broadcast %cst_163 : f32 to vector<2x1xf32>
    %320 = arith.divf %306, %319 : vector<2x1xf32>
    %cst_164 = arith.constant 2.560000e+02 : f32
    %321 = vector.broadcast %cst_164 : f32 to vector<2x1xf32>
    %322 = arith.divf %316, %321 : vector<2x1xf32>
    %323 = arith.mulf %318, %318 : vector<2x1xf32>
    %324 = arith.subf %322, %323 : vector<2x1xf32>
    %cst_165 = arith.constant 0.000000e+00 : f32
    %325 = vector.broadcast %cst_165 : f32 to vector<2x1xf32>
    %326 = arith.maximumf %324, %325 : vector<2x1xf32>
    %cst_166 = arith.constant 2.560000e+02 : f32
    %327 = vector.broadcast %cst_166 : f32 to vector<2x1xf32>
    %328 = arith.divf %310, %327 : vector<2x1xf32>
    %329 = arith.mulf %320, %320 : vector<2x1xf32>
    %330 = arith.subf %328, %329 : vector<2x1xf32>
    %cst_167 = arith.constant 0.000000e+00 : f32
    %331 = vector.broadcast %cst_167 : f32 to vector<2x1xf32>
    %332 = arith.maximumf %330, %331 : vector<2x1xf32>
    %cst_168 = arith.constant 9.99999974E-6 : f32
    %333 = vector.broadcast %cst_168 : f32 to vector<2x1xf32>
    %334 = arith.addf %326, %333 : vector<2x1xf32>
    %335 = math.rsqrt %334 : vector<2x1xf32>
    %cst_169 = arith.constant 9.99999974E-6 : f32
    %336 = vector.broadcast %cst_169 : f32 to vector<2x1xf32>
    %337 = arith.addf %332, %336 : vector<2x1xf32>
    %338 = math.rsqrt %337 : vector<2x1xf32>
    %339 = arith.subf %338, %335 : vector<2x1xf32>
    %340 = vector.broadcast %339 : vector<2x1xf32> to vector<2x128xf32>
    %341 = vector.broadcast %279 : vector<1x128xf32> to vector<2x128xf32>
    %342 = arith.mulf %340, %341 : vector<2x128xf32>
    %343 = vector.broadcast %335 : vector<2x1xf32> to vector<2x128xf32>
    %344 = arith.addf %343, %342 : vector<2x128xf32>
    %345 = arith.subf %320, %318 : vector<2x1xf32>
    %346 = vector.broadcast %345 : vector<2x1xf32> to vector<2x128xf32>
    %347 = vector.broadcast %279 : vector<1x128xf32> to vector<2x128xf32>
    %348 = arith.mulf %346, %347 : vector<2x128xf32>
    %349 = vector.broadcast %318 : vector<2x1xf32> to vector<2x128xf32>
    %350 = arith.addf %349, %348 : vector<2x128xf32>
    %351 = vector.broadcast %277 : vector<1x128xf32> to vector<2x128xf32>
    %352 = arith.mulf %351, %344 : vector<2x128xf32>
    %353 = arith.mulf %350, %352 : vector<2x128xf32>
    %354 = vector.broadcast %278 : vector<1x128xf32> to vector<2x128xf32>
    %355 = arith.subf %354, %353 : vector<2x128xf32>
    %c0_170 = arith.constant 0 : index
    %c0_171 = arith.constant 0 : index
    %356 = vector.load %arg21[%c0_170, %c0_171] : memref<8x2xf32, #tpu.memory_space<vmem>>, vector<8x2xf32>
    %cst_172 = arith.constant dense<0.000000e+00> : vector<8x128xf32>
    %357 = tpu.matmul %356, %352, %cst_172 {dimension_numbers = #tpu.dot_dimension_numbers<[1], [0], [0], [1], [0, 0, 1, 1], [], []>} : vector<8x2xf32>, vector<2x128xf32>, vector<8x128xf32> -> vector<8x128xf32>
    %cst_173 = arith.constant dense<0.000000e+00> : vector<8x128xf32>
    %358 = tpu.matmul %356, %355, %cst_173 {dimension_numbers = #tpu.dot_dimension_numbers<[1], [0], [0], [1], [0, 0, 1, 1], [], []>} : vector<8x2xf32>, vector<2x128xf32>, vector<8x128xf32> -> vector<8x128xf32>
    %359 = arith.mulf %298, %357 : vector<8x128xf32>
    %360 = arith.addf %359, %358 : vector<8x128xf32>
    %cst_174 = arith.constant 0.000000e+00 : f32
    %361 = vector.broadcast %cst_174 : f32 to vector<8x128xf32>
    %362 = arith.cmpf oge, %360, %361 : vector<8x128xf32>
    %cst_175 = arith.constant 2.000000e-01 : f32
    %363 = vector.broadcast %cst_175 : f32 to vector<8x128xf32>
    %364 = arith.mulf %363, %360 : vector<8x128xf32>
    %365 = arith.select %362, %360, %364 : vector<8x128xi1>, vector<8x128xf32>
    %c0_176 = arith.constant 0 : index
    %c0_177 = arith.constant 0 : index
    %366 = vector.load %arg23[%c0_176, %c0_177] : memref<8x128xf32, #tpu.memory_space<vmem>>, vector<8x128xf32>
    tpu.vector_store %arg23[%c0_176, %c0_177], %365 {strides = array<i32>} : memref<8x128xf32, #tpu.memory_space<vmem>>, vector<8x128xf32>,
    return
  }
  func.func @transform_0(%arg0: i32) -> (i32, i32) {
    %c0_i32 = arith.constant 0 : i32
    %c0_i32_0 = arith.constant 0 : i32
    return %arg0, %c0_i32 : i32, i32
  }
  func.func @transform_1(%arg0: i32) -> (i32, i32) {
    %c0_i32 = arith.constant 0 : i32
    %c0_i32_0 = arith.constant 0 : i32
    %c0_i32_1 = arith.constant 0 : i32
    return %c0_i32, %c0_i32_0 : i32, i32
  }
  func.func @transform_2(%arg0: i32) -> (i32, i32) {
    %c0_i32 = arith.constant 0 : i32
    %c0_i32_0 = arith.constant 0 : i32
    %c0_i32_1 = arith.constant 0 : i32
    return %c0_i32, %c0_i32_0 : i32, i32
  }
  func.func @transform_3(%arg0: i32) -> (i32, i32) {
    %c0_i32 = arith.constant 0 : i32
    %c0_i32_0 = arith.constant 0 : i32
    %c0_i32_1 = arith.constant 0 : i32
    return %c0_i32, %c0_i32_0 : i32, i32
  }
  func.func @transform_4(%arg0: i32) -> (i32, i32) {
    %c0_i32 = arith.constant 0 : i32
    %c0_i32_0 = arith.constant 0 : i32
    %c0_i32_1 = arith.constant 0 : i32
    return %c0_i32, %c0_i32_0 : i32, i32
  }
  func.func @transform_5(%arg0: i32) -> (i32, i32, i32) {
    %c0_i32 = arith.constant 0 : i32
    %c0_i32_0 = arith.constant 0 : i32
    %c0_i32_1 = arith.constant 0 : i32
    %c0_i32_2 = arith.constant 0 : i32
    return %c0_i32, %c0_i32_0, %c0_i32_1 : i32, i32, i32
  }
  func.func @transform_6(%arg0: i32) -> (i32, i32, i32) {
    %c0_i32 = arith.constant 0 : i32
    %c0_i32_0 = arith.constant 0 : i32
    %c0_i32_1 = arith.constant 0 : i32
    %c0_i32_2 = arith.constant 0 : i32
    return %c0_i32, %c0_i32_0, %c0_i32_1 : i32, i32, i32
  }
  func.func @transform_7(%arg0: i32) -> (i32, i32, i32) {
    %c0_i32 = arith.constant 0 : i32
    %c0_i32_0 = arith.constant 0 : i32
    %c0_i32_1 = arith.constant 0 : i32
    %c0_i32_2 = arith.constant 0 : i32
    return %c0_i32, %c0_i32_0, %c0_i32_1 : i32, i32, i32
  }
  func.func @transform_8(%arg0: i32) -> (i32, i32, i32) {
    %c0_i32 = arith.constant 0 : i32
    %c0_i32_0 = arith.constant 0 : i32
    %c0_i32_1 = arith.constant 0 : i32
    %c0_i32_2 = arith.constant 0 : i32
    return %c0_i32, %c0_i32_0, %c0_i32_1 : i32, i32, i32
  }
  func.func @transform_9(%arg0: i32) -> (i32, i32) {
    %c0_i32 = arith.constant 0 : i32
    %c0_i32_0 = arith.constant 0 : i32
    %c0_i32_1 = arith.constant 0 : i32
    return %c0_i32, %c0_i32_0 : i32, i32
  }
  func.func @transform_10(%arg0: i32) -> (i32, i32) {
    %c0_i32 = arith.constant 0 : i32
    %c0_i32_0 = arith.constant 0 : i32
    %c0_i32_1 = arith.constant 0 : i32
    return %c0_i32, %c0_i32_0 : i32, i32
  }
  func.func @transform_11(%arg0: i32) -> (i32, i32) {
    %c0_i32 = arith.constant 0 : i32
    %c0_i32_0 = arith.constant 0 : i32
    %c0_i32_1 = arith.constant 0 : i32
    return %c0_i32, %c0_i32_0 : i32, i32
  }
  func.func @transform_12(%arg0: i32) -> (i32, i32) {
    %c0_i32 = arith.constant 0 : i32
    %c0_i32_0 = arith.constant 0 : i32
    %c0_i32_1 = arith.constant 0 : i32
    return %c0_i32, %c0_i32_0 : i32, i32
  }
  func.func @transform_13(%arg0: i32) -> (i32, i32) {
    %c0_i32 = arith.constant 0 : i32
    %c0_i32_0 = arith.constant 0 : i32
    %c0_i32_1 = arith.constant 0 : i32
    return %c0_i32, %c0_i32_0 : i32, i32
  }
  func.func @transform_14(%arg0: i32) -> (i32, i32) {
    %c0_i32 = arith.constant 0 : i32
    %c0_i32_0 = arith.constant 0 : i32
    %c0_i32_1 = arith.constant 0 : i32
    return %c0_i32, %c0_i32_0 : i32, i32
  }
  func.func @transform_15(%arg0: i32) -> (i32, i32) {
    %c0_i32 = arith.constant 0 : i32
    %c0_i32_0 = arith.constant 0 : i32
    %c0_i32_1 = arith.constant 0 : i32
    return %c0_i32, %c0_i32_0 : i32, i32
  }
  func.func @transform_16(%arg0: i32) -> (i32, i32) {
    %c0_i32 = arith.constant 0 : i32
    %c0_i32_0 = arith.constant 0 : i32
    %c0_i32_1 = arith.constant 0 : i32
    return %c0_i32, %c0_i32_0 : i32, i32
  }
  func.func @transform_17(%arg0: i32) -> (i32, i32) {
    %c0_i32 = arith.constant 0 : i32
    %c0_i32_0 = arith.constant 0 : i32
    %c0_i32_1 = arith.constant 0 : i32
    return %c0_i32, %c0_i32_0 : i32, i32
  }
  func.func @transform_18(%arg0: i32) -> (i32, i32) {
    %c0_i32 = arith.constant 0 : i32
    %c0_i32_0 = arith.constant 0 : i32
    %c0_i32_1 = arith.constant 0 : i32
    return %c0_i32, %c0_i32_0 : i32, i32
  }
  func.func @transform_19(%arg0: i32) -> (i32, i32) {
    %c0_i32 = arith.constant 0 : i32
    %c0_i32_0 = arith.constant 0 : i32
    %c0_i32_1 = arith.constant 0 : i32
    return %c0_i32, %c0_i32_0 : i32, i32
  }
  func.func @transform_20(%arg0: i32) -> (i32, i32) {
    %c0_i32 = arith.constant 0 : i32
    %c0_i32_0 = arith.constant 0 : i32
    %c0_i32_1 = arith.constant 0 : i32
    return %c0_i32, %c0_i32_0 : i32, i32
  }
  func.func @transform_21(%arg0: i32) -> (i32, i32) {
    %c0_i32 = arith.constant 0 : i32
    %c0_i32_0 = arith.constant 0 : i32
    return %arg0, %c0_i32 : i32, i32
  }
  func.func @transform_22(%arg0: i32) -> (i32, i32) {
    %c0_i32 = arith.constant 0 : i32
    %c0_i32_0 = arith.constant 0 : i32
    return %arg0, %c0_i32 : i32, i32
  }
}

</mosaic_0001>

<llo_original>
// kernel: encoder_forward.1
$region0: #{encoder_forward.1}
  #allocation0 [shape = 'u32[]', space=smem, size = 0x4, offset = 0x4, fixed_abs, tag = 'smem constant byte address 0x4 - core index']
  #allocation1 [shape = 'u32[144,128]{1,0:T(1,128)}', space=vmem, size = 0x12000, scoped, tag = 'internal scratch']
  %s0 = inlined_call_operand.vmem [shape: f32[32,64], index: 0, kind: input, shape index: {}]
  %s1 = inlined_call_operand.hbm [shape: f32[64,1536], index: 1, kind: input, shape index: {}]
  %s2 = inlined_call_operand.hbm [shape: f32[512,768], index: 2, kind: input, shape index: {}]
  %s3 = inlined_call_operand.hbm [shape: f32[256,768], index: 3, kind: input, shape index: {}]
  %s4 = inlined_call_operand.hbm [shape: f32[256,384], index: 4, kind: input, shape index: {}]
  %s5 = inlined_call_operand.hbm [shape: f32[3,32,32], index: 5, kind: input, shape index: {}]
  %s6 = inlined_call_operand.hbm [shape: f32[3,16,32], index: 6, kind: input, shape index: {}]
  %s7 = inlined_call_operand.hbm [shape: f32[3,16,16], index: 7, kind: input, shape index: {}]
  %s8 = inlined_call_operand.hbm [shape: f32[3,8,16], index: 8, kind: input, shape index: {}]
  %s9 = inlined_call_operand.hbm [shape: f32[8,512], index: 9, kind: input, shape index: {}]
  %s10 = inlined_call_operand.hbm [shape: f32[8,256], index: 10, kind: input, shape index: {}]
  %s11 = inlined_call_operand.hbm [shape: f32[8,256], index: 11, kind: input, shape index: {}]
  %s12 = inlined_call_operand.hbm [shape: f32[8,128], index: 12, kind: input, shape index: {}]
  %s13 = inlined_call_operand.hbm [shape: f32[2,32], index: 13, kind: input, shape index: {}]
  %s14 = inlined_call_operand.hbm [shape: f32[2,16], index: 14, kind: input, shape index: {}]
  %s15 = inlined_call_operand.hbm [shape: f32[2,16], index: 15, kind: input, shape index: {}]
  %s16 = inlined_call_operand.hbm [shape: f32[2,8], index: 16, kind: input, shape index: {}]
  %s17 = inlined_call_operand.vmem [shape: f32[32,2], index: 17, kind: input, shape index: {}]
  %s18 = inlined_call_operand.vmem [shape: f32[16,2], index: 18, kind: input, shape index: {}]
  %s19 = inlined_call_operand.vmem [shape: f32[16,2], index: 19, kind: input, shape index: {}]
  %s20 = inlined_call_operand.vmem [shape: f32[8,2], index: 20, kind: input, shape index: {}]
  %s21 = inlined_call_operand.vmem [shape: f32[32,512], index: 21, kind: output, shape index: {0}]
  %s22 = inlined_call_operand.vmem [shape: f32[8,128], index: 22, kind: output, shape index: {1}]
  %23 = xla_tuple %s21, %s22
  %s24 = sld [smem:[#allocation0]]
  $region166: #{encoder_forward.1} parent=0
    _
  %s26 = ssub.s32 1, %s24
  %s27 = scalar_select 0, %s26, %s24
  $region1: #{encoder_forward.1} parent=0
    #allocation2 [shape = 'u8[393216]{0}', space=vmem, size = 0x60000, scoped, tag = 'input window, operand 1, single buffered']
    #allocation3 [shape = 's32[1]{0}', space=sflag, size = 0x4, scoped, tag = 'scoped memory for encoder_forward.1']
    #allocation4 [shape = 'u8[1572864]{0}', space=vmem, size = 0x180000, scoped, tag = 'input window, operand 2, single buffered']
    #allocation5 [shape = 's32[1]{0}', space=sflag, size = 0x4, scoped, tag = 'scoped memory for encoder_forward.1']
    #allocation6 [shape = 'u8[786432]{0}', space=vmem, size = 0xc0000, scoped, tag = 'input window, operand 3, single buffered']
    #allocation7 [shape = 'u8[393216]{0}', space=vmem, size = 0x60000, scoped, tag = 'input window, operand 4, single buffered']
    #allocation8 [shape = 's32[1]{0}', space=sflag, size = 0x4, scoped, tag = 'scoped memory for encoder_forward.1']
    #allocation9 [shape = 'u8[49152]{0}', space=vmem, size = 0xc000, scoped, tag = 'input window, operand 5, single buffered']
    #allocation10 [shape = 'u8[24576]{0}', space=vmem, size = 0x6000, scoped, tag = 'input window, operand 6, single buffered']
    #allocation11 [shape = 's32[1]{0}', space=sflag, size = 0x4, scoped, tag = 'scoped memory for encoder_forward.1']
    #allocation12 [shape = 'u8[24576]{0}', space=vmem, size = 0x6000, scoped, tag = 'input window, operand 7, single buffered']
    #allocation13 [shape = 'u8[12288]{0}', space=vmem, size = 0x3000, scoped, tag = 'input window, operand 8, single buffered']
    #allocation14 [shape = 's32[1]{0}', space=sflag, size = 0x4, scoped, tag = 'scoped memory for encoder_forward.1']
    #allocation15 [shape = 'u8[16384]{0}', space=vmem, size = 0x4000, scoped, tag = 'input window, operand 9, single buffered']
    #allocation16 [shape = 'u8[8192]{0}', space=vmem, size = 0x2000, scoped, tag = 'input window, operand 10, single buffered']
    #allocation17 [shape = 's32[1]{0}', space=sflag, size = 0x4, scoped, tag = 'scoped memory for encoder_forward.1']
    #allocation18 [shape = 'u8[8192]{0}', space=vmem, size = 0x2000, scoped, tag = 'input window, operand 11, single buffered']
    #allocation19 [shape = 'u8[4096]{0}', space=vmem, size = 0x1000, scoped, tag = 'input window, operand 12, single buffered']
    #allocation20 [shape = 's32[1]{0}', space=sflag, size = 0x4, scoped, tag = 'scoped memory for encoder_forward.1']
    #allocation21 [shape = 'u8[1024]{0}', space=vmem, size = 0x400, scoped, tag = 'input window, operand 13, single buffered']
    #allocation22 [shape = 'u8[1024]{0}', space=vmem, size = 0x400, scoped, tag = 'input window, operand 14, single buffered']
    #allocation23 [shape = 's32[1]{0}', space=sflag, size = 0x4, scoped, tag = 'scoped memory for encoder_forward.1']
    #allocation24 [shape = 'u8[1024]{0}', space=vmem, size = 0x400, scoped, tag = 'input window, operand 15, single buffered']
    #allocation25 [shape = 'u8[1024]{0}', space=vmem, size = 0x400, scoped, tag = 'input window, operand 16, single buffered']
    #allocation26 [shape = 's32[1]{0}', space=sflag, size = 0x4, scoped, tag = 'scoped memory for encoder_forward.1']
    %28 = vsyncpa [#allocation3], 0
    %29 = vsyncpa [#allocation5], 0
    %30 = vsyncpa [#allocation8], 0
    %31 = vsyncpa [#allocation11], 0
    %32 = vsyncpa [#allocation14], 0
    %33 = vsyncpa [#allocation17], 0
    %34 = vsyncpa [#allocation20], 0
    %35 = vsyncpa [#allocation23], 0
    %36 = vsyncpa [#allocation26], 0
    // Predicated region
    $region2: #{encoder_forward.1} parent=1 // pred_check
      _
    $region3: #{encoder_forward.1} parent=1 // pred_check_branch
      %38 = sbr.rel (0) target = $region5
    $region4: #{encoder_forward.1} parent=1 // pred_region
      _
    $region5: #{encoder_forward.1} parent=1 // pred_fallthru
      _
    // Predicated region
    $region6: #{encoder_forward.1} parent=1 // pred_check
      _
    $region7: #{encoder_forward.1} parent=1 // pred_check_branch
      %40 = sbr.rel (0) target = $region9
    $region8: #{encoder_forward.1} parent=1 // pred_region
      %s42 = ssub.s32 12288, 12288
      %43 = vsyncadd [#allocation3], %s42
      %s44 = sshll.u32 [#allocation2], 4
      %s45 = int_to_ptr.vmem [resolvable:$true] %s44
      %50 = dma.hbm_to_vmem [thread:$0]  %s1, 12288, %s45, [#allocation3], 1536, 1536, 96
    $region9: #{encoder_forward.1} parent=1 // pred_fallthru
      _
    // Predicated region
    $region10: #{encoder_forward.1} parent=1 // pred_check
      _
    $region11: #{encoder_forward.1} parent=1 // pred_check_branch
      %52 = sbr.rel (0) target = $region13
    $region12: #{encoder_forward.1} parent=1 // pred_region
      %s54 = ssub.s32 49152, 49152
      %55 = vsyncadd [#allocation5], %s54
      %s56 = sshll.u32 [#allocation4], 4
      %s57 = int_to_ptr.vmem [resolvable:$true] %s56
      %62 = dma.hbm_to_vmem [thread:$0]  %s2, 49152, %s57, [#allocation5], 768, 768, 48
    $region13: #{encoder_forward.1} parent=1 // pred_fallthru
      _
    // Predicated region
    $region14: #{encoder_forward.1} parent=1 // pred_check
      _
    $region15: #{encoder_forward.1} parent=1 // pred_check_branch
      %64 = sbr.rel (0) target = $region17
    $region16: #{encoder_forward.1} parent=1 // pred_region
      %s66 = ssub.s32 24576, 24576
      %67 = vsyncadd [#allocation5], %s66
      %s68 = sshll.u32 [#allocation6], 4
      %s69 = int_to_ptr.vmem [resolvable:$true] %s68
      %74 = dma.hbm_to_vmem [thread:$0]  %s3, 24576, %s69, [#allocation5], 768, 768, 48
    $region17: #{encoder_forward.1} parent=1 // pred_fallthru
      _
    // Predicated region
    $region18: #{encoder_forward.1} parent=1 // pred_check
      _
    $region19: #{encoder_forward.1} parent=1 // pred_check_branch
      %76 = sbr.rel (0) target = $region21
    $region20: #{encoder_forward.1} parent=1 // pred_region
      %s78 = ssub.s32 12288, 12288
      %79 = vsyncadd [#allocation8], %s78
      %s80 = sshll.u32 [#allocation7], 4
      %s81 = int_to_ptr.vmem [resolvable:$true] %s80
      %86 = dma.hbm_to_vmem [thread:$0]  %s4, 12288, %s81, [#allocation8], 384, 384, 24
    $region21: #{encoder_forward.1} parent=1 // pred_fallthru
      _
    // Predicated region
    $region22: #{encoder_forward.1} parent=1 // pred_check
      _
    $region23: #{encoder_forward.1} parent=1 // pred_check_branch
      %88 = sbr.rel (0) target = $region25
    $region24: #{encoder_forward.1} parent=1 // pred_region
      %s90 = ssub.s32 1536, 1536
      %91 = vsyncadd [#allocation8], %s90
      %s92 = sshll.u32 [#allocation9], 4
      %s93 = int_to_ptr.vmem [resolvable:$true] %s92
      %98 = dma.hbm_to_vmem [thread:$0]  %s5, 1536, %s93, [#allocation8], 128, 128, 8
    $region25: #{encoder_forward.1} parent=1 // pred_fallthru
      _
    // Predicated region
    $region26: #{encoder_forward.1} parent=1 // pred_check
      _
    $region27: #{encoder_forward.1} parent=1 // pred_check_branch
      %100 = sbr.rel (0) target = $region29
    $region28: #{encoder_forward.1} parent=1 // pred_region
      %s102 = ssub.s32 768, 768
      %103 = vsyncadd [#allocation11], %s102
      %s104 = sshll.u32 [#allocation10], 4
      %s105 = int_to_ptr.vmem [resolvable:$true] %s104
      %110 = dma.hbm_to_vmem [thread:$0]  %s6, 768, %s105, [#allocation11], 128, 128, 8
    $region29: #{encoder_forward.1} parent=1 // pred_fallthru
      _
    // Predicated region
    $region30: #{encoder_forward.1} parent=1 // pred_check
      _
    $region31: #{encoder_forward.1} parent=1 // pred_check_branch
      %112 = sbr.rel (0) target = $region33
    $region32: #{encoder_forward.1} parent=1 // pred_region
      %s114 = ssub.s32 768, 768
      %115 = vsyncadd [#allocation11], %s114
      %s116 = sshll.u32 [#allocation12], 4
      %s117 = int_to_ptr.vmem [resolvable:$true] %s116
      %122 = dma.hbm_to_vmem [thread:$0]  %s7, 768, %s117, [#allocation11], 128, 128, 8
    $region33: #{encoder_forward.1} parent=1 // pred_fallthru
      _
    // Predicated region
    $region34: #{encoder_forward.1} parent=1 // pred_check
      _
    $region35: #{encoder_forward.1} parent=1 // pred_check_branch
      %124 = sbr.rel (0) target = $region37
    $region36: #{encoder_forward.1} parent=1 // pred_region
      %s126 = ssub.s32 384, 384
      %127 = vsyncadd [#allocation14], %s126
      %s128 = sshll.u32 [#allocation13], 4
      %s129 = int_to_ptr.vmem [resolvable:$true] %s128
      %134 = dma.hbm_to_vmem [thread:$0]  %s8, 384, %s129, [#allocation14], 128, 128, 8
    $region37: #{encoder_forward.1} parent=1 // pred_fallthru
      _
    // Predicated region
    $region38: #{encoder_forward.1} parent=1 // pred_check
      _
    $region39: #{encoder_forward.1} parent=1 // pred_check_branch
      %136 = sbr.rel (0) target = $region41
    $region40: #{encoder_forward.1} parent=1 // pred_region
      %s138 = ssub.s32 512, 512
      %139 = vsyncadd [#allocation14], %s138
      %s141 = sshll.u32 [#allocation15], 4
      %s142 = int_to_ptr.vmem [resolvable:$true] %s141
      %144 = dma.hbm_to_vmem [thread:$0]  %s9, 512, %s142, [#allocation14]
    $region41: #{encoder_forward.1} parent=1 // pred_fallthru
      _
    // Predicated region
    $region42: #{encoder_forward.1} parent=1 // pred_check
      _
    $region43: #{encoder_forward.1} parent=1 // pred_check_branch
      %146 = sbr.rel (0) target = $region45
    $region44: #{encoder_forward.1} parent=1 // pred_region
      %s148 = ssub.s32 256, 256
      %149 = vsyncadd [#allocation17], %s148
      %s151 = sshll.u32 [#allocation16], 4
      %s152 = int_to_ptr.vmem [resolvable:$true] %s151
      %154 = dma.hbm_to_vmem [thread:$0]  %s10, 256, %s152, [#allocation17]
    $region45: #{encoder_forward.1} parent=1 // pred_fallthru
      _
    // Predicated region
    $region46: #{encoder_forward.1} parent=1 // pred_check
      _
    $region47: #{encoder_forward.1} parent=1 // pred_check_branch
      %156 = sbr.rel (0) target = $region49
    $region48: #{encoder_forward.1} parent=1 // pred_region
      %s158 = ssub.s32 256, 256
      %159 = vsyncadd [#allocation17], %s158
      %s161 = sshll.u32 [#allocation18], 4
      %s162 = int_to_ptr.vmem [resolvable:$true] %s161
      %164 = dma.hbm_to_vmem [thread:$0]  %s11, 256, %s162, [#allocation17]
    $region49: #{encoder_forward.1} parent=1 // pred_fallthru
      _
    // Predicated region
    $region50: #{encoder_forward.1} parent=1 // pred_check
      _
    $region51: #{encoder_forward.1} parent=1 // pred_check_branch
      %166 = sbr.rel (0) target = $region53
    $region52: #{encoder_forward.1} parent=1 // pred_region
      %s168 = ssub.s32 128, 128
      %169 = vsyncadd [#allocation20], %s168
      %s171 = sshll.u32 [#allocation19], 4
      %s172 = int_to_ptr.vmem [resolvable:$true] %s171
      %174 = dma.hbm_to_vmem [thread:$0]  %s12, 128, %s172, [#allocation20]
    $region53: #{encoder_forward.1} parent=1 // pred_fallthru
      _
    // Predicated region
    $region54: #{encoder_forward.1} parent=1 // pred_check
      _
    $region55: #{encoder_forward.1} parent=1 // pred_check_branch
      %176 = sbr.rel (0) target = $region57
    $region56: #{encoder_forward.1} parent=1 // pred_region
      %s178 = ssub.s32 32, 32
      %179 = vsyncadd [#allocation20], %s178
      %s181 = sshll.u32 [#allocation21], 4
      %s182 = int_to_ptr.vmem [resolvable:$true] %s181
      %184 = dma.hbm_to_vmem [thread:$0]  %s13, 32, %s182, [#allocation20]
    $region57: #{encoder_forward.1} parent=1 // pred_fallthru
      _
    // Predicated region
    $region58: #{encoder_forward.1} parent=1 // pred_check
      _
    $region59: #{encoder_forward.1} parent=1 // pred_check_branch
      %186 = sbr.rel (0) target = $region61
    $region60: #{encoder_forward.1} parent=1 // pred_region
      %s188 = ssub.s32 32, 32
      %189 = vsyncadd [#allocation23], %s188
      %s191 = sshll.u32 [#allocation22], 4
      %s192 = int_to_ptr.vmem [resolvable:$true] %s191
      %194 = dma.hbm_to_vmem [thread:$0]  %s14, 32, %s192, [#allocation23]
    $region61: #{encoder_forward.1} parent=1 // pred_fallthru
      _
    // Predicated region
    $region62: #{encoder_forward.1} parent=1 // pred_check
      _
    $region63: #{encoder_forward.1} parent=1 // pred_check_branch
      %196 = sbr.rel (0) target = $region65
    $region64: #{encoder_forward.1} parent=1 // pred_region
      %s198 = ssub.s32 32, 32
      %199 = vsyncadd [#allocation23], %s198
      %s201 = sshll.u32 [#allocation24], 4
      %s202 = int_to_ptr.vmem [resolvable:$true] %s201
      %204 = dma.hbm_to_vmem [thread:$0]  %s15, 32, %s202, [#allocation23]
    $region65: #{encoder_forward.1} parent=1 // pred_fallthru
      _
    // Predicated region
    $region66: #{encoder_forward.1} parent=1 // pred_check
      _
    $region67: #{encoder_forward.1} parent=1 // pred_check_branch
      %206 = sbr.rel (0) target = $region69
    $region68: #{encoder_forward.1} parent=1 // pred_region
      %s208 = ssub.s32 32, 32
      %209 = vsyncadd [#allocation26], %s208
      %s211 = sshll.u32 [#allocation25], 4
      %s212 = int_to_ptr.vmem [resolvable:$true] %s211
      %214 = dma.hbm_to_vmem [thread:$0]  %s16, 32, %s212, [#allocation26]
    $region69: #{encoder_forward.1} parent=1 // pred_fallthru
      _
    // Predicated region
    $region70: #{encoder_forward.1} parent=1 // pred_check
      _
    $region71: #{encoder_forward.1} parent=1 // pred_check_branch
      %216 = sbr.rel (0) target = $region73
    $region72: #{encoder_forward.1} parent=1 // pred_region
      _
    $region73: #{encoder_forward.1} parent=1 // pred_fallthru
      _
    // Predicated region
    $region74: #{encoder_forward.1} parent=1 // pred_check
      _
    $region75: #{encoder_forward.1} parent=1 // pred_check_branch
      %218 = sbr.rel (0) target = $region77
    $region76: #{encoder_forward.1} parent=1 // pred_region
      _
    $region77: #{encoder_forward.1} parent=1 // pred_fallthru
      _
    // Predicated region
    $region78: #{encoder_forward.1} parent=1 // pred_check
      _
    $region79: #{encoder_forward.1} parent=1 // pred_check_branch
      %220 = sbr.rel (0) target = $region81
    $region80: #{encoder_forward.1} parent=1 // pred_region
      _
    $region81: #{encoder_forward.1} parent=1 // pred_fallthru
      _
    // Predicated region
    $region82: #{encoder_forward.1} parent=1 // pred_check
      _
    $region83: #{encoder_forward.1} parent=1 // pred_check_branch
      %222 = sbr.rel (0) target = $region85
    $region84: #{encoder_forward.1} parent=1 // pred_region
      _
    $region85: #{encoder_forward.1} parent=1 // pred_fallthru
      _
    // Predicated region
    $region86: #{encoder_forward.1} parent=1 // pred_check
      _
    $region87: #{encoder_forward.1} parent=1 // pred_check_branch
      %224 = sbr.rel (0) target = $region89
    $region88: #{encoder_forward.1} parent=1 // pred_region
      %225 = dma.done [#allocation3], 12288
    $region89: #{encoder_forward.1} parent=1 // pred_fallthru
      _
    // Predicated region
    $region90: #{encoder_forward.1} parent=1 // pred_check
      _
    $region91: #{encoder_forward.1} parent=1 // pred_check_branch
      %227 = sbr.rel (0) target = $region93
    $region92: #{encoder_forward.1} parent=1 // pred_region
      %228 = dma.done [#allocation5], 49152
    $region93: #{encoder_forward.1} parent=1 // pred_fallthru
      _
    // Predicated region
    $region94: #{encoder_forward.1} parent=1 // pred_check
      _
    $region95: #{encoder_forward.1} parent=1 // pred_check_branch
      %230 = sbr.rel (0) target = $region97
    $region96: #{encoder_forward.1} parent=1 // pred_region
      %231 = dma.done [#allocation5], 24576
    $region97: #{encoder_forward.1} parent=1 // pred_fallthru
      _
    // Predicated region
    $region98: #{encoder_forward.1} parent=1 // pred_check
      _
    $region99: #{encoder_forward.1} parent=1 // pred_check_branch
      %233 = sbr.rel (0) target = $region101
    $region100: #{encoder_forward.1} parent=1 // pred_region
      %234 = dma.done [#allocation8], 12288
    $region101: #{encoder_forward.1} parent=1 // pred_fallthru
      _
    // Predicated region
    $region102: #{encoder_forward.1} parent=1 // pred_check
      _
    $region103: #{encoder_forward.1} parent=1 // pred_check_branch
      %236 = sbr.rel (0) target = $region105
    $region104: #{encoder_forward.1} parent=1 // pred_region
      %237 = dma.done [#allocation8], 1536
    $region105: #{encoder_forward.1} parent=1 // pred_fallthru
      _
    // Predicated region
    $region106: #{encoder_forward.1} parent=1 // pred_check
      _
    $region107: #{encoder_forward.1} parent=1 // pred_check_branch
      %239 = sbr.rel (0) target = $region109
    $region108: #{encoder_forward.1} parent=1 // pred_region
      %240 = dma.done [#allocation11], 768
    $region109: #{encoder_forward.1} parent=1 // pred_fallthru
      _
    // Predicated region
    $region110: #{encoder_forward.1} parent=1 // pred_check
      _
    $region111: #{encoder_forward.1} parent=1 // pred_check_branch
      %242 = sbr.rel (0) target = $region113
    $region112: #{encoder_forward.1} parent=1 // pred_region
      %243 = dma.done [#allocation11], 768
    $region113: #{encoder_forward.1} parent=1 // pred_fallthru
      _
    // Predicated region
    $region114: #{encoder_forward.1} parent=1 // pred_check
      _
    $region115: #{encoder_forward.1} parent=1 // pred_check_branch
      %245 = sbr.rel (0) target = $region117
    $region116: #{encoder_forward.1} parent=1 // pred_region
      %246 = dma.done [#allocation14], 384
    $region117: #{encoder_forward.1} parent=1 // pred_fallthru
      _
    // Predicated region
    $region118: #{encoder_forward.1} parent=1 // pred_check
      _
    $region119: #{encoder_forward.1} parent=1 // pred_check_branch
      %248 = sbr.rel (0) target = $region121
    $region120: #{encoder_forward.1} parent=1 // pred_region
      %249 = dma.done [#allocation14], 512
    $region121: #{encoder_forward.1} parent=1 // pred_fallthru
      _
    // Predicated region
    $region122: #{encoder_forward.1} parent=1 // pred_check
      _
    $region123: #{encoder_forward.1} parent=1 // pred_check_branch
      %251 = sbr.rel (0) target = $region125
    $region124: #{encoder_forward.1} parent=1 // pred_region
      %252 = dma.done [#allocation17], 256
    $region125: #{encoder_forward.1} parent=1 // pred_fallthru
      _
    // Predicated region
    $region126: #{encoder_forward.1} parent=1 // pred_check
      _
    $region127: #{encoder_forward.1} parent=1 // pred_check_branch
      %254 = sbr.rel (0) target = $region129
    $region128: #{encoder_forward.1} parent=1 // pred_region
      %255 = dma.done [#allocation17], 256
    $region129: #{encoder_forward.1} parent=1 // pred_fallthru
      _
    // Predicated region
    $region130: #{encoder_forward.1} parent=1 // pred_check
      _
    $region131: #{encoder_forward.1} parent=1 // pred_check_branch
      %257 = sbr.rel (0) target = $region133
    $region132: #{encoder_forward.1} parent=1 // pred_region
      %258 = dma.done [#allocation20], 128
    $region133: #{encoder_forward.1} parent=1 // pred_fallthru
      _
    // Predicated region
    $region134: #{encoder_forward.1} parent=1 // pred_check
      _
    $region135: #{encoder_forward.1} parent=1 // pred_check_branch
      %260 = sbr.rel (0) target = $region137
    $region136: #{encoder_forward.1} parent=1 // pred_region
      %261 = dma.done [#allocation20], 32
    $region137: #{encoder_forward.1} parent=1 // pred_fallthru
      _
    // Predicated region
    $region138: #{encoder_forward.1} parent=1 // pred_check
      _
    $region139: #{encoder_forward.1} parent=1 // pred_check_branch
      %263 = sbr.rel (0) target = $region141
    $region140: #{encoder_forward.1} parent=1 // pred_region
      %264 = dma.done [#allocation23], 32
    $region141: #{encoder_forward.1} parent=1 // pred_fallthru
      _
    // Predicated region
    $region142: #{encoder_forward.1} parent=1 // pred_check
      _
    $region143: #{encoder_forward.1} parent=1 // pred_check_branch
      %266 = sbr.rel (0) target = $region145
    $region144: #{encoder_forward.1} parent=1 // pred_region
      %267 = dma.done [#allocation23], 32
    $region145: #{encoder_forward.1} parent=1 // pred_fallthru
      _
    // Predicated region
    $region146: #{encoder_forward.1} parent=1 // pred_check
      _
    $region147: #{encoder_forward.1} parent=1 // pred_check_branch
      %269 = sbr.rel (0) target = $region149
    $region148: #{encoder_forward.1} parent=1 // pred_region
      %270 = dma.done [#allocation26], 32
    $region149: #{encoder_forward.1} parent=1 // pred_fallthru
      _
    %v271 = vld [vmem:[%s0] sm:$0xff]
    %v272 = vld [vmem:[%s0 + $0x8] sm:$0xff]
    %v273 = vld [vmem:[%s0 + $0x10] sm:$0xff]
    %v274 = vld [vmem:[%s0 + $0x18] sm:$0xff]
    %v275 = vld [vmem:[#allocation15] sm:$0xff]
    %v276 = vld [vmem:[#allocation15 + $0x8] sm:$0xff]
    %v277 = vld [vmem:[#allocation15 + $0x10] sm:$0xff]
    %v278 = vld [vmem:[#allocation15 + $0x18] sm:$0xff]
    %v279 = vld [vmem:[#allocation2] sm:$0xff]
    %v280 = vld [vmem:[#allocation2 + $0x8] sm:$0xff]
    %v281 = vld [vmem:[#allocation2 + $0x10] sm:$0xff]
    %v282 = vld [vmem:[#allocation2 + $0x18] sm:$0xff]
    %v283 = vld [vmem:[#allocation2 + $0x60] sm:$0xff]
    %v284 = vld [vmem:[#allocation2 + $0x68] sm:$0xff]
    %v285 = vld [vmem:[#allocation2 + $0x70] sm:$0xff]
    %v286 = vld [vmem:[#allocation2 + $0x78] sm:$0xff]
    %v287 = vld [vmem:[#allocation2 + $0xc0] sm:$0xff]
    %v288 = vld [vmem:[#allocation2 + $0xc8] sm:$0xff]
    %v289 = vld [vmem:[#allocation2 + $0xd0] sm:$0xff]
    %v290 = vld [vmem:[#allocation2 + $0xd8] sm:$0xff]
    %v291 = vld [vmem:[#allocation2 + $0x120] sm:$0xff]
    %v292 = vld [vmem:[#allocation2 + $0x128] sm:$0xff]
    %v293 = vld [vmem:[#allocation2 + $0x130] sm:$0xff]
    %v294 = vld [vmem:[#allocation2 + $0x138] sm:$0xff]
    %v295 = vld [vmem:[#allocation2 + $0x180] sm:$0xff]
    %v296 = vld [vmem:[#allocation2 + $0x188] sm:$0xff]
    %v297 = vld [vmem:[#allocation2 + $0x190] sm:$0xff]
    %v298 = vld [vmem:[#allocation2 + $0x198] sm:$0xff]
    %v299 = vld [vmem:[#allocation2 + $0x1e0] sm:$0xff]
    %v300 = vld [vmem:[#allocation2 + $0x1e8] sm:$0xff]
    %v301 = vld [vmem:[#allocation2 + $0x1f0] sm:$0xff]
    %v302 = vld [vmem:[#allocation2 + $0x1f8] sm:$0xff]
    %v303 = vld [vmem:[#allocation2 + $0x240] sm:$0xff]
    %v304 = vld [vmem:[#allocation2 + $0x248] sm:$0xff]
    %v305 = vld [vmem:[#allocation2 + $0x250] sm:$0xff]
    %v306 = vld [vmem:[#allocation2 + $0x258] sm:$0xff]
    %v307 = vld [vmem:[#allocation2 + $0x2a0] sm:$0xff]
    %v308 = vld [vmem:[#allocation2 + $0x2a8] sm:$0xff]
    %v309 = vld [vmem:[#allocation2 + $0x2b0] sm:$0xff]
    %v310 = vld [vmem:[#allocation2 + $0x2b8] sm:$0xff]
    %vm311 = vcmask 523264
    %v313 = vsel %vm311, %v271, 0
    %v316 = vsel %vm311, %v272, 0
    %v319 = vsel %vm311, %v273, 0
    %v322 = vsel %vm311, %v274, 0
    %324 = vmatprep.subr.mxu0 %v280
    %325 = vmatpush1.msra.mxu0 %v279
    %326 = vmatprep.subr.mxu0 %v284
    %327 = vmatpush1.msra.mxu0 %v283
    %328 = vmatprep.subr.mxu0 %v288
    %329 = vmatpush1.msra.mxu0 %v287
    %330 = vmatprep.subr.mxu0 %v292
    %331 = vmatpush1.msra.mxu0 %v291
    %332 = vmatprep.subr.mxu0 %v296
    %333 = vmatpush1.msra.mxu0 %v295
    %334 = vmatprep.subr.mxu0 %v300
    %335 = vmatpush1.msra.mxu0 %v299
    %336 = vmatprep.subr.mxu0 %v304
    %337 = vmatpush1.msra.mxu0 %v303
    %338 = vmatprep.subr.mxu0 %v308
    %339 = vmatpush1.msra.mxu0 %v307
    %340 = vmatprep.subr.mxu0 0.0
    %341 = vmatpush1.msra.mxu0 0.0
    %342 = vmatprep.subr.mxu0 0.0
    %343 = vmatpush1.msra.mxu0 0.0
    %344 = vmatprep.subr.mxu0 0.0
    %345 = vmatpush1.msra.mxu0 0.0
    %346 = vmatprep.subr.mxu0 0.0
    %347 = vmatpush1.msra.mxu0 0.0
    %348 = vmatprep.subr.mxu0 0.0
    %349 = vmatpush1.msra.mxu0 0.0
    %350 = vmatprep.subr.mxu0 0.0
    %351 = vmatpush1.msra.mxu0 0.0
    %352 = vmatprep.subr.mxu0 0.0
    %353 = vmatpush1.msra.mxu0 0.0
    %354 = vmatprep.subr.mxu0 0.0
    %355 = vmatpush1.msra.mxu0 0.0
    %356 = vmatprep.subr.mxu0 0.0
    %357 = vmatpush1.msra.mxu0 0.0
    %358 = vmatprep.subr.mxu0 0.0
    %359 = vmatpush1.msra.mxu0 0.0
    %360 = vmatprep.subr.mxu0 0.0
    %361 = vmatpush1.msra.mxu0 0.0
    %362 = vmatprep.subr.mxu0 0.0
    %363 = vmatpush1.msra.mxu0 0.0
    %364 = vmatprep.subr.mxu0 0.0
    %365 = vmatpush1.msra.mxu0 0.0
    %366 = vmatprep.subr.mxu0 0.0
    %367 = vmatpush1.msra.mxu0 0.0
    %368 = vmatprep.subr.mxu0 0.0
    %369 = vmatpush1.msra.mxu0 0.0
    %370 = vmatprep.subr.mxu0 0.0
    %371 = vmatpush1.msra.mxu0 0.0
    %372 = vmatprep.subr.mxu0 0.0
    %373 = vmatpush1.msra.mxu0 0.0
    %374 = vmatprep.subr.mxu0 0.0
    %375 = vmatpush1.msra.mxu0 0.0
    %376 = vmatprep.subr.mxu0 0.0
    %377 = vmatpush1.msra.mxu0 0.0
    %378 = vmatprep.subr.mxu0 0.0
    %379 = vmatpush1.msra.mxu0 0.0
    %380 = vmatprep.subr.mxu0 0.0
    %381 = vmatpush1.msra.mxu0 0.0
    %382 = vmatprep.subr.mxu0 0.0
    %383 = vmatpush1.msra.mxu0 0.0
    %384 = vmatprep.subr.mxu0 0.0
    %385 = vmatpush1.msra.mxu0 0.0
    %386 = vmatprep.subr.mxu0 0.0
    %387 = vmatpush1.msra.mxu0 0.0
    %388 = vmatprep.mubr.f32.mxu0 0.0
    %389 = vmatmul.mubr.f32.gmra.mrb[0].mxu0 %v313
    %v390 = vpop.f32.mrb[0].mxu0
    %v391 = vadd.f32 0.0, %v390
    %v392 = vpop.f32.mrb[0].mxu0
    %v393 = vadd.f32 0.0, %v392
    %394 = vmatprep.mubr.f32.mxu0 0.0
    %395 = vmatmul.mubr.f32.gmra.mrb[0].mxu0 %v316
    %v396 = vpop.f32.mrb[0].mxu0
    %v397 = vadd.f32 0.0, %v396
    %v398 = vpop.f32.mrb[0].mxu0
    %v399 = vadd.f32 0.0, %v398
    %400 = vmatprep.mubr.f32.mxu0 0.0
    %401 = vmatmul.mubr.f32.gmra.mrb[0].mxu0 %v319
    %v402 = vpop.f32.mrb[0].mxu0
    %v403 = vadd.f32 0.0, %v402
    %v404 = vpop.f32.mrb[0].mxu0
    %v405 = vadd.f32 0.0, %v404
    %406 = vmatprep.mubr.f32.mxu0 0.0
    %407 = vmatmul.mubr.f32.gmra.mrb[0].mxu0 %v322
    %v408 = vpop.f32.mrb[0].mxu0
    %v409 = vadd.f32 0.0, %v408
    %v410 = vpop.f32.mrb[0].mxu0
    %v411 = vadd.f32 0.0, %v410
    %412 = vdwg.mxu0
    %413 = vmatprep.subr.mxu0 %v282
    %414 = vmatpush1.msra.mxu0 %v281
    %415 = vmatprep.subr.mxu0 %v286
    %416 = vmatpush1.msra.mxu0 %v285
    %417 = vmatprep.subr.mxu0 %v290
    %418 = vmatpush1.msra.mxu0 %v289
    %419 = vmatprep.subr.mxu0 %v294
    %420 = vmatpush1.msra.mxu0 %v293
    %421 = vmatprep.subr.mxu0 %v298
    %422 = vmatpush1.msra.mxu0 %v297
    %423 = vmatprep.subr.mxu0 %v302
    %424 = vmatpush1.msra.mxu0 %v301
    %425 = vmatprep.subr.mxu0 %v306
    %426 = vmatpush1.msra.mxu0 %v305
    %427 = vmatprep.subr.mxu0 %v310
    %428 = vmatpush1.msra.mxu0 %v309
    %429 = vmatprep.subr.mxu0 0.0
    %430 = vmatpush1.msra.mxu0 0.0
    %431 = vmatprep.subr.mxu0 0.0
    %432 = vmatpush1.msra.mxu0 0.0
    %433 = vmatprep.subr.mxu0 0.0
    %434 = vmatpush1.msra.mxu0 0.0
    %435 = vmatprep.subr.mxu0 0.0
    %436 = vmatpush1.msra.mxu0 0.0
    %437 = vmatprep.subr.mxu0 0.0
    %438 = vmatpush1.msra.mxu0 0.0
    %439 = vmatprep.subr.mxu0 0.0
    %440 = vmatpush1.msra.mxu0 0.0
    %441 = vmatprep.subr.mxu0 0.0
    %442 = vmatpush1.msra.mxu0 0.0
    %443 = vmatprep.subr.mxu0 0.0
    %444 = vmatpush1.msra.mxu0 0.0
    %445 = vmatprep.subr.mxu0 0.0
    %446 = vmatpush1.msra.mxu0 0.0
    %447 = vmatprep.subr.mxu0 0.0
    %448 = vmatpush1.msra.mxu0 0.0
    %449 = vmatprep.subr.mxu0 0.0
    %450 = vmatpush1.msra.mxu0 0.0
    %451 = vmatprep.subr.mxu0 0.0
    %452 = vmatpush1.msra.mxu0 0.0
    %453 = vmatprep.subr.mxu0 0.0
    %454 = vmatpush1.msra.mxu0 0.0
    %455 = vmatprep.subr.mxu0 0.0
    %456 = vmatpush1.msra.mxu0 0.0
    %457 = vmatprep.subr.mxu0 0.0
    %458 = vmatpush1.msra.mxu0 0.0
    %459 = vmatprep.subr.mxu0 0.0
    %460 = vmatpush1.msra.mxu0 0.0
    %461 = vmatprep.subr.mxu0 0.0
    %462 = vmatpush1.msra.mxu0 0.0
    %463 = vmatprep.subr.mxu0 0.0
    %464 = vmatpush1.msra.mxu0 0.0
    %465 = vmatprep.subr.mxu0 0.0
    %466 = vmatpush1.msra.mxu0 0.0
    %467 = vmatprep.subr.mxu0 0.0
    %468 = vmatpush1.msra.mxu0 0.0
    %469 = vmatprep.subr.mxu0 0.0
    %470 = vmatpush1.msra.mxu0 0.0
    %471 = vmatprep.subr.mxu0 0.0
    %472 = vmatpush1.msra.mxu0 0.0
    %473 = vmatprep.subr.mxu0 0.0
    %474 = vmatpush1.msra.mxu0 0.0
    %475 = vmatprep.subr.mxu0 0.0
    %476 = vmatpush1.msra.mxu0 0.0
    %477 = vmatprep.mubr.f32.mxu0 0.0
    %478 = vmatmul.mubr.f32.gmra.mrb[0].mxu0 %v313
    %v479 = vpop.f32.mrb[0].mxu0
    %v480 = vadd.f32 0.0, %v479
    %v481 = vpop.f32.mrb[0].mxu0
    %v482 = vadd.f32 0.0, %v481
    %483 = vmatprep.mubr.f32.mxu0 0.0
    %484 = vmatmul.mubr.f32.gmra.mrb[0].mxu0 %v316
    %v485 = vpop.f32.mrb[0].mxu0
    %v486 = vadd.f32 0.0, %v485
    %v487 = vpop.f32.mrb[0].mxu0
    %v488 = vadd.f32 0.0, %v487
    %489 = vmatprep.mubr.f32.mxu0 0.0
    %490 = vmatmul.mubr.f32.gmra.mrb[0].mxu0 %v319
    %v491 = vpop.f32.mrb[0].mxu0
    %v492 = vadd.f32 0.0, %v491
    %v493 = vpop.f32.mrb[0].mxu0
    %v494 = vadd.f32 0.0, %v493
    %495 = vmatprep.mubr.f32.mxu0 0.0
    %496 = vmatmul.mubr.f32.gmra.mrb[0].mxu0 %v322
    %v497 = vpop.f32.mrb[0].mxu0
    %v498 = vadd.f32 0.0, %v497
    %v499 = vpop.f32.mrb[0].mxu0
    %v500 = vadd.f32 0.0, %v499
    %501 = vdwg.mxu0
    %v502 = vld [vmem:[#allocation9] sm:$0xff]
    %v503 = vld [vmem:[#allocation9 + $0x8] sm:$0xff]
    %v504 = vld [vmem:[#allocation9 + $0x10] sm:$0xff]
    %v505 = vld [vmem:[#allocation9 + $0x18] sm:$0xff]
    %v506 = vld [vmem:[#allocation2 + $0x20] sm:$0xff]
    %v507 = vld [vmem:[#allocation2 + $0x28] sm:$0xff]
    %v508 = vld [vmem:[#allocation2 + $0x30] sm:$0xff]
    %v509 = vld [vmem:[#allocation2 + $0x38] sm:$0xff]
    %v510 = vld [vmem:[#allocation2 + $0x80] sm:$0xff]
    %v511 = vld [vmem:[#allocation2 + $0x88] sm:$0xff]
    %v512 = vld [vmem:[#allocation2 + $0x90] sm:$0xff]
    %v513 = vld [vmem:[#allocation2 + $0x98] sm:$0xff]
    %v514 = vld [vmem:[#allocation2 + $0xe0] sm:$0xff]
    %v515 = vld [vmem:[#allocation2 + $0xe8] sm:$0xff]
    %v516 = vld [vmem:[#allocation2 + $0xf0] sm:$0xff]
    %v517 = vld [vmem:[#allocation2 + $0xf8] sm:$0xff]
    %v518 = vld [vmem:[#allocation2 + $0x140] sm:$0xff]
    %v519 = vld [vmem:[#allocation2 + $0x148] sm:$0xff]
    %v520 = vld [vmem:[#allocation2 + $0x150] sm:$0xff]
    %v521 = vld [vmem:[#allocation2 + $0x158] sm:$0xff]
    %v522 = vld [vmem:[#allocation2 + $0x1a0] sm:$0xff]
    %v523 = vld [vmem:[#allocation2 + $0x1a8] sm:$0xff]
    %v524 = vld [vmem:[#allocation2 + $0x1b0] sm:$0xff]
    %v525 = vld [vmem:[#allocation2 + $0x1b8] sm:$0xff]
    %v526 = vld [vmem:[#allocation2 + $0x200] sm:$0xff]
    %v527 = vld [vmem:[#allocation2 + $0x208] sm:$0xff]
    %v528 = vld [vmem:[#allocation2 + $0x210] sm:$0xff]
    %v529 = vld [vmem:[#allocation2 + $0x218] sm:$0xff]
    %v530 = vld [vmem:[#allocation2 + $0x260] sm:$0xff]
    %v531 = vld [vmem:[#allocation2 + $0x268] sm:$0xff]
    %v532 = vld [vmem:[#allocation2 + $0x270] sm:$0xff]
    %v533 = vld [vmem:[#allocation2 + $0x278] sm:$0xff]
    %v534 = vld [vmem:[#allocation2 + $0x2c0] sm:$0xff]
    %v535 = vld [vmem:[#allocation2 + $0x2c8] sm:$0xff]
    %v536 = vld [vmem:[#allocation2 + $0x2d0] sm:$0xff]
    %v537 = vld [vmem:[#allocation2 + $0x2d8] sm:$0xff]
    %538 = vmatprep.subr.mxu0 %v507
    %539 = vmatpush1.msra.mxu0 %v506
    %540 = vmatprep.subr.mxu0 %v511
    %541 = vmatpush1.msra.mxu0 %v510
    %542 = vmatprep.subr.mxu0 %v515
    %543 = vmatpush1.msra.mxu0 %v514
    %544 = vmatprep.subr.mxu0 %v519
    %545 = vmatpush1.msra.mxu0 %v518
    %546 = vmatprep.subr.mxu0 %v523
    %547 = vmatpush1.msra.mxu0 %v522
    %548 = vmatprep.subr.mxu0 %v527
    %549 = vmatpush1.msra.mxu0 %v526
    %550 = vmatprep.subr.mxu0 %v531
    %551 = vmatpush1.msra.mxu0 %v530
    %552 = vmatprep.subr.mxu0 %v535
    %553 = vmatpush1.msra.mxu0 %v534
    %554 = vmatprep.subr.mxu0 0.0
    %555 = vmatpush1.msra.mxu0 0.0
    %556 = vmatprep.subr.mxu0 0.0
    %557 = vmatpush1.msra.mxu0 0.0
    %558 = vmatprep.subr.mxu0 0.0
    %559 = vmatpush1.msra.mxu0 0.0
    %560 = vmatprep.subr.mxu0 0.0
    %561 = vmatpush1.msra.mxu0 0.0
    %562 = vmatprep.subr.mxu0 0.0
    %563 = vmatpush1.msra.mxu0 0.0
    %564 = vmatprep.subr.mxu0 0.0
    %565 = vmatpush1.msra.mxu0 0.0
    %566 = vmatprep.subr.mxu0 0.0
    %567 = vmatpush1.msra.mxu0 0.0
    %568 = vmatprep.subr.mxu0 0.0
    %569 = vmatpush1.msra.mxu0 0.0
    %570 = vmatprep.subr.mxu0 0.0
    %571 = vmatpush1.msra.mxu0 0.0
    %572 = vmatprep.subr.mxu0 0.0
    %573 = vmatpush1.msra.mxu0 0.0
    %574 = vmatprep.subr.mxu0 0.0
    %575 = vmatpush1.msra.mxu0 0.0
    %576 = vmatprep.subr.mxu0 0.0
    %577 = vmatpush1.msra.mxu0 0.0
    %578 = vmatprep.subr.mxu0 0.0
    %579 = vmatpush1.msra.mxu0 0.0
    %580 = vmatprep.subr.mxu0 0.0
    %581 = vmatpush1.msra.mxu0 0.0
    %582 = vmatprep.subr.mxu0 0.0
    %583 = vmatpush1.msra.mxu0 0.0
    %584 = vmatprep.subr.mxu0 0.0
    %585 = vmatpush1.msra.mxu0 0.0
    %586 = vmatprep.subr.mxu0 0.0
    %587 = vmatpush1.msra.mxu0 0.0
    %588 = vmatprep.subr.mxu0 0.0
    %589 = vmatpush1.msra.mxu0 0.0
    %590 = vmatprep.subr.mxu0 0.0
    %591 = vmatpush1.msra.mxu0 0.0
    %592 = vmatprep.subr.mxu0 0.0
    %593 = vmatpush1.msra.mxu0 0.0
    %594 = vmatprep.subr.mxu0 0.0
    %595 = vmatpush1.msra.mxu0 0.0
    %596 = vmatprep.subr.mxu0 0.0
    %597 = vmatpush1.msra.mxu0 0.0
    %598 = vmatprep.subr.mxu0 0.0
    %599 = vmatpush1.msra.mxu0 0.0
    %600 = vmatprep.subr.mxu0 0.0
    %601 = vmatpush1.msra.mxu0 0.0
    %602 = vmatprep.mubr.f32.mxu0 0.0
    %603 = vmatmul.mubr.f32.gmra.mrb[0].mxu0 %v313
    %v604 = vpop.f32.mrb[0].mxu0
    %v605 = vadd.f32 0.0, %v604
    %v606 = vpop.f32.mrb[0].mxu0
    %v607 = vadd.f32 0.0, %v606
    %608 = vmatprep.mubr.f32.mxu0 0.0
    %609 = vmatmul.mubr.f32.gmra.mrb[0].mxu0 %v316
    %v610 = vpop.f32.mrb[0].mxu0
    %v611 = vadd.f32 0.0, %v610
    %v612 = vpop.f32.mrb[0].mxu0
    %v613 = vadd.f32 0.0, %v612
    %614 = vmatprep.mubr.f32.mxu0 0.0
    %615 = vmatmul.mubr.f32.gmra.mrb[0].mxu0 %v319
    %v616 = vpop.f32.mrb[0].mxu0
    %v617 = vadd.f32 0.0, %v616
    %v618 = vpop.f32.mrb[0].mxu0
    %v619 = vadd.f32 0.0, %v618
    %620 = vmatprep.mubr.f32.mxu0 0.0
    %621 = vmatmul.mubr.f32.gmra.mrb[0].mxu0 %v322
    %v622 = vpop.f32.mrb[0].mxu0
    %v623 = vadd.f32 0.0, %v622
    %v624 = vpop.f32.mrb[0].mxu0
    %v625 = vadd.f32 0.0, %v624
    %626 = vdwg.mxu0
    %627 = vmatprep.subr.mxu0 %v509
    %628 = vmatpush1.msra.mxu0 %v508
    %629 = vmatprep.subr.mxu0 %v513
    %630 = vmatpush1.msra.mxu0 %v512
    %631 = vmatprep.subr.mxu0 %v517
    %632 = vmatpush1.msra.mxu0 %v516
    %633 = vmatprep.subr.mxu0 %v521
    %634 = vmatpush1.msra.mxu0 %v520
    %635 = vmatprep.subr.mxu0 %v525
    %636 = vmatpush1.msra.mxu0 %v524
    %637 = vmatprep.subr.mxu0 %v529
    %638 = vmatpush1.msra.mxu0 %v528
    %639 = vmatprep.subr.mxu0 %v533
    %640 = vmatpush1.msra.mxu0 %v532
    %641 = vmatprep.subr.mxu0 %v537
    %642 = vmatpush1.msra.mxu0 %v536
    %643 = vmatprep.subr.mxu0 0.0
    %644 = vmatpush1.msra.mxu0 0.0
    %645 = vmatprep.subr.mxu0 0.0
    %646 = vmatpush1.msra.mxu0 0.0
    %647 = vmatprep.subr.mxu0 0.0
    %648 = vmatpush1.msra.mxu0 0.0
    %649 = vmatprep.subr.mxu0 0.0
    %650 = vmatpush1.msra.mxu0 0.0
    %651 = vmatprep.subr.mxu0 0.0
    %652 = vmatpush1.msra.mxu0 0.0
    %653 = vmatprep.subr.mxu0 0.0
    %654 = vmatpush1.msra.mxu0 0.0
    %655 = vmatprep.subr.mxu0 0.0
    %656 = vmatpush1.msra.mxu0 0.0
    %657 = vmatprep.subr.mxu0 0.0
    %658 = vmatpush1.msra.mxu0 0.0
    %659 = vmatprep.subr.mxu0 0.0
    %660 = vmatpush1.msra.mxu0 0.0
    %661 = vmatprep.subr.mxu0 0.0
    %662 = vmatpush1.msra.mxu0 0.0
    %663 = vmatprep.subr.mxu0 0.0
    %664 = vmatpush1.msra.mxu0 0.0
    %665 = vmatprep.subr.mxu0 0.0
    %666 = vmatpush1.msra.mxu0 0.0
    %667 = vmatprep.subr.mxu0 0.0
    %668 = vmatpush1.msra.mxu0 0.0
    %669 = vmatprep.subr.mxu0 0.0
    %670 = vmatpush1.msra.mxu0 0.0
    %671 = vmatprep.subr.mxu0 0.0
    %672 = vmatpush1.msra.mxu0 0.0
    %673 = vmatprep.subr.mxu0 0.0
    %674 = vmatpush1.msra.mxu0 0.0
    %675 = vmatprep.subr.mxu0 0.0
    %676 = vmatpush1.msra.mxu0 0.0
    %677 = vmatprep.subr.mxu0 0.0
    %678 = vmatpush1.msra.mxu0 0.0
    %679 = vmatprep.subr.mxu0 0.0
    %680 = vmatpush1.msra.mxu0 0.0
    %681 = vmatprep.subr.mxu0 0.0
    %682 = vmatpush1.msra.mxu0 0.0
    %683 = vmatprep.subr.mxu0 0.0
    %684 = vmatpush1.msra.mxu0 0.0
    %685 = vmatprep.subr.mxu0 0.0
    %686 = vmatpush1.msra.mxu0 0.0
    %687 = vmatprep.subr.mxu0 0.0
    %688 = vmatpush1.msra.mxu0 0.0
    %689 = vmatprep.subr.mxu0 0.0
    %690 = vmatpush1.msra.mxu0 0.0
    %691 = vmatprep.mubr.f32.mxu0 0.0
    %692 = vmatmul.mubr.f32.gmra.mrb[0].mxu0 %v313
    %v693 = vpop.f32.mrb[0].mxu0
    %v694 = vadd.f32 0.0, %v693
    %v695 = vpop.f32.mrb[0].mxu0
    %v696 = vadd.f32 0.0, %v695
    %697 = vmatprep.mubr.f32.mxu0 0.0
    %698 = vmatmul.mubr.f32.gmra.mrb[0].mxu0 %v316
    %v699 = vpop.f32.mrb[0].mxu0
    %v700 = vadd.f32 0.0, %v699
    %v701 = vpop.f32.mrb[0].mxu0
    %v702 = vadd.f32 0.0, %v701
    %703 = vmatprep.mubr.f32.mxu0 0.0
    %704 = vmatmul.mubr.f32.gmra.mrb[0].mxu0 %v319
    %v705 = vpop.f32.mrb[0].mxu0
    %v706 = vadd.f32 0.0, %v705
    %v707 = vpop.f32.mrb[0].mxu0
    %v708 = vadd.f32 0.0, %v707
    %709 = vmatprep.mubr.f32.mxu0 0.0
    %710 = vmatmul.mubr.f32.gmra.mrb[0].mxu0 %v322
    %v711 = vpop.f32.mrb[0].mxu0
    %v712 = vadd.f32 0.0, %v711
    %v713 = vpop.f32.mrb[0].mxu0
    %v714 = vadd.f32 0.0, %v713
    %715 = vdwg.mxu0
    %s716 = scalar_lea.vmem [#allocation9], 32
    %v717 = vld [vmem:[%s716] sm:$0xff]
    %v718 = vld [vmem:[%s716 + $0x8] sm:$0xff]
    %v719 = vld [vmem:[%s716 + $0x10] sm:$0xff]
    %v720 = vld [vmem:[%s716 + $0x18] sm:$0xff]
    %vm721 = vcmask 261120
    %v723 = vsel %vm721, %v717, 0
    %v726 = vsel %vm721, %v718, 0
    %v729 = vsel %vm721, %v719, 0
    %v732 = vsel %vm721, %v720, 0
    %734 = vmatprep.subr.mxu0 %v607
    %735 = vmatpush1.msra.mxu0 %v605
    %736 = vmatprep.subr.mxu0 %v613
    %737 = vmatpush1.msra.mxu0 %v611
    %738 = vmatprep.subr.mxu0 %v619
    %739 = vmatpush1.msra.mxu0 %v617
    %740 = vmatprep.subr.mxu0 %v625
    %741 = vmatpush1.msra.mxu0 %v623
    %742 = vmatprep.subr.mxu0 0.0
    %743 = vmatpush1.msra.mxu0 0.0
    %744 = vmatprep.subr.mxu0 0.0
    %745 = vmatpush1.msra.mxu0 0.0
    %746 = vmatprep.subr.mxu0 0.0
    %747 = vmatpush1.msra.mxu0 0.0
    %748 = vmatprep.subr.mxu0 0.0
    %749 = vmatpush1.msra.mxu0 0.0
    %750 = vmatprep.subr.mxu0 0.0
    %751 = vmatpush1.msra.mxu0 0.0
    %752 = vmatprep.subr.mxu0 0.0
    %753 = vmatpush1.msra.mxu0 0.0
    %754 = vmatprep.subr.mxu0 0.0
    %755 = vmatpush1.msra.mxu0 0.0
    %756 = vmatprep.subr.mxu0 0.0
    %757 = vmatpush1.msra.mxu0 0.0
    %758 = vmatprep.subr.mxu0 0.0
    %759 = vmatpush1.msra.mxu0 0.0
    %760 = vmatprep.subr.mxu0 0.0
    %761 = vmatpush1.msra.mxu0 0.0
    %762 = vmatprep.subr.mxu0 0.0
    %763 = vmatpush1.msra.mxu0 0.0
    %764 = vmatprep.subr.mxu0 0.0
    %765 = vmatpush1.msra.mxu0 0.0
    %766 = vmatprep.subr.mxu0 0.0
    %767 = vmatpush1.msra.mxu0 0.0
    %768 = vmatprep.subr.mxu0 0.0
    %769 = vmatpush1.msra.mxu0 0.0
    %770 = vmatprep.subr.mxu0 0.0
    %771 = vmatpush1.msra.mxu0 0.0
    %772 = vmatprep.subr.mxu0 0.0
    %773 = vmatpush1.msra.mxu0 0.0
    %774 = vmatprep.subr.mxu0 0.0
    %775 = vmatpush1.msra.mxu0 0.0
    %776 = vmatprep.subr.mxu0 0.0
    %777 = vmatpush1.msra.mxu0 0.0
    %778 = vmatprep.subr.mxu0 0.0
    %779 = vmatpush1.msra.mxu0 0.0
    %780 = vmatprep.subr.mxu0 0.0
    %781 = vmatpush1.msra.mxu0 0.0
    %782 = vmatprep.subr.mxu0 0.0
    %783 = vmatpush1.msra.mxu0 0.0
    %784 = vmatprep.subr.mxu0 0.0
    %785 = vmatpush1.msra.mxu0 0.0
    %786 = vmatprep.subr.mxu0 0.0
    %787 = vmatpush1.msra.mxu0 0.0
    %788 = vmatprep.subr.mxu0 0.0
    %789 = vmatpush1.msra.mxu0 0.0
    %790 = vmatprep.subr.mxu0 0.0
    %791 = vmatpush1.msra.mxu0 0.0
    %792 = vmatprep.subr.mxu0 0.0
    %793 = vmatpush1.msra.mxu0 0.0
    %794 = vmatprep.subr.mxu0 0.0
    %795 = vmatpush1.msra.mxu0 0.0
    %796 = vmatprep.subr.mxu0 0.0
    %797 = vmatpush1.msra.mxu0 0.0
    %798 = vmatprep.mubr.f32.mxu0 0.0
    %799 = vmatmul.mubr.f32.gmra.mrb[0].mxu0 %v723
    %v800 = vpop.f32.mrb[0].mxu0
    %v801 = vadd.f32 0.0, %v800
    %v802 = vpop.f32.mrb[0].mxu0
    %v803 = vadd.f32 0.0, %v802
    %804 = vmatprep.mubr.f32.mxu0 0.0
    %805 = vmatmul.mubr.f32.gmra.mrb[0].mxu0 %v726
    %v806 = vpop.f32.mrb[0].mxu0
    %v807 = vadd.f32 0.0, %v806
    %v808 = vpop.f32.mrb[0].mxu0
    %v809 = vadd.f32 0.0, %v808
    %810 = vmatprep.mubr.f32.mxu0 0.0
    %811 = vmatmul.mubr.f32.gmra.mrb[0].mxu0 %v729
    %v812 = vpop.f32.mrb[0].mxu0
    %v813 = vadd.f32 0.0, %v812
    %v814 = vpop.f32.mrb[0].mxu0
    %v815 = vadd.f32 0.0, %v814
    %816 = vmatprep.mubr.f32.mxu0 0.0
    %817 = vmatmul.mubr.f32.gmra.mrb[0].mxu0 %v732
    %v818 = vpop.f32.mrb[0].mxu0
    %v819 = vadd.f32 0.0, %v818
    %v820 = vpop.f32.mrb[0].mxu0
    %v821 = vadd.f32 0.0, %v820
    %822 = vdwg.mxu0
    %823 = vmatprep.subr.mxu0 %v696
    %824 = vmatpush1.msra.mxu0 %v694
    %825 = vmatprep.subr.mxu0 %v702
    %826 = vmatpush1.msra.mxu0 %v700
    %827 = vmatprep.subr.mxu0 %v708
    %828 = vmatpush1.msra.mxu0 %v706
    %829 = vmatprep.subr.mxu0 %v714
    %830 = vmatpush1.msra.mxu0 %v712
    %831 = vmatprep.subr.mxu0 0.0
    %832 = vmatpush1.msra.mxu0 0.0
    %833 = vmatprep.subr.mxu0 0.0
    %834 = vmatpush1.msra.mxu0 0.0
    %835 = vmatprep.subr.mxu0 0.0
    %836 = vmatpush1.msra.mxu0 0.0
    %837 = vmatprep.subr.mxu0 0.0
    %838 = vmatpush1.msra.mxu0 0.0
    %839 = vmatprep.subr.mxu0 0.0
    %840 = vmatpush1.msra.mxu0 0.0
    %841 = vmatprep.subr.mxu0 0.0
    %842 = vmatpush1.msra.mxu0 0.0
    %843 = vmatprep.subr.mxu0 0.0
    %844 = vmatpush1.msra.mxu0 0.0
    %845 = vmatprep.subr.mxu0 0.0
    %846 = vmatpush1.msra.mxu0 0.0
    %847 = vmatprep.subr.mxu0 0.0
    %848 = vmatpush1.msra.mxu0 0.0
    %849 = vmatprep.subr.mxu0 0.0
    %850 = vmatpush1.msra.mxu0 0.0
    %851 = vmatprep.subr.mxu0 0.0
    %852 = vmatpush1.msra.mxu0 0.0
    %853 = vmatprep.subr.mxu0 0.0
    %854 = vmatpush1.msra.mxu0 0.0
    %855 = vmatprep.subr.mxu0 0.0
    %856 = vmatpush1.msra.mxu0 0.0
    %857 = vmatprep.subr.mxu0 0.0
    %858 = vmatpush1.msra.mxu0 0.0
    %859 = vmatprep.subr.mxu0 0.0
    %860 = vmatpush1.msra.mxu0 0.0
    %861 = vmatprep.subr.mxu0 0.0
    %862 = vmatpush1.msra.mxu0 0.0
    %863 = vmatprep.subr.mxu0 0.0
    %864 = vmatpush1.msra.mxu0 0.0
    %865 = vmatprep.subr.mxu0 0.0
    %866 = vmatpush1.msra.mxu0 0.0
    %867 = vmatprep.subr.mxu0 0.0
    %868 = vmatpush1.msra.mxu0 0.0
    %869 = vmatprep.subr.mxu0 0.0
    %870 = vmatpush1.msra.mxu0 0.0
    %871 = vmatprep.subr.mxu0 0.0
    %872 = vmatpush1.msra.mxu0 0.0
    %873 = vmatprep.subr.mxu0 0.0
    %874 = vmatpush1.msra.mxu0 0.0
    %875 = vmatprep.subr.mxu0 0.0
    %876 = vmatpush1.msra.mxu0 0.0
    %877 = vmatprep.subr.mxu0 0.0
    %878 = vmatpush1.msra.mxu0 0.0
    %879 = vmatprep.subr.mxu0 0.0
    %880 = vmatpush1.msra.mxu0 0.0
    %881 = vmatprep.subr.mxu0 0.0
    %882 = vmatpush1.msra.mxu0 0.0
    %883 = vmatprep.subr.mxu0 0.0
    %884 = vmatpush1.msra.mxu0 0.0
    %885 = vmatprep.subr.mxu0 0.0
    %886 = vmatpush1.msra.mxu0 0.0
    %887 = vmatprep.mubr.f32.mxu0 0.0
    %888 = vmatmul.mubr.f32.gmra.mrb[0].mxu0 %v723
    %v889 = vpop.f32.mrb[0].mxu0
    %v890 = vadd.f32 0.0, %v889
    %v891 = vpop.f32.mrb[0].mxu0
    %v892 = vadd.f32 0.0, %v891
    %893 = vmatprep.mubr.f32.mxu0 0.0
    %894 = vmatmul.mubr.f32.gmra.mrb[0].mxu0 %v726
    %v895 = vpop.f32.mrb[0].mxu0
    %v896 = vadd.f32 0.0, %v895
    %v897 = vpop.f32.mrb[0].mxu0
    %v898 = vadd.f32 0.0, %v897
    %899 = vmatprep.mubr.f32.mxu0 0.0
    %900 = vmatmul.mubr.f32.gmra.mrb[0].mxu0 %v729
    %v901 = vpop.f32.mrb[0].mxu0
    %v902 = vadd.f32 0.0, %v901
    %v903 = vpop.f32.mrb[0].mxu0
    %v904 = vadd.f32 0.0, %v903
    %905 = vmatprep.mubr.f32.mxu0 0.0
    %906 = vmatmul.mubr.f32.gmra.mrb[0].mxu0 %v732
    %v907 = vpop.f32.mrb[0].mxu0
    %v908 = vadd.f32 0.0, %v907
    %v909 = vpop.f32.mrb[0].mxu0
    %v910 = vadd.f32 0.0, %v909
    %911 = vdwg.mxu0
    %v913 = vsel %vm721, %v502, 0
    %v916 = vsel %vm721, %v503, 0
    %v919 = vsel %vm721, %v504, 0
    %v922 = vsel %vm721, %v505, 0
    %924 = vmatprep.subr.mxu0 %v393
    %925 = vmatpush1.msra.mxu0 %v391
    %926 = vmatprep.subr.mxu0 %v399
    %927 = vmatpush1.msra.mxu0 %v397
    %928 = vmatprep.subr.mxu0 %v405
    %929 = vmatpush1.msra.mxu0 %v403
    %930 = vmatprep.subr.mxu0 %v411
    %931 = vmatpush1.msra.mxu0 %v409
    %932 = vmatprep.subr.mxu0 0.0
    %933 = vmatpush1.msra.mxu0 0.0
    %934 = vmatprep.subr.mxu0 0.0
    %935 = vmatpush1.msra.mxu0 0.0
    %936 = vmatprep.subr.mxu0 0.0
    %937 = vmatpush1.msra.mxu0 0.0
    %938 = vmatprep.subr.mxu0 0.0
    %939 = vmatpush1.msra.mxu0 0.0
    %940 = vmatprep.subr.mxu0 0.0
    %941 = vmatpush1.msra.mxu0 0.0
    %942 = vmatprep.subr.mxu0 0.0
    %943 = vmatpush1.msra.mxu0 0.0
    %944 = vmatprep.subr.mxu0 0.0
    %945 = vmatpush1.msra.mxu0 0.0
    %946 = vmatprep.subr.mxu0 0.0
    %947 = vmatpush1.msra.mxu0 0.0
    %948 = vmatprep.subr.mxu0 0.0
    %949 = vmatpush1.msra.mxu0 0.0
    %950 = vmatprep.subr.mxu0 0.0
    %951 = vmatpush1.msra.mxu0 0.0
    %952 = vmatprep.subr.mxu0 0.0
    %953 = vmatpush1.msra.mxu0 0.0
    %954 = vmatprep.subr.mxu0 0.0
    %955 = vmatpush1.msra.mxu0 0.0
    %956 = vmatprep.subr.mxu0 0.0
    %957 = vmatpush1.msra.mxu0 0.0
    %958 = vmatprep.subr.mxu0 0.0
    %959 = vmatpush1.msra.mxu0 0.0
    %960 = vmatprep.subr.mxu0 0.0
    %961 = vmatpush1.msra.mxu0 0.0
    %962 = vmatprep.subr.mxu0 0.0
    %963 = vmatpush1.msra.mxu0 0.0
    %964 = vmatprep.subr.mxu0 0.0
    %965 = vmatpush1.msra.mxu0 0.0
    %966 = vmatprep.subr.mxu0 0.0
    %967 = vmatpush1.msra.mxu0 0.0
    %968 = vmatprep.subr.mxu0 0.0
    %969 = vmatpush1.msra.mxu0 0.0
    %970 = vmatprep.subr.mxu0 0.0
    %971 = vmatpush1.msra.mxu0 0.0
    %972 = vmatprep.subr.mxu0 0.0
    %973 = vmatpush1.msra.mxu0 0.0
    %974 = vmatprep.subr.mxu0 0.0
    %975 = vmatpush1.msra.mxu0 0.0
    %976 = vmatprep.subr.mxu0 0.0
    %977 = vmatpush1.msra.mxu0 0.0
    %978 = vmatprep.subr.mxu0 0.0
    %979 = vmatpush1.msra.mxu0 0.0
    %980 = vmatprep.subr.mxu0 0.0
    %981 = vmatpush1.msra.mxu0 0.0
    %982 = vmatprep.subr.mxu0 0.0
    %983 = vmatpush1.msra.mxu0 0.0
    %984 = vmatprep.subr.mxu0 0.0
    %985 = vmatpush1.msra.mxu0 0.0
    %986 = vmatprep.subr.mxu0 0.0
    %987 = vmatpush1.msra.mxu0 0.0
    %988 = vmatprep.mubr.f32.mxu0 0.0
    %989 = vmatmul.mubr.f32.gmra.mrb[0].mxu0 %v913
    %v990 = vpop.f32.mrb[0].mxu0
    %v991 = vadd.f32 %v801, %v990
    %v992 = vpop.f32.mrb[0].mxu0
    %v993 = vadd.f32 %v803, %v992
    %994 = vmatprep.mubr.f32.mxu0 0.0
    %995 = vmatmul.mubr.f32.gmra.mrb[0].mxu0 %v916
    %v996 = vpop.f32.mrb[0].mxu0
    %v997 = vadd.f32 %v807, %v996
    %v998 = vpop.f32.mrb[0].mxu0
    %v999 = vadd.f32 %v809, %v998
    %1000 = vmatprep.mubr.f32.mxu0 0.0
    %1001 = vmatmul.mubr.f32.gmra.mrb[0].mxu0 %v919
    %v1002 = vpop.f32.mrb[0].mxu0
    %v1003 = vadd.f32 %v813, %v1002
    %v1004 = vpop.f32.mrb[0].mxu0
    %v1005 = vadd.f32 %v815, %v1004
    %1006 = vmatprep.mubr.f32.mxu0 0.0
    %1007 = vmatmul.mubr.f32.gmra.mrb[0].mxu0 %v922
    %v1008 = vpop.f32.mrb[0].mxu0
    %v1009 = vadd.f32 %v819, %v1008
    %v1010 = vpop.f32.mrb[0].mxu0
    %v1011 = vadd.f32 %v821, %v1010
    %1012 = vdwg.mxu0
    %1013 = vmatprep.subr.mxu0 %v482
    %1014 = vmatpush1.msra.mxu0 %v480
    %1015 = vmatprep.subr.mxu0 %v488
    %1016 = vmatpush1.msra.mxu0 %v486
    %1017 = vmatprep.subr.mxu0 %v494
    %1018 = vmatpush1.msra.mxu0 %v492
    %1019 = vmatprep.subr.mxu0 %v500
    %1020 = vmatpush1.msra.mxu0 %v498
    %1021 = vmatprep.subr.mxu0 0.0
    %1022 = vmatpush1.msra.mxu0 0.0
    %1023 = vmatprep.subr.mxu0 0.0
    %1024 = vmatpush1.msra.mxu0 0.0
    %1025 = vmatprep.subr.mxu0 0.0
    %1026 = vmatpush1.msra.mxu0 0.0
    %1027 = vmatprep.subr.mxu0 0.0
    %1028 = vmatpush1.msra.mxu0 0.0
    %1029 = vmatprep.subr.mxu0 0.0
    %1030 = vmatpush1.msra.mxu0 0.0
    %1031 = vmatprep.subr.mxu0 0.0
    %1032 = vmatpush1.msra.mxu0 0.0
    %1033 = vmatprep.subr.mxu0 0.0
    %1034 = vmatpush1.msra.mxu0 0.0
    %1035 = vmatprep.subr.mxu0 0.0
    %1036 = vmatpush1.msra.mxu0 0.0
    %1037 = vmatprep.subr.mxu0 0.0
    %1038 = vmatpush1.msra.mxu0 0.0
    %1039 = vmatprep.subr.mxu0 0.0
    %1040 = vmatpush1.msra.mxu0 0.0
    %1041 = vmatprep.subr.mxu0 0.0
    %1042 = vmatpush1.msra.mxu0 0.0
    %1043 = vmatprep.subr.mxu0 0.0
    %1044 = vmatpush1.msra.mxu0 0.0
    %1045 = vmatprep.subr.mxu0 0.0
    %1046 = vmatpush1.msra.mxu0 0.0
    %1047 = vmatprep.subr.mxu0 0.0
    %1048 = vmatpush1.msra.mxu0 0.0
    %1049 = vmatprep.subr.mxu0 0.0
    %1050 = vmatpush1.msra.mxu0 0.0
    %1051 = vmatprep.subr.mxu0 0.0
    %1052 = vmatpush1.msra.mxu0 0.0
    %1053 = vmatprep.subr.mxu0 0.0
    %1054 = vmatpush1.msra.mxu0 0.0
    %1055 = vmatprep.subr.mxu0 0.0
    %1056 = vmatpush1.msra.mxu0 0.0
    %1057 = vmatprep.subr.mxu0 0.0
    %1058 = vmatpush1.msra.mxu0 0.0
    %1059 = vmatprep.subr.mxu0 0.0
    %1060 = vmatpush1.msra.mxu0 0.0
    %1061 = vmatprep.subr.mxu0 0.0
    %1062 = vmatpush1.msra.mxu0 0.0
    %1063 = vmatprep.subr.mxu0 0.0
    %1064 = vmatpush1.msra.mxu0 0.0
    %1065 = vmatprep.subr.mxu0 0.0
    %1066 = vmatpush1.msra.mxu0 0.0
    %1067 = vmatprep.subr.mxu0 0.0
    %1068 = vmatpush1.msra.mxu0 0.0
    %1069 = vmatprep.subr.mxu0 0.0
    %1070 = vmatpush1.msra.mxu0 0.0
    %1071 = vmatprep.subr.mxu0 0.0
    %1072 = vmatpush1.msra.mxu0 0.0
    %1073 = vmatprep.subr.mxu0 0.0
    %1074 = vmatpush1.msra.mxu0 0.0
    %1075 = vmatprep.subr.mxu0 0.0
    %1076 = vmatpush1.msra.mxu0 0.0
    %1077 = vmatprep.mubr.f32.mxu0 0.0
    %1078 = vmatmul.mubr.f32.gmra.mrb[0].mxu0 %v913
    %v1079 = vpop.f32.mrb[0].mxu0
    %v1080 = vadd.f32 %v890, %v1079
    %v1081 = vpop.f32.mrb[0].mxu0
    %v1082 = vadd.f32 %v892, %v1081
    %1083 = vmatprep.mubr.f32.mxu0 0.0
    %1084 = vmatmul.mubr.f32.gmra.mrb[0].mxu0 %v916
    %v1085 = vpop.f32.mrb[0].mxu0
    %v1086 = vadd.f32 %v896, %v1085
    %v1087 = vpop.f32.mrb[0].mxu0
    %v1088 = vadd.f32 %v898, %v1087
    %1089 = vmatprep.mubr.f32.mxu0 0.0
    %1090 = vmatmul.mubr.f32.gmra.mrb[0].mxu0 %v919
    %v1091 = vpop.f32.mrb[0].mxu0
    %v1092 = vadd.f32 %v902, %v1091
    %v1093 = vpop.f32.mrb[0].mxu0
    %v1094 = vadd.f32 %v904, %v1093
    %1095 = vmatprep.mubr.f32.mxu0 0.0
    %1096 = vmatmul.mubr.f32.gmra.mrb[0].mxu0 %v922
    %v1097 = vpop.f32.mrb[0].mxu0
    %v1098 = vadd.f32 %v908, %v1097
    %v1099 = vpop.f32.mrb[0].mxu0
    %v1100 = vadd.f32 %v910, %v1099
    %1101 = vdwg.mxu0
    %v1102 = vld [vmem:[#allocation2 + $0x40] sm:$0xff]
    %v1103 = vld [vmem:[#allocation2 + $0x48] sm:$0xff]
    %v1104 = vld [vmem:[#allocation2 + $0x50] sm:$0xff]
    %v1105 = vld [vmem:[#allocation2 + $0x58] sm:$0xff]
    %v1106 = vld [vmem:[#allocation2 + $0xa0] sm:$0xff]
    %v1107 = vld [vmem:[#allocation2 + $0xa8] sm:$0xff]
    %v1108 = vld [vmem:[#allocation2 + $0xb0] sm:$0xff]
    %v1109 = vld [vmem:[#allocation2 + $0xb8] sm:$0xff]
    %v1110 = vld [vmem:[#allocation2 + $0x100] sm:$0xff]
    %v1111 = vld [vmem:[#allocation2 + $0x108] sm:$0xff]
    %v1112 = vld [vmem:[#allocation2 + $0x110] sm:$0xff]
    %v1113 = vld [vmem:[#allocation2 + $0x118] sm:$0xff]
    %v1114 = vld [vmem:[#allocation2 + $0x160] sm:$0xff]
    %v1115 = vld [vmem:[#allocation2 + $0x168] sm:$0xff]
    %v1116 = vld [vmem:[#allocation2 + $0x170] sm:$0xff]
    %v1117 = vld [vmem:[#allocation2 + $0x178] sm:$0xff]
    %v1118 = vld [vmem:[#allocation2 + $0x1c0] sm:$0xff]
    %v1119 = vld [vmem:[#allocation2 + $0x1c8] sm:$0xff]
    %v1120 = vld [vmem:[#allocation2 + $0x1d0] sm:$0xff]
    %v1121 = vld [vmem:[#allocation2 + $0x1d8] sm:$0xff]
    %v1122 = vld [vmem:[#allocation2 + $0x220] sm:$0xff]
    %v1123 = vld [vmem:[#allocation2 + $0x228] sm:$0xff]
    %v1124 = vld [vmem:[#allocation2 + $0x230] sm:$0xff]
    %v1125 = vld [vmem:[#allocation2 + $0x238] sm:$0xff]
    %v1126 = vld [vmem:[#allocation2 + $0x280] sm:$0xff]
    %v1127 = vld [vmem:[#allocation2 + $0x288] sm:$0xff]
    %v1128 = vld [vmem:[#allocation2 + $0x290] sm:$0xff]
    %v1129 = vld [vmem:[#allocation2 + $0x298] sm:$0xff]
    %v1130 = vld [vmem:[#allocation2 + $0x2e0] sm:$0xff]
    %v1131 = vld [vmem:[#allocation2 + $0x2e8] sm:$0xff]
    %v1132 = vld [vmem:[#allocation2 + $0x2f0] sm:$0xff]
    %v1133 = vld [vmem:[#allocation2 + $0x2f8] sm:$0xff]
    %1134 = vmatprep.subr.mxu0 %v1103
    %1135 = vmatpush1.msra.mxu0 %v1102
    %1136 = vmatprep.subr.mxu0 %v1107
    %1137 = vmatpush1.msra.mxu0 %v1106
    %1138 = vmatprep.subr.mxu0 %v1111
    %1139 = vmatpush1.msra.mxu0 %v1110
    %1140 = vmatprep.subr.mxu0 %v1115
    %1141 = vmatpush1.msra.mxu0 %v1114
    %1142 = vmatprep.subr.mxu0 %v1119
    %1143 = vmatpush1.msra.mxu0 %v1118
    %1144 = vmatprep.subr.mxu0 %v1123
    %1145 = vmatpush1.msra.mxu0 %v1122
    %1146 = vmatprep.subr.mxu0 %v1127
    %1147 = vmatpush1.msra.mxu0 %v1126
    %1148 = vmatprep.subr.mxu0 %v1131
    %1149 = vmatpush1.msra.mxu0 %v1130
    %1150 = vmatprep.subr.mxu0 0.0
    %1151 = vmatpush1.msra.mxu0 0.0
    %1152 = vmatprep.subr.mxu0 0.0
    %1153 = vmatpush1.msra.mxu0 0.0
    %1154 = vmatprep.subr.mxu0 0.0
    %1155 = vmatpush1.msra.mxu0 0.0
    %1156 = vmatprep.subr.mxu0 0.0
    %1157 = vmatpush1.msra.mxu0 0.0
    %1158 = vmatprep.subr.mxu0 0.0
    %1159 = vmatpush1.msra.mxu0 0.0
    %1160 = vmatprep.subr.mxu0 0.0
    %1161 = vmatpush1.msra.mxu0 0.0
    %1162 = vmatprep.subr.mxu0 0.0
    %1163 = vmatpush1.msra.mxu0 0.0
    %1164 = vmatprep.subr.mxu0 0.0
    %1165 = vmatpush1.msra.mxu0 0.0
    %1166 = vmatprep.subr.mxu0 0.0
    %1167 = vmatpush1.msra.mxu0 0.0
    %1168 = vmatprep.subr.mxu0 0.0
    %1169 = vmatpush1.msra.mxu0 0.0
    %1170 = vmatprep.subr.mxu0 0.0
    %1171 = vmatpush1.msra.mxu0 0.0
    %1172 = vmatprep.subr.mxu0 0.0
    %1173 = vmatpush1.msra.mxu0 0.0
    %1174 = vmatprep.subr.mxu0 0.0
    %1175 = vmatpush1.msra.mxu0 0.0
    %1176 = vmatprep.subr.mxu0 0.0
    %1177 = vmatpush1.msra.mxu0 0.0
    %1178 = vmatprep.subr.mxu0 0.0
    %1179 = vmatpush1.msra.mxu0 0.0
    %1180 = vmatprep.subr.mxu0 0.0
    %1181 = vmatpush1.msra.mxu0 0.0
    %1182 = vmatprep.subr.mxu0 0.0
    %1183 = vmatpush1.msra.mxu0 0.0
    %1184 = vmatprep.subr.mxu0 0.0
    %1185 = vmatpush1.msra.mxu0 0.0
    %1186 = vmatprep.subr.mxu0 0.0
    %1187 = vmatpush1.msra.mxu0 0.0
    %1188 = vmatprep.subr.mxu0 0.0
    %1189 = vmatpush1.msra.mxu0 0.0
    %1190 = vmatprep.subr.mxu0 0.0
    %1191 = vmatpush1.msra.mxu0 0.0
    %1192 = vmatprep.subr.mxu0 0.0
    %1193 = vmatpush1.msra.mxu0 0.0
    %1194 = vmatprep.subr.mxu0 0.0
    %1195 = vmatpush1.msra.mxu0 0.0
    %1196 = vmatprep.subr.mxu0 0.0
    %1197 = vmatpush1.msra.mxu0 0.0
    %1198 = vmatprep.mubr.f32.mxu0 0.0
    %1199 = vmatmul.mubr.f32.gmra.mrb[0].mxu0 %v313
    %v1200 = vpop.f32.mrb[0].mxu0
    %v1201 = vadd.f32 0.0, %v1200
    %v1202 = vpop.f32.mrb[0].mxu0
    %v1203 = vadd.f32 0.0, %v1202
    %1204 = vmatprep.mubr.f32.mxu0 0.0
    %1205 = vmatmul.mubr.f32.gmra.mrb[0].mxu0 %v316
    %v1206 = vpop.f32.mrb[0].mxu0
    %v1207 = vadd.f32 0.0, %v1206
    %v1208 = vpop.f32.mrb[0].mxu0
    %v1209 = vadd.f32 0.0, %v1208
    %1210 = vmatprep.mubr.f32.mxu0 0.0
    %1211 = vmatmul.mubr.f32.gmra.mrb[0].mxu0 %v319
    %v1212 = vpop.f32.mrb[0].mxu0
    %v1213 = vadd.f32 0.0, %v1212
    %v1214 = vpop.f32.mrb[0].mxu0
    %v1215 = vadd.f32 0.0, %v1214
    %1216 = vmatprep.mubr.f32.mxu0 0.0
    %1217 = vmatmul.mubr.f32.gmra.mrb[0].mxu0 %v322
    %v1218 = vpop.f32.mrb[0].mxu0
    %v1219 = vadd.f32 0.0, %v1218
    %v1220 = vpop.f32.mrb[0].mxu0
    %v1221 = vadd.f32 0.0, %v1220
    %1222 = vdwg.mxu0
    %1223 = vmatprep.subr.mxu0 %v1105
    %1224 = vmatpush1.msra.mxu0 %v1104
    %1225 = vmatprep.subr.mxu0 %v1109
    %1226 = vmatpush1.msra.mxu0 %v1108
    %1227 = vmatprep.subr.mxu0 %v1113
    %1228 = vmatpush1.msra.mxu0 %v1112
    %1229 = vmatprep.subr.mxu0 %v1117
    %1230 = vmatpush1.msra.mxu0 %v1116
    %1231 = vmatprep.subr.mxu0 %v1121
    %1232 = vmatpush1.msra.mxu0 %v1120
    %1233 = vmatprep.subr.mxu0 %v1125
    %1234 = vmatpush1.msra.mxu0 %v1124
    %1235 = vmatprep.subr.mxu0 %v1129
    %1236 = vmatpush1.msra.mxu0 %v1128
    %1237 = vmatprep.subr.mxu0 %v1133
    %1238 = vmatpush1.msra.mxu0 %v1132
    %1239 = vmatprep.subr.mxu0 0.0
    %1240 = vmatpush1.msra.mxu0 0.0
    %1241 = vmatprep.subr.mxu0 0.0
    %1242 = vmatpush1.msra.mxu0 0.0
    %1243 = vmatprep.subr.mxu0 0.0
    %1244 = vmatpush1.msra.mxu0 0.0
    %1245 = vmatprep.subr.mxu0 0.0
    %1246 = vmatpush1.msra.mxu0 0.0
    %1247 = vmatprep.subr.mxu0 0.0
    %1248 = vmatpush1.msra.mxu0 0.0
    %1249 = vmatprep.subr.mxu0 0.0
    %1250 = vmatpush1.msra.mxu0 0.0
    %1251 = vmatprep.subr.mxu0 0.0
    %1252 = vmatpush1.msra.mxu0 0.0
    %1253 = vmatprep.subr.mxu0 0.0
    %1254 = vmatpush1.msra.mxu0 0.0
    %1255 = vmatprep.subr.mxu0 0.0
    %1256 = vmatpush1.msra.mxu0 0.0
    %1257 = vmatprep.subr.mxu0 0.0
    %1258 = vmatpush1.msra.mxu0 0.0
    %1259 = vmatprep.subr.mxu0 0.0
    %1260 = vmatpush1.msra.mxu0 0.0
    %1261 = vmatprep.subr.mxu0 0.0
    %1262 = vmatpush1.msra.mxu0 0.0
    %1263 = vmatprep.subr.mxu0 0.0
    %1264 = vmatpush1.msra.mxu0 0.0
    %1265 = vmatprep.subr.mxu0 0.0
    %1266 = vmatpush1.msra.mxu0 0.0
    %1267 = vmatprep.subr.mxu0 0.0
    %1268 = vmatpush1.msra.mxu0 0.0
    %1269 = vmatprep.subr.mxu0 0.0
    %1270 = vmatpush1.msra.mxu0 0.0
    %1271 = vmatprep.subr.mxu0 0.0
    %1272 = vmatpush1.msra.mxu0 0.0
    %1273 = vmatprep.subr.mxu0 0.0
    %1274 = vmatpush1.msra.mxu0 0.0
    %1275 = vmatprep.subr.mxu0 0.0
    %1276 = vmatpush1.msra.mxu0 0.0
    %1277 = vmatprep.subr.mxu0 0.0
    %1278 = vmatpush1.msra.mxu0 0.0
    %1279 = vmatprep.subr.mxu0 0.0
    %1280 = vmatpush1.msra.mxu0 0.0
    %1281 = vmatprep.subr.mxu0 0.0
    %1282 = vmatpush1.msra.mxu0 0.0
    %1283 = vmatprep.subr.mxu0 0.0
    %1284 = vmatpush1.msra.mxu0 0.0
    %1285 = vmatprep.subr.mxu0 0.0
    %1286 = vmatpush1.msra.mxu0 0.0
    %1287 = vmatprep.mubr.f32.mxu0 0.0
    %1288 = vmatmul.mubr.f32.gmra.mrb[0].mxu0 %v313
    %v1289 = vpop.f32.mrb[0].mxu0
    %v1290 = vadd.f32 0.0, %v1289
    %v1291 = vpop.f32.mrb[0].mxu0
    %v1292 = vadd.f32 0.0, %v1291
    %1293 = vmatprep.mubr.f32.mxu0 0.0
    %1294 = vmatmul.mubr.f32.gmra.mrb[0].mxu0 %v316
    %v1295 = vpop.f32.mrb[0].mxu0
    %v1296 = vadd.f32 0.0, %v1295
    %v1297 = vpop.f32.mrb[0].mxu0
    %v1298 = vadd.f32 0.0, %v1297
    %1299 = vmatprep.mubr.f32.mxu0 0.0
    %1300 = vmatmul.mubr.f32.gmra.mrb[0].mxu0 %v319
    %v1301 = vpop.f32.mrb[0].mxu0
    %v1302 = vadd.f32 0.0, %v1301
    %v1303 = vpop.f32.mrb[0].mxu0
    %v1304 = vadd.f32 0.0, %v1303
    %1305 = vmatprep.mubr.f32.mxu0 0.0
    %1306 = vmatmul.mubr.f32.gmra.mrb[0].mxu0 %v322
    %v1307 = vpop.f32.mrb[0].mxu0
    %v1308 = vadd.f32 0.0, %v1307
    %v1309 = vpop.f32.mrb[0].mxu0
    %v1310 = vadd.f32 0.0, %v1309
    %1311 = vdwg.mxu0
    %s1312 = scalar_lea.vmem [#allocation9], 64
    %v1313 = vld [vmem:[%s1312] sm:$0xff]
    %v1314 = vld [vmem:[%s1312 + $0x8] sm:$0xff]
    %v1315 = vld [vmem:[%s1312 + $0x10] sm:$0xff]
    %v1316 = vld [vmem:[%s1312 + $0x18] sm:$0xff]
    %v1318 = vsel %vm721, %v1313, 0
    %v1321 = vsel %vm721, %v1314, 0
    %v1324 = vsel %vm721, %v1315, 0
    %v1327 = vsel %vm721, %v1316, 0
    %1329 = vmatprep.subr.mxu0 %v1203
    %1330 = vmatpush1.msra.mxu0 %v1201
    %1331 = vmatprep.subr.mxu0 %v1209
    %1332 = vmatpush1.msra.mxu0 %v1207
    %1333 = vmatprep.subr.mxu0 %v1215
    %1334 = vmatpush1.msra.mxu0 %v1213
    %1335 = vmatprep.subr.mxu0 %v1221
    %1336 = vmatpush1.msra.mxu0 %v1219
    %1337 = vmatprep.subr.mxu0 0.0
    %1338 = vmatpush1.msra.mxu0 0.0
    %1339 = vmatprep.subr.mxu0 0.0
    %1340 = vmatpush1.msra.mxu0 0.0
    %1341 = vmatprep.subr.mxu0 0.0
    %1342 = vmatpush1.msra.mxu0 0.0
    %1343 = vmatprep.subr.mxu0 0.0
    %1344 = vmatpush1.msra.mxu0 0.0
    %1345 = vmatprep.subr.mxu0 0.0
    %1346 = vmatpush1.msra.mxu0 0.0
    %1347 = vmatprep.subr.mxu0 0.0
    %1348 = vmatpush1.msra.mxu0 0.0
    %1349 = vmatprep.subr.mxu0 0.0
    %1350 = vmatpush1.msra.mxu0 0.0
    %1351 = vmatprep.subr.mxu0 0.0
    %1352 = vmatpush1.msra.mxu0 0.0
    %1353 = vmatprep.subr.mxu0 0.0
    %1354 = vmatpush1.msra.mxu0 0.0
    %1355 = vmatprep.subr.mxu0 0.0
    %1356 = vmatpush1.msra.mxu0 0.0
    %1357 = vmatprep.subr.mxu0 0.0
    %1358 = vmatpush1.msra.mxu0 0.0
    %1359 = vmatprep.subr.mxu0 0.0
    %1360 = vmatpush1.msra.mxu0 0.0
    %1361 = vmatprep.subr.mxu0 0.0
    %1362 = vmatpush1.msra.mxu0 0.0
    %1363 = vmatprep.subr.mxu0 0.0
    %1364 = vmatpush1.msra.mxu0 0.0
    %1365 = vmatprep.subr.mxu0 0.0
    %1366 = vmatpush1.msra.mxu0 0.0
    %1367 = vmatprep.subr.mxu0 0.0
    %1368 = vmatpush1.msra.mxu0 0.0
    %1369 = vmatprep.subr.mxu0 0.0
    %1370 = vmatpush1.msra.mxu0 0.0
    %1371 = vmatprep.subr.mxu0 0.0
    %1372 = vmatpush1.msra.mxu0 0.0
    %1373 = vmatprep.subr.mxu0 0.0
    %1374 = vmatpush1.msra.mxu0 0.0
    %1375 = vmatprep.subr.mxu0 0.0
    %1376 = vmatpush1.msra.mxu0 0.0
    %1377 = vmatprep.subr.mxu0 0.0
    %1378 = vmatpush1.msra.mxu0 0.0
    %1379 = vmatprep.subr.mxu0 0.0
    %1380 = vmatpush1.msra.mxu0 0.0
    %1381 = vmatprep.subr.mxu0 0.0
    %1382 = vmatpush1.msra.mxu0 0.0
    %1383 = vmatprep.subr.mxu0 0.0
    %1384 = vmatpush1.msra.mxu0 0.0
    %1385 = vmatprep.subr.mxu0 0.0
    %1386 = vmatpush1.msra.mxu0 0.0
    %1387 = vmatprep.subr.mxu0 0.0
    %1388 = vmatpush1.msra.mxu0 0.0
    %1389 = vmatprep.subr.mxu0 0.0
    %1390 = vmatpush1.msra.mxu0 0.0
    %1391 = vmatprep.subr.mxu0 0.0
    %1392 = vmatpush1.msra.mxu0 0.0
    %1393 = vmatprep.mubr.f32.mxu0 0.0
    %1394 = vmatmul.mubr.f32.gmra.mrb[0].mxu0 %v1318
    %v1395 = vpop.f32.mrb[0].mxu0
    %v1396 = vadd.f32 0.0, %v1395
    %v1397 = vpop.f32.mrb[0].mxu0
    %v1398 = vadd.f32 0.0, %v1397
    %1399 = vmatprep.mubr.f32.mxu0 0.0
    %1400 = vmatmul.mubr.f32.gmra.mrb[0].mxu0 %v1321
    %v1401 = vpop.f32.mrb[0].mxu0
    %v1402 = vadd.f32 0.0, %v1401
    %v1403 = vpop.f32.mrb[0].mxu0
    %v1404 = vadd.f32 0.0, %v1403
    %1405 = vmatprep.mubr.f32.mxu0 0.0
    %1406 = vmatmul.mubr.f32.gmra.mrb[0].mxu0 %v1324
    %v1407 = vpop.f32.mrb[0].mxu0
    %v1408 = vadd.f32 0.0, %v1407
    %v1409 = vpop.f32.mrb[0].mxu0
    %v1410 = vadd.f32 0.0, %v1409
    %1411 = vmatprep.mubr.f32.mxu0 0.0
    %1412 = vmatmul.mubr.f32.gmra.mrb[0].mxu0 %v1327
    %v1413 = vpop.f32.mrb[0].mxu0
    %v1414 = vadd.f32 0.0, %v1413
    %v1415 = vpop.f32.mrb[0].mxu0
    %v1416 = vadd.f32 0.0, %v1415
    %1417 = vdwg.mxu0
    %1418 = vmatprep.subr.mxu0 %v1292
    %1419 = vmatpush1.msra.mxu0 %v1290
    %1420 = vmatprep.subr.mxu0 %v1298
    %1421 = vmatpush1.msra.mxu0 %v1296
    %1422 = vmatprep.subr.mxu0 %v1304
    %1423 = vmatpush1.msra.mxu0 %v1302
    %1424 = vmatprep.subr.mxu0 %v1310
    %1425 = vmatpush1.msra.mxu0 %v1308
    %1426 = vmatprep.subr.mxu0 0.0
    %1427 = vmatpush1.msra.mxu0 0.0
    %1428 = vmatprep.subr.mxu0 0.0
    %1429 = vmatpush1.msra.mxu0 0.0
    %1430 = vmatprep.subr.mxu0 0.0
    %1431 = vmatpush1.msra.mxu0 0.0
    %1432 = vmatprep.subr.mxu0 0.0
    %1433 = vmatpush1.msra.mxu0 0.0
    %1434 = vmatprep.subr.mxu0 0.0
    %1435 = vmatpush1.msra.mxu0 0.0
    %1436 = vmatprep.subr.mxu0 0.0
    %1437 = vmatpush1.msra.mxu0 0.0
    %1438 = vmatprep.subr.mxu0 0.0
    %1439 = vmatpush1.msra.mxu0 0.0
    %1440 = vmatprep.subr.mxu0 0.0
    %1441 = vmatpush1.msra.mxu0 0.0
    %1442 = vmatprep.subr.mxu0 0.0
    %1443 = vmatpush1.msra.mxu0 0.0
    %1444 = vmatprep.subr.mxu0 0.0
    %1445 = vmatpush1.msra.mxu0 0.0
    %1446 = vmatprep.subr.mxu0 0.0
    %1447 = vmatpush1.msra.mxu0 0.0
    %1448 = vmatprep.subr.mxu0 0.0
    %1449 = vmatpush1.msra.mxu0 0.0
    %1450 = vmatprep.subr.mxu0 0.0
    %1451 = vmatpush1.msra.mxu0 0.0
    %1452 = vmatprep.subr.mxu0 0.0
    %1453 = vmatpush1.msra.mxu0 0.0
    %1454 = vmatprep.subr.mxu0 0.0
    %1455 = vmatpush1.msra.mxu0 0.0
    %1456 = vmatprep.subr.mxu0 0.0
    %1457 = vmatpush1.msra.mxu0 0.0
    %1458 = vmatprep.subr.mxu0 0.0
    %1459 = vmatpush1.msra.mxu0 0.0
    %1460 = vmatprep.subr.mxu0 0.0
    %1461 = vmatpush1.msra.mxu0 0.0
    %1462 = vmatprep.subr.mxu0 0.0
    %1463 = vmatpush1.msra.mxu0 0.0
    %1464 = vmatprep.subr.mxu0 0.0
    %1465 = vmatpush1.msra.mxu0 0.0
    %1466 = vmatprep.subr.mxu0 0.0
    %1467 = vmatpush1.msra.mxu0 0.0
    %1468 = vmatprep.subr.mxu0 0.0
    %1469 = vmatpush1.msra.mxu0 0.0
    %1470 = vmatprep.subr.mxu0 0.0
    %1471 = vmatpush1.msra.mxu0 0.0
    %1472 = vmatprep.subr.mxu0 0.0
    %1473 = vmatpush1.msra.mxu0 0.0
    %1474 = vmatprep.subr.mxu0 0.0
    %1475 = vmatpush1.msra.mxu0 0.0
    %1476 = vmatprep.subr.mxu0 0.0
    %1477 = vmatpush1.msra.mxu0 0.0
    %1478 = vmatprep.subr.mxu0 0.0
    %1479 = vmatpush1.msra.mxu0 0.0
    %1480 = vmatprep.subr.mxu0 0.0
    %1481 = vmatpush1.msra.mxu0 0.0
    %1482 = vmatprep.mubr.f32.mxu0 0.0
    %1483 = vmatmul.mubr.f32.gmra.mrb[0].mxu0 %v1318
    %v1484 = vpop.f32.mrb[0].mxu0
    %v1485 = vadd.f32 0.0, %v1484
    %v1486 = vpop.f32.mrb[0].mxu0
    %v1487 = vadd.f32 0.0, %v1486
    %1488 = vmatprep.mubr.f32.mxu0 0.0
    %1489 = vmatmul.mubr.f32.gmra.mrb[0].mxu0 %v1321
    %v1490 = vpop.f32.mrb[0].mxu0
    %v1491 = vadd.f32 0.0, %v1490
    %v1492 = vpop.f32.mrb[0].mxu0
    %v1493 = vadd.f32 0.0, %v1492
    %1494 = vmatprep.mubr.f32.mxu0 0.0
    %1495 = vmatmul.mubr.f32.gmra.mrb[0].mxu0 %v1324
    %v1496 = vpop.f32.mrb[0].mxu0
    %v1497 = vadd.f32 0.0, %v1496
    %v1498 = vpop.f32.mrb[0].mxu0
    %v1499 = vadd.f32 0.0, %v1498
    %1500 = vmatprep.mubr.f32.mxu0 0.0
    %1501 = vmatmul.mubr.f32.gmra.mrb[0].mxu0 %v1327
    %v1502 = vpop.f32.mrb[0].mxu0
    %v1503 = vadd.f32 0.0, %v1502
    %v1504 = vpop.f32.mrb[0].mxu0
    %v1505 = vadd.f32 0.0, %v1504
    %1506 = vdwg.mxu0
    %v1507 = vadd.f32 %v991, %v1396
    %v1508 = vadd.f32 %v993, %v1398
    %v1509 = vadd.f32 %v1080, %v1485
    %v1510 = vadd.f32 %v1082, %v1487
    %v1511 = vadd.f32 %v997, %v1402
    %v1512 = vadd.f32 %v999, %v1404
    %v1513 = vadd.f32 %v1086, %v1491
    %v1514 = vadd.f32 %v1088, %v1493
    %v1515 = vadd.f32 %v1003, %v1408
    %v1516 = vadd.f32 %v1005, %v1410
    %v1517 = vadd.f32 %v1092, %v1497
    %v1518 = vadd.f32 %v1094, %v1499
    %v1519 = vadd.f32 %v1009, %v1414
    %v1520 = vadd.f32 %v1011, %v1416
    %v1521 = vadd.f32 %v1098, %v1503
    %v1522 = vadd.f32 %v1100, %v1505
    %v1523 = vlaneseq
    %v1524 = vshrl.u32 %v1523, 7
    %v1525 = vsub.s32 0, %v1524
    %v1526 = vrot.slane %v275, %v1525
    %v1527 = vlaneseq
    %v1528 = vshrl.u32 %v1527, 7
    %v1529 = vsub.s32 0, %v1528
    %v1530 = vrot.slane %v276, %v1529
    %v1531 = vlaneseq
    %v1532 = vshrl.u32 %v1531, 7
    %v1533 = vsub.s32 0, %v1532
    %v1534 = vrot.slane %v277, %v1533
    %v1535 = vlaneseq
    %v1536 = vshrl.u32 %v1535, 7
    %v1537 = vsub.s32 0, %v1536
    %v1538 = vrot.slane %v278, %v1537
    %v1539 = vadd.f32 %v1507, %v1526
    %v1540 = vadd.f32 %v1508, %v1530
    %v1541 = vadd.f32 %v1509, %v1534
    %v1542 = vadd.f32 %v1510, %v1538
    %v1543 = vadd.f32 %v1511, %v1526
    %v1544 = vadd.f32 %v1512, %v1530
    %v1545 = vadd.f32 %v1513, %v1534
    %v1546 = vadd.f32 %v1514, %v1538
    %v1547 = vadd.f32 %v1515, %v1526
    %v1548 = vadd.f32 %v1516, %v1530
    %v1549 = vadd.f32 %v1517, %v1534
    %v1550 = vadd.f32 %v1518, %v1538
    %v1551 = vadd.f32 %v1519, %v1526
    %v1552 = vadd.f32 %v1520, %v1530
    %v1553 = vadd.f32 %v1521, %v1534
    %v1554 = vadd.f32 %v1522, %v1538
    %v1555 = vld [vmem:[#allocation21] sm:$0x3]
    %v1557 = vsel %vm721, %v1555, 0
    %1559 = vmatprep.subr.mxu0 %v1540
    %1560 = vmatpush1.msra.mxu0 %v1539
    %1561 = vmatprep.subr.mxu0 %v1544
    %1562 = vmatpush1.msra.mxu0 %v1543
    %1563 = vmatprep.subr.mxu0 %v1548
    %1564 = vmatpush1.msra.mxu0 %v1547
    %1565 = vmatprep.subr.mxu0 %v1552
    %1566 = vmatpush1.msra.mxu0 %v1551
    %1567 = vmatprep.subr.mxu0 0.0
    %1568 = vmatpush1.msra.mxu0 0.0
    %1569 = vmatprep.subr.mxu0 0.0
    %1570 = vmatpush1.msra.mxu0 0.0
    %1571 = vmatprep.subr.mxu0 0.0
    %1572 = vmatpush1.msra.mxu0 0.0
    %1573 = vmatprep.subr.mxu0 0.0
    %1574 = vmatpush1.msra.mxu0 0.0
    %1575 = vmatprep.subr.mxu0 0.0
    %1576 = vmatpush1.msra.mxu0 0.0
    %1577 = vmatprep.subr.mxu0 0.0
    %1578 = vmatpush1.msra.mxu0 0.0
    %1579 = vmatprep.subr.mxu0 0.0
    %1580 = vmatpush1.msra.mxu0 0.0
    %1581 = vmatprep.subr.mxu0 0.0
    %1582 = vmatpush1.msra.mxu0 0.0
    %1583 = vmatprep.subr.mxu0 0.0
    %1584 = vmatpush1.msra.mxu0 0.0
    %1585 = vmatprep.subr.mxu0 0.0
    %1586 = vmatpush1.msra.mxu0 0.0
    %1587 = vmatprep.subr.mxu0 0.0
    %1588 = vmatpush1.msra.mxu0 0.0
    %1589 = vmatprep.subr.mxu0 0.0
    %1590 = vmatpush1.msra.mxu0 0.0
    %1591 = vmatprep.subr.mxu0 0.0
    %1592 = vmatpush1.msra.mxu0 0.0
    %1593 = vmatprep.subr.mxu0 0.0
    %1594 = vmatpush1.msra.mxu0 0.0
    %1595 = vmatprep.subr.mxu0 0.0
    %1596 = vmatpush1.msra.mxu0 0.0
    %1597 = vmatprep.subr.mxu0 0.0
    %1598 = vmatpush1.msra.mxu0 0.0
    %1599 = vmatprep.subr.mxu0 0.0
    %1600 = vmatpush1.msra.mxu0 0.0
    %1601 = vmatprep.subr.mxu0 0.0
    %1602 = vmatpush1.msra.mxu0 0.0
    %1603 = vmatprep.subr.mxu0 0.0
    %1604 = vmatpush1.msra.mxu0 0.0
    %1605 = vmatprep.subr.mxu0 0.0
    %1606 = vmatpush1.msra.mxu0 0.0
    %1607 = vmatprep.subr.mxu0 0.0
    %1608 = vmatpush1.msra.mxu0 0.0
    %1609 = vmatprep.subr.mxu0 0.0
    %1610 = vmatpush1.msra.mxu0 0.0
    %1611 = vmatprep.subr.mxu0 0.0
    %1612 = vmatpush1.msra.mxu0 0.0
    %1613 = vmatprep.subr.mxu0 0.0
    %1614 = vmatpush1.msra.mxu0 0.0
    %1615 = vmatprep.subr.mxu0 0.0
    %1616 = vmatpush1.msra.mxu0 0.0
    %1617 = vmatprep.subr.mxu0 0.0
    %1618 = vmatpush1.msra.mxu0 0.0
    %1619 = vmatprep.subr.mxu0 0.0
    %1620 = vmatpush1.msra.mxu0 0.0
    %1621 = vmatprep.subr.mxu0 0.0
    %1622 = vmatpush1.msra.mxu0 0.0
    %1623 = vmatprep.mubr.f32.mxu0 0.0
    %1624 = vmatmul.mubr.f32.gmra.mrb[0].mxu0 %v1557
    %v1625 = vpop.f32.mrb[0].mxu0
    %v1626 = vadd.f32 0.0, %v1625
    %v1627 = vpop.f32.mrb[0].mxu0
    %v1628 = vadd.f32 0.0, %v1627
    %1629 = vdwg.mxu0
    %1630 = vmatprep.subr.mxu0 %v1542
    %1631 = vmatpush1.msra.mxu0 %v1541
    %1632 = vmatprep.subr.mxu0 %v1546
    %1633 = vmatpush1.msra.mxu0 %v1545
    %1634 = vmatprep.subr.mxu0 %v1550
    %1635 = vmatpush1.msra.mxu0 %v1549
    %1636 = vmatprep.subr.mxu0 %v1554
    %1637 = vmatpush1.msra.mxu0 %v1553
    %1638 = vmatprep.subr.mxu0 0.0
    %1639 = vmatpush1.msra.mxu0 0.0
    %1640 = vmatprep.subr.mxu0 0.0
    %1641 = vmatpush1.msra.mxu0 0.0
    %1642 = vmatprep.subr.mxu0 0.0
    %1643 = vmatpush1.msra.mxu0 0.0
    %1644 = vmatprep.subr.mxu0 0.0
    %1645 = vmatpush1.msra.mxu0 0.0
    %1646 = vmatprep.subr.mxu0 0.0
    %1647 = vmatpush1.msra.mxu0 0.0
    %1648 = vmatprep.subr.mxu0 0.0
    %1649 = vmatpush1.msra.mxu0 0.0
    %1650 = vmatprep.subr.mxu0 0.0
    %1651 = vmatpush1.msra.mxu0 0.0
    %1652 = vmatprep.subr.mxu0 0.0
    %1653 = vmatpush1.msra.mxu0 0.0
    %1654 = vmatprep.subr.mxu0 0.0
    %1655 = vmatpush1.msra.mxu0 0.0
    %1656 = vmatprep.subr.mxu0 0.0
    %1657 = vmatpush1.msra.mxu0 0.0
    %1658 = vmatprep.subr.mxu0 0.0
    %1659 = vmatpush1.msra.mxu0 0.0
    %1660 = vmatprep.subr.mxu0 0.0
    %1661 = vmatpush1.msra.mxu0 0.0
    %1662 = vmatprep.subr.mxu0 0.0
    %1663 = vmatpush1.msra.mxu0 0.0
    %1664 = vmatprep.subr.mxu0 0.0
    %1665 = vmatpush1.msra.mxu0 0.0
    %1666 = vmatprep.subr.mxu0 0.0
    %1667 = vmatpush1.msra.mxu0 0.0
    %1668 = vmatprep.subr.mxu0 0.0
    %1669 = vmatpush1.msra.mxu0 0.0
    %1670 = vmatprep.subr.mxu0 0.0
    %1671 = vmatpush1.msra.mxu0 0.0
    %1672 = vmatprep.subr.mxu0 0.0
    %1673 = vmatpush1.msra.mxu0 0.0
    %1674 = vmatprep.subr.mxu0 0.0
    %1675 = vmatpush1.msra.mxu0 0.0
    %1676 = vmatprep.subr.mxu0 0.0
    %1677 = vmatpush1.msra.mxu0 0.0
    %1678 = vmatprep.subr.mxu0 0.0
    %1679 = vmatpush1.msra.mxu0 0.0
    %1680 = vmatprep.subr.mxu0 0.0
    %1681 = vmatpush1.msra.mxu0 0.0
    %1682 = vmatprep.subr.mxu0 0.0
    %1683 = vmatpush1.msra.mxu0 0.0
    %1684 = vmatprep.subr.mxu0 0.0
    %1685 = vmatpush1.msra.mxu0 0.0
    %1686 = vmatprep.subr.mxu0 0.0
    %1687 = vmatpush1.msra.mxu0 0.0
    %1688 = vmatprep.subr.mxu0 0.0
    %1689 = vmatpush1.msra.mxu0 0.0
    %1690 = vmatprep.subr.mxu0 0.0
    %1691 = vmatpush1.msra.mxu0 0.0
    %1692 = vmatprep.subr.mxu0 0.0
    %1693 = vmatpush1.msra.mxu0 0.0
    %1694 = vmatprep.mubr.f32.mxu0 0.0
    %1695 = vmatmul.mubr.f32.gmra.mrb[0].mxu0 %v1557
    %v1696 = vpop.f32.mrb[0].mxu0
    %v1697 = vadd.f32 0.0, %v1696
    %v1698 = vpop.f32.mrb[0].mxu0
    %v1699 = vadd.f32 0.0, %v1698
    %1700 = vdwg.mxu0
    %v1701 = vmul.f32 %v1539, %v1539
    %v1702 = vmul.f32 %v1540, %v1540
    %v1703 = vmul.f32 %v1541, %v1541
    %v1704 = vmul.f32 %v1542, %v1542
    %v1705 = vmul.f32 %v1543, %v1543
    %v1706 = vmul.f32 %v1544, %v1544
    %v1707 = vmul.f32 %v1545, %v1545
    %v1708 = vmul.f32 %v1546, %v1546
    %v1709 = vmul.f32 %v1547, %v1547
    %v1710 = vmul.f32 %v1548, %v1548
    %v1711 = vmul.f32 %v1549, %v1549
    %v1712 = vmul.f32 %v1550, %v1550
    %v1713 = vmul.f32 %v1551, %v1551
    %v1714 = vmul.f32 %v1552, %v1552
    %v1715 = vmul.f32 %v1553, %v1553
    %v1716 = vmul.f32 %v1554, %v1554
    %1717 = vmatprep.subr.mxu0 %v1702
    %1718 = vmatpush1.msra.mxu0 %v1701
    %1719 = vmatprep.subr.mxu0 %v1706
    %1720 = vmatpush1.msra.mxu0 %v1705
    %1721 = vmatprep.subr.mxu0 %v1710
    %1722 = vmatpush1.msra.mxu0 %v1709
    %1723 = vmatprep.subr.mxu0 %v1714
    %1724 = vmatpush1.msra.mxu0 %v1713
    %1725 = vmatprep.subr.mxu0 0.0
    %1726 = vmatpush1.msra.mxu0 0.0
    %1727 = vmatprep.subr.mxu0 0.0
    %1728 = vmatpush1.msra.mxu0 0.0
    %1729 = vmatprep.subr.mxu0 0.0
    %1730 = vmatpush1.msra.mxu0 0.0
    %1731 = vmatprep.subr.mxu0 0.0
    %1732 = vmatpush1.msra.mxu0 0.0
    %1733 = vmatprep.subr.mxu0 0.0
    %1734 = vmatpush1.msra.mxu0 0.0
    %1735 = vmatprep.subr.mxu0 0.0
    %1736 = vmatpush1.msra.mxu0 0.0
    %1737 = vmatprep.subr.mxu0 0.0
    %1738 = vmatpush1.msra.mxu0 0.0
    %1739 = vmatprep.subr.mxu0 0.0
    %1740 = vmatpush1.msra.mxu0 0.0
    %1741 = vmatprep.subr.mxu0 0.0
    %1742 = vmatpush1.msra.mxu0 0.0
    %1743 = vmatprep.subr.mxu0 0.0
    %1744 = vmatpush1.msra.mxu0 0.0
    %1745 = vmatprep.subr.mxu0 0.0
    %1746 = vmatpush1.msra.mxu0 0.0
    %1747 = vmatprep.subr.mxu0 0.0
    %1748 = vmatpush1.msra.mxu0 0.0
    %1749 = vmatprep.subr.mxu0 0.0
    %1750 = vmatpush1.msra.mxu0 0.0
    %1751 = vmatprep.subr.mxu0 0.0
    %1752 = vmatpush1.msra.mxu0 0.0
    %1753 = vmatprep.subr.mxu0 0.0
    %1754 = vmatpush1.msra.mxu0 0.0
    %1755 = vmatprep.subr.mxu0 0.0
    %1756 = vmatpush1.msra.mxu0 0.0
    %1757 = vmatprep.subr.mxu0 0.0
    %1758 = vmatpush1.msra.mxu0 0.0
    %1759 = vmatprep.subr.mxu0 0.0
    %1760 = vmatpush1.msra.mxu0 0.0
    %1761 = vmatprep.subr.mxu0 0.0
    %1762 = vmatpush1.msra.mxu0 0.0
    %1763 = vmatprep.subr.mxu0 0.0
    %1764 = vmatpush1.msra.mxu0 0.0
    %1765 = vmatprep.subr.mxu0 0.0
    %1766 = vmatpush1.msra.mxu0 0.0
    %1767 = vmatprep.subr.mxu0 0.0
    %1768 = vmatpush1.msra.mxu0 0.0
    %1769 = vmatprep.subr.mxu0 0.0
    %1770 = vmatpush1.msra.mxu0 0.0
    %1771 = vmatprep.subr.mxu0 0.0
    %1772 = vmatpush1.msra.mxu0 0.0
    %1773 = vmatprep.subr.mxu0 0.0
    %1774 = vmatpush1.msra.mxu0 0.0
    %1775 = vmatprep.subr.mxu0 0.0
    %1776 = vmatpush1.msra.mxu0 0.0
    %1777 = vmatprep.subr.mxu0 0.0
    %1778 = vmatpush1.msra.mxu0 0.0
    %1779 = vmatprep.subr.mxu0 0.0
    %1780 = vmatpush1.msra.mxu0 0.0
    %1781 = vmatprep.mubr.f32.mxu0 0.0
    %1782 = vmatmul.mubr.f32.gmra.mrb[0].mxu0 %v1557
    %v1783 = vpop.f32.mrb[0].mxu0
    %v1784 = vadd.f32 0.0, %v1783
    %v1785 = vpop.f32.mrb[0].mxu0
    %v1786 = vadd.f32 0.0, %v1785
    %1787 = vdwg.mxu0
    %1788 = vmatprep.subr.mxu0 %v1704
    %1789 = vmatpush1.msra.mxu0 %v1703
    %1790 = vmatprep.subr.mxu0 %v1708
    %1791 = vmatpush1.msra.mxu0 %v1707
    %1792 = vmatprep.subr.mxu0 %v1712
    %1793 = vmatpush1.msra.mxu0 %v1711
    %1794 = vmatprep.subr.mxu0 %v1716
    %1795 = vmatpush1.msra.mxu0 %v1715
    %1796 = vmatprep.subr.mxu0 0.0
    %1797 = vmatpush1.msra.mxu0 0.0
    %1798 = vmatprep.subr.mxu0 0.0
    %1799 = vmatpush1.msra.mxu0 0.0
    %1800 = vmatprep.subr.mxu0 0.0
    %1801 = vmatpush1.msra.mxu0 0.0
    %1802 = vmatprep.subr.mxu0 0.0
    %1803 = vmatpush1.msra.mxu0 0.0
    %1804 = vmatprep.subr.mxu0 0.0
    %1805 = vmatpush1.msra.mxu0 0.0
    %1806 = vmatprep.subr.mxu0 0.0
    %1807 = vmatpush1.msra.mxu0 0.0
    %1808 = vmatprep.subr.mxu0 0.0
    %1809 = vmatpush1.msra.mxu0 0.0
    %1810 = vmatprep.subr.mxu0 0.0
    %1811 = vmatpush1.msra.mxu0 0.0
    %1812 = vmatprep.subr.mxu0 0.0
    %1813 = vmatpush1.msra.mxu0 0.0
    %1814 = vmatprep.subr.mxu0 0.0
    %1815 = vmatpush1.msra.mxu0 0.0
    %1816 = vmatprep.subr.mxu0 0.0
    %1817 = vmatpush1.msra.mxu0 0.0
    %1818 = vmatprep.subr.mxu0 0.0
    %1819 = vmatpush1.msra.mxu0 0.0
    %1820 = vmatprep.subr.mxu0 0.0
    %1821 = vmatpush1.msra.mxu0 0.0
    %1822 = vmatprep.subr.mxu0 0.0
    %1823 = vmatpush1.msra.mxu0 0.0
    %1824 = vmatprep.subr.mxu0 0.0
    %1825 = vmatpush1.msra.mxu0 0.0
    %1826 = vmatprep.subr.mxu0 0.0
    %1827 = vmatpush1.msra.mxu0 0.0
    %1828 = vmatprep.subr.mxu0 0.0
    %1829 = vmatpush1.msra.mxu0 0.0
    %1830 = vmatprep.subr.mxu0 0.0
    %1831 = vmatpush1.msra.mxu0 0.0
    %1832 = vmatprep.subr.mxu0 0.0
    %1833 = vmatpush1.msra.mxu0 0.0
    %1834 = vmatprep.subr.mxu0 0.0
    %1835 = vmatpush1.msra.mxu0 0.0
    %1836 = vmatprep.subr.mxu0 0.0
    %1837 = vmatpush1.msra.mxu0 0.0
    %1838 = vmatprep.subr.mxu0 0.0
    %1839 = vmatpush1.msra.mxu0 0.0
    %1840 = vmatprep.subr.mxu0 0.0
    %1841 = vmatpush1.msra.mxu0 0.0
    %1842 = vmatprep.subr.mxu0 0.0
    %1843 = vmatpush1.msra.mxu0 0.0
    %1844 = vmatprep.subr.mxu0 0.0
    %1845 = vmatpush1.msra.mxu0 0.0
    %1846 = vmatprep.subr.mxu0 0.0
    %1847 = vmatpush1.msra.mxu0 0.0
    %1848 = vmatprep.subr.mxu0 0.0
    %1849 = vmatpush1.msra.mxu0 0.0
    %1850 = vmatprep.subr.mxu0 0.0
    %1851 = vmatpush1.msra.mxu0 0.0
    %1852 = vmatprep.mubr.f32.mxu0 0.0
    %1853 = vmatmul.mubr.f32.gmra.mrb[0].mxu0 %v1557
    %v1854 = vpop.f32.mrb[0].mxu0
    %v1855 = vadd.f32 0.0, %v1854
    %v1856 = vpop.f32.mrb[0].mxu0
    %v1857 = vadd.f32 0.0, %v1856
    %1858 = vdwg.mxu0
    %v1859 = vlaneseq
    %v1860 = vshrl.u32 %v1859, 7
    %v1861 = vsub.s32 3, %v1860
    %v1862 = vrot.slane %v275, %v1861
    %v1863 = vlaneseq
    %v1864 = vshrl.u32 %v1863, 7
    %v1865 = vsub.s32 3, %v1864
    %v1866 = vrot.slane %v276, %v1865
    %v1867 = vlaneseq
    %v1868 = vshrl.u32 %v1867, 7
    %v1869 = vsub.s32 3, %v1868
    %v1870 = vrot.slane %v277, %v1869
    %v1871 = vlaneseq
    %v1872 = vshrl.u32 %v1871, 7
    %v1873 = vsub.s32 3, %v1872
    %v1874 = vrot.slane %v278, %v1873
    %v1875 = vmul.f32 %v1626, %v1862
    %v1876 = vmul.f32 %v1628, %v1866
    %v1877 = vmul.f32 %v1697, %v1870
    %v1878 = vmul.f32 %v1699, %v1874
    %vm1879 = vcmask 1041408
    %v1880 = vsel %vm1879, %v1875, 0.0
    %v1881 = vsel %vm1879, %v1876, 0.0
    %v1882 = vadd.f32 %v1880, %v1881
    %v1883 = vsel %vm1879, %v1877, 0.0
    %v1884 = vadd.f32 %v1882, %v1883
    %v1885 = vsel %vm1879, %v1878, 0.0
    %v1886 = vadd.f32 %v1884, %v1885
    %1887 = vadd.xlane.f32.xlu0 %v1886
    %v1888 = vpop.xlane.xlu0 %1887
    %v1889 = vmul.f32 %v1784, %v1862
    %v1890 = vmul.f32 %v1786, %v1866
    %v1891 = vmul.f32 %v1855, %v1870
    %v1892 = vmul.f32 %v1857, %v1874
    %v1893 = vsel %vm1879, %v1889, 0.0
    %v1894 = vsel %vm1879, %v1890, 0.0
    %v1895 = vadd.f32 %v1893, %v1894
    %v1896 = vsel %vm1879, %v1891, 0.0
    %v1897 = vadd.f32 %v1895, %v1896
    %v1898 = vsel %vm1879, %v1892, 0.0
    %v1899 = vadd.f32 %v1897, %v1898
    %1900 = vadd.xlane.f32.xlu0 %v1899
    %v1901 = vpop.xlane.xlu0 %1900
    %v1902 = vsel %vm1879, %v1626, 0.0
    %v1903 = vsel %vm1879, %v1628, 0.0
    %v1904 = vadd.f32 %v1902, %v1903
    %v1905 = vsel %vm1879, %v1697, 0.0
    %v1906 = vadd.f32 %v1904, %v1905
    %v1907 = vsel %vm1879, %v1699, 0.0
    %v1908 = vadd.f32 %v1906, %v1907
    %1909 = vadd.xlane.f32.xlu0 %v1908
    %v1910 = vpop.xlane.xlu0 %1909
    %v1911 = vsub.f32 %v1910, %v1888
    %v1912 = vsel %vm1879, %v1784, 0.0
    %v1913 = vsel %vm1879, %v1786, 0.0
    %v1914 = vadd.f32 %v1912, %v1913
    %v1915 = vsel %vm1879, %v1855, 0.0
    %v1916 = vadd.f32 %v1914, %v1915
    %v1917 = vsel %vm1879, %v1857, 0.0
    %v1918 = vadd.f32 %v1916, %v1917
    %1919 = vadd.xlane.f32.xlu0 %v1918
    %v1920 = vpop.xlane.xlu0 %1919
    %v1921 = vsub.f32 %v1920, %v1901
    %v1922 = vrcp.pop 4096.0
    %v1923 = vmul.f32 %v1911, %v1922
    %v1924 = vmul.f32 %v1888, %v1922
    %v1925 = vmul.f32 %v1921, %v1922
    %v1926 = vmul.f32 %v1923, %v1923
    %v1927 = vsub.f32 %v1925, %v1926
    %v1928 = vmax.f32 %v1927, 0.0
    %v1929 = vmul.f32 %v1901, %v1922
    %v1930 = vmul.f32 %v1924, %v1924
    %v1931 = vsub.f32 %v1929, %v1930
    %v1932 = vmax.f32 %v1931, 0.0
    %v1933 = vadd.f32 %v1928, 1e-05
    %v1934 = vrsqrt.pop %v1933
    %v1935 = vadd.f32 %v1932, 1e-05
    %v1936 = vrsqrt.pop %v1935
    %v1937 = vsub.f32 %v1936, %v1934
    %v1938 = vmul.f32 %v1937, %v1862
    %v1939 = vmul.f32 %v1937, %v1866
    %v1940 = vmul.f32 %v1937, %v1870
    %v1941 = vmul.f32 %v1937, %v1874
    %v1942 = vadd.f32 %v1934, %v1938
    %v1943 = vadd.f32 %v1934, %v1939
    %v1944 = vadd.f32 %v1934, %v1940
    %v1945 = vadd.f32 %v1934, %v1941
    %v1946 = vsub.f32 %v1924, %v1923
    %v1947 = vmul.f32 %v1946, %v1862
    %v1948 = vmul.f32 %v1946, %v1866
    %v1949 = vmul.f32 %v1946, %v1870
    %v1950 = vmul.f32 %v1946, %v1874
    %v1951 = vadd.f32 %v1923, %v1947
    %v1952 = vadd.f32 %v1923, %v1948
    %v1953 = vadd.f32 %v1923, %v1949
    %v1954 = vadd.f32 %v1923, %v1950
    %v1955 = vlaneseq
    %v1956 = vshrl.u32 %v1955, 7
    %v1957 = vsub.s32 1, %v1956
    %v1958 = vrot.slane %v275, %v1957
    %v1959 = vlaneseq
    %v1960 = vshrl.u32 %v1959, 7
    %v1961 = vsub.s32 1, %v1960
    %v1962 = vrot.slane %v276, %v1961
    %v1963 = vlaneseq
    %v1964 = vshrl.u32 %v1963, 7
    %v1965 = vsub.s32 1, %v1964
    %v1966 = vrot.slane %v277, %v1965
    %v1967 = vlaneseq
    %v1968 = vshrl.u32 %v1967, 7
    %v1969 = vsub.s32 1, %v1968
    %v1970 = vrot.slane %v278, %v1969
    %v1971 = vmul.f32 %v1958, %v1942
    %v1972 = vmul.f32 %v1962, %v1943
    %v1973 = vmul.f32 %v1966, %v1944
    %v1974 = vmul.f32 %v1970, %v1945
    %v1975 = vmul.f32 %v1951, %v1971
    %v1976 = vmul.f32 %v1952, %v1972
    %v1977 = vmul.f32 %v1953, %v1973
    %v1978 = vmul.f32 %v1954, %v1974
    %v1979 = vlaneseq
    %v1980 = vshrl.u32 %v1979, 7
    %v1981 = vsub.s32 2, %v1980
    %v1982 = vrot.slane %v275, %v1981
    %v1983 = vlaneseq
    %v1984 = vshrl.u32 %v1983, 7
    %v1985 = vsub.s32 2, %v1984
    %v1986 = vrot.slane %v276, %v1985
    %v1987 = vlaneseq
    %v1988 = vshrl.u32 %v1987, 7
    %v1989 = vsub.s32 2, %v1988
    %v1990 = vrot.slane %v277, %v1989
    %v1991 = vlaneseq
    %v1992 = vshrl.u32 %v1991, 7
    %v1993 = vsub.s32 2, %v1992
    %v1994 = vrot.slane %v278, %v1993
    %v1995 = vsub.f32 %v1982, %v1975
    %v1996 = vsub.f32 %v1986, %v1976
    %v1997 = vsub.f32 %v1990, %v1977
    %v1998 = vsub.f32 %v1994, %v1978
    %v1999 = vld [vmem:[%s17] sm:$0xff]
    %v2000 = vld [vmem:[%s17 + $0x8] sm:$0xff]
    %v2001 = vld [vmem:[%s17 + $0x10] sm:$0xff]
    %v2002 = vld [vmem:[%s17 + $0x18] sm:$0xff]
    %vm2003 = vcmask 15360
    %v2005 = vsel %vm2003, %v1999, 0
    %v2008 = vsel %vm2003, %v2000, 0
    %v2011 = vsel %vm2003, %v2001, 0
    %v2014 = vsel %vm2003, %v2002, 0
    %v2017 = vsel %vm1879, %v1971, 0
    %v2020 = vsel %vm1879, %v1972, 0
    %v2023 = vsel %vm1879, %v1973, 0
    %v2026 = vsel %vm1879, %v1974, 0
    %2028 = vmatprep.subr.mxu0 %v2020
    %2029 = vmatpush1.msra.mxu0 %v2017
    %2030 = vmatprep.subr.mxu0 0.0
    %2031 = vmatpush1.msra.mxu0 0.0
    %2032 = vmatprep.subr.mxu0 0.0
    %2033 = vmatpush1.msra.mxu0 0.0
    %2034 = vmatprep.subr.mxu0 0.0
    %2035 = vmatpush1.msra.mxu0 0.0
    %2036 = vmatprep.subr.mxu0 0.0
    %2037 = vmatpush1.msra.mxu0 0.0
    %2038 = vmatprep.subr.mxu0 0.0
    %2039 = vmatpush1.msra.mxu0 0.0
    %2040 = vmatprep.subr.mxu0 0.0
    %2041 = vmatpush1.msra.mxu0 0.0
    %2042 = vmatprep.subr.mxu0 0.0
    %2043 = vmatpush1.msra.mxu0 0.0
    %2044 = vmatprep.subr.mxu0 0.0
    %2045 = vmatpush1.msra.mxu0 0.0
    %2046 = vmatprep.subr.mxu0 0.0
    %2047 = vmatpush1.msra.mxu0 0.0
    %2048 = vmatprep.subr.mxu0 0.0
    %2049 = vmatpush1.msra.mxu0 0.0
    %2050 = vmatprep.subr.mxu0 0.0
    %2051 = vmatpush1.msra.mxu0 0.0
    %2052 = vmatprep.subr.mxu0 0.0
    %2053 = vmatpush1.msra.mxu0 0.0
    %2054 = vmatprep.subr.mxu0 0.0
    %2055 = vmatpush1.msra.mxu0 0.0
    %2056 = vmatprep.subr.mxu0 0.0
    %2057 = vmatpush1.msra.mxu0 0.0
    %2058 = vmatprep.subr.mxu0 0.0
    %2059 = vmatpush1.msra.mxu0 0.0
    %2060 = vmatprep.subr.mxu0 0.0
    %2061 = vmatpush1.msra.mxu0 0.0
    %2062 = vmatprep.subr.mxu0 0.0
    %2063 = vmatpush1.msra.mxu0 0.0
    %2064 = vmatprep.subr.mxu0 0.0
    %2065 = vmatpush1.msra.mxu0 0.0
    %2066 = vmatprep.subr.mxu0 0.0
    %2067 = vmatpush1.msra.mxu0 0.0
    %2068 = vmatprep.subr.mxu0 0.0
    %2069 = vmatpush1.msra.mxu0 0.0
    %2070 = vmatprep.subr.mxu0 0.0
    %2071 = vmatpush1.msra.mxu0 0.0
    %2072 = vmatprep.subr.mxu0 0.0
    %2073 = vmatpush1.msra.mxu0 0.0
    %2074 = vmatprep.subr.mxu0 0.0
    %2075 = vmatpush1.msra.mxu0 0.0
    %2076 = vmatprep.subr.mxu0 0.0
    %2077 = vmatpush1.msra.mxu0 0.0
    %2078 = vmatprep.subr.mxu0 0.0
    %2079 = vmatpush1.msra.mxu0 0.0
    %2080 = vmatprep.subr.mxu0 0.0
    %2081 = vmatpush1.msra.mxu0 0.0
    %2082 = vmatprep.subr.mxu0 0.0
    %2083 = vmatpush1.msra.mxu0 0.0
    %2084 = vmatprep.subr.mxu0 0.0
    %2085 = vmatpush1.msra.mxu0 0.0
    %2086 = vmatprep.subr.mxu0 0.0
    %2087 = vmatpush1.msra.mxu0 0.0
    %2088 = vmatprep.subr.mxu0 0.0
    %2089 = vmatpush1.msra.mxu0 0.0
    %2090 = vmatprep.subr.mxu0 0.0
    %2091 = vmatpush1.msra.mxu0 0.0
    %2092 = vmatprep.mubr.f32.mxu0 0.0
    %2093 = vmatmul.mubr.f32.gmra.mrb[0].mxu0 %v2005
    %v2094 = vpop.f32.mrb[0].mxu0
    %v2095 = vadd.f32 0.0, %v2094
    %v2096 = vpop.f32.mrb[0].mxu0
    %v2097 = vadd.f32 0.0, %v2096
    %2098 = vmatprep.mubr.f32.mxu0 0.0
    %2099 = vmatmul.mubr.f32.gmra.mrb[0].mxu0 %v2008
    %v2100 = vpop.f32.mrb[0].mxu0
    %v2101 = vadd.f32 0.0, %v2100
    %v2102 = vpop.f32.mrb[0].mxu0
    %v2103 = vadd.f32 0.0, %v2102
    %2104 = vmatprep.mubr.f32.mxu0 0.0
    %2105 = vmatmul.mubr.f32.gmra.mrb[0].mxu0 %v2011
    %v2106 = vpop.f32.mrb[0].mxu0
    %v2107 = vadd.f32 0.0, %v2106
    %v2108 = vpop.f32.mrb[0].mxu0
    %v2109 = vadd.f32 0.0, %v2108
    %2110 = vmatprep.mubr.f32.mxu0 0.0
    %2111 = vmatmul.mubr.f32.gmra.mrb[0].mxu0 %v2014
    %v2112 = vpop.f32.mrb[0].mxu0
    %v2113 = vadd.f32 0.0, %v2112
    %v2114 = vpop.f32.mrb[0].mxu0
    %v2115 = vadd.f32 0.0, %v2114
    %2116 = vdwg.mxu0
    %2117 = vmatprep.subr.mxu0 %v2026
    %2118 = vmatpush1.msra.mxu0 %v2023
    %2119 = vmatprep.subr.mxu0 0.0
    %2120 = vmatpush1.msra.mxu0 0.0
    %2121 = vmatprep.subr.mxu0 0.0
    %2122 = vmatpush1.msra.mxu0 0.0
    %2123 = vmatprep.subr.mxu0 0.0
    %2124 = vmatpush1.msra.mxu0 0.0
    %2125 = vmatprep.subr.mxu0 0.0
    %2126 = vmatpush1.msra.mxu0 0.0
    %2127 = vmatprep.subr.mxu0 0.0
    %2128 = vmatpush1.msra.mxu0 0.0
    %2129 = vmatprep.subr.mxu0 0.0
    %2130 = vmatpush1.msra.mxu0 0.0
    %2131 = vmatprep.subr.mxu0 0.0
    %2132 = vmatpush1.msra.mxu0 0.0
    %2133 = vmatprep.subr.mxu0 0.0
    %2134 = vmatpush1.msra.mxu0 0.0
    %2135 = vmatprep.subr.mxu0 0.0
    %2136 = vmatpush1.msra.mxu0 0.0
    %2137 = vmatprep.subr.mxu0 0.0
    %2138 = vmatpush1.msra.mxu0 0.0
    %2139 = vmatprep.subr.mxu0 0.0
    %2140 = vmatpush1.msra.mxu0 0.0
    %2141 = vmatprep.subr.mxu0 0.0
    %2142 = vmatpush1.msra.mxu0 0.0
    %2143 = vmatprep.subr.mxu0 0.0
    %2144 = vmatpush1.msra.mxu0 0.0
    %2145 = vmatprep.subr.mxu0 0.0
    %2146 = vmatpush1.msra.mxu0 0.0
    %2147 = vmatprep.subr.mxu0 0.0
    %2148 = vmatpush1.msra.mxu0 0.0
    %2149 = vmatprep.subr.mxu0 0.0
    %2150 = vmatpush1.msra.mxu0 0.0
    %2151 = vmatprep.subr.mxu0 0.0
    %2152 = vmatpush1.msra.mxu0 0.0
    %2153 = vmatprep.subr.mxu0 0.0
    %2154 = vmatpush1.msra.mxu0 0.0
    %2155 = vmatprep.subr.mxu0 0.0
    %2156 = vmatpush1.msra.mxu0 0.0
    %2157 = vmatprep.subr.mxu0 0.0
    %2158 = vmatpush1.msra.mxu0 0.0
    %2159 = vmatprep.subr.mxu0 0.0
    %2160 = vmatpush1.msra.mxu0 0.0
    %2161 = vmatprep.subr.mxu0 0.0
    %2162 = vmatpush1.msra.mxu0 0.0
    %2163 = vmatprep.subr.mxu0 0.0
    %2164 = vmatpush1.msra.mxu0 0.0
    %2165 = vmatprep.subr.mxu0 0.0
    %2166 = vmatpush1.msra.mxu0 0.0
    %2167 = vmatprep.subr.mxu0 0.0
    %2168 = vmatpush1.msra.mxu0 0.0
    %2169 = vmatprep.subr.mxu0 0.0
    %2170 = vmatpush1.msra.mxu0 0.0
    %2171 = vmatprep.subr.mxu0 0.0
    %2172 = vmatpush1.msra.mxu0 0.0
    %2173 = vmatprep.subr.mxu0 0.0
    %2174 = vmatpush1.msra.mxu0 0.0
    %2175 = vmatprep.subr.mxu0 0.0
    %2176 = vmatpush1.msra.mxu0 0.0
    %2177 = vmatprep.subr.mxu0 0.0
    %2178 = vmatpush1.msra.mxu0 0.0
    %2179 = vmatprep.subr.mxu0 0.0
    %2180 = vmatpush1.msra.mxu0 0.0
    %2181 = vmatprep.mubr.f32.mxu0 0.0
    %2182 = vmatmul.mubr.f32.gmra.mrb[0].mxu0 %v2005
    %v2183 = vpop.f32.mrb[0].mxu0
    %v2184 = vadd.f32 0.0, %v2183
    %v2185 = vpop.f32.mrb[0].mxu0
    %v2186 = vadd.f32 0.0, %v2185
    %2187 = vmatprep.mubr.f32.mxu0 0.0
    %2188 = vmatmul.mubr.f32.gmra.mrb[0].mxu0 %v2008
    %v2189 = vpop.f32.mrb[0].mxu0
    %v2190 = vadd.f32 0.0, %v2189
    %v2191 = vpop.f32.mrb[0].mxu0
    %v2192 = vadd.f32 0.0, %v2191
    %2193 = vmatprep.mubr.f32.mxu0 0.0
    %2194 = vmatmul.mubr.f32.gmra.mrb[0].mxu0 %v2011
    %v2195 = vpop.f32.mrb[0].mxu0
    %v2196 = vadd.f32 0.0, %v2195
    %v2197 = vpop.f32.mrb[0].mxu0
    %v2198 = vadd.f32 0.0, %v2197
    %2199 = vmatprep.mubr.f32.mxu0 0.0
    %2200 = vmatmul.mubr.f32.gmra.mrb[0].mxu0 %v2014
    %v2201 = vpop.f32.mrb[0].mxu0
    %v2202 = vadd.f32 0.0, %v2201
    %v2203 = vpop.f32.mrb[0].mxu0
    %v2204 = vadd.f32 0.0, %v2203
    %2205 = vdwg.mxu0
    %v2207 = vsel %vm1879, %v1995, 0
    %v2210 = vsel %vm1879, %v1996, 0
    %v2213 = vsel %vm1879, %v1997, 0
    %v2216 = vsel %vm1879, %v1998, 0
    %2218 = vmatprep.subr.mxu0 %v2210
    %2219 = vmatpush1.msra.mxu0 %v2207
    %2220 = vmatprep.subr.mxu0 0.0
    %2221 = vmatpush1.msra.mxu0 0.0
    %2222 = vmatprep.subr.mxu0 0.0
    %2223 = vmatpush1.msra.mxu0 0.0
    %2224 = vmatprep.subr.mxu0 0.0
    %2225 = vmatpush1.msra.mxu0 0.0
    %2226 = vmatprep.subr.mxu0 0.0
    %2227 = vmatpush1.msra.mxu0 0.0
    %2228 = vmatprep.subr.mxu0 0.0
    %2229 = vmatpush1.msra.mxu0 0.0
    %2230 = vmatprep.subr.mxu0 0.0
    %2231 = vmatpush1.msra.mxu0 0.0
    %2232 = vmatprep.subr.mxu0 0.0
    %2233 = vmatpush1.msra.mxu0 0.0
    %2234 = vmatprep.subr.mxu0 0.0
    %2235 = vmatpush1.msra.mxu0 0.0
    %2236 = vmatprep.subr.mxu0 0.0
    %2237 = vmatpush1.msra.mxu0 0.0
    %2238 = vmatprep.subr.mxu0 0.0
    %2239 = vmatpush1.msra.mxu0 0.0
    %2240 = vmatprep.subr.mxu0 0.0
    %2241 = vmatpush1.msra.mxu0 0.0
    %2242 = vmatprep.subr.mxu0 0.0
    %2243 = vmatpush1.msra.mxu0 0.0
    %2244 = vmatprep.subr.mxu0 0.0
    %2245 = vmatpush1.msra.mxu0 0.0
    %2246 = vmatprep.subr.mxu0 0.0
    %2247 = vmatpush1.msra.mxu0 0.0
    %2248 = vmatprep.subr.mxu0 0.0
    %2249 = vmatpush1.msra.mxu0 0.0
    %2250 = vmatprep.subr.mxu0 0.0
    %2251 = vmatpush1.msra.mxu0 0.0
    %2252 = vmatprep.subr.mxu0 0.0
    %2253 = vmatpush1.msra.mxu0 0.0
    %2254 = vmatprep.subr.mxu0 0.0
    %2255 = vmatpush1.msra.mxu0 0.0
    %2256 = vmatprep.subr.mxu0 0.0
    %2257 = vmatpush1.msra.mxu0 0.0
    %2258 = vmatprep.subr.mxu0 0.0
    %2259 = vmatpush1.msra.mxu0 0.0
    %2260 = vmatprep.subr.mxu0 0.0
    %2261 = vmatpush1.msra.mxu0 0.0
    %2262 = vmatprep.subr.mxu0 0.0
    %2263 = vmatpush1.msra.mxu0 0.0
    %2264 = vmatprep.subr.mxu0 0.0
    %2265 = vmatpush1.msra.mxu0 0.0
    %2266 = vmatprep.subr.mxu0 0.0
    %2267 = vmatpush1.msra.mxu0 0.0
    %2268 = vmatprep.subr.mxu0 0.0
    %2269 = vmatpush1.msra.mxu0 0.0
    %2270 = vmatprep.subr.mxu0 0.0
    %2271 = vmatpush1.msra.mxu0 0.0
    %2272 = vmatprep.subr.mxu0 0.0
    %2273 = vmatpush1.msra.mxu0 0.0
    %2274 = vmatprep.subr.mxu0 0.0
    %2275 = vmatpush1.msra.mxu0 0.0
    %2276 = vmatprep.subr.mxu0 0.0
    %2277 = vmatpush1.msra.mxu0 0.0
    %2278 = vmatprep.subr.mxu0 0.0
    %2279 = vmatpush1.msra.mxu0 0.0
    %2280 = vmatprep.subr.mxu0 0.0
    %2281 = vmatpush1.msra.mxu0 0.0
    %2282 = vmatprep.mubr.f32.mxu0 0.0
    %2283 = vmatmul.mubr.f32.gmra.mrb[0].mxu0 %v2005
    %v2284 = vpop.f32.mrb[0].mxu0
    %v2285 = vadd.f32 0.0, %v2284
    %v2286 = vpop.f32.mrb[0].mxu0
    %v2287 = vadd.f32 0.0, %v2286
    %2288 = vmatprep.mubr.f32.mxu0 0.0
    %2289 = vmatmul.mubr.f32.gmra.mrb[0].mxu0 %v2008
    %v2290 = vpop.f32.mrb[0].mxu0
    %v2291 = vadd.f32 0.0, %v2290
    %v2292 = vpop.f32.mrb[0].mxu0
    %v2293 = vadd.f32 0.0, %v2292
    %2294 = vmatprep.mubr.f32.mxu0 0.0
    %2295 = vmatmul.mubr.f32.gmra.mrb[0].mxu0 %v2011
    %v2296 = vpop.f32.mrb[0].mxu0
    %v2297 = vadd.f32 0.0, %v2296
    %v2298 = vpop.f32.mrb[0].mxu0
    %v2299 = vadd.f32 0.0, %v2298
    %2300 = vmatprep.mubr.f32.mxu0 0.0
    %2301 = vmatmul.mubr.f32.gmra.mrb[0].mxu0 %v2014
    %v2302 = vpop.f32.mrb[0].mxu0
    %v2303 = vadd.f32 0.0, %v2302
    %v2304 = vpop.f32.mrb[0].mxu0
    %v2305 = vadd.f32 0.0, %v2304
    %2306 = vdwg.mxu0
    %2307 = vmatprep.subr.mxu0 %v2216
    %2308 = vmatpush1.msra.mxu0 %v2213
    %2309 = vmatprep.subr.mxu0 0.0
    %2310 = vmatpush1.msra.mxu0 0.0
    %2311 = vmatprep.subr.mxu0 0.0
    %2312 = vmatpush1.msra.mxu0 0.0
    %2313 = vmatprep.subr.mxu0 0.0
    %2314 = vmatpush1.msra.mxu0 0.0
    %2315 = vmatprep.subr.mxu0 0.0
    %2316 = vmatpush1.msra.mxu0 0.0
    %2317 = vmatprep.subr.mxu0 0.0
    %2318 = vmatpush1.msra.mxu0 0.0
    %2319 = vmatprep.subr.mxu0 0.0
    %2320 = vmatpush1.msra.mxu0 0.0
    %2321 = vmatprep.subr.mxu0 0.0
    %2322 = vmatpush1.msra.mxu0 0.0
    %2323 = vmatprep.subr.mxu0 0.0
    %2324 = vmatpush1.msra.mxu0 0.0
    %2325 = vmatprep.subr.mxu0 0.0
    %2326 = vmatpush1.msra.mxu0 0.0
    %2327 = vmatprep.subr.mxu0 0.0
    %2328 = vmatpush1.msra.mxu0 0.0
    %2329 = vmatprep.subr.mxu0 0.0
    %2330 = vmatpush1.msra.mxu0 0.0
    %2331 = vmatprep.subr.mxu0 0.0
    %2332 = vmatpush1.msra.mxu0 0.0
    %2333 = vmatprep.subr.mxu0 0.0
    %2334 = vmatpush1.msra.mxu0 0.0
    %2335 = vmatprep.subr.mxu0 0.0
    %2336 = vmatpush1.msra.mxu0 0.0
    %2337 = vmatprep.subr.mxu0 0.0
    %2338 = vmatpush1.msra.mxu0 0.0
    %2339 = vmatprep.subr.mxu0 0.0
    %2340 = vmatpush1.msra.mxu0 0.0
    %2341 = vmatprep.subr.mxu0 0.0
    %2342 = vmatpush1.msra.mxu0 0.0
    %2343 = vmatprep.subr.mxu0 0.0
    %2344 = vmatpush1.msra.mxu0 0.0
    %2345 = vmatprep.subr.mxu0 0.0
    %2346 = vmatpush1.msra.mxu0 0.0
    %2347 = vmatprep.subr.mxu0 0.0
    %2348 = vmatpush1.msra.mxu0 0.0
    %2349 = vmatprep.subr.mxu0 0.0
    %2350 = vmatpush1.msra.mxu0 0.0
    %2351 = vmatprep.subr.mxu0 0.0
    %2352 = vmatpush1.msra.mxu0 0.0
    %2353 = vmatprep.subr.mxu0 0.0
    %2354 = vmatpush1.msra.mxu0 0.0
    %2355 = vmatprep.subr.mxu0 0.0
    %2356 = vmatpush1.msra.mxu0 0.0
    %2357 = vmatprep.subr.mxu0 0.0
    %2358 = vmatpush1.msra.mxu0 0.0
    %2359 = vmatprep.subr.mxu0 0.0
    %2360 = vmatpush1.msra.mxu0 0.0
    %2361 = vmatprep.subr.mxu0 0.0
    %2362 = vmatpush1.msra.mxu0 0.0
    %2363 = vmatprep.subr.mxu0 0.0
    %2364 = vmatpush1.msra.mxu0 0.0
    %2365 = vmatprep.subr.mxu0 0.0
    %2366 = vmatpush1.msra.mxu0 0.0
    %2367 = vmatprep.subr.mxu0 0.0
    %2368 = vmatpush1.msra.mxu0 0.0
    %2369 = vmatprep.subr.mxu0 0.0
    %2370 = vmatpush1.msra.mxu0 0.0
    %2371 = vmatprep.mubr.f32.mxu0 0.0
    %2372 = vmatmul.mubr.f32.gmra.mrb[0].mxu0 %v2005
    %v2373 = vpop.f32.mrb[0].mxu0
    %v2374 = vadd.f32 0.0, %v2373
    %v2375 = vpop.f32.mrb[0].mxu0
    %v2376 = vadd.f32 0.0, %v2375
    %2377 = vmatprep.mubr.f32.mxu0 0.0
    %2378 = vmatmul.mubr.f32.gmra.mrb[0].mxu0 %v2008
    %v2379 = vpop.f32.mrb[0].mxu0
    %v2380 = vadd.f32 0.0, %v2379
    %v2381 = vpop.f32.mrb[0].mxu0
    %v2382 = vadd.f32 0.0, %v2381
    %2383 = vmatprep.mubr.f32.mxu0 0.0
    %2384 = vmatmul.mubr.f32.gmra.mrb[0].mxu0 %v2011
    %v2385 = vpop.f32.mrb[0].mxu0
    %v2386 = vadd.f32 0.0, %v2385
    %v2387 = vpop.f32.mrb[0].mxu0
    %v2388 = vadd.f32 0.0, %v2387
    %2389 = vmatprep.mubr.f32.mxu0 0.0
    %2390 = vmatmul.mubr.f32.gmra.mrb[0].mxu0 %v2014
    %v2391 = vpop.f32.mrb[0].mxu0
    %v2392 = vadd.f32 0.0, %v2391
    %v2393 = vpop.f32.mrb[0].mxu0
    %v2394 = vadd.f32 0.0, %v2393
    %2395 = vdwg.mxu0
    %v2396 = vmul.f32 %v1539, %v2095
    %v2397 = vmul.f32 %v1540, %v2097
    %v2398 = vmul.f32 %v1541, %v2184
    %v2399 = vmul.f32 %v1542, %v2186
    %v2400 = vmul.f32 %v1543, %v2101
    %v2401 = vmul.f32 %v1544, %v2103
    %v2402 = vmul.f32 %v1545, %v2190
    %v2403 = vmul.f32 %v1546, %v2192
    %v2404 = vmul.f32 %v1547, %v2107
    %v2405 = vmul.f32 %v1548, %v2109
    %v2406 = vmul.f32 %v1549, %v2196
    %v2407 = vmul.f32 %v1550, %v2198
    %v2408 = vmul.f32 %v1551, %v2113
    %v2409 = vmul.f32 %v1552, %v2115
    %v2410 = vmul.f32 %v1553, %v2202
    %v2411 = vmul.f32 %v1554, %v2204
    %v2412 = vadd.f32 %v2396, %v2285
    %v2413 = vadd.f32 %v2397, %v2287
    %v2414 = vadd.f32 %v2398, %v2374
    %v2415 = vadd.f32 %v2399, %v2376
    %v2416 = vadd.f32 %v2400, %v2291
    %v2417 = vadd.f32 %v2401, %v2293
    %v2418 = vadd.f32 %v2402, %v2380
    %v2419 = vadd.f32 %v2403, %v2382
    %v2420 = vadd.f32 %v2404, %v2297
    %v2421 = vadd.f32 %v2405, %v2299
    %v2422 = vadd.f32 %v2406, %v2386
    %v2423 = vadd.f32 %v2407, %v2388
    %v2424 = vadd.f32 %v2408, %v2303
    %v2425 = vadd.f32 %v2409, %v2305
    %v2426 = vadd.f32 %v2410, %v2392
    %v2427 = vadd.f32 %v2411, %v2394
    %vm2428 = vcmp.ge.f32.partialorder %v2412, 0.0
    %vm2429 = vcmp.ge.f32.partialorder %v2413, 0.0
    %vm2430 = vcmp.ge.f32.partialorder %v2414, 0.0
    %vm2431 = vcmp.ge.f32.partialorder %v2415, 0.0
    %vm2432 = vcmp.ge.f32.partialorder %v2416, 0.0
    %vm2433 = vcmp.ge.f32.partialorder %v2417, 0.0
    %vm2434 = vcmp.ge.f32.partialorder %v2418, 0.0
    %vm2435 = vcmp.ge.f32.partialorder %v2419, 0.0
    %vm2436 = vcmp.ge.f32.partialorder %v2420, 0.0
    %vm2437 = vcmp.ge.f32.partialorder %v2421, 0.0
    %vm2438 = vcmp.ge.f32.partialorder %v2422, 0.0
    %vm2439 = vcmp.ge.f32.partialorder %v2423, 0.0
    %vm2440 = vcmp.ge.f32.partialorder %v2424, 0.0
    %vm2441 = vcmp.ge.f32.partialorder %v2425, 0.0
    %vm2442 = vcmp.ge.f32.partialorder %v2426, 0.0
    %vm2443 = vcmp.ge.f32.partialorder %v2427, 0.0
    %v2444 = vmul.f32 %v2412, 0.2
    %v2445 = vmul.f32 %v2413, 0.2
    %v2446 = vmul.f32 %v2414, 0.2
    %v2447 = vmul.f32 %v2415, 0.2
    %v2448 = vmul.f32 %v2416, 0.2
    %v2449 = vmul.f32 %v2417, 0.2
    %v2450 = vmul.f32 %v2418, 0.2
    %v2451 = vmul.f32 %v2419, 0.2
    %v2452 = vmul.f32 %v2420, 0.2
    %v2453 = vmul.f32 %v2421, 0.2
    %v2454 = vmul.f32 %v2422, 0.2
    %v2455 = vmul.f32 %v2423, 0.2
    %v2456 = vmul.f32 %v2424, 0.2
    %v2457 = vmul.f32 %v2425, 0.2
    %v2458 = vmul.f32 %v2426, 0.2
    %v2459 = vmul.f32 %v2427, 0.2
    %v2460 = vsel %vm2428, %v2412, %v2444
    %v2461 = vsel %vm2429, %v2413, %v2445
    %v2462 = vsel %vm2430, %v2414, %v2446
    %v2463 = vsel %vm2431, %v2415, %v2447
    %v2464 = vsel %vm2432, %v2416, %v2448
    %v2465 = vsel %vm2433, %v2417, %v2449
    %v2466 = vsel %vm2434, %v2418, %v2450
    %v2467 = vsel %vm2435, %v2419, %v2451
    %v2468 = vsel %vm2436, %v2420, %v2452
    %v2469 = vsel %vm2437, %v2421, %v2453
    %v2470 = vsel %vm2438, %v2422, %v2454
    %v2471 = vsel %vm2439, %v2423, %v2455
    %v2472 = vsel %vm2440, %v2424, %v2456
    %v2473 = vsel %vm2441, %v2425, %v2457
    %v2474 = vsel %vm2442, %v2426, %v2458
    %v2475 = vsel %vm2443, %v2427, %v2459
    %2476 = vst [vmem:[%s21] sm:$0xff] %v2460
    %2477 = vst [vmem:[%s21 + $0x8] sm:$0xff] %v2461
    %2478 = vst [vmem:[%s21 + $0x10] sm:$0xff] %v2462
    %2479 = vst [vmem:[%s21 + $0x18] sm:$0xff] %v2463
    %2480 = vst [vmem:[%s21 + $0x20] sm:$0xff] %v2464
    %2481 = vst [vmem:[%s21 + $0x28] sm:$0xff] %v2465
    %2482 = vst [vmem:[%s21 + $0x30] sm:$0xff] %v2466
    %2483 = vst [vmem:[%s21 + $0x38] sm:$0xff] %v2467
    %2484 = vst [vmem:[%s21 + $0x40] sm:$0xff] %v2468
    %2485 = vst [vmem:[%s21 + $0x48] sm:$0xff] %v2469
    %2486 = vst [vmem:[%s21 + $0x50] sm:$0xff] %v2470
    %2487 = vst [vmem:[%s21 + $0x58] sm:$0xff] %v2471
    %2488 = vst [vmem:[%s21 + $0x60] sm:$0xff] %v2472
    %2489 = vst [vmem:[%s21 + $0x68] sm:$0xff] %v2473
    %2490 = vst [vmem:[%s21 + $0x70] sm:$0xff] %v2474
    %2491 = vst [vmem:[%s21 + $0x78] sm:$0xff] %v2475
    %v2492 = vld [vmem:[#allocation16] sm:$0xff]
    %v2493 = vld [vmem:[#allocation16 + $0x8] sm:$0xff]
    %v2494 = vld [vmem:[#allocation4] sm:$0xff]
    %v2495 = vld [vmem:[#allocation4 + $0x8] sm:$0xff]
    %v2496 = vld [vmem:[#allocation4 + $0x30] sm:$0xff]
    %v2497 = vld [vmem:[#allocation4 + $0x38] sm:$0xff]
    %v2498 = vld [vmem:[#allocation4 + $0x60] sm:$0xff]
    %v2499 = vld [vmem:[#allocation4 + $0x68] sm:$0xff]
    %v2500 = vld [vmem:[#allocation4 + $0x90] sm:$0xff]
    %v2501 = vld [vmem:[#allocation4 + $0x98] sm:$0xff]
    %v2502 = vld [vmem:[#allocation4 + $0xc0] sm:$0xff]
    %v2503 = vld [vmem:[#allocation4 + $0xc8] sm:$0xff]
    %v2504 = vld [vmem:[#allocation4 + $0xf0] sm:$0xff]
    %v2505 = vld [vmem:[#allocation4 + $0xf8] sm:$0xff]
    %v2506 = vld [vmem:[#allocation4 + $0x120] sm:$0xff]
    %v2507 = vld [vmem:[#allocation4 + $0x128] sm:$0xff]
    %v2508 = vld [vmem:[#allocation4 + $0x150] sm:$0xff]
    %v2509 = vld [vmem:[#allocation4 + $0x158] sm:$0xff]
    %v2510 = vld [vmem:[#allocation4 + $0x180] sm:$0xff]
    %v2511 = vld [vmem:[#allocation4 + $0x188] sm:$0xff]
    %v2512 = vld [vmem:[#allocation4 + $0x1b0] sm:$0xff]
    %v2513 = vld [vmem:[#allocation4 + $0x1b8] sm:$0xff]
    %v2514 = vld [vmem:[#allocation4 + $0x1e0] sm:$0xff]
    %v2515 = vld [vmem:[#allocation4 + $0x1e8] sm:$0xff]
    %v2516 = vld [vmem:[#allocation4 + $0x210] sm:$0xff]
    %v2517 = vld [vmem:[#allocation4 + $0x218] sm:$0xff]
    %v2518 = vld [vmem:[#allocation4 + $0x240] sm:$0xff]
    %v2519 = vld [vmem:[#allocation4 + $0x248] sm:$0xff]
    %v2520 = vld [vmem:[#allocation4 + $0x270] sm:$0xff]
    %v2521 = vld [vmem:[#allocation4 + $0x278] sm:$0xff]
    %v2522 = vld [vmem:[#allocation4 + $0x2a0] sm:$0xff]
    %v2523 = vld [vmem:[#allocation4 + $0x2a8] sm:$0xff]
    %v2524 = vld [vmem:[#allocation4 + $0x2d0] sm:$0xff]
    %v2525 = vld [vmem:[#allocation4 + $0x2d8] sm:$0xff]
    %v2526 = vld [vmem:[#allocation4 + $0x300] sm:$0xff]
    %v2527 = vld [vmem:[#allocation4 + $0x308] sm:$0xff]
    %v2528 = vld [vmem:[#allocation4 + $0x330] sm:$0xff]
    %v2529 = vld [vmem:[#allocation4 + $0x338] sm:$0xff]
    %v2530 = vld [vmem:[#allocation4 + $0x360] sm:$0xff]
    %v2531 = vld [vmem:[#allocation4 + $0x368] sm:$0xff]
    %v2532 = vld [vmem:[#allocation4 + $0x390] sm:$0xff]
    %v2533 = vld [vmem:[#allocation4 + $0x398] sm:$0xff]
    %v2534 = vld [vmem:[#allocation4 + $0x3c0] sm:$0xff]
    %v2535 = vld [vmem:[#allocation4 + $0x3c8] sm:$0xff]
    %v2536 = vld [vmem:[#allocation4 + $0x3f0] sm:$0xff]
    %v2537 = vld [vmem:[#allocation4 + $0x3f8] sm:$0xff]
    %v2538 = vld [vmem:[#allocation4 + $0x420] sm:$0xff]
    %v2539 = vld [vmem:[#allocation4 + $0x428] sm:$0xff]
    %v2540 = vld [vmem:[#allocation4 + $0x450] sm:$0xff]
    %v2541 = vld [vmem:[#allocation4 + $0x458] sm:$0xff]
    %v2542 = vld [vmem:[#allocation4 + $0x480] sm:$0xff]
    %v2543 = vld [vmem:[#allocation4 + $0x488] sm:$0xff]
    %v2544 = vld [vmem:[#allocation4 + $0x4b0] sm:$0xff]
    %v2545 = vld [vmem:[#allocation4 + $0x4b8] sm:$0xff]
    %v2546 = vld [vmem:[#allocation4 + $0x4e0] sm:$0xff]
    %v2547 = vld [vmem:[#allocation4 + $0x4e8] sm:$0xff]
    %v2548 = vld [vmem:[#allocation4 + $0x510] sm:$0xff]
    %v2549 = vld [vmem:[#allocation4 + $0x518] sm:$0xff]
    %v2550 = vld [vmem:[#allocation4 + $0x540] sm:$0xff]
    %v2551 = vld [vmem:[#allocation4 + $0x548] sm:$0xff]
    %v2552 = vld [vmem:[#allocation4 + $0x570] sm:$0xff]
    %v2553 = vld [vmem:[#allocation4 + $0x578] sm:$0xff]
    %v2554 = vld [vmem:[#allocation4 + $0x5a0] sm:$0xff]
    %v2555 = vld [vmem:[#allocation4 + $0x5a8] sm:$0xff]
    %v2556 = vld [vmem:[#allocation4 + $0x5d0] sm:$0xff]
    %v2557 = vld [vmem:[#allocation4 + $0x5d8] sm:$0xff]
    %v2558 = vld [vmem:[#allocation4 + $0x600] sm:$0xff]
    %v2559 = vld [vmem:[#allocation4 + $0x608] sm:$0xff]
    %v2560 = vld [vmem:[#allocation4 + $0x630] sm:$0xff]
    %v2561 = vld [vmem:[#allocation4 + $0x638] sm:$0xff]
    %v2562 = vld [vmem:[#allocation4 + $0x660] sm:$0xff]
    %v2563 = vld [vmem:[#allocation4 + $0x668] sm:$0xff]
    %v2564 = vld [vmem:[#allocation4 + $0x690] sm:$0xff]
    %v2565 = vld [vmem:[#allocation4 + $0x698] sm:$0xff]
    %v2566 = vld [vmem:[#allocation4 + $0x6c0] sm:$0xff]
    %v2567 = vld [vmem:[#allocation4 + $0x6c8] sm:$0xff]
    %v2568 = vld [vmem:[#allocation4 + $0x6f0] sm:$0xff]
    %v2569 = vld [vmem:[#allocation4 + $0x6f8] sm:$0xff]
    %v2570 = vld [vmem:[#allocation4 + $0x720] sm:$0xff]
    %v2571 = vld [vmem:[#allocation4 + $0x728] sm:$0xff]
    %v2572 = vld [vmem:[#allocation4 + $0x750] sm:$0xff]
    %v2573 = vld [vmem:[#allocation4 + $0x758] sm:$0xff]
    %v2574 = vld [vmem:[#allocation4 + $0x780] sm:$0xff]
    %v2575 = vld [vmem:[#allocation4 + $0x788] sm:$0xff]
    %v2576 = vld [vmem:[#allocation4 + $0x7b0] sm:$0xff]
    %v2577 = vld [vmem:[#allocation4 + $0x7b8] sm:$0xff]
    %v2578 = vld [vmem:[#allocation4 + $0x7e0] sm:$0xff]
    %v2579 = vld [vmem:[#allocation4 + $0x7e8] sm:$0xff]
    %v2580 = vld [vmem:[#allocation4 + $0x810] sm:$0xff]
    %v2581 = vld [vmem:[#allocation4 + $0x818] sm:$0xff]
    %v2582 = vld [vmem:[#allocation4 + $0x840] sm:$0xff]
    %v2583 = vld [vmem:[#allocation4 + $0x848] sm:$0xff]
    %v2584 = vld [vmem:[#allocation4 + $0x870] sm:$0xff]
    %v2585 = vld [vmem:[#allocation4 + $0x878] sm:$0xff]
    %v2586 = vld [vmem:[#allocation4 + $0x8a0] sm:$0xff]
    %v2587 = vld [vmem:[#allocation4 + $0x8a8] sm:$0xff]
    %v2588 = vld [vmem:[#allocation4 + $0x8d0] sm:$0xff]
    %v2589 = vld [vmem:[#allocation4 + $0x8d8] sm:$0xff]
    %v2590 = vld [vmem:[#allocation4 + $0x900] sm:$0xff]
    %v2591 = vld [vmem:[#allocation4 + $0x908] sm:$0xff]
    %v2592 = vld [vmem:[#allocation4 + $0x930] sm:$0xff]
    %v2593 = vld [vmem:[#allocation4 + $0x938] sm:$0xff]
    %v2594 = vld [vmem:[#allocation4 + $0x960] sm:$0xff]
    %v2595 = vld [vmem:[#allocation4 + $0x968] sm:$0xff]
    %v2596 = vld [vmem:[#allocation4 + $0x990] sm:$0xff]
    %v2597 = vld [vmem:[#allocation4 + $0x998] sm:$0xff]
    %v2598 = vld [vmem:[#allocation4 + $0x9c0] sm:$0xff]
    %v2599 = vld [vmem:[#allocation4 + $0x9c8] sm:$0xff]
    %v2600 = vld [vmem:[#allocation4 + $0x9f0] sm:$0xff]
    %v2601 = vld [vmem:[#allocation4 + $0x9f8] sm:$0xff]
    %v2602 = vld [vmem:[#allocation4 + $0xa20] sm:$0xff]
    %v2603 = vld [vmem:[#allocation4 + $0xa28] sm:$0xff]
    %v2604 = vld [vmem:[#allocation4 + $0xa50] sm:$0xff]
    %v2605 = vld [vmem:[#allocation4 + $0xa58] sm:$0xff]
    %v2606 = vld [vmem:[#allocation4 + $0xa80] sm:$0xff]
    %v2607 = vld [vmem:[#allocation4 + $0xa88] sm:$0xff]
    %v2608 = vld [vmem:[#allocation4 + $0xab0] sm:$0xff]
    %v2609 = vld [vmem:[#allocation4 + $0xab8] sm:$0xff]
    %v2610 = vld [vmem:[#allocation4 + $0xae0] sm:$0xff]
    %v2611 = vld [vmem:[#allocation4 + $0xae8] sm:$0xff]
    %v2612 = vld [vmem:[#allocation4 + $0xb10] sm:$0xff]
    %v2613 = vld [vmem:[#allocation4 + $0xb18] sm:$0xff]
    %v2614 = vld [vmem:[#allocation4 + $0xb40] sm:$0xff]
    %v2615 = vld [vmem:[#allocation4 + $0xb48] sm:$0xff]
    %v2616 = vld [vmem:[#allocation4 + $0xb70] sm:$0xff]
    %v2617 = vld [vmem:[#allocation4 + $0xb78] sm:$0xff]
    %v2618 = vld [vmem:[#allocation4 + $0xba0] sm:$0xff]
    %v2619 = vld [vmem:[#allocation4 + $0xba8] sm:$0xff]
    %v2620 = vld [vmem:[#allocation4 + $0xbd0] sm:$0xff]
    %v2621 = vld [vmem:[#allocation4 + $0xbd8] sm:$0xff]
    %2622 = vmatprep.subr.mxu0 %v2495
    %2623 = vmatpush1.msra.mxu0 %v2494
    %2624 = vmatprep.subr.mxu0 %v2497
    %2625 = vmatpush1.msra.mxu0 %v2496
    %2626 = vmatprep.subr.mxu0 %v2499
    %2627 = vmatpush1.msra.mxu0 %v2498
    %2628 = vmatprep.subr.mxu0 %v2501
    %2629 = vmatpush1.msra.mxu0 %v2500
    %2630 = vmatprep.subr.mxu0 %v2503
    %2631 = vmatpush1.msra.mxu0 %v2502
    %2632 = vmatprep.subr.mxu0 %v2505
    %2633 = vmatpush1.msra.mxu0 %v2504
    %2634 = vmatprep.subr.mxu0 %v2507
    %2635 = vmatpush1.msra.mxu0 %v2506
    %2636 = vmatprep.subr.mxu0 %v2509
    %2637 = vmatpush1.msra.mxu0 %v2508
    %2638 = vmatprep.subr.mxu0 %v2511
    %2639 = vmatpush1.msra.mxu0 %v2510
    %2640 = vmatprep.subr.mxu0 %v2513
    %2641 = vmatpush1.msra.mxu0 %v2512
    %2642 = vmatprep.subr.mxu0 %v2515
    %2643 = vmatpush1.msra.mxu0 %v2514
    %2644 = vmatprep.subr.mxu0 %v2517
    %2645 = vmatpush1.msra.mxu0 %v2516
    %2646 = vmatprep.subr.mxu0 %v2519
    %2647 = vmatpush1.msra.mxu0 %v2518
    %2648 = vmatprep.subr.mxu0 %v2521
    %2649 = vmatpush1.msra.mxu0 %v2520
    %2650 = vmatprep.subr.mxu0 %v2523
    %2651 = vmatpush1.msra.mxu0 %v2522
    %2652 = vmatprep.subr.mxu0 %v2525
    %2653 = vmatpush1.msra.mxu0 %v2524
    %2654 = vmatprep.subr.mxu0 %v2527
    %2655 = vmatpush1.msra.mxu0 %v2526
    %2656 = vmatprep.subr.mxu0 %v2529
    %2657 = vmatpush1.msra.mxu0 %v2528
    %2658 = vmatprep.subr.mxu0 %v2531
    %2659 = vmatpush1.msra.mxu0 %v2530
    %2660 = vmatprep.subr.mxu0 %v2533
    %2661 = vmatpush1.msra.mxu0 %v2532
    %2662 = vmatprep.subr.mxu0 %v2535
    %2663 = vmatpush1.msra.mxu0 %v2534
    %2664 = vmatprep.subr.mxu0 %v2537
    %2665 = vmatpush1.msra.mxu0 %v2536
    %2666 = vmatprep.subr.mxu0 %v2539
    %2667 = vmatpush1.msra.mxu0 %v2538
    %2668 = vmatprep.subr.mxu0 %v2541
    %2669 = vmatpush1.msra.mxu0 %v2540
    %2670 = vmatprep.subr.mxu0 %v2543
    %2671 = vmatpush1.msra.mxu0 %v2542
    %2672 = vmatprep.subr.mxu0 %v2545
    %2673 = vmatpush1.msra.mxu0 %v2544
    %2674 = vmatprep.subr.mxu0 %v2547
    %2675 = vmatpush1.msra.mxu0 %v2546
    %2676 = vmatprep.subr.mxu0 %v2549
    %2677 = vmatpush1.msra.mxu0 %v2548
    %2678 = vmatprep.subr.mxu0 %v2551
    %2679 = vmatpush1.msra.mxu0 %v2550
    %2680 = vmatprep.subr.mxu0 %v2553
    %2681 = vmatpush1.msra.mxu0 %v2552
    %2682 = vmatprep.subr.mxu0 %v2555
    %2683 = vmatpush1.msra.mxu0 %v2554
    %2684 = vmatprep.subr.mxu0 %v2557
    %2685 = vmatpush1.msra.mxu0 %v2556
    %2686 = vmatprep.mubr.f32.mxu0 %v2461
    %2687 = vmatmul.mubr.f32.gmra.mrb[0].mxu0 %v2460
    %v2688 = vpop.f32.mrb[0].mxu0
    %v2689 = vadd.f32 0.0, %v2688
    %v2690 = vpop.f32.mrb[0].mxu0
    %v2691 = vadd.f32 0.0, %v2690
    %2692 = vmatprep.mubr.f32.mxu0 %v2465
    %2693 = vmatmul.mubr.f32.gmra.mrb[0].mxu0 %v2464
    %v2694 = vpop.f32.mrb[0].mxu0
    %v2695 = vadd.f32 0.0, %v2694
    %v2696 = vpop.f32.mrb[0].mxu0
    %v2697 = vadd.f32 0.0, %v2696
    %2698 = vmatprep.mubr.f32.mxu0 %v2469
    %2699 = vmatmul.mubr.f32.gmra.mrb[0].mxu0 %v2468
    %v2700 = vpop.f32.mrb[0].mxu0
    %v2701 = vadd.f32 0.0, %v2700
    %v2702 = vpop.f32.mrb[0].mxu0
    %v2703 = vadd.f32 0.0, %v2702
    %2704 = vmatprep.mubr.f32.mxu0 %v2473
    %2705 = vmatmul.mubr.f32.gmra.mrb[0].mxu0 %v2472
    %v2706 = vpop.f32.mrb[0].mxu0
    %v2707 = vadd.f32 0.0, %v2706
    %v2708 = vpop.f32.mrb[0].mxu0
    %v2709 = vadd.f32 0.0, %v2708
    %2710 = vdwg.mxu0
    %2711 = vmatprep.subr.mxu0 %v2559
    %2712 = vmatpush1.msra.mxu0 %v2558
    %2713 = vmatprep.subr.mxu0 %v2561
    %2714 = vmatpush1.msra.mxu0 %v2560
    %2715 = vmatprep.subr.mxu0 %v2563
    %2716 = vmatpush1.msra.mxu0 %v2562
    %2717 = vmatprep.subr.mxu0 %v2565
    %2718 = vmatpush1.msra.mxu0 %v2564
    %2719 = vmatprep.subr.mxu0 %v2567
    %2720 = vmatpush1.msra.mxu0 %v2566
    %2721 = vmatprep.subr.mxu0 %v2569
    %2722 = vmatpush1.msra.mxu0 %v2568
    %2723 = vmatprep.subr.mxu0 %v2571
    %2724 = vmatpush1.msra.mxu0 %v2570
    %2725 = vmatprep.subr.mxu0 %v2573
    %2726 = vmatpush1.msra.mxu0 %v2572
    %2727 = vmatprep.subr.mxu0 %v2575
    %2728 = vmatpush1.msra.mxu0 %v2574
    %2729 = vmatprep.subr.mxu0 %v2577
    %2730 = vmatpush1.msra.mxu0 %v2576
    %2731 = vmatprep.subr.mxu0 %v2579
    %2732 = vmatpush1.msra.mxu0 %v2578
    %2733 = vmatprep.subr.mxu0 %v2581
    %2734 = vmatpush1.msra.mxu0 %v2580
    %2735 = vmatprep.subr.mxu0 %v2583
    %2736 = vmatpush1.msra.mxu0 %v2582
    %2737 = vmatprep.subr.mxu0 %v2585
    %2738 = vmatpush1.msra.mxu0 %v2584
    %2739 = vmatprep.subr.mxu0 %v2587
    %2740 = vmatpush1.msra.mxu0 %v2586
    %2741 = vmatprep.subr.mxu0 %v2589
    %2742 = vmatpush1.msra.mxu0 %v2588
    %2743 = vmatprep.subr.mxu0 %v2591
    %2744 = vmatpush1.msra.mxu0 %v2590
    %2745 = vmatprep.subr.mxu0 %v2593
    %2746 = vmatpush1.msra.mxu0 %v2592
    %2747 = vmatprep.subr.mxu0 %v2595
    %2748 = vmatpush1.msra.mxu0 %v2594
    %2749 = vmatprep.subr.mxu0 %v2597
    %2750 = vmatpush1.msra.mxu0 %v2596
    %2751 = vmatprep.subr.mxu0 %v2599
    %2752 = vmatpush1.msra.mxu0 %v2598
    %2753 = vmatprep.subr.mxu0 %v2601
    %2754 = vmatpush1.msra.mxu0 %v2600
    %2755 = vmatprep.subr.mxu0 %v2603
    %2756 = vmatpush1.msra.mxu0 %v2602
    %2757 = vmatprep.subr.mxu0 %v2605
    %2758 = vmatpush1.msra.mxu0 %v2604
    %2759 = vmatprep.subr.mxu0 %v2607
    %2760 = vmatpush1.msra.mxu0 %v2606
    %2761 = vmatprep.subr.mxu0 %v2609
    %2762 = vmatpush1.msra.mxu0 %v2608
    %2763 = vmatprep.subr.mxu0 %v2611
    %2764 = vmatpush1.msra.mxu0 %v2610
    %2765 = vmatprep.subr.mxu0 %v2613
    %2766 = vmatpush1.msra.mxu0 %v2612
    %2767 = vmatprep.subr.mxu0 %v2615
    %2768 = vmatpush1.msra.mxu0 %v2614
    %2769 = vmatprep.subr.mxu0 %v2617
    %2770 = vmatpush1.msra.mxu0 %v2616
    %2771 = vmatprep.subr.mxu0 %v2619
    %2772 = vmatpush1.msra.mxu0 %v2618
    %2773 = vmatprep.subr.mxu0 %v2621
    %2774 = vmatpush1.msra.mxu0 %v2620
    %2775 = vmatprep.mubr.f32.mxu0 %v2463
    %2776 = vmatmul.mubr.f32.gmra.mrb[0].mxu0 %v2462
    %v2777 = vpop.f32.mrb[0].mxu0
    %v2778 = vadd.f32 %v2689, %v2777
    %v2779 = vpop.f32.mrb[0].mxu0
    %v2780 = vadd.f32 %v2691, %v2779
    %2781 = vmatprep.mubr.f32.mxu0 %v2467
    %2782 = vmatmul.mubr.f32.gmra.mrb[0].mxu0 %v2466
    %v2783 = vpop.f32.mrb[0].mxu0
    %v2784 = vadd.f32 %v2695, %v2783
    %v2785 = vpop.f32.mrb[0].mxu0
    %v2786 = vadd.f32 %v2697, %v2785
    %2787 = vmatprep.mubr.f32.mxu0 %v2471
    %2788 = vmatmul.mubr.f32.gmra.mrb[0].mxu0 %v2470
    %v2789 = vpop.f32.mrb[0].mxu0
    %v2790 = vadd.f32 %v2701, %v2789
    %v2791 = vpop.f32.mrb[0].mxu0
    %v2792 = vadd.f32 %v2703, %v2791
    %2793 = vmatprep.mubr.f32.mxu0 %v2475
    %2794 = vmatmul.mubr.f32.gmra.mrb[0].mxu0 %v2474
    %v2795 = vpop.f32.mrb[0].mxu0
    %v2796 = vadd.f32 %v2707, %v2795
    %v2797 = vpop.f32.mrb[0].mxu0
    %v2798 = vadd.f32 %v2709, %v2797
    %2799 = vdwg.mxu0
    %v2800 = vld [vmem:[#allocation10] sm:$0xff]
    %v2801 = vld [vmem:[#allocation10 + $0x8] sm:$0xff]
    %v2802 = vld [vmem:[#allocation4 + $0x10] sm:$0xff]
    %v2803 = vld [vmem:[#allocation4 + $0x18] sm:$0xff]
    %v2804 = vld [vmem:[#allocation4 + $0x40] sm:$0xff]
    %v2805 = vld [vmem:[#allocation4 + $0x48] sm:$0xff]
    %v2806 = vld [vmem:[#allocation4 + $0x70] sm:$0xff]
    %v2807 = vld [vmem:[#allocation4 + $0x78] sm:$0xff]
    %v2808 = vld [vmem:[#allocation4 + $0xa0] sm:$0xff]
    %v2809 = vld [vmem:[#allocation4 + $0xa8] sm:$0xff]
    %v2810 = vld [vmem:[#allocation4 + $0xd0] sm:$0xff]
    %v2811 = vld [vmem:[#allocation4 + $0xd8] sm:$0xff]
    %v2812 = vld [vmem:[#allocation4 + $0x100] sm:$0xff]
    %v2813 = vld [vmem:[#allocation4 + $0x108] sm:$0xff]
    %v2814 = vld [vmem:[#allocation4 + $0x130] sm:$0xff]
    %v2815 = vld [vmem:[#allocation4 + $0x138] sm:$0xff]
    %v2816 = vld [vmem:[#allocation4 + $0x160] sm:$0xff]
    %v2817 = vld [vmem:[#allocation4 + $0x168] sm:$0xff]
    %v2818 = vld [vmem:[#allocation4 + $0x190] sm:$0xff]
    %v2819 = vld [vmem:[#allocation4 + $0x198] sm:$0xff]
    %v2820 = vld [vmem:[#allocation4 + $0x1c0] sm:$0xff]
    %v2821 = vld [vmem:[#allocation4 + $0x1c8] sm:$0xff]
    %v2822 = vld [vmem:[#allocation4 + $0x1f0] sm:$0xff]
    %v2823 = vld [vmem:[#allocation4 + $0x1f8] sm:$0xff]
    %v2824 = vld [vmem:[#allocation4 + $0x220] sm:$0xff]
    %v2825 = vld [vmem:[#allocation4 + $0x228] sm:$0xff]
    %v2826 = vld [vmem:[#allocation4 + $0x250] sm:$0xff]
    %v2827 = vld [vmem:[#allocation4 + $0x258] sm:$0xff]
    %v2828 = vld [vmem:[#allocation4 + $0x280] sm:$0xff]
    %v2829 = vld [vmem:[#allocation4 + $0x288] sm:$0xff]
    %v2830 = vld [vmem:[#allocation4 + $0x2b0] sm:$0xff]
    %v2831 = vld [vmem:[#allocation4 + $0x2b8] sm:$0xff]
    %v2832 = vld [vmem:[#allocation4 + $0x2e0] sm:$0xff]
    %v2833 = vld [vmem:[#allocation4 + $0x2e8] sm:$0xff]
    %v2834 = vld [vmem:[#allocation4 + $0x310] sm:$0xff]
    %v2835 = vld [vmem:[#allocation4 + $0x318] sm:$0xff]
    %v2836 = vld [vmem:[#allocation4 + $0x340] sm:$0xff]
    %v2837 = vld [vmem:[#allocation4 + $0x348] sm:$0xff]
    %v2838 = vld [vmem:[#allocation4 + $0x370] sm:$0xff]
    %v2839 = vld [vmem:[#allocation4 + $0x378] sm:$0xff]
    %v2840 = vld [vmem:[#allocation4 + $0x3a0] sm:$0xff]
    %v2841 = vld [vmem:[#allocation4 + $0x3a8] sm:$0xff]
    %v2842 = vld [vmem:[#allocation4 + $0x3d0] sm:$0xff]
    %v2843 = vld [vmem:[#allocation4 + $0x3d8] sm:$0xff]
    %v2844 = vld [vmem:[#allocation4 + $0x400] sm:$0xff]
    %v2845 = vld [vmem:[#allocation4 + $0x408] sm:$0xff]
    %v2846 = vld [vmem:[#allocation4 + $0x430] sm:$0xff]
    %v2847 = vld [vmem:[#allocation4 + $0x438] sm:$0xff]
    %v2848 = vld [vmem:[#allocation4 + $0x460] sm:$0xff]
    %v2849 = vld [vmem:[#allocation4 + $0x468] sm:$0xff]
    %v2850 = vld [vmem:[#allocation4 + $0x490] sm:$0xff]
    %v2851 = vld [vmem:[#allocation4 + $0x498] sm:$0xff]
    %v2852 = vld [vmem:[#allocation4 + $0x4c0] sm:$0xff]
    %v2853 = vld [vmem:[#allocation4 + $0x4c8] sm:$0xff]
    %v2854 = vld [vmem:[#allocation4 + $0x4f0] sm:$0xff]
    %v2855 = vld [vmem:[#allocation4 + $0x4f8] sm:$0xff]
    %v2856 = vld [vmem:[#allocation4 + $0x520] sm:$0xff]
    %v2857 = vld [vmem:[#allocation4 + $0x528] sm:$0xff]
    %v2858 = vld [vmem:[#allocation4 + $0x550] sm:$0xff]
    %v2859 = vld [vmem:[#allocation4 + $0x558] sm:$0xff]
    %v2860 = vld [vmem:[#allocation4 + $0x580] sm:$0xff]
    %v2861 = vld [vmem:[#allocation4 + $0x588] sm:$0xff]
    %v2862 = vld [vmem:[#allocation4 + $0x5b0] sm:$0xff]
    %v2863 = vld [vmem:[#allocation4 + $0x5b8] sm:$0xff]
    %v2864 = vld [vmem:[#allocation4 + $0x5e0] sm:$0xff]
    %v2865 = vld [vmem:[#allocation4 + $0x5e8] sm:$0xff]
    %v2866 = vld [vmem:[#allocation4 + $0x610] sm:$0xff]
    %v2867 = vld [vmem:[#allocation4 + $0x618] sm:$0xff]
    %v2868 = vld [vmem:[#allocation4 + $0x640] sm:$0xff]
    %v2869 = vld [vmem:[#allocation4 + $0x648] sm:$0xff]
    %v2870 = vld [vmem:[#allocation4 + $0x670] sm:$0xff]
    %v2871 = vld [vmem:[#allocation4 + $0x678] sm:$0xff]
    %v2872 = vld [vmem:[#allocation4 + $0x6a0] sm:$0xff]
    %v2873 = vld [vmem:[#allocation4 + $0x6a8] sm:$0xff]
    %v2874 = vld [vmem:[#allocation4 + $0x6d0] sm:$0xff]
    %v2875 = vld [vmem:[#allocation4 + $0x6d8] sm:$0xff]
    %v2876 = vld [vmem:[#allocation4 + $0x700] sm:$0xff]
    %v2877 = vld [vmem:[#allocation4 + $0x708] sm:$0xff]
    %v2878 = vld [vmem:[#allocation4 + $0x730] sm:$0xff]
    %v2879 = vld [vmem:[#allocation4 + $0x738] sm:$0xff]
    %v2880 = vld [vmem:[#allocation4 + $0x760] sm:$0xff]
    %v2881 = vld [vmem:[#allocation4 + $0x768] sm:$0xff]
    %v2882 = vld [vmem:[#allocation4 + $0x790] sm:$0xff]
    %v2883 = vld [vmem:[#allocation4 + $0x798] sm:$0xff]
    %v2884 = vld [vmem:[#allocation4 + $0x7c0] sm:$0xff]
    %v2885 = vld [vmem:[#allocation4 + $0x7c8] sm:$0xff]
    %v2886 = vld [vmem:[#allocation4 + $0x7f0] sm:$0xff]
    %v2887 = vld [vmem:[#allocation4 + $0x7f8] sm:$0xff]
    %v2888 = vld [vmem:[#allocation4 + $0x820] sm:$0xff]
    %v2889 = vld [vmem:[#allocation4 + $0x828] sm:$0xff]
    %v2890 = vld [vmem:[#allocation4 + $0x850] sm:$0xff]
    %v2891 = vld [vmem:[#allocation4 + $0x858] sm:$0xff]
    %v2892 = vld [vmem:[#allocation4 + $0x880] sm:$0xff]
    %v2893 = vld [vmem:[#allocation4 + $0x888] sm:$0xff]
    %v2894 = vld [vmem:[#allocation4 + $0x8b0] sm:$0xff]
    %v2895 = vld [vmem:[#allocation4 + $0x8b8] sm:$0xff]
    %v2896 = vld [vmem:[#allocation4 + $0x8e0] sm:$0xff]
    %v2897 = vld [vmem:[#allocation4 + $0x8e8] sm:$0xff]
    %v2898 = vld [vmem:[#allocation4 + $0x910] sm:$0xff]
    %v2899 = vld [vmem:[#allocation4 + $0x918] sm:$0xff]
    %v2900 = vld [vmem:[#allocation4 + $0x940] sm:$0xff]
    %v2901 = vld [vmem:[#allocation4 + $0x948] sm:$0xff]
    %v2902 = vld [vmem:[#allocation4 + $0x970] sm:$0xff]
    %v2903 = vld [vmem:[#allocation4 + $0x978] sm:$0xff]
    %v2904 = vld [vmem:[#allocation4 + $0x9a0] sm:$0xff]
    %v2905 = vld [vmem:[#allocation4 + $0x9a8] sm:$0xff]
    %v2906 = vld [vmem:[#allocation4 + $0x9d0] sm:$0xff]
    %v2907 = vld [vmem:[#allocation4 + $0x9d8] sm:$0xff]
    %v2908 = vld [vmem:[#allocation4 + $0xa00] sm:$0xff]
    %v2909 = vld [vmem:[#allocation4 + $0xa08] sm:$0xff]
    %v2910 = vld [vmem:[#allocation4 + $0xa30] sm:$0xff]
    %v2911 = vld [vmem:[#allocation4 + $0xa38] sm:$0xff]
    %v2912 = vld [vmem:[#allocation4 + $0xa60] sm:$0xff]
    %v2913 = vld [vmem:[#allocation4 + $0xa68] sm:$0xff]
    %v2914 = vld [vmem:[#allocation4 + $0xa90] sm:$0xff]
    %v2915 = vld [vmem:[#allocation4 + $0xa98] sm:$0xff]
    %v2916 = vld [vmem:[#allocation4 + $0xac0] sm:$0xff]
    %v2917 = vld [vmem:[#allocation4 + $0xac8] sm:$0xff]
    %v2918 = vld [vmem:[#allocation4 + $0xaf0] sm:$0xff]
    %v2919 = vld [vmem:[#allocation4 + $0xaf8] sm:$0xff]
    %v2920 = vld [vmem:[#allocation4 + $0xb20] sm:$0xff]
    %v2921 = vld [vmem:[#allocation4 + $0xb28] sm:$0xff]
    %v2922 = vld [vmem:[#allocation4 + $0xb50] sm:$0xff]
    %v2923 = vld [vmem:[#allocation4 + $0xb58] sm:$0xff]
    %v2924 = vld [vmem:[#allocation4 + $0xb80] sm:$0xff]
    %v2925 = vld [vmem:[#allocation4 + $0xb88] sm:$0xff]
    %v2926 = vld [vmem:[#allocation4 + $0xbb0] sm:$0xff]
    %v2927 = vld [vmem:[#allocation4 + $0xbb8] sm:$0xff]
    %v2928 = vld [vmem:[#allocation4 + $0xbe0] sm:$0xff]
    %v2929 = vld [vmem:[#allocation4 + $0xbe8] sm:$0xff]
    %2930 = vmatprep.subr.mxu0 %v2803
    %2931 = vmatpush1.msra.mxu0 %v2802
    %2932 = vmatprep.subr.mxu0 %v2805
    %2933 = vmatpush1.msra.mxu0 %v2804
    %2934 = vmatprep.subr.mxu0 %v2807
    %2935 = vmatpush1.msra.mxu0 %v2806
    %2936 = vmatprep.subr.mxu0 %v2809
    %2937 = vmatpush1.msra.mxu0 %v2808
    %2938 = vmatprep.subr.mxu0 %v2811
    %2939 = vmatpush1.msra.mxu0 %v2810
    %2940 = vmatprep.subr.mxu0 %v2813
    %2941 = vmatpush1.msra.mxu0 %v2812
    %2942 = vmatprep.subr.mxu0 %v2815
    %2943 = vmatpush1.msra.mxu0 %v2814
    %2944 = vmatprep.subr.mxu0 %v2817
    %2945 = vmatpush1.msra.mxu0 %v2816
    %2946 = vmatprep.subr.mxu0 %v2819
    %2947 = vmatpush1.msra.mxu0 %v2818
    %2948 = vmatprep.subr.mxu0 %v2821
    %2949 = vmatpush1.msra.mxu0 %v2820
    %2950 = vmatprep.subr.mxu0 %v2823
    %2951 = vmatpush1.msra.mxu0 %v2822
    %2952 = vmatprep.subr.mxu0 %v2825
    %2953 = vmatpush1.msra.mxu0 %v2824
    %2954 = vmatprep.subr.mxu0 %v2827
    %2955 = vmatpush1.msra.mxu0 %v2826
    %2956 = vmatprep.subr.mxu0 %v2829
    %2957 = vmatpush1.msra.mxu0 %v2828
    %2958 = vmatprep.subr.mxu0 %v2831
    %2959 = vmatpush1.msra.mxu0 %v2830
    %2960 = vmatprep.subr.mxu0 %v2833
    %2961 = vmatpush1.msra.mxu0 %v2832
    %2962 = vmatprep.subr.mxu0 %v2835
    %2963 = vmatpush1.msra.mxu0 %v2834
    %2964 = vmatprep.subr.mxu0 %v2837
    %2965 = vmatpush1.msra.mxu0 %v2836
    %2966 = vmatprep.subr.mxu0 %v2839
    %2967 = vmatpush1.msra.mxu0 %v2838
    %2968 = vmatprep.subr.mxu0 %v2841
    %2969 = vmatpush1.msra.mxu0 %v2840
    %2970 = vmatprep.subr.mxu0 %v2843
    %2971 = vmatpush1.msra.mxu0 %v2842
    %2972 = vmatprep.subr.mxu0 %v2845
    %2973 = vmatpush1.msra.mxu0 %v2844
    %2974 = vmatprep.subr.mxu0 %v2847
    %2975 = vmatpush1.msra.mxu0 %v2846
    %2976 = vmatprep.subr.mxu0 %v2849
    %2977 = vmatpush1.msra.mxu0 %v2848
    %2978 = vmatprep.subr.mxu0 %v2851
    %2979 = vmatpush1.msra.mxu0 %v2850
    %2980 = vmatprep.subr.mxu0 %v2853
    %2981 = vmatpush1.msra.mxu0 %v2852
    %2982 = vmatprep.subr.mxu0 %v2855
    %2983 = vmatpush1.msra.mxu0 %v2854
    %2984 = vmatprep.subr.mxu0 %v2857
    %2985 = vmatpush1.msra.mxu0 %v2856
    %2986 = vmatprep.subr.mxu0 %v2859
    %2987 = vmatpush1.msra.mxu0 %v2858
    %2988 = vmatprep.subr.mxu0 %v2861
    %2989 = vmatpush1.msra.mxu0 %v2860
    %2990 = vmatprep.subr.mxu0 %v2863
    %2991 = vmatpush1.msra.mxu0 %v2862
    %2992 = vmatprep.subr.mxu0 %v2865
    %2993 = vmatpush1.msra.mxu0 %v2864
    %2994 = vmatprep.mubr.f32.mxu0 %v2461
    %2995 = vmatmul.mubr.f32.gmra.mrb[0].mxu0 %v2460
    %v2996 = vpop.f32.mrb[0].mxu0
    %v2997 = vadd.f32 0.0, %v2996
    %v2998 = vpop.f32.mrb[0].mxu0
    %v2999 = vadd.f32 0.0, %v2998
    %3000 = vmatprep.mubr.f32.mxu0 %v2465
    %3001 = vmatmul.mubr.f32.gmra.mrb[0].mxu0 %v2464
    %v3002 = vpop.f32.mrb[0].mxu0
    %v3003 = vadd.f32 0.0, %v3002
    %v3004 = vpop.f32.mrb[0].mxu0
    %v3005 = vadd.f32 0.0, %v3004
    %3006 = vmatprep.mubr.f32.mxu0 %v2469
    %3007 = vmatmul.mubr.f32.gmra.mrb[0].mxu0 %v2468
    %v3008 = vpop.f32.mrb[0].mxu0
    %v3009 = vadd.f32 0.0, %v3008
    %v3010 = vpop.f32.mrb[0].mxu0
    %v3011 = vadd.f32 0.0, %v3010
    %3012 = vmatprep.mubr.f32.mxu0 %v2473
    %3013 = vmatmul.mubr.f32.gmra.mrb[0].mxu0 %v2472
    %v3014 = vpop.f32.mrb[0].mxu0
    %v3015 = vadd.f32 0.0, %v3014
    %v3016 = vpop.f32.mrb[0].mxu0
    %v3017 = vadd.f32 0.0, %v3016
    %3018 = vdwg.mxu0
    %3019 = vmatprep.subr.mxu0 %v2867
    %3020 = vmatpush1.msra.mxu0 %v2866
    %3021 = vmatprep.subr.mxu0 %v2869
    %3022 = vmatpush1.msra.mxu0 %v2868
    %3023 = vmatprep.subr.mxu0 %v2871
    %3024 = vmatpush1.msra.mxu0 %v2870
    %3025 = vmatprep.subr.mxu0 %v2873
    %3026 = vmatpush1.msra.mxu0 %v2872
    %3027 = vmatprep.subr.mxu0 %v2875
    %3028 = vmatpush1.msra.mxu0 %v2874
    %3029 = vmatprep.subr.mxu0 %v2877
    %3030 = vmatpush1.msra.mxu0 %v2876
    %3031 = vmatprep.subr.mxu0 %v2879
    %3032 = vmatpush1.msra.mxu0 %v2878
    %3033 = vmatprep.subr.mxu0 %v2881
    %3034 = vmatpush1.msra.mxu0 %v2880
    %3035 = vmatprep.subr.mxu0 %v2883
    %3036 = vmatpush1.msra.mxu0 %v2882
    %3037 = vmatprep.subr.mxu0 %v2885
    %3038 = vmatpush1.msra.mxu0 %v2884
    %3039 = vmatprep.subr.mxu0 %v2887
    %3040 = vmatpush1.msra.mxu0 %v2886
    %3041 = vmatprep.subr.mxu0 %v2889
    %3042 = vmatpush1.msra.mxu0 %v2888
    %3043 = vmatprep.subr.mxu0 %v2891
    %3044 = vmatpush1.msra.mxu0 %v2890
    %3045 = vmatprep.subr.mxu0 %v2893
    %3046 = vmatpush1.msra.mxu0 %v2892
    %3047 = vmatprep.subr.mxu0 %v2895
    %3048 = vmatpush1.msra.mxu0 %v2894
    %3049 = vmatprep.subr.mxu0 %v2897
    %3050 = vmatpush1.msra.mxu0 %v2896
    %3051 = vmatprep.subr.mxu0 %v2899
    %3052 = vmatpush1.msra.mxu0 %v2898
    %3053 = vmatprep.subr.mxu0 %v2901
    %3054 = vmatpush1.msra.mxu0 %v2900
    %3055 = vmatprep.subr.mxu0 %v2903
    %3056 = vmatpush1.msra.mxu0 %v2902
    %3057 = vmatprep.subr.mxu0 %v2905
    %3058 = vmatpush1.msra.mxu0 %v2904
    %3059 = vmatprep.subr.mxu0 %v2907
    %3060 = vmatpush1.msra.mxu0 %v2906
    %3061 = vmatprep.subr.mxu0 %v2909
    %3062 = vmatpush1.msra.mxu0 %v2908
    %3063 = vmatprep.subr.mxu0 %v2911
    %3064 = vmatpush1.msra.mxu0 %v2910
    %3065 = vmatprep.subr.mxu0 %v2913
    %3066 = vmatpush1.msra.mxu0 %v2912
    %3067 = vmatprep.subr.mxu0 %v2915
    %3068 = vmatpush1.msra.mxu0 %v2914
    %3069 = vmatprep.subr.mxu0 %v2917
    %3070 = vmatpush1.msra.mxu0 %v2916
    %3071 = vmatprep.subr.mxu0 %v2919
    %3072 = vmatpush1.msra.mxu0 %v2918
    %3073 = vmatprep.subr.mxu0 %v2921
    %3074 = vmatpush1.msra.mxu0 %v2920
    %3075 = vmatprep.subr.mxu0 %v2923
    %3076 = vmatpush1.msra.mxu0 %v2922
    %3077 = vmatprep.subr.mxu0 %v2925
    %3078 = vmatpush1.msra.mxu0 %v2924
    %3079 = vmatprep.subr.mxu0 %v2927
    %3080 = vmatpush1.msra.mxu0 %v2926
    %3081 = vmatprep.subr.mxu0 %v2929
    %3082 = vmatpush1.msra.mxu0 %v2928
    %3083 = vmatprep.mubr.f32.mxu0 %v2463
    %3084 = vmatmul.mubr.f32.gmra.mrb[0].mxu0 %v2462
    %v3085 = vpop.f32.mrb[0].mxu0
    %v3086 = vadd.f32 %v2997, %v3085
    %v3087 = vpop.f32.mrb[0].mxu0
    %v3088 = vadd.f32 %v2999, %v3087
    %3089 = vmatprep.mubr.f32.mxu0 %v2467
    %3090 = vmatmul.mubr.f32.gmra.mrb[0].mxu0 %v2466
    %v3091 = vpop.f32.mrb[0].mxu0
    %v3092 = vadd.f32 %v3003, %v3091
    %v3093 = vpop.f32.mrb[0].mxu0
    %v3094 = vadd.f32 %v3005, %v3093
    %3095 = vmatprep.mubr.f32.mxu0 %v2471
    %3096 = vmatmul.mubr.f32.gmra.mrb[0].mxu0 %v2470
    %v3097 = vpop.f32.mrb[0].mxu0
    %v3098 = vadd.f32 %v3009, %v3097
    %v3099 = vpop.f32.mrb[0].mxu0
    %v3100 = vadd.f32 %v3011, %v3099
    %3101 = vmatprep.mubr.f32.mxu0 %v2475
    %3102 = vmatmul.mubr.f32.gmra.mrb[0].mxu0 %v2474
    %v3103 = vpop.f32.mrb[0].mxu0
    %v3104 = vadd.f32 %v3015, %v3103
    %v3105 = vpop.f32.mrb[0].mxu0
    %v3106 = vadd.f32 %v3017, %v3105
    %3107 = vdwg.mxu0
    %s3108 = scalar_lea.vmem [#allocation10], 16
    %v3109 = vld [vmem:[%s3108] sm:$0xff]
    %v3110 = vld [vmem:[%s3108 + $0x8] sm:$0xff]
    %v3112 = vsel %vm721, %v3109, 0
    %v3115 = vsel %vm721, %v3110, 0
    %3117 = vmatprep.subr.mxu0 %v3088
    %3118 = vmatpush1.msra.mxu0 %v3086
    %3119 = vmatprep.subr.mxu0 %v3094
    %3120 = vmatpush1.msra.mxu0 %v3092
    %3121 = vmatprep.subr.mxu0 %v3100
    %3122 = vmatpush1.msra.mxu0 %v3098
    %3123 = vmatprep.subr.mxu0 %v3106
    %3124 = vmatpush1.msra.mxu0 %v3104
    %3125 = vmatprep.subr.mxu0 0.0
    %3126 = vmatpush1.msra.mxu0 0.0
    %3127 = vmatprep.subr.mxu0 0.0
    %3128 = vmatpush1.msra.mxu0 0.0
    %3129 = vmatprep.subr.mxu0 0.0
    %3130 = vmatpush1.msra.mxu0 0.0
    %3131 = vmatprep.subr.mxu0 0.0
    %3132 = vmatpush1.msra.mxu0 0.0
    %3133 = vmatprep.subr.mxu0 0.0
    %3134 = vmatpush1.msra.mxu0 0.0
    %3135 = vmatprep.subr.mxu0 0.0
    %3136 = vmatpush1.msra.mxu0 0.0
    %3137 = vmatprep.subr.mxu0 0.0
    %3138 = vmatpush1.msra.mxu0 0.0
    %3139 = vmatprep.subr.mxu0 0.0
    %3140 = vmatpush1.msra.mxu0 0.0
    %3141 = vmatprep.subr.mxu0 0.0
    %3142 = vmatpush1.msra.mxu0 0.0
    %3143 = vmatprep.subr.mxu0 0.0
    %3144 = vmatpush1.msra.mxu0 0.0
    %3145 = vmatprep.subr.mxu0 0.0
    %3146 = vmatpush1.msra.mxu0 0.0
    %3147 = vmatprep.subr.mxu0 0.0
    %3148 = vmatpush1.msra.mxu0 0.0
    %3149 = vmatprep.subr.mxu0 0.0
    %3150 = vmatpush1.msra.mxu0 0.0
    %3151 = vmatprep.subr.mxu0 0.0
    %3152 = vmatpush1.msra.mxu0 0.0
    %3153 = vmatprep.subr.mxu0 0.0
    %3154 = vmatpush1.msra.mxu0 0.0
    %3155 = vmatprep.subr.mxu0 0.0
    %3156 = vmatpush1.msra.mxu0 0.0
    %3157 = vmatprep.subr.mxu0 0.0
    %3158 = vmatpush1.msra.mxu0 0.0
    %3159 = vmatprep.subr.mxu0 0.0
    %3160 = vmatpush1.msra.mxu0 0.0
    %3161 = vmatprep.subr.mxu0 0.0
    %3162 = vmatpush1.msra.mxu0 0.0
    %3163 = vmatprep.subr.mxu0 0.0
    %3164 = vmatpush1.msra.mxu0 0.0
    %3165 = vmatprep.subr.mxu0 0.0
    %3166 = vmatpush1.msra.mxu0 0.0
    %3167 = vmatprep.subr.mxu0 0.0
    %3168 = vmatpush1.msra.mxu0 0.0
    %3169 = vmatprep.subr.mxu0 0.0
    %3170 = vmatpush1.msra.mxu0 0.0
    %3171 = vmatprep.subr.mxu0 0.0
    %3172 = vmatpush1.msra.mxu0 0.0
    %3173 = vmatprep.subr.mxu0 0.0
    %3174 = vmatpush1.msra.mxu0 0.0
    %3175 = vmatprep.subr.mxu0 0.0
    %3176 = vmatpush1.msra.mxu0 0.0
    %3177 = vmatprep.subr.mxu0 0.0
    %3178 = vmatpush1.msra.mxu0 0.0
    %3179 = vmatprep.subr.mxu0 0.0
    %3180 = vmatpush1.msra.mxu0 0.0
    %3181 = vmatprep.mubr.f32.mxu0 0.0
    %3182 = vmatmul.mubr.f32.gmra.mrb[0].mxu0 %v3112
    %v3183 = vpop.f32.mrb[0].mxu0
    %v3184 = vadd.f32 0.0, %v3183
    %v3185 = vpop.f32.mrb[0].mxu0
    %v3186 = vadd.f32 0.0, %v3185
    %3187 = vmatprep.mubr.f32.mxu0 0.0
    %3188 = vmatmul.mubr.f32.gmra.mrb[0].mxu0 %v3115
    %v3189 = vpop.f32.mrb[0].mxu0
    %v3190 = vadd.f32 0.0, %v3189
    %v3191 = vpop.f32.mrb[0].mxu0
    %v3192 = vadd.f32 0.0, %v3191
    %3193 = vdwg.mxu0
    %v3195 = vsel %vm721, %v2800, 0
    %v3198 = vsel %vm721, %v2801, 0
    %3200 = vmatprep.subr.mxu0 %v2780
    %3201 = vmatpush1.msra.mxu0 %v2778
    %3202 = vmatprep.subr.mxu0 %v2786
    %3203 = vmatpush1.msra.mxu0 %v2784
    %3204 = vmatprep.subr.mxu0 %v2792
    %3205 = vmatpush1.msra.mxu0 %v2790
    %3206 = vmatprep.subr.mxu0 %v2798
    %3207 = vmatpush1.msra.mxu0 %v2796
    %3208 = vmatprep.subr.mxu0 0.0
    %3209 = vmatpush1.msra.mxu0 0.0
    %3210 = vmatprep.subr.mxu0 0.0
    %3211 = vmatpush1.msra.mxu0 0.0
    %3212 = vmatprep.subr.mxu0 0.0
    %3213 = vmatpush1.msra.mxu0 0.0
    %3214 = vmatprep.subr.mxu0 0.0
    %3215 = vmatpush1.msra.mxu0 0.0
    %3216 = vmatprep.subr.mxu0 0.0
    %3217 = vmatpush1.msra.mxu0 0.0
    %3218 = vmatprep.subr.mxu0 0.0
    %3219 = vmatpush1.msra.mxu0 0.0
    %3220 = vmatprep.subr.mxu0 0.0
    %3221 = vmatpush1.msra.mxu0 0.0
    %3222 = vmatprep.subr.mxu0 0.0
    %3223 = vmatpush1.msra.mxu0 0.0
    %3224 = vmatprep.subr.mxu0 0.0
    %3225 = vmatpush1.msra.mxu0 0.0
    %3226 = vmatprep.subr.mxu0 0.0
    %3227 = vmatpush1.msra.mxu0 0.0
    %3228 = vmatprep.subr.mxu0 0.0
    %3229 = vmatpush1.msra.mxu0 0.0
    %3230 = vmatprep.subr.mxu0 0.0
    %3231 = vmatpush1.msra.mxu0 0.0
    %3232 = vmatprep.subr.mxu0 0.0
    %3233 = vmatpush1.msra.mxu0 0.0
    %3234 = vmatprep.subr.mxu0 0.0
    %3235 = vmatpush1.msra.mxu0 0.0
    %3236 = vmatprep.subr.mxu0 0.0
    %3237 = vmatpush1.msra.mxu0 0.0
    %3238 = vmatprep.subr.mxu0 0.0
    %3239 = vmatpush1.msra.mxu0 0.0
    %3240 = vmatprep.subr.mxu0 0.0
    %3241 = vmatpush1.msra.mxu0 0.0
    %3242 = vmatprep.subr.mxu0 0.0
    %3243 = vmatpush1.msra.mxu0 0.0
    %3244 = vmatprep.subr.mxu0 0.0
    %3245 = vmatpush1.msra.mxu0 0.0
    %3246 = vmatprep.subr.mxu0 0.0
    %3247 = vmatpush1.msra.mxu0 0.0
    %3248 = vmatprep.subr.mxu0 0.0
    %3249 = vmatpush1.msra.mxu0 0.0
    %3250 = vmatprep.subr.mxu0 0.0
    %3251 = vmatpush1.msra.mxu0 0.0
    %3252 = vmatprep.subr.mxu0 0.0
    %3253 = vmatpush1.msra.mxu0 0.0
    %3254 = vmatprep.subr.mxu0 0.0
    %3255 = vmatpush1.msra.mxu0 0.0
    %3256 = vmatprep.subr.mxu0 0.0
    %3257 = vmatpush1.msra.mxu0 0.0
    %3258 = vmatprep.subr.mxu0 0.0
    %3259 = vmatpush1.msra.mxu0 0.0
    %3260 = vmatprep.subr.mxu0 0.0
    %3261 = vmatpush1.msra.mxu0 0.0
    %3262 = vmatprep.subr.mxu0 0.0
    %3263 = vmatpush1.msra.mxu0 0.0
    %3264 = vmatprep.mubr.f32.mxu0 0.0
    %3265 = vmatmul.mubr.f32.gmra.mrb[0].mxu0 %v3195
    %v3266 = vpop.f32.mrb[0].mxu0
    %v3267 = vadd.f32 %v3184, %v3266
    %v3268 = vpop.f32.mrb[0].mxu0
    %v3269 = vadd.f32 %v3186, %v3268
    %3270 = vmatprep.mubr.f32.mxu0 0.0
    %3271 = vmatmul.mubr.f32.gmra.mrb[0].mxu0 %v3198
    %v3272 = vpop.f32.mrb[0].mxu0
    %v3273 = vadd.f32 %v3190, %v3272
    %v3274 = vpop.f32.mrb[0].mxu0
    %v3275 = vadd.f32 %v3192, %v3274
    %3276 = vdwg.mxu0
    %v3277 = vld [vmem:[#allocation4 + $0x20] sm:$0xff]
    %v3278 = vld [vmem:[#allocation4 + $0x28] sm:$0xff]
    %v3279 = vld [vmem:[#allocation4 + $0x50] sm:$0xff]
    %v3280 = vld [vmem:[#allocation4 + $0x58] sm:$0xff]
    %v3281 = vld [vmem:[#allocation4 + $0x80] sm:$0xff]
    %v3282 = vld [vmem:[#allocation4 + $0x88] sm:$0xff]
    %v3283 = vld [vmem:[#allocation4 + $0xb0] sm:$0xff]
    %v3284 = vld [vmem:[#allocation4 + $0xb8] sm:$0xff]
    %v3285 = vld [vmem:[#allocation4 + $0xe0] sm:$0xff]
    %v3286 = vld [vmem:[#allocation4 + $0xe8] sm:$0xff]
    %v3287 = vld [vmem:[#allocation4 + $0x110] sm:$0xff]
    %v3288 = vld [vmem:[#allocation4 + $0x118] sm:$0xff]
    %v3289 = vld [vmem:[#allocation4 + $0x140] sm:$0xff]
    %v3290 = vld [vmem:[#allocation4 + $0x148] sm:$0xff]
    %v3291 = vld [vmem:[#allocation4 + $0x170] sm:$0xff]
    %v3292 = vld [vmem:[#allocation4 + $0x178] sm:$0xff]
    %v3293 = vld [vmem:[#allocation4 + $0x1a0] sm:$0xff]
    %v3294 = vld [vmem:[#allocation4 + $0x1a8] sm:$0xff]
    %v3295 = vld [vmem:[#allocation4 + $0x1d0] sm:$0xff]
    %v3296 = vld [vmem:[#allocation4 + $0x1d8] sm:$0xff]
    %v3297 = vld [vmem:[#allocation4 + $0x200] sm:$0xff]
    %v3298 = vld [vmem:[#allocation4 + $0x208] sm:$0xff]
    %v3299 = vld [vmem:[#allocation4 + $0x230] sm:$0xff]
    %v3300 = vld [vmem:[#allocation4 + $0x238] sm:$0xff]
    %v3301 = vld [vmem:[#allocation4 + $0x260] sm:$0xff]
    %v3302 = vld [vmem:[#allocation4 + $0x268] sm:$0xff]
    %v3303 = vld [vmem:[#allocation4 + $0x290] sm:$0xff]
    %v3304 = vld [vmem:[#allocation4 + $0x298] sm:$0xff]
    %v3305 = vld [vmem:[#allocation4 + $0x2c0] sm:$0xff]
    %v3306 = vld [vmem:[#allocation4 + $0x2c8] sm:$0xff]
    %v3307 = vld [vmem:[#allocation4 + $0x2f0] sm:$0xff]
    %v3308 = vld [vmem:[#allocation4 + $0x2f8] sm:$0xff]
    %v3309 = vld [vmem:[#allocation4 + $0x320] sm:$0xff]
    %v3310 = vld [vmem:[#allocation4 + $0x328] sm:$0xff]
    %v3311 = vld [vmem:[#allocation4 + $0x350] sm:$0xff]
    %v3312 = vld [vmem:[#allocation4 + $0x358] sm:$0xff]
    %v3313 = vld [vmem:[#allocation4 + $0x380] sm:$0xff]
    %v3314 = vld [vmem:[#allocation4 + $0x388] sm:$0xff]
    %v3315 = vld [vmem:[#allocation4 + $0x3b0] sm:$0xff]
    %v3316 = vld [vmem:[#allocation4 + $0x3b8] sm:$0xff]
    %v3317 = vld [vmem:[#allocation4 + $0x3e0] sm:$0xff]
    %v3318 = vld [vmem:[#allocation4 + $0x3e8] sm:$0xff]
    %v3319 = vld [vmem:[#allocation4 + $0x410] sm:$0xff]
    %v3320 = vld [vmem:[#allocation4 + $0x418] sm:$0xff]
    %v3321 = vld [vmem:[#allocation4 + $0x440] sm:$0xff]
    %v3322 = vld [vmem:[#allocation4 + $0x448] sm:$0xff]
    %v3323 = vld [vmem:[#allocation4 + $0x470] sm:$0xff]
    %v3324 = vld [vmem:[#allocation4 + $0x478] sm:$0xff]
    %v3325 = vld [vmem:[#allocation4 + $0x4a0] sm:$0xff]
    %v3326 = vld [vmem:[#allocation4 + $0x4a8] sm:$0xff]
    %v3327 = vld [vmem:[#allocation4 + $0x4d0] sm:$0xff]
    %v3328 = vld [vmem:[#allocation4 + $0x4d8] sm:$0xff]
    %v3329 = vld [vmem:[#allocation4 + $0x500] sm:$0xff]
    %v3330 = vld [vmem:[#allocation4 + $0x508] sm:$0xff]
    %v3331 = vld [vmem:[#allocation4 + $0x530] sm:$0xff]
    %v3332 = vld [vmem:[#allocation4 + $0x538] sm:$0xff]
    %v3333 = vld [vmem:[#allocation4 + $0x560] sm:$0xff]
    %v3334 = vld [vmem:[#allocation4 + $0x568] sm:$0xff]
    %v3335 = vld [vmem:[#allocation4 + $0x590] sm:$0xff]
    %v3336 = vld [vmem:[#allocation4 + $0x598] sm:$0xff]
    %v3337 = vld [vmem:[#allocation4 + $0x5c0] sm:$0xff]
    %v3338 = vld [vmem:[#allocation4 + $0x5c8] sm:$0xff]
    %v3339 = vld [vmem:[#allocation4 + $0x5f0] sm:$0xff]
    %v3340 = vld [vmem:[#allocation4 + $0x5f8] sm:$0xff]
    %v3341 = vld [vmem:[#allocation4 + $0x620] sm:$0xff]
    %v3342 = vld [vmem:[#allocation4 + $0x628] sm:$0xff]
    %v3343 = vld [vmem:[#allocation4 + $0x650] sm:$0xff]
    %v3344 = vld [vmem:[#allocation4 + $0x658] sm:$0xff]
    %v3345 = vld [vmem:[#allocation4 + $0x680] sm:$0xff]
    %v3346 = vld [vmem:[#allocation4 + $0x688] sm:$0xff]
    %v3347 = vld [vmem:[#allocation4 + $0x6b0] sm:$0xff]
    %v3348 = vld [vmem:[#allocation4 + $0x6b8] sm:$0xff]
    %v3349 = vld [vmem:[#allocation4 + $0x6e0] sm:$0xff]
    %v3350 = vld [vmem:[#allocation4 + $0x6e8] sm:$0xff]
    %v3351 = vld [vmem:[#allocation4 + $0x710] sm:$0xff]
    %v3352 = vld [vmem:[#allocation4 + $0x718] sm:$0xff]
    %v3353 = vld [vmem:[#allocation4 + $0x740] sm:$0xff]
    %v3354 = vld [vmem:[#allocation4 + $0x748] sm:$0xff]
    %v3355 = vld [vmem:[#allocation4 + $0x770] sm:$0xff]
    %v3356 = vld [vmem:[#allocation4 + $0x778] sm:$0xff]
    %v3357 = vld [vmem:[#allocation4 + $0x7a0] sm:$0xff]
    %v3358 = vld [vmem:[#allocation4 + $0x7a8] sm:$0xff]
    %v3359 = vld [vmem:[#allocation4 + $0x7d0] sm:$0xff]
    %v3360 = vld [vmem:[#allocation4 + $0x7d8] sm:$0xff]
    %v3361 = vld [vmem:[#allocation4 + $0x800] sm:$0xff]
    %v3362 = vld [vmem:[#allocation4 + $0x808] sm:$0xff]
    %v3363 = vld [vmem:[#allocation4 + $0x830] sm:$0xff]
    %v3364 = vld [vmem:[#allocation4 + $0x838] sm:$0xff]
    %v3365 = vld [vmem:[#allocation4 + $0x860] sm:$0xff]
    %v3366 = vld [vmem:[#allocation4 + $0x868] sm:$0xff]
    %v3367 = vld [vmem:[#allocation4 + $0x890] sm:$0xff]
    %v3368 = vld [vmem:[#allocation4 + $0x898] sm:$0xff]
    %v3369 = vld [vmem:[#allocation4 + $0x8c0] sm:$0xff]
    %v3370 = vld [vmem:[#allocation4 + $0x8c8] sm:$0xff]
    %v3371 = vld [vmem:[#allocation4 + $0x8f0] sm:$0xff]
    %v3372 = vld [vmem:[#allocation4 + $0x8f8] sm:$0xff]
    %v3373 = vld [vmem:[#allocation4 + $0x920] sm:$0xff]
    %v3374 = vld [vmem:[#allocation4 + $0x928] sm:$0xff]
    %v3375 = vld [vmem:[#allocation4 + $0x950] sm:$0xff]
    %v3376 = vld [vmem:[#allocation4 + $0x958] sm:$0xff]
    %v3377 = vld [vmem:[#allocation4 + $0x980] sm:$0xff]
    %v3378 = vld [vmem:[#allocation4 + $0x988] sm:$0xff]
    %v3379 = vld [vmem:[#allocation4 + $0x9b0] sm:$0xff]
    %v3380 = vld [vmem:[#allocation4 + $0x9b8] sm:$0xff]
    %v3381 = vld [vmem:[#allocation4 + $0x9e0] sm:$0xff]
    %v3382 = vld [vmem:[#allocation4 + $0x9e8] sm:$0xff]
    %v3383 = vld [vmem:[#allocation4 + $0xa10] sm:$0xff]
    %v3384 = vld [vmem:[#allocation4 + $0xa18] sm:$0xff]
    %v3385 = vld [vmem:[#allocation4 + $0xa40] sm:$0xff]
    %v3386 = vld [vmem:[#allocation4 + $0xa48] sm:$0xff]
    %v3387 = vld [vmem:[#allocation4 + $0xa70] sm:$0xff]
    %v3388 = vld [vmem:[#allocation4 + $0xa78] sm:$0xff]
    %v3389 = vld [vmem:[#allocation4 + $0xaa0] sm:$0xff]
    %v3390 = vld [vmem:[#allocation4 + $0xaa8] sm:$0xff]
    %v3391 = vld [vmem:[#allocation4 + $0xad0] sm:$0xff]
    %v3392 = vld [vmem:[#allocation4 + $0xad8] sm:$0xff]
    %v3393 = vld [vmem:[#allocation4 + $0xb00] sm:$0xff]
    %v3394 = vld [vmem:[#allocation4 + $0xb08] sm:$0xff]
    %v3395 = vld [vmem:[#allocation4 + $0xb30] sm:$0xff]
    %v3396 = vld [vmem:[#allocation4 + $0xb38] sm:$0xff]
    %v3397 = vld [vmem:[#allocation4 + $0xb60] sm:$0xff]
    %v3398 = vld [vmem:[#allocation4 + $0xb68] sm:$0xff]
    %v3399 = vld [vmem:[#allocation4 + $0xb90] sm:$0xff]
    %v3400 = vld [vmem:[#allocation4 + $0xb98] sm:$0xff]
    %v3401 = vld [vmem:[#allocation4 + $0xbc0] sm:$0xff]
    %v3402 = vld [vmem:[#allocation4 + $0xbc8] sm:$0xff]
    %v3403 = vld [vmem:[#allocation4 + $0xbf0] sm:$0xff]
    %v3404 = vld [vmem:[#allocation4 + $0xbf8] sm:$0xff]
    %3405 = vmatprep.subr.mxu0 %v3278
    %3406 = vmatpush1.msra.mxu0 %v3277
    %3407 = vmatprep.subr.mxu0 %v3280
    %3408 = vmatpush1.msra.mxu0 %v3279
    %3409 = vmatprep.subr.mxu0 %v3282
    %3410 = vmatpush1.msra.mxu0 %v3281
    %3411 = vmatprep.subr.mxu0 %v3284
    %3412 = vmatpush1.msra.mxu0 %v3283
    %3413 = vmatprep.subr.mxu0 %v3286
    %3414 = vmatpush1.msra.mxu0 %v3285
    %3415 = vmatprep.subr.mxu0 %v3288
    %3416 = vmatpush1.msra.mxu0 %v3287
    %3417 = vmatprep.subr.mxu0 %v3290
    %3418 = vmatpush1.msra.mxu0 %v3289
    %3419 = vmatprep.subr.mxu0 %v3292
    %3420 = vmatpush1.msra.mxu0 %v3291
    %3421 = vmatprep.subr.mxu0 %v3294
    %3422 = vmatpush1.msra.mxu0 %v3293
    %3423 = vmatprep.subr.mxu0 %v3296
    %3424 = vmatpush1.msra.mxu0 %v3295
    %3425 = vmatprep.subr.mxu0 %v3298
    %3426 = vmatpush1.msra.mxu0 %v3297
    %3427 = vmatprep.subr.mxu0 %v3300
    %3428 = vmatpush1.msra.mxu0 %v3299
    %3429 = vmatprep.subr.mxu0 %v3302
    %3430 = vmatpush1.msra.mxu0 %v3301
    %3431 = vmatprep.subr.mxu0 %v3304
    %3432 = vmatpush1.msra.mxu0 %v3303
    %3433 = vmatprep.subr.mxu0 %v3306
    %3434 = vmatpush1.msra.mxu0 %v3305
    %3435 = vmatprep.subr.mxu0 %v3308
    %3436 = vmatpush1.msra.mxu0 %v3307
    %3437 = vmatprep.subr.mxu0 %v3310
    %3438 = vmatpush1.msra.mxu0 %v3309
    %3439 = vmatprep.subr.mxu0 %v3312
    %3440 = vmatpush1.msra.mxu0 %v3311
    %3441 = vmatprep.subr.mxu0 %v3314
    %3442 = vmatpush1.msra.mxu0 %v3313
    %3443 = vmatprep.subr.mxu0 %v3316
    %3444 = vmatpush1.msra.mxu0 %v3315
    %3445 = vmatprep.subr.mxu0 %v3318
    %3446 = vmatpush1.msra.mxu0 %v3317
    %3447 = vmatprep.subr.mxu0 %v3320
    %3448 = vmatpush1.msra.mxu0 %v3319
    %3449 = vmatprep.subr.mxu0 %v3322
    %3450 = vmatpush1.msra.mxu0 %v3321
    %3451 = vmatprep.subr.mxu0 %v3324
    %3452 = vmatpush1.msra.mxu0 %v3323
    %3453 = vmatprep.subr.mxu0 %v3326
    %3454 = vmatpush1.msra.mxu0 %v3325
    %3455 = vmatprep.subr.mxu0 %v3328
    %3456 = vmatpush1.msra.mxu0 %v3327
    %3457 = vmatprep.subr.mxu0 %v3330
    %3458 = vmatpush1.msra.mxu0 %v3329
    %3459 = vmatprep.subr.mxu0 %v3332
    %3460 = vmatpush1.msra.mxu0 %v3331
    %3461 = vmatprep.subr.mxu0 %v3334
    %3462 = vmatpush1.msra.mxu0 %v3333
    %3463 = vmatprep.subr.mxu0 %v3336
    %3464 = vmatpush1.msra.mxu0 %v3335
    %3465 = vmatprep.subr.mxu0 %v3338
    %3466 = vmatpush1.msra.mxu0 %v3337
    %3467 = vmatprep.subr.mxu0 %v3340
    %3468 = vmatpush1.msra.mxu0 %v3339
    %3469 = vmatprep.mubr.f32.mxu0 %v2461
    %3470 = vmatmul.mubr.f32.gmra.mrb[0].mxu0 %v2460
    %v3471 = vpop.f32.mrb[0].mxu0
    %v3472 = vadd.f32 0.0, %v3471
    %v3473 = vpop.f32.mrb[0].mxu0
    %v3474 = vadd.f32 0.0, %v3473
    %3475 = vmatprep.mubr.f32.mxu0 %v2465
    %3476 = vmatmul.mubr.f32.gmra.mrb[0].mxu0 %v2464
    %v3477 = vpop.f32.mrb[0].mxu0
    %v3478 = vadd.f32 0.0, %v3477
    %v3479 = vpop.f32.mrb[0].mxu0
    %v3480 = vadd.f32 0.0, %v3479
    %3481 = vmatprep.mubr.f32.mxu0 %v2469
    %3482 = vmatmul.mubr.f32.gmra.mrb[0].mxu0 %v2468
    %v3483 = vpop.f32.mrb[0].mxu0
    %v3484 = vadd.f32 0.0, %v3483
    %v3485 = vpop.f32.mrb[0].mxu0
    %v3486 = vadd.f32 0.0, %v3485
    %3487 = vmatprep.mubr.f32.mxu0 %v2473
    %3488 = vmatmul.mubr.f32.gmra.mrb[0].mxu0 %v2472
    %v3489 = vpop.f32.mrb[0].mxu0
    %v3490 = vadd.f32 0.0, %v3489
    %v3491 = vpop.f32.mrb[0].mxu0
    %v3492 = vadd.f32 0.0, %v3491
    %3493 = vdwg.mxu0
    %3494 = vmatprep.subr.mxu0 %v3342
    %3495 = vmatpush1.msra.mxu0 %v3341
    %3496 = vmatprep.subr.mxu0 %v3344
    %3497 = vmatpush1.msra.mxu0 %v3343
    %3498 = vmatprep.subr.mxu0 %v3346
    %3499 = vmatpush1.msra.mxu0 %v3345
    %3500 = vmatprep.subr.mxu0 %v3348
    %3501 = vmatpush1.msra.mxu0 %v3347
    %3502 = vmatprep.subr.mxu0 %v3350
    %3503 = vmatpush1.msra.mxu0 %v3349
    %3504 = vmatprep.subr.mxu0 %v3352
    %3505 = vmatpush1.msra.mxu0 %v3351
    %3506 = vmatprep.subr.mxu0 %v3354
    %3507 = vmatpush1.msra.mxu0 %v3353
    %3508 = vmatprep.subr.mxu0 %v3356
    %3509 = vmatpush1.msra.mxu0 %v3355
    %3510 = vmatprep.subr.mxu0 %v3358
    %3511 = vmatpush1.msra.mxu0 %v3357
    %3512 = vmatprep.subr.mxu0 %v3360
    %3513 = vmatpush1.msra.mxu0 %v3359
    %3514 = vmatprep.subr.mxu0 %v3362
    %3515 = vmatpush1.msra.mxu0 %v3361
    %3516 = vmatprep.subr.mxu0 %v3364
    %3517 = vmatpush1.msra.mxu0 %v3363
    %3518 = vmatprep.subr.mxu0 %v3366
    %3519 = vmatpush1.msra.mxu0 %v3365
    %3520 = vmatprep.subr.mxu0 %v3368
    %3521 = vmatpush1.msra.mxu0 %v3367
    %3522 = vmatprep.subr.mxu0 %v3370
    %3523 = vmatpush1.msra.mxu0 %v3369
    %3524 = vmatprep.subr.mxu0 %v3372
    %3525 = vmatpush1.msra.mxu0 %v3371
    %3526 = vmatprep.subr.mxu0 %v3374
    %3527 = vmatpush1.msra.mxu0 %v3373
    %3528 = vmatprep.subr.mxu0 %v3376
    %3529 = vmatpush1.msra.mxu0 %v3375
    %3530 = vmatprep.subr.mxu0 %v3378
    %3531 = vmatpush1.msra.mxu0 %v3377
    %3532 = vmatprep.subr.mxu0 %v3380
    %3533 = vmatpush1.msra.mxu0 %v3379
    %3534 = vmatprep.subr.mxu0 %v3382
    %3535 = vmatpush1.msra.mxu0 %v3381
    %3536 = vmatprep.subr.mxu0 %v3384
    %3537 = vmatpush1.msra.mxu0 %v3383
    %3538 = vmatprep.subr.mxu0 %v3386
    %3539 = vmatpush1.msra.mxu0 %v3385
    %3540 = vmatprep.subr.mxu0 %v3388
    %3541 = vmatpush1.msra.mxu0 %v3387
    %3542 = vmatprep.subr.mxu0 %v3390
    %3543 = vmatpush1.msra.mxu0 %v3389
    %3544 = vmatprep.subr.mxu0 %v3392
    %3545 = vmatpush1.msra.mxu0 %v3391
    %3546 = vmatprep.subr.mxu0 %v3394
    %3547 = vmatpush1.msra.mxu0 %v3393
    %3548 = vmatprep.subr.mxu0 %v3396
    %3549 = vmatpush1.msra.mxu0 %v3395
    %3550 = vmatprep.subr.mxu0 %v3398
    %3551 = vmatpush1.msra.mxu0 %v3397
    %3552 = vmatprep.subr.mxu0 %v3400
    %3553 = vmatpush1.msra.mxu0 %v3399
    %3554 = vmatprep.subr.mxu0 %v3402
    %3555 = vmatpush1.msra.mxu0 %v3401
    %3556 = vmatprep.subr.mxu0 %v3404
    %3557 = vmatpush1.msra.mxu0 %v3403
    %3558 = vmatprep.mubr.f32.mxu0 %v2463
    %3559 = vmatmul.mubr.f32.gmra.mrb[0].mxu0 %v2462
    %v3560 = vpop.f32.mrb[0].mxu0
    %v3561 = vadd.f32 %v3472, %v3560
    %v3562 = vpop.f32.mrb[0].mxu0
    %v3563 = vadd.f32 %v3474, %v3562
    %3564 = vmatprep.mubr.f32.mxu0 %v2467
    %3565 = vmatmul.mubr.f32.gmra.mrb[0].mxu0 %v2466
    %v3566 = vpop.f32.mrb[0].mxu0
    %v3567 = vadd.f32 %v3478, %v3566
    %v3568 = vpop.f32.mrb[0].mxu0
    %v3569 = vadd.f32 %v3480, %v3568
    %3570 = vmatprep.mubr.f32.mxu0 %v2471
    %3571 = vmatmul.mubr.f32.gmra.mrb[0].mxu0 %v2470
    %v3572 = vpop.f32.mrb[0].mxu0
    %v3573 = vadd.f32 %v3484, %v3572
    %v3574 = vpop.f32.mrb[0].mxu0
    %v3575 = vadd.f32 %v3486, %v3574
    %3576 = vmatprep.mubr.f32.mxu0 %v2475
    %3577 = vmatmul.mubr.f32.gmra.mrb[0].mxu0 %v2474
    %v3578 = vpop.f32.mrb[0].mxu0
    %v3579 = vadd.f32 %v3490, %v3578
    %v3580 = vpop.f32.mrb[0].mxu0
    %v3581 = vadd.f32 %v3492, %v3580
    %3582 = vdwg.mxu0
    %s3583 = scalar_lea.vmem [#allocation10], 32
    %v3584 = vld [vmem:[%s3583] sm:$0xff]
    %v3585 = vld [vmem:[%s3583 + $0x8] sm:$0xff]
    %v3587 = vsel %vm721, %v3584, 0
    %v3590 = vsel %vm721, %v3585, 0
    %3592 = vmatprep.subr.mxu0 %v3563
    %3593 = vmatpush1.msra.mxu0 %v3561
    %3594 = vmatprep.subr.mxu0 %v3569
    %3595 = vmatpush1.msra.mxu0 %v3567
    %3596 = vmatprep.subr.mxu0 %v3575
    %3597 = vmatpush1.msra.mxu0 %v3573
    %3598 = vmatprep.subr.mxu0 %v3581
    %3599 = vmatpush1.msra.mxu0 %v3579
    %3600 = vmatprep.subr.mxu0 0.0
    %3601 = vmatpush1.msra.mxu0 0.0
    %3602 = vmatprep.subr.mxu0 0.0
    %3603 = vmatpush1.msra.mxu0 0.0
    %3604 = vmatprep.subr.mxu0 0.0
    %3605 = vmatpush1.msra.mxu0 0.0
    %3606 = vmatprep.subr.mxu0 0.0
    %3607 = vmatpush1.msra.mxu0 0.0
    %3608 = vmatprep.subr.mxu0 0.0
    %3609 = vmatpush1.msra.mxu0 0.0
    %3610 = vmatprep.subr.mxu0 0.0
    %3611 = vmatpush1.msra.mxu0 0.0
    %3612 = vmatprep.subr.mxu0 0.0
    %3613 = vmatpush1.msra.mxu0 0.0
    %3614 = vmatprep.subr.mxu0 0.0
    %3615 = vmatpush1.msra.mxu0 0.0
    %3616 = vmatprep.subr.mxu0 0.0
    %3617 = vmatpush1.msra.mxu0 0.0
    %3618 = vmatprep.subr.mxu0 0.0
    %3619 = vmatpush1.msra.mxu0 0.0
    %3620 = vmatprep.subr.mxu0 0.0
    %3621 = vmatpush1.msra.mxu0 0.0
    %3622 = vmatprep.subr.mxu0 0.0
    %3623 = vmatpush1.msra.mxu0 0.0
    %3624 = vmatprep.subr.mxu0 0.0
    %3625 = vmatpush1.msra.mxu0 0.0
    %3626 = vmatprep.subr.mxu0 0.0
    %3627 = vmatpush1.msra.mxu0 0.0
    %3628 = vmatprep.subr.mxu0 0.0
    %3629 = vmatpush1.msra.mxu0 0.0
    %3630 = vmatprep.subr.mxu0 0.0
    %3631 = vmatpush1.msra.mxu0 0.0
    %3632 = vmatprep.subr.mxu0 0.0
    %3633 = vmatpush1.msra.mxu0 0.0
    %3634 = vmatprep.subr.mxu0 0.0
    %3635 = vmatpush1.msra.mxu0 0.0
    %3636 = vmatprep.subr.mxu0 0.0
    %3637 = vmatpush1.msra.mxu0 0.0
    %3638 = vmatprep.subr.mxu0 0.0
    %3639 = vmatpush1.msra.mxu0 0.0
    %3640 = vmatprep.subr.mxu0 0.0
    %3641 = vmatpush1.msra.mxu0 0.0
    %3642 = vmatprep.subr.mxu0 0.0
    %3643 = vmatpush1.msra.mxu0 0.0
    %3644 = vmatprep.subr.mxu0 0.0
    %3645 = vmatpush1.msra.mxu0 0.0
    %3646 = vmatprep.subr.mxu0 0.0
    %3647 = vmatpush1.msra.mxu0 0.0
    %3648 = vmatprep.subr.mxu0 0.0
    %3649 = vmatpush1.msra.mxu0 0.0
    %3650 = vmatprep.subr.mxu0 0.0
    %3651 = vmatpush1.msra.mxu0 0.0
    %3652 = vmatprep.subr.mxu0 0.0
    %3653 = vmatpush1.msra.mxu0 0.0
    %3654 = vmatprep.subr.mxu0 0.0
    %3655 = vmatpush1.msra.mxu0 0.0
    %3656 = vmatprep.mubr.f32.mxu0 0.0
    %3657 = vmatmul.mubr.f32.gmra.mrb[0].mxu0 %v3587
    %v3658 = vpop.f32.mrb[0].mxu0
    %v3659 = vadd.f32 0.0, %v3658
    %v3660 = vpop.f32.mrb[0].mxu0
    %v3661 = vadd.f32 0.0, %v3660
    %3662 = vmatprep.mubr.f32.mxu0 0.0
    %3663 = vmatmul.mubr.f32.gmra.mrb[0].mxu0 %v3590
    %v3664 = vpop.f32.mrb[0].mxu0
    %v3665 = vadd.f32 0.0, %v3664
    %v3666 = vpop.f32.mrb[0].mxu0
    %v3667 = vadd.f32 0.0, %v3666
    %3668 = vdwg.mxu0
    %v3669 = vadd.f32 %v3267, %v3659
    %v3670 = vadd.f32 %v3269, %v3661
    %v3671 = vadd.f32 %v3273, %v3665
    %v3672 = vadd.f32 %v3275, %v3667
    %v3673 = vlaneseq
    %v3674 = vshrl.u32 %v3673, 7
    %v3675 = vsub.s32 0, %v3674
    %v3676 = vrot.slane %v2492, %v3675
    %v3677 = vlaneseq
    %v3678 = vshrl.u32 %v3677, 7
    %v3679 = vsub.s32 0, %v3678
    %v3680 = vrot.slane %v2493, %v3679
    %v3681 = vadd.f32 %v3669, %v3676
    %v3682 = vadd.f32 %v3670, %v3680
    %v3683 = vadd.f32 %v3671, %v3676
    %v3684 = vadd.f32 %v3672, %v3680
    %v3685 = vld [vmem:[#allocation22] sm:$0x3]
    %vm3686 = vcmask 130048
    %v3688 = vsel %vm3686, %v3685, 0
    %3690 = vmatprep.subr.mxu0 %v3682
    %3691 = vmatpush1.msra.mxu0 %v3681
    %3692 = vmatprep.subr.mxu0 %v3684
    %3693 = vmatpush1.msra.mxu0 %v3683
    %3694 = vmatprep.subr.mxu0 0.0
    %3695 = vmatpush1.msra.mxu0 0.0
    %3696 = vmatprep.subr.mxu0 0.0
    %3697 = vmatpush1.msra.mxu0 0.0
    %3698 = vmatprep.subr.mxu0 0.0
    %3699 = vmatpush1.msra.mxu0 0.0
    %3700 = vmatprep.subr.mxu0 0.0
    %3701 = vmatpush1.msra.mxu0 0.0
    %3702 = vmatprep.subr.mxu0 0.0
    %3703 = vmatpush1.msra.mxu0 0.0
    %3704 = vmatprep.subr.mxu0 0.0
    %3705 = vmatpush1.msra.mxu0 0.0
    %3706 = vmatprep.subr.mxu0 0.0
    %3707 = vmatpush1.msra.mxu0 0.0
    %3708 = vmatprep.subr.mxu0 0.0
    %3709 = vmatpush1.msra.mxu0 0.0
    %3710 = vmatprep.subr.mxu0 0.0
    %3711 = vmatpush1.msra.mxu0 0.0
    %3712 = vmatprep.subr.mxu0 0.0
    %3713 = vmatpush1.msra.mxu0 0.0
    %3714 = vmatprep.subr.mxu0 0.0
    %3715 = vmatpush1.msra.mxu0 0.0
    %3716 = vmatprep.subr.mxu0 0.0
    %3717 = vmatpush1.msra.mxu0 0.0
    %3718 = vmatprep.subr.mxu0 0.0
    %3719 = vmatpush1.msra.mxu0 0.0
    %3720 = vmatprep.subr.mxu0 0.0
    %3721 = vmatpush1.msra.mxu0 0.0
    %3722 = vmatprep.subr.mxu0 0.0
    %3723 = vmatpush1.msra.mxu0 0.0
    %3724 = vmatprep.subr.mxu0 0.0
    %3725 = vmatpush1.msra.mxu0 0.0
    %3726 = vmatprep.subr.mxu0 0.0
    %3727 = vmatpush1.msra.mxu0 0.0
    %3728 = vmatprep.subr.mxu0 0.0
    %3729 = vmatpush1.msra.mxu0 0.0
    %3730 = vmatprep.subr.mxu0 0.0
    %3731 = vmatpush1.msra.mxu0 0.0
    %3732 = vmatprep.subr.mxu0 0.0
    %3733 = vmatpush1.msra.mxu0 0.0
    %3734 = vmatprep.subr.mxu0 0.0
    %3735 = vmatpush1.msra.mxu0 0.0
    %3736 = vmatprep.subr.mxu0 0.0
    %3737 = vmatpush1.msra.mxu0 0.0
    %3738 = vmatprep.subr.mxu0 0.0
    %3739 = vmatpush1.msra.mxu0 0.0
    %3740 = vmatprep.subr.mxu0 0.0
    %3741 = vmatpush1.msra.mxu0 0.0
    %3742 = vmatprep.subr.mxu0 0.0
    %3743 = vmatpush1.msra.mxu0 0.0
    %3744 = vmatprep.subr.mxu0 0.0
    %3745 = vmatpush1.msra.mxu0 0.0
    %3746 = vmatprep.subr.mxu0 0.0
    %3747 = vmatpush1.msra.mxu0 0.0
    %3748 = vmatprep.subr.mxu0 0.0
    %3749 = vmatpush1.msra.mxu0 0.0
    %3750 = vmatprep.subr.mxu0 0.0
    %3751 = vmatpush1.msra.mxu0 0.0
    %3752 = vmatprep.subr.mxu0 0.0
    %3753 = vmatpush1.msra.mxu0 0.0
    %3754 = vmatprep.mubr.f32.mxu0 0.0
    %3755 = vmatmul.mubr.f32.gmra.mrb[0].mxu0 %v3688
    %v3756 = vpop.f32.mrb[0].mxu0
    %v3757 = vadd.f32 0.0, %v3756
    %v3758 = vpop.f32.mrb[0].mxu0
    %v3759 = vadd.f32 0.0, %v3758
    %3760 = vdwg.mxu0
    %v3761 = vmul.f32 %v3681, %v3681
    %v3762 = vmul.f32 %v3682, %v3682
    %v3763 = vmul.f32 %v3683, %v3683
    %v3764 = vmul.f32 %v3684, %v3684
    %3765 = vmatprep.subr.mxu0 %v3762
    %3766 = vmatpush1.msra.mxu0 %v3761
    %3767 = vmatprep.subr.mxu0 %v3764
    %3768 = vmatpush1.msra.mxu0 %v3763
    %3769 = vmatprep.subr.mxu0 0.0
    %3770 = vmatpush1.msra.mxu0 0.0
    %3771 = vmatprep.subr.mxu0 0.0
    %3772 = vmatpush1.msra.mxu0 0.0
    %3773 = vmatprep.subr.mxu0 0.0
    %3774 = vmatpush1.msra.mxu0 0.0
    %3775 = vmatprep.subr.mxu0 0.0
    %3776 = vmatpush1.msra.mxu0 0.0
    %3777 = vmatprep.subr.mxu0 0.0
    %3778 = vmatpush1.msra.mxu0 0.0
    %3779 = vmatprep.subr.mxu0 0.0
    %3780 = vmatpush1.msra.mxu0 0.0
    %3781 = vmatprep.subr.mxu0 0.0
    %3782 = vmatpush1.msra.mxu0 0.0
    %3783 = vmatprep.subr.mxu0 0.0
    %3784 = vmatpush1.msra.mxu0 0.0
    %3785 = vmatprep.subr.mxu0 0.0
    %3786 = vmatpush1.msra.mxu0 0.0
    %3787 = vmatprep.subr.mxu0 0.0
    %3788 = vmatpush1.msra.mxu0 0.0
    %3789 = vmatprep.subr.mxu0 0.0
    %3790 = vmatpush1.msra.mxu0 0.0
    %3791 = vmatprep.subr.mxu0 0.0
    %3792 = vmatpush1.msra.mxu0 0.0
    %3793 = vmatprep.subr.mxu0 0.0
    %3794 = vmatpush1.msra.mxu0 0.0
    %3795 = vmatprep.subr.mxu0 0.0
    %3796 = vmatpush1.msra.mxu0 0.0
    %3797 = vmatprep.subr.mxu0 0.0
    %3798 = vmatpush1.msra.mxu0 0.0
    %3799 = vmatprep.subr.mxu0 0.0
    %3800 = vmatpush1.msra.mxu0 0.0
    %3801 = vmatprep.subr.mxu0 0.0
    %3802 = vmatpush1.msra.mxu0 0.0
    %3803 = vmatprep.subr.mxu0 0.0
    %3804 = vmatpush1.msra.mxu0 0.0
    %3805 = vmatprep.subr.mxu0 0.0
    %3806 = vmatpush1.msra.mxu0 0.0
    %3807 = vmatprep.subr.mxu0 0.0
    %3808 = vmatpush1.msra.mxu0 0.0
    %3809 = vmatprep.subr.mxu0 0.0
    %3810 = vmatpush1.msra.mxu0 0.0
    %3811 = vmatprep.subr.mxu0 0.0
    %3812 = vmatpush1.msra.mxu0 0.0
    %3813 = vmatprep.subr.mxu0 0.0
    %3814 = vmatpush1.msra.mxu0 0.0
    %3815 = vmatprep.subr.mxu0 0.0
    %3816 = vmatpush1.msra.mxu0 0.0
    %3817 = vmatprep.subr.mxu0 0.0
    %3818 = vmatpush1.msra.mxu0 0.0
    %3819 = vmatprep.subr.mxu0 0.0
    %3820 = vmatpush1.msra.mxu0 0.0
    %3821 = vmatprep.subr.mxu0 0.0
    %3822 = vmatpush1.msra.mxu0 0.0
    %3823 = vmatprep.subr.mxu0 0.0
    %3824 = vmatpush1.msra.mxu0 0.0
    %3825 = vmatprep.subr.mxu0 0.0
    %3826 = vmatpush1.msra.mxu0 0.0
    %3827 = vmatprep.subr.mxu0 0.0
    %3828 = vmatpush1.msra.mxu0 0.0
    %3829 = vmatprep.mubr.f32.mxu0 0.0
    %3830 = vmatmul.mubr.f32.gmra.mrb[0].mxu0 %v3688
    %v3831 = vpop.f32.mrb[0].mxu0
    %v3832 = vadd.f32 0.0, %v3831
    %v3833 = vpop.f32.mrb[0].mxu0
    %v3834 = vadd.f32 0.0, %v3833
    %3835 = vdwg.mxu0
    %v3836 = vlaneseq
    %v3837 = vshrl.u32 %v3836, 7
    %v3838 = vsub.s32 3, %v3837
    %v3839 = vrot.slane %v2492, %v3838
    %v3840 = vlaneseq
    %v3841 = vshrl.u32 %v3840, 7
    %v3842 = vsub.s32 3, %v3841
    %v3843 = vrot.slane %v2493, %v3842
    %v3844 = vmul.f32 %v3757, %v3839
    %v3845 = vmul.f32 %v3759, %v3843
    %v3846 = vsel %vm1879, %v3844, 0.0
    %v3847 = vsel %vm1879, %v3845, 0.0
    %v3848 = vadd.f32 %v3846, %v3847
    %3849 = vadd.xlane.f32.xlu0 %v3848
    %v3850 = vpop.xlane.xlu0 %3849
    %v3851 = vmul.f32 %v3832, %v3839
    %v3852 = vmul.f32 %v3834, %v3843
    %v3853 = vsel %vm1879, %v3851, 0.0
    %v3854 = vsel %vm1879, %v3852, 0.0
    %v3855 = vadd.f32 %v3853, %v3854
    %3856 = vadd.xlane.f32.xlu0 %v3855
    %v3857 = vpop.xlane.xlu0 %3856
    %v3858 = vsel %vm1879, %v3757, 0.0
    %v3859 = vsel %vm1879, %v3759, 0.0
    %v3860 = vadd.f32 %v3858, %v3859
    %3861 = vadd.xlane.f32.xlu0 %v3860
    %v3862 = vpop.xlane.xlu0 %3861
    %v3863 = vsub.f32 %v3862, %v3850
    %v3864 = vsel %vm1879, %v3832, 0.0
    %v3865 = vsel %vm1879, %v3834, 0.0
    %v3866 = vadd.f32 %v3864, %v3865
    %3867 = vadd.xlane.f32.xlu0 %v3866
    %v3868 = vpop.xlane.xlu0 %3867
    %v3869 = vsub.f32 %v3868, %v3857
    %v3870 = vrcp.pop 1024.0
    %v3871 = vmul.f32 %v3863, %v3870
    %v3872 = vmul.f32 %v3850, %v3870
    %v3873 = vmul.f32 %v3869, %v3870
    %v3874 = vmul.f32 %v3871, %v3871
    %v3875 = vsub.f32 %v3873, %v3874
    %v3876 = vmax.f32 %v3875, 0.0
    %v3877 = vmul.f32 %v3857, %v3870
    %v3878 = vmul.f32 %v3872, %v3872
    %v3879 = vsub.f32 %v3877, %v3878
    %v3880 = vmax.f32 %v3879, 0.0
    %v3881 = vadd.f32 %v3876, 1e-05
    %v3882 = vrsqrt.pop %v3881
    %v3883 = vadd.f32 %v3880, 1e-05
    %v3884 = vrsqrt.pop %v3883
    %v3885 = vsub.f32 %v3884, %v3882
    %v3886 = vmul.f32 %v3885, %v3839
    %v3887 = vmul.f32 %v3885, %v3843
    %v3888 = vadd.f32 %v3882, %v3886
    %v3889 = vadd.f32 %v3882, %v3887
    %v3890 = vsub.f32 %v3872, %v3871
    %v3891 = vmul.f32 %v3890, %v3839
    %v3892 = vmul.f32 %v3890, %v3843
    %v3893 = vadd.f32 %v3871, %v3891
    %v3894 = vadd.f32 %v3871, %v3892
    %v3895 = vlaneseq
    %v3896 = vshrl.u32 %v3895, 7
    %v3897 = vsub.s32 1, %v3896
    %v3898 = vrot.slane %v2492, %v3897
    %v3899 = vlaneseq
    %v3900 = vshrl.u32 %v3899, 7
    %v3901 = vsub.s32 1, %v3900
    %v3902 = vrot.slane %v2493, %v3901
    %v3903 = vmul.f32 %v3898, %v3888
    %v3904 = vmul.f32 %v3902, %v3889
    %v3905 = vmul.f32 %v3893, %v3903
    %v3906 = vmul.f32 %v3894, %v3904
    %v3907 = vlaneseq
    %v3908 = vshrl.u32 %v3907, 7
    %v3909 = vsub.s32 2, %v3908
    %v3910 = vrot.slane %v2492, %v3909
    %v3911 = vlaneseq
    %v3912 = vshrl.u32 %v3911, 7
    %v3913 = vsub.s32 2, %v3912
    %v3914 = vrot.slane %v2493, %v3913
    %v3915 = vsub.f32 %v3910, %v3905
    %v3916 = vsub.f32 %v3914, %v3906
    %v3917 = vld [vmem:[%s18] sm:$0xff]
    %v3918 = vld [vmem:[%s18 + $0x8] sm:$0xff]
    %v3920 = vsel %vm2003, %v3917, 0
    %v3923 = vsel %vm2003, %v3918, 0
    %v3926 = vsel %vm1879, %v3903, 0
    %v3929 = vsel %vm1879, %v3904, 0
    %3931 = vmatprep.subr.mxu0 %v3929
    %3932 = vmatpush1.msra.mxu0 %v3926
    %3933 = vmatprep.subr.mxu0 0.0
    %3934 = vmatpush1.msra.mxu0 0.0
    %3935 = vmatprep.subr.mxu0 0.0
    %3936 = vmatpush1.msra.mxu0 0.0
    %3937 = vmatprep.subr.mxu0 0.0
    %3938 = vmatpush1.msra.mxu0 0.0
    %3939 = vmatprep.subr.mxu0 0.0
    %3940 = vmatpush1.msra.mxu0 0.0
    %3941 = vmatprep.subr.mxu0 0.0
    %3942 = vmatpush1.msra.mxu0 0.0
    %3943 = vmatprep.subr.mxu0 0.0
    %3944 = vmatpush1.msra.mxu0 0.0
    %3945 = vmatprep.subr.mxu0 0.0
    %3946 = vmatpush1.msra.mxu0 0.0
    %3947 = vmatprep.subr.mxu0 0.0
    %3948 = vmatpush1.msra.mxu0 0.0
    %3949 = vmatprep.subr.mxu0 0.0
    %3950 = vmatpush1.msra.mxu0 0.0
    %3951 = vmatprep.subr.mxu0 0.0
    %3952 = vmatpush1.msra.mxu0 0.0
    %3953 = vmatprep.subr.mxu0 0.0
    %3954 = vmatpush1.msra.mxu0 0.0
    %3955 = vmatprep.subr.mxu0 0.0
    %3956 = vmatpush1.msra.mxu0 0.0
    %3957 = vmatprep.subr.mxu0 0.0
    %3958 = vmatpush1.msra.mxu0 0.0
    %3959 = vmatprep.subr.mxu0 0.0
    %3960 = vmatpush1.msra.mxu0 0.0
    %3961 = vmatprep.subr.mxu0 0.0
    %3962 = vmatpush1.msra.mxu0 0.0
    %3963 = vmatprep.subr.mxu0 0.0
    %3964 = vmatpush1.msra.mxu0 0.0
    %3965 = vmatprep.subr.mxu0 0.0
    %3966 = vmatpush1.msra.mxu0 0.0
    %3967 = vmatprep.subr.mxu0 0.0
    %3968 = vmatpush1.msra.mxu0 0.0
    %3969 = vmatprep.subr.mxu0 0.0
    %3970 = vmatpush1.msra.mxu0 0.0
    %3971 = vmatprep.subr.mxu0 0.0
    %3972 = vmatpush1.msra.mxu0 0.0
    %3973 = vmatprep.subr.mxu0 0.0
    %3974 = vmatpush1.msra.mxu0 0.0
    %3975 = vmatprep.subr.mxu0 0.0
    %3976 = vmatpush1.msra.mxu0 0.0
    %3977 = vmatprep.subr.mxu0 0.0
    %3978 = vmatpush1.msra.mxu0 0.0
    %3979 = vmatprep.subr.mxu0 0.0
    %3980 = vmatpush1.msra.mxu0 0.0
    %3981 = vmatprep.subr.mxu0 0.0
    %3982 = vmatpush1.msra.mxu0 0.0
    %3983 = vmatprep.subr.mxu0 0.0
    %3984 = vmatpush1.msra.mxu0 0.0
    %3985 = vmatprep.subr.mxu0 0.0
    %3986 = vmatpush1.msra.mxu0 0.0
    %3987 = vmatprep.subr.mxu0 0.0
    %3988 = vmatpush1.msra.mxu0 0.0
    %3989 = vmatprep.subr.mxu0 0.0
    %3990 = vmatpush1.msra.mxu0 0.0
    %3991 = vmatprep.subr.mxu0 0.0
    %3992 = vmatpush1.msra.mxu0 0.0
    %3993 = vmatprep.subr.mxu0 0.0
    %3994 = vmatpush1.msra.mxu0 0.0
    %3995 = vmatprep.mubr.f32.mxu0 0.0
    %3996 = vmatmul.mubr.f32.gmra.mrb[0].mxu0 %v3920
    %v3997 = vpop.f32.mrb[0].mxu0
    %v3998 = vadd.f32 0.0, %v3997
    %v3999 = vpop.f32.mrb[0].mxu0
    %v4000 = vadd.f32 0.0, %v3999
    %4001 = vmatprep.mubr.f32.mxu0 0.0
    %4002 = vmatmul.mubr.f32.gmra.mrb[0].mxu0 %v3923
    %v4003 = vpop.f32.mrb[0].mxu0
    %v4004 = vadd.f32 0.0, %v4003
    %v4005 = vpop.f32.mrb[0].mxu0
    %v4006 = vadd.f32 0.0, %v4005
    %4007 = vdwg.mxu0
    %v4009 = vsel %vm1879, %v3915, 0
    %v4012 = vsel %vm1879, %v3916, 0
    %4014 = vmatprep.subr.mxu0 %v4012
    %4015 = vmatpush1.msra.mxu0 %v4009
    %4016 = vmatprep.subr.mxu0 0.0
    %4017 = vmatpush1.msra.mxu0 0.0
    %4018 = vmatprep.subr.mxu0 0.0
    %4019 = vmatpush1.msra.mxu0 0.0
    %4020 = vmatprep.subr.mxu0 0.0
    %4021 = vmatpush1.msra.mxu0 0.0
    %4022 = vmatprep.subr.mxu0 0.0
    %4023 = vmatpush1.msra.mxu0 0.0
    %4024 = vmatprep.subr.mxu0 0.0
    %4025 = vmatpush1.msra.mxu0 0.0
    %4026 = vmatprep.subr.mxu0 0.0
    %4027 = vmatpush1.msra.mxu0 0.0
    %4028 = vmatprep.subr.mxu0 0.0
    %4029 = vmatpush1.msra.mxu0 0.0
    %4030 = vmatprep.subr.mxu0 0.0
    %4031 = vmatpush1.msra.mxu0 0.0
    %4032 = vmatprep.subr.mxu0 0.0
    %4033 = vmatpush1.msra.mxu0 0.0
    %4034 = vmatprep.subr.mxu0 0.0
    %4035 = vmatpush1.msra.mxu0 0.0
    %4036 = vmatprep.subr.mxu0 0.0
    %4037 = vmatpush1.msra.mxu0 0.0
    %4038 = vmatprep.subr.mxu0 0.0
    %4039 = vmatpush1.msra.mxu0 0.0
    %4040 = vmatprep.subr.mxu0 0.0
    %4041 = vmatpush1.msra.mxu0 0.0
    %4042 = vmatprep.subr.mxu0 0.0
    %4043 = vmatpush1.msra.mxu0 0.0
    %4044 = vmatprep.subr.mxu0 0.0
    %4045 = vmatpush1.msra.mxu0 0.0
    %4046 = vmatprep.subr.mxu0 0.0
    %4047 = vmatpush1.msra.mxu0 0.0
    %4048 = vmatprep.subr.mxu0 0.0
    %4049 = vmatpush1.msra.mxu0 0.0
    %4050 = vmatprep.subr.mxu0 0.0
    %4051 = vmatpush1.msra.mxu0 0.0
    %4052 = vmatprep.subr.mxu0 0.0
    %4053 = vmatpush1.msra.mxu0 0.0
    %4054 = vmatprep.subr.mxu0 0.0
    %4055 = vmatpush1.msra.mxu0 0.0
    %4056 = vmatprep.subr.mxu0 0.0
    %4057 = vmatpush1.msra.mxu0 0.0
    %4058 = vmatprep.subr.mxu0 0.0
    %4059 = vmatpush1.msra.mxu0 0.0
    %4060 = vmatprep.subr.mxu0 0.0
    %4061 = vmatpush1.msra.mxu0 0.0
    %4062 = vmatprep.subr.mxu0 0.0
    %4063 = vmatpush1.msra.mxu0 0.0
    %4064 = vmatprep.subr.mxu0 0.0
    %4065 = vmatpush1.msra.mxu0 0.0
    %4066 = vmatprep.subr.mxu0 0.0
    %4067 = vmatpush1.msra.mxu0 0.0
    %4068 = vmatprep.subr.mxu0 0.0
    %4069 = vmatpush1.msra.mxu0 0.0
    %4070 = vmatprep.subr.mxu0 0.0
    %4071 = vmatpush1.msra.mxu0 0.0
    %4072 = vmatprep.subr.mxu0 0.0
    %4073 = vmatpush1.msra.mxu0 0.0
    %4074 = vmatprep.subr.mxu0 0.0
    %4075 = vmatpush1.msra.mxu0 0.0
    %4076 = vmatprep.subr.mxu0 0.0
    %4077 = vmatpush1.msra.mxu0 0.0
    %4078 = vmatprep.mubr.f32.mxu0 0.0
    %4079 = vmatmul.mubr.f32.gmra.mrb[0].mxu0 %v3920
    %v4080 = vpop.f32.mrb[0].mxu0
    %v4081 = vadd.f32 0.0, %v4080
    %v4082 = vpop.f32.mrb[0].mxu0
    %v4083 = vadd.f32 0.0, %v4082
    %4084 = vmatprep.mubr.f32.mxu0 0.0
    %4085 = vmatmul.mubr.f32.gmra.mrb[0].mxu0 %v3923
    %v4086 = vpop.f32.mrb[0].mxu0
    %v4087 = vadd.f32 0.0, %v4086
    %v4088 = vpop.f32.mrb[0].mxu0
    %v4089 = vadd.f32 0.0, %v4088
    %4090 = vdwg.mxu0
    %v4091 = vmul.f32 %v3681, %v3998
    %v4092 = vmul.f32 %v3682, %v4000
    %v4093 = vmul.f32 %v3683, %v4004
    %v4094 = vmul.f32 %v3684, %v4006
    %v4095 = vadd.f32 %v4091, %v4081
    %v4096 = vadd.f32 %v4092, %v4083
    %v4097 = vadd.f32 %v4093, %v4087
    %v4098 = vadd.f32 %v4094, %v4089
    %vm4099 = vcmp.ge.f32.partialorder %v4095, 0.0
    %vm4100 = vcmp.ge.f32.partialorder %v4096, 0.0
    %vm4101 = vcmp.ge.f32.partialorder %v4097, 0.0
    %vm4102 = vcmp.ge.f32.partialorder %v4098, 0.0
    %v4103 = vmul.f32 %v4095, 0.2
    %v4104 = vmul.f32 %v4096, 0.2
    %v4105 = vmul.f32 %v4097, 0.2
    %v4106 = vmul.f32 %v4098, 0.2
    %v4107 = vsel %vm4099, %v4095, %v4103
    %v4108 = vsel %vm4100, %v4096, %v4104
    %v4109 = vsel %vm4101, %v4097, %v4105
    %v4110 = vsel %vm4102, %v4098, %v4106
    %v4111 = vld [vmem:[#allocation18] sm:$0xff]
    %v4112 = vld [vmem:[#allocation18 + $0x8] sm:$0xff]
    %v4113 = vld [vmem:[#allocation6] sm:$0xff]
    %v4114 = vld [vmem:[#allocation6 + $0x8] sm:$0xff]
    %v4115 = vld [vmem:[#allocation6 + $0x30] sm:$0xff]
    %v4116 = vld [vmem:[#allocation6 + $0x38] sm:$0xff]
    %v4117 = vld [vmem:[#allocation6 + $0x60] sm:$0xff]
    %v4118 = vld [vmem:[#allocation6 + $0x68] sm:$0xff]
    %v4119 = vld [vmem:[#allocation6 + $0x90] sm:$0xff]
    %v4120 = vld [vmem:[#allocation6 + $0x98] sm:$0xff]
    %v4121 = vld [vmem:[#allocation6 + $0xc0] sm:$0xff]
    %v4122 = vld [vmem:[#allocation6 + $0xc8] sm:$0xff]
    %v4123 = vld [vmem:[#allocation6 + $0xf0] sm:$0xff]
    %v4124 = vld [vmem:[#allocation6 + $0xf8] sm:$0xff]
    %v4125 = vld [vmem:[#allocation6 + $0x120] sm:$0xff]
    %v4126 = vld [vmem:[#allocation6 + $0x128] sm:$0xff]
    %v4127 = vld [vmem:[#allocation6 + $0x150] sm:$0xff]
    %v4128 = vld [vmem:[#allocation6 + $0x158] sm:$0xff]
    %v4129 = vld [vmem:[#allocation6 + $0x180] sm:$0xff]
    %v4130 = vld [vmem:[#allocation6 + $0x188] sm:$0xff]
    %v4131 = vld [vmem:[#allocation6 + $0x1b0] sm:$0xff]
    %v4132 = vld [vmem:[#allocation6 + $0x1b8] sm:$0xff]
    %v4133 = vld [vmem:[#allocation6 + $0x1e0] sm:$0xff]
    %v4134 = vld [vmem:[#allocation6 + $0x1e8] sm:$0xff]
    %v4135 = vld [vmem:[#allocation6 + $0x210] sm:$0xff]
    %v4136 = vld [vmem:[#allocation6 + $0x218] sm:$0xff]
    %v4137 = vld [vmem:[#allocation6 + $0x240] sm:$0xff]
    %v4138 = vld [vmem:[#allocation6 + $0x248] sm:$0xff]
    %v4139 = vld [vmem:[#allocation6 + $0x270] sm:$0xff]
    %v4140 = vld [vmem:[#allocation6 + $0x278] sm:$0xff]
    %v4141 = vld [vmem:[#allocation6 + $0x2a0] sm:$0xff]
    %v4142 = vld [vmem:[#allocation6 + $0x2a8] sm:$0xff]
    %v4143 = vld [vmem:[#allocation6 + $0x2d0] sm:$0xff]
    %v4144 = vld [vmem:[#allocation6 + $0x2d8] sm:$0xff]
    %v4145 = vld [vmem:[#allocation6 + $0x300] sm:$0xff]
    %v4146 = vld [vmem:[#allocation6 + $0x308] sm:$0xff]
    %v4147 = vld [vmem:[#allocation6 + $0x330] sm:$0xff]
    %v4148 = vld [vmem:[#allocation6 + $0x338] sm:$0xff]
    %v4149 = vld [vmem:[#allocation6 + $0x360] sm:$0xff]
    %v4150 = vld [vmem:[#allocation6 + $0x368] sm:$0xff]
    %v4151 = vld [vmem:[#allocation6 + $0x390] sm:$0xff]
    %v4152 = vld [vmem:[#allocation6 + $0x398] sm:$0xff]
    %v4153 = vld [vmem:[#allocation6 + $0x3c0] sm:$0xff]
    %v4154 = vld [vmem:[#allocation6 + $0x3c8] sm:$0xff]
    %v4155 = vld [vmem:[#allocation6 + $0x3f0] sm:$0xff]
    %v4156 = vld [vmem:[#allocation6 + $0x3f8] sm:$0xff]
    %v4157 = vld [vmem:[#allocation6 + $0x420] sm:$0xff]
    %v4158 = vld [vmem:[#allocation6 + $0x428] sm:$0xff]
    %v4159 = vld [vmem:[#allocation6 + $0x450] sm:$0xff]
    %v4160 = vld [vmem:[#allocation6 + $0x458] sm:$0xff]
    %v4161 = vld [vmem:[#allocation6 + $0x480] sm:$0xff]
    %v4162 = vld [vmem:[#allocation6 + $0x488] sm:$0xff]
    %v4163 = vld [vmem:[#allocation6 + $0x4b0] sm:$0xff]
    %v4164 = vld [vmem:[#allocation6 + $0x4b8] sm:$0xff]
    %v4165 = vld [vmem:[#allocation6 + $0x4e0] sm:$0xff]
    %v4166 = vld [vmem:[#allocation6 + $0x4e8] sm:$0xff]
    %v4167 = vld [vmem:[#allocation6 + $0x510] sm:$0xff]
    %v4168 = vld [vmem:[#allocation6 + $0x518] sm:$0xff]
    %v4169 = vld [vmem:[#allocation6 + $0x540] sm:$0xff]
    %v4170 = vld [vmem:[#allocation6 + $0x548] sm:$0xff]
    %v4171 = vld [vmem:[#allocation6 + $0x570] sm:$0xff]
    %v4172 = vld [vmem:[#allocation6 + $0x578] sm:$0xff]
    %v4173 = vld [vmem:[#allocation6 + $0x5a0] sm:$0xff]
    %v4174 = vld [vmem:[#allocation6 + $0x5a8] sm:$0xff]
    %v4175 = vld [vmem:[#allocation6 + $0x5d0] sm:$0xff]
    %v4176 = vld [vmem:[#allocation6 + $0x5d8] sm:$0xff]
    %4177 = vmatprep.subr.mxu0 %v4114
    %4178 = vmatpush1.msra.mxu0 %v4113
    %4179 = vmatprep.subr.mxu0 %v4116
    %4180 = vmatpush1.msra.mxu0 %v4115
    %4181 = vmatprep.subr.mxu0 %v4118
    %4182 = vmatpush1.msra.mxu0 %v4117
    %4183 = vmatprep.subr.mxu0 %v4120
    %4184 = vmatpush1.msra.mxu0 %v4119
    %4185 = vmatprep.subr.mxu0 %v4122
    %4186 = vmatpush1.msra.mxu0 %v4121
    %4187 = vmatprep.subr.mxu0 %v4124
    %4188 = vmatpush1.msra.mxu0 %v4123
    %4189 = vmatprep.subr.mxu0 %v4126
    %4190 = vmatpush1.msra.mxu0 %v4125
    %4191 = vmatprep.subr.mxu0 %v4128
    %4192 = vmatpush1.msra.mxu0 %v4127
    %4193 = vmatprep.subr.mxu0 %v4130
    %4194 = vmatpush1.msra.mxu0 %v4129
    %4195 = vmatprep.subr.mxu0 %v4132
    %4196 = vmatpush1.msra.mxu0 %v4131
    %4197 = vmatprep.subr.mxu0 %v4134
    %4198 = vmatpush1.msra.mxu0 %v4133
    %4199 = vmatprep.subr.mxu0 %v4136
    %4200 = vmatpush1.msra.mxu0 %v4135
    %4201 = vmatprep.subr.mxu0 %v4138
    %4202 = vmatpush1.msra.mxu0 %v4137
    %4203 = vmatprep.subr.mxu0 %v4140
    %4204 = vmatpush1.msra.mxu0 %v4139
    %4205 = vmatprep.subr.mxu0 %v4142
    %4206 = vmatpush1.msra.mxu0 %v4141
    %4207 = vmatprep.subr.mxu0 %v4144
    %4208 = vmatpush1.msra.mxu0 %v4143
    %4209 = vmatprep.subr.mxu0 %v4146
    %4210 = vmatpush1.msra.mxu0 %v4145
    %4211 = vmatprep.subr.mxu0 %v4148
    %4212 = vmatpush1.msra.mxu0 %v4147
    %4213 = vmatprep.subr.mxu0 %v4150
    %4214 = vmatpush1.msra.mxu0 %v4149
    %4215 = vmatprep.subr.mxu0 %v4152
    %4216 = vmatpush1.msra.mxu0 %v4151
    %4217 = vmatprep.subr.mxu0 %v4154
    %4218 = vmatpush1.msra.mxu0 %v4153
    %4219 = vmatprep.subr.mxu0 %v4156
    %4220 = vmatpush1.msra.mxu0 %v4155
    %4221 = vmatprep.subr.mxu0 %v4158
    %4222 = vmatpush1.msra.mxu0 %v4157
    %4223 = vmatprep.subr.mxu0 %v4160
    %4224 = vmatpush1.msra.mxu0 %v4159
    %4225 = vmatprep.subr.mxu0 %v4162
    %4226 = vmatpush1.msra.mxu0 %v4161
    %4227 = vmatprep.subr.mxu0 %v4164
    %4228 = vmatpush1.msra.mxu0 %v4163
    %4229 = vmatprep.subr.mxu0 %v4166
    %4230 = vmatpush1.msra.mxu0 %v4165
    %4231 = vmatprep.subr.mxu0 %v4168
    %4232 = vmatpush1.msra.mxu0 %v4167
    %4233 = vmatprep.subr.mxu0 %v4170
    %4234 = vmatpush1.msra.mxu0 %v4169
    %4235 = vmatprep.subr.mxu0 %v4172
    %4236 = vmatpush1.msra.mxu0 %v4171
    %4237 = vmatprep.subr.mxu0 %v4174
    %4238 = vmatpush1.msra.mxu0 %v4173
    %4239 = vmatprep.subr.mxu0 %v4176
    %4240 = vmatpush1.msra.mxu0 %v4175
    %4241 = vmatprep.mubr.f32.mxu0 %v4108
    %4242 = vmatmul.mubr.f32.gmra.mrb[0].mxu0 %v4107
    %v4243 = vpop.f32.mrb[0].mxu0
    %v4244 = vadd.f32 0.0, %v4243
    %v4245 = vpop.f32.mrb[0].mxu0
    %v4246 = vadd.f32 0.0, %v4245
    %4247 = vmatprep.mubr.f32.mxu0 %v4110
    %4248 = vmatmul.mubr.f32.gmra.mrb[0].mxu0 %v4109
    %v4249 = vpop.f32.mrb[0].mxu0
    %v4250 = vadd.f32 0.0, %v4249
    %v4251 = vpop.f32.mrb[0].mxu0
    %v4252 = vadd.f32 0.0, %v4251
    %4253 = vdwg.mxu0
    %v4254 = vld [vmem:[#allocation12] sm:$0xff]
    %v4255 = vld [vmem:[#allocation12 + $0x8] sm:$0xff]
    %v4256 = vld [vmem:[#allocation6 + $0x10] sm:$0xff]
    %v4257 = vld [vmem:[#allocation6 + $0x18] sm:$0xff]
    %v4258 = vld [vmem:[#allocation6 + $0x40] sm:$0xff]
    %v4259 = vld [vmem:[#allocation6 + $0x48] sm:$0xff]
    %v4260 = vld [vmem:[#allocation6 + $0x70] sm:$0xff]
    %v4261 = vld [vmem:[#allocation6 + $0x78] sm:$0xff]
    %v4262 = vld [vmem:[#allocation6 + $0xa0] sm:$0xff]
    %v4263 = vld [vmem:[#allocation6 + $0xa8] sm:$0xff]
    %v4264 = vld [vmem:[#allocation6 + $0xd0] sm:$0xff]
    %v4265 = vld [vmem:[#allocation6 + $0xd8] sm:$0xff]
    %v4266 = vld [vmem:[#allocation6 + $0x100] sm:$0xff]
    %v4267 = vld [vmem:[#allocation6 + $0x108] sm:$0xff]
    %v4268 = vld [vmem:[#allocation6 + $0x130] sm:$0xff]
    %v4269 = vld [vmem:[#allocation6 + $0x138] sm:$0xff]
    %v4270 = vld [vmem:[#allocation6 + $0x160] sm:$0xff]
    %v4271 = vld [vmem:[#allocation6 + $0x168] sm:$0xff]
    %v4272 = vld [vmem:[#allocation6 + $0x190] sm:$0xff]
    %v4273 = vld [vmem:[#allocation6 + $0x198] sm:$0xff]
    %v4274 = vld [vmem:[#allocation6 + $0x1c0] sm:$0xff]
    %v4275 = vld [vmem:[#allocation6 + $0x1c8] sm:$0xff]
    %v4276 = vld [vmem:[#allocation6 + $0x1f0] sm:$0xff]
    %v4277 = vld [vmem:[#allocation6 + $0x1f8] sm:$0xff]
    %v4278 = vld [vmem:[#allocation6 + $0x220] sm:$0xff]
    %v4279 = vld [vmem:[#allocation6 + $0x228] sm:$0xff]
    %v4280 = vld [vmem:[#allocation6 + $0x250] sm:$0xff]
    %v4281 = vld [vmem:[#allocation6 + $0x258] sm:$0xff]
    %v4282 = vld [vmem:[#allocation6 + $0x280] sm:$0xff]
    %v4283 = vld [vmem:[#allocation6 + $0x288] sm:$0xff]
    %v4284 = vld [vmem:[#allocation6 + $0x2b0] sm:$0xff]
    %v4285 = vld [vmem:[#allocation6 + $0x2b8] sm:$0xff]
    %v4286 = vld [vmem:[#allocation6 + $0x2e0] sm:$0xff]
    %v4287 = vld [vmem:[#allocation6 + $0x2e8] sm:$0xff]
    %v4288 = vld [vmem:[#allocation6 + $0x310] sm:$0xff]
    %v4289 = vld [vmem:[#allocation6 + $0x318] sm:$0xff]
    %v4290 = vld [vmem:[#allocation6 + $0x340] sm:$0xff]
    %v4291 = vld [vmem:[#allocation6 + $0x348] sm:$0xff]
    %v4292 = vld [vmem:[#allocation6 + $0x370] sm:$0xff]
    %v4293 = vld [vmem:[#allocation6 + $0x378] sm:$0xff]
    %v4294 = vld [vmem:[#allocation6 + $0x3a0] sm:$0xff]
    %v4295 = vld [vmem:[#allocation6 + $0x3a8] sm:$0xff]
    %v4296 = vld [vmem:[#allocation6 + $0x3d0] sm:$0xff]
    %v4297 = vld [vmem:[#allocation6 + $0x3d8] sm:$0xff]
    %v4298 = vld [vmem:[#allocation6 + $0x400] sm:$0xff]
    %v4299 = vld [vmem:[#allocation6 + $0x408] sm:$0xff]
    %v4300 = vld [vmem:[#allocation6 + $0x430] sm:$0xff]
    %v4301 = vld [vmem:[#allocation6 + $0x438] sm:$0xff]
    %v4302 = vld [vmem:[#allocation6 + $0x460] sm:$0xff]
    %v4303 = vld [vmem:[#allocation6 + $0x468] sm:$0xff]
    %v4304 = vld [vmem:[#allocation6 + $0x490] sm:$0xff]
    %v4305 = vld [vmem:[#allocation6 + $0x498] sm:$0xff]
    %v4306 = vld [vmem:[#allocation6 + $0x4c0] sm:$0xff]
    %v4307 = vld [vmem:[#allocation6 + $0x4c8] sm:$0xff]
    %v4308 = vld [vmem:[#allocation6 + $0x4f0] sm:$0xff]
    %v4309 = vld [vmem:[#allocation6 + $0x4f8] sm:$0xff]
    %v4310 = vld [vmem:[#allocation6 + $0x520] sm:$0xff]
    %v4311 = vld [vmem:[#allocation6 + $0x528] sm:$0xff]
    %v4312 = vld [vmem:[#allocation6 + $0x550] sm:$0xff]
    %v4313 = vld [vmem:[#allocation6 + $0x558] sm:$0xff]
    %v4314 = vld [vmem:[#allocation6 + $0x580] sm:$0xff]
    %v4315 = vld [vmem:[#allocation6 + $0x588] sm:$0xff]
    %v4316 = vld [vmem:[#allocation6 + $0x5b0] sm:$0xff]
    %v4317 = vld [vmem:[#allocation6 + $0x5b8] sm:$0xff]
    %v4318 = vld [vmem:[#allocation6 + $0x5e0] sm:$0xff]
    %v4319 = vld [vmem:[#allocation6 + $0x5e8] sm:$0xff]
    %4320 = vmatprep.subr.mxu0 %v4257
    %4321 = vmatpush1.msra.mxu0 %v4256
    %4322 = vmatprep.subr.mxu0 %v4259
    %4323 = vmatpush1.msra.mxu0 %v4258
    %4324 = vmatprep.subr.mxu0 %v4261
    %4325 = vmatpush1.msra.mxu0 %v4260
    %4326 = vmatprep.subr.mxu0 %v4263
    %4327 = vmatpush1.msra.mxu0 %v4262
    %4328 = vmatprep.subr.mxu0 %v4265
    %4329 = vmatpush1.msra.mxu0 %v4264
    %4330 = vmatprep.subr.mxu0 %v4267
    %4331 = vmatpush1.msra.mxu0 %v4266
    %4332 = vmatprep.subr.mxu0 %v4269
    %4333 = vmatpush1.msra.mxu0 %v4268
    %4334 = vmatprep.subr.mxu0 %v4271
    %4335 = vmatpush1.msra.mxu0 %v4270
    %4336 = vmatprep.subr.mxu0 %v4273
    %4337 = vmatpush1.msra.mxu0 %v4272
    %4338 = vmatprep.subr.mxu0 %v4275
    %4339 = vmatpush1.msra.mxu0 %v4274
    %4340 = vmatprep.subr.mxu0 %v4277
    %4341 = vmatpush1.msra.mxu0 %v4276
    %4342 = vmatprep.subr.mxu0 %v4279
    %4343 = vmatpush1.msra.mxu0 %v4278
    %4344 = vmatprep.subr.mxu0 %v4281
    %4345 = vmatpush1.msra.mxu0 %v4280
    %4346 = vmatprep.subr.mxu0 %v4283
    %4347 = vmatpush1.msra.mxu0 %v4282
    %4348 = vmatprep.subr.mxu0 %v4285
    %4349 = vmatpush1.msra.mxu0 %v4284
    %4350 = vmatprep.subr.mxu0 %v4287
    %4351 = vmatpush1.msra.mxu0 %v4286
    %4352 = vmatprep.subr.mxu0 %v4289
    %4353 = vmatpush1.msra.mxu0 %v4288
    %4354 = vmatprep.subr.mxu0 %v4291
    %4355 = vmatpush1.msra.mxu0 %v4290
    %4356 = vmatprep.subr.mxu0 %v4293
    %4357 = vmatpush1.msra.mxu0 %v4292
    %4358 = vmatprep.subr.mxu0 %v4295
    %4359 = vmatpush1.msra.mxu0 %v4294
    %4360 = vmatprep.subr.mxu0 %v4297
    %4361 = vmatpush1.msra.mxu0 %v4296
    %4362 = vmatprep.subr.mxu0 %v4299
    %4363 = vmatpush1.msra.mxu0 %v4298
    %4364 = vmatprep.subr.mxu0 %v4301
    %4365 = vmatpush1.msra.mxu0 %v4300
    %4366 = vmatprep.subr.mxu0 %v4303
    %4367 = vmatpush1.msra.mxu0 %v4302
    %4368 = vmatprep.subr.mxu0 %v4305
    %4369 = vmatpush1.msra.mxu0 %v4304
    %4370 = vmatprep.subr.mxu0 %v4307
    %4371 = vmatpush1.msra.mxu0 %v4306
    %4372 = vmatprep.subr.mxu0 %v4309
    %4373 = vmatpush1.msra.mxu0 %v4308
    %4374 = vmatprep.subr.mxu0 %v4311
    %4375 = vmatpush1.msra.mxu0 %v4310
    %4376 = vmatprep.subr.mxu0 %v4313
    %4377 = vmatpush1.msra.mxu0 %v4312
    %4378 = vmatprep.subr.mxu0 %v4315
    %4379 = vmatpush1.msra.mxu0 %v4314
    %4380 = vmatprep.subr.mxu0 %v4317
    %4381 = vmatpush1.msra.mxu0 %v4316
    %4382 = vmatprep.subr.mxu0 %v4319
    %4383 = vmatpush1.msra.mxu0 %v4318
    %4384 = vmatprep.mubr.f32.mxu0 %v4108
    %4385 = vmatmul.mubr.f32.gmra.mrb[0].mxu0 %v4107
    %v4386 = vpop.f32.mrb[0].mxu0
    %v4387 = vadd.f32 0.0, %v4386
    %v4388 = vpop.f32.mrb[0].mxu0
    %v4389 = vadd.f32 0.0, %v4388
    %4390 = vmatprep.mubr.f32.mxu0 %v4110
    %4391 = vmatmul.mubr.f32.gmra.mrb[0].mxu0 %v4109
    %v4392 = vpop.f32.mrb[0].mxu0
    %v4393 = vadd.f32 0.0, %v4392
    %v4394 = vpop.f32.mrb[0].mxu0
    %v4395 = vadd.f32 0.0, %v4394
    %4396 = vdwg.mxu0
    %s4397 = scalar_lea.vmem [#allocation12], 16
    %v4398 = vld [vmem:[%s4397] sm:$0xff]
    %v4399 = vld [vmem:[%s4397 + $0x8] sm:$0xff]
    %v4401 = vsel %vm3686, %v4398, 0
    %v4404 = vsel %vm3686, %v4399, 0
    %4406 = vmatprep.subr.mxu0 %v4389
    %4407 = vmatpush1.msra.mxu0 %v4387
    %4408 = vmatprep.subr.mxu0 %v4395
    %4409 = vmatpush1.msra.mxu0 %v4393
    %4410 = vmatprep.subr.mxu0 0.0
    %4411 = vmatpush1.msra.mxu0 0.0
    %4412 = vmatprep.subr.mxu0 0.0
    %4413 = vmatpush1.msra.mxu0 0.0
    %4414 = vmatprep.subr.mxu0 0.0
    %4415 = vmatpush1.msra.mxu0 0.0
    %4416 = vmatprep.subr.mxu0 0.0
    %4417 = vmatpush1.msra.mxu0 0.0
    %4418 = vmatprep.subr.mxu0 0.0
    %4419 = vmatpush1.msra.mxu0 0.0
    %4420 = vmatprep.subr.mxu0 0.0
    %4421 = vmatpush1.msra.mxu0 0.0
    %4422 = vmatprep.subr.mxu0 0.0
    %4423 = vmatpush1.msra.mxu0 0.0
    %4424 = vmatprep.subr.mxu0 0.0
    %4425 = vmatpush1.msra.mxu0 0.0
    %4426 = vmatprep.subr.mxu0 0.0
    %4427 = vmatpush1.msra.mxu0 0.0
    %4428 = vmatprep.subr.mxu0 0.0
    %4429 = vmatpush1.msra.mxu0 0.0
    %4430 = vmatprep.subr.mxu0 0.0
    %4431 = vmatpush1.msra.mxu0 0.0
    %4432 = vmatprep.subr.mxu0 0.0
    %4433 = vmatpush1.msra.mxu0 0.0
    %4434 = vmatprep.subr.mxu0 0.0
    %4435 = vmatpush1.msra.mxu0 0.0
    %4436 = vmatprep.subr.mxu0 0.0
    %4437 = vmatpush1.msra.mxu0 0.0
    %4438 = vmatprep.subr.mxu0 0.0
    %4439 = vmatpush1.msra.mxu0 0.0
    %4440 = vmatprep.subr.mxu0 0.0
    %4441 = vmatpush1.msra.mxu0 0.0
    %4442 = vmatprep.subr.mxu0 0.0
    %4443 = vmatpush1.msra.mxu0 0.0
    %4444 = vmatprep.subr.mxu0 0.0
    %4445 = vmatpush1.msra.mxu0 0.0
    %4446 = vmatprep.subr.mxu0 0.0
    %4447 = vmatpush1.msra.mxu0 0.0
    %4448 = vmatprep.subr.mxu0 0.0
    %4449 = vmatpush1.msra.mxu0 0.0
    %4450 = vmatprep.subr.mxu0 0.0
    %4451 = vmatpush1.msra.mxu0 0.0
    %4452 = vmatprep.subr.mxu0 0.0
    %4453 = vmatpush1.msra.mxu0 0.0
    %4454 = vmatprep.subr.mxu0 0.0
    %4455 = vmatpush1.msra.mxu0 0.0
    %4456 = vmatprep.subr.mxu0 0.0
    %4457 = vmatpush1.msra.mxu0 0.0
    %4458 = vmatprep.subr.mxu0 0.0
    %4459 = vmatpush1.msra.mxu0 0.0
    %4460 = vmatprep.subr.mxu0 0.0
    %4461 = vmatpush1.msra.mxu0 0.0
    %4462 = vmatprep.subr.mxu0 0.0
    %4463 = vmatpush1.msra.mxu0 0.0
    %4464 = vmatprep.subr.mxu0 0.0
    %4465 = vmatpush1.msra.mxu0 0.0
    %4466 = vmatprep.subr.mxu0 0.0
    %4467 = vmatpush1.msra.mxu0 0.0
    %4468 = vmatprep.subr.mxu0 0.0
    %4469 = vmatpush1.msra.mxu0 0.0
    %4470 = vmatprep.mubr.f32.mxu0 0.0
    %4471 = vmatmul.mubr.f32.gmra.mrb[0].mxu0 %v4401
    %v4472 = vpop.f32.mrb[0].mxu0
    %v4473 = vadd.f32 0.0, %v4472
    %v4474 = vpop.f32.mrb[0].mxu0
    %v4475 = vadd.f32 0.0, %v4474
    %4476 = vmatprep.mubr.f32.mxu0 0.0
    %4477 = vmatmul.mubr.f32.gmra.mrb[0].mxu0 %v4404
    %v4478 = vpop.f32.mrb[0].mxu0
    %v4479 = vadd.f32 0.0, %v4478
    %v4480 = vpop.f32.mrb[0].mxu0
    %v4481 = vadd.f32 0.0, %v4480
    %4482 = vdwg.mxu0
    %v4484 = vsel %vm3686, %v4254, 0
    %v4487 = vsel %vm3686, %v4255, 0
    %4489 = vmatprep.subr.mxu0 %v4246
    %4490 = vmatpush1.msra.mxu0 %v4244
    %4491 = vmatprep.subr.mxu0 %v4252
    %4492 = vmatpush1.msra.mxu0 %v4250
    %4493 = vmatprep.subr.mxu0 0.0
    %4494 = vmatpush1.msra.mxu0 0.0
    %4495 = vmatprep.subr.mxu0 0.0
    %4496 = vmatpush1.msra.mxu0 0.0
    %4497 = vmatprep.subr.mxu0 0.0
    %4498 = vmatpush1.msra.mxu0 0.0
    %4499 = vmatprep.subr.mxu0 0.0
    %4500 = vmatpush1.msra.mxu0 0.0
    %4501 = vmatprep.subr.mxu0 0.0
    %4502 = vmatpush1.msra.mxu0 0.0
    %4503 = vmatprep.subr.mxu0 0.0
    %4504 = vmatpush1.msra.mxu0 0.0
    %4505 = vmatprep.subr.mxu0 0.0
    %4506 = vmatpush1.msra.mxu0 0.0
    %4507 = vmatprep.subr.mxu0 0.0
    %4508 = vmatpush1.msra.mxu0 0.0
    %4509 = vmatprep.subr.mxu0 0.0
    %4510 = vmatpush1.msra.mxu0 0.0
    %4511 = vmatprep.subr.mxu0 0.0
    %4512 = vmatpush1.msra.mxu0 0.0
    %4513 = vmatprep.subr.mxu0 0.0
    %4514 = vmatpush1.msra.mxu0 0.0
    %4515 = vmatprep.subr.mxu0 0.0
    %4516 = vmatpush1.msra.mxu0 0.0
    %4517 = vmatprep.subr.mxu0 0.0
    %4518 = vmatpush1.msra.mxu0 0.0
    %4519 = vmatprep.subr.mxu0 0.0
    %4520 = vmatpush1.msra.mxu0 0.0
    %4521 = vmatprep.subr.mxu0 0.0
    %4522 = vmatpush1.msra.mxu0 0.0
    %4523 = vmatprep.subr.mxu0 0.0
    %4524 = vmatpush1.msra.mxu0 0.0
    %4525 = vmatprep.subr.mxu0 0.0
    %4526 = vmatpush1.msra.mxu0 0.0
    %4527 = vmatprep.subr.mxu0 0.0
    %4528 = vmatpush1.msra.mxu0 0.0
    %4529 = vmatprep.subr.mxu0 0.0
    %4530 = vmatpush1.msra.mxu0 0.0
    %4531 = vmatprep.subr.mxu0 0.0
    %4532 = vmatpush1.msra.mxu0 0.0
    %4533 = vmatprep.subr.mxu0 0.0
    %4534 = vmatpush1.msra.mxu0 0.0
    %4535 = vmatprep.subr.mxu0 0.0
    %4536 = vmatpush1.msra.mxu0 0.0
    %4537 = vmatprep.subr.mxu0 0.0
    %4538 = vmatpush1.msra.mxu0 0.0
    %4539 = vmatprep.subr.mxu0 0.0
    %4540 = vmatpush1.msra.mxu0 0.0
    %4541 = vmatprep.subr.mxu0 0.0
    %4542 = vmatpush1.msra.mxu0 0.0
    %4543 = vmatprep.subr.mxu0 0.0
    %4544 = vmatpush1.msra.mxu0 0.0
    %4545 = vmatprep.subr.mxu0 0.0
    %4546 = vmatpush1.msra.mxu0 0.0
    %4547 = vmatprep.subr.mxu0 0.0
    %4548 = vmatpush1.msra.mxu0 0.0
    %4549 = vmatprep.subr.mxu0 0.0
    %4550 = vmatpush1.msra.mxu0 0.0
    %4551 = vmatprep.subr.mxu0 0.0
    %4552 = vmatpush1.msra.mxu0 0.0
    %4553 = vmatprep.mubr.f32.mxu0 0.0
    %4554 = vmatmul.mubr.f32.gmra.mrb[0].mxu0 %v4484
    %v4555 = vpop.f32.mrb[0].mxu0
    %v4556 = vadd.f32 %v4473, %v4555
    %v4557 = vpop.f32.mrb[0].mxu0
    %v4558 = vadd.f32 %v4475, %v4557
    %4559 = vmatprep.mubr.f32.mxu0 0.0
    %4560 = vmatmul.mubr.f32.gmra.mrb[0].mxu0 %v4487
    %v4561 = vpop.f32.mrb[0].mxu0
    %v4562 = vadd.f32 %v4479, %v4561
    %v4563 = vpop.f32.mrb[0].mxu0
    %v4564 = vadd.f32 %v4481, %v4563
    %4565 = vdwg.mxu0
    %v4566 = vld [vmem:[#allocation6 + $0x20] sm:$0xff]
    %v4567 = vld [vmem:[#allocation6 + $0x28] sm:$0xff]
    %v4568 = vld [vmem:[#allocation6 + $0x50] sm:$0xff]
    %v4569 = vld [vmem:[#allocation6 + $0x58] sm:$0xff]
    %v4570 = vld [vmem:[#allocation6 + $0x80] sm:$0xff]
    %v4571 = vld [vmem:[#allocation6 + $0x88] sm:$0xff]
    %v4572 = vld [vmem:[#allocation6 + $0xb0] sm:$0xff]
    %v4573 = vld [vmem:[#allocation6 + $0xb8] sm:$0xff]
    %v4574 = vld [vmem:[#allocation6 + $0xe0] sm:$0xff]
    %v4575 = vld [vmem:[#allocation6 + $0xe8] sm:$0xff]
    %v4576 = vld [vmem:[#allocation6 + $0x110] sm:$0xff]
    %v4577 = vld [vmem:[#allocation6 + $0x118] sm:$0xff]
    %v4578 = vld [vmem:[#allocation6 + $0x140] sm:$0xff]
    %v4579 = vld [vmem:[#allocation6 + $0x148] sm:$0xff]
    %v4580 = vld [vmem:[#allocation6 + $0x170] sm:$0xff]
    %v4581 = vld [vmem:[#allocation6 + $0x178] sm:$0xff]
    %v4582 = vld [vmem:[#allocation6 + $0x1a0] sm:$0xff]
    %v4583 = vld [vmem:[#allocation6 + $0x1a8] sm:$0xff]
    %v4584 = vld [vmem:[#allocation6 + $0x1d0] sm:$0xff]
    %v4585 = vld [vmem:[#allocation6 + $0x1d8] sm:$0xff]
    %v4586 = vld [vmem:[#allocation6 + $0x200] sm:$0xff]
    %v4587 = vld [vmem:[#allocation6 + $0x208] sm:$0xff]
    %v4588 = vld [vmem:[#allocation6 + $0x230] sm:$0xff]
    %v4589 = vld [vmem:[#allocation6 + $0x238] sm:$0xff]
    %v4590 = vld [vmem:[#allocation6 + $0x260] sm:$0xff]
    %v4591 = vld [vmem:[#allocation6 + $0x268] sm:$0xff]
    %v4592 = vld [vmem:[#allocation6 + $0x290] sm:$0xff]
    %v4593 = vld [vmem:[#allocation6 + $0x298] sm:$0xff]
    %v4594 = vld [vmem:[#allocation6 + $0x2c0] sm:$0xff]
    %v4595 = vld [vmem:[#allocation6 + $0x2c8] sm:$0xff]
    %v4596 = vld [vmem:[#allocation6 + $0x2f0] sm:$0xff]
    %v4597 = vld [vmem:[#allocation6 + $0x2f8] sm:$0xff]
    %v4598 = vld [vmem:[#allocation6 + $0x320] sm:$0xff]
    %v4599 = vld [vmem:[#allocation6 + $0x328] sm:$0xff]
    %v4600 = vld [vmem:[#allocation6 + $0x350] sm:$0xff]
    %v4601 = vld [vmem:[#allocation6 + $0x358] sm:$0xff]
    %v4602 = vld [vmem:[#allocation6 + $0x380] sm:$0xff]
    %v4603 = vld [vmem:[#allocation6 + $0x388] sm:$0xff]
    %v4604 = vld [vmem:[#allocation6 + $0x3b0] sm:$0xff]
    %v4605 = vld [vmem:[#allocation6 + $0x3b8] sm:$0xff]
    %v4606 = vld [vmem:[#allocation6 + $0x3e0] sm:$0xff]
    %v4607 = vld [vmem:[#allocation6 + $0x3e8] sm:$0xff]
    %v4608 = vld [vmem:[#allocation6 + $0x410] sm:$0xff]
    %v4609 = vld [vmem:[#allocation6 + $0x418] sm:$0xff]
    %v4610 = vld [vmem:[#allocation6 + $0x440] sm:$0xff]
    %v4611 = vld [vmem:[#allocation6 + $0x448] sm:$0xff]
    %v4612 = vld [vmem:[#allocation6 + $0x470] sm:$0xff]
    %v4613 = vld [vmem:[#allocation6 + $0x478] sm:$0xff]
    %v4614 = vld [vmem:[#allocation6 + $0x4a0] sm:$0xff]
    %v4615 = vld [vmem:[#allocation6 + $0x4a8] sm:$0xff]
    %v4616 = vld [vmem:[#allocation6 + $0x4d0] sm:$0xff]
    %v4617 = vld [vmem:[#allocation6 + $0x4d8] sm:$0xff]
    %v4618 = vld [vmem:[#allocation6 + $0x500] sm:$0xff]
    %v4619 = vld [vmem:[#allocation6 + $0x508] sm:$0xff]
    %v4620 = vld [vmem:[#allocation6 + $0x530] sm:$0xff]
    %v4621 = vld [vmem:[#allocation6 + $0x538] sm:$0xff]
    %v4622 = vld [vmem:[#allocation6 + $0x560] sm:$0xff]
    %v4623 = vld [vmem:[#allocation6 + $0x568] sm:$0xff]
    %v4624 = vld [vmem:[#allocation6 + $0x590] sm:$0xff]
    %v4625 = vld [vmem:[#allocation6 + $0x598] sm:$0xff]
    %v4626 = vld [vmem:[#allocation6 + $0x5c0] sm:$0xff]
    %v4627 = vld [vmem:[#allocation6 + $0x5c8] sm:$0xff]
    %v4628 = vld [vmem:[#allocation6 + $0x5f0] sm:$0xff]
    %v4629 = vld [vmem:[#allocation6 + $0x5f8] sm:$0xff]
    %4630 = vmatprep.subr.mxu0 %v4567
    %4631 = vmatpush1.msra.mxu0 %v4566
    %4632 = vmatprep.subr.mxu0 %v4569
    %4633 = vmatpush1.msra.mxu0 %v4568
    %4634 = vmatprep.subr.mxu0 %v4571
    %4635 = vmatpush1.msra.mxu0 %v4570
    %4636 = vmatprep.subr.mxu0 %v4573
    %4637 = vmatpush1.msra.mxu0 %v4572
    %4638 = vmatprep.subr.mxu0 %v4575
    %4639 = vmatpush1.msra.mxu0 %v4574
    %4640 = vmatprep.subr.mxu0 %v4577
    %4641 = vmatpush1.msra.mxu0 %v4576
    %4642 = vmatprep.subr.mxu0 %v4579
    %4643 = vmatpush1.msra.mxu0 %v4578
    %4644 = vmatprep.subr.mxu0 %v4581
    %4645 = vmatpush1.msra.mxu0 %v4580
    %4646 = vmatprep.subr.mxu0 %v4583
    %4647 = vmatpush1.msra.mxu0 %v4582
    %4648 = vmatprep.subr.mxu0 %v4585
    %4649 = vmatpush1.msra.mxu0 %v4584
    %4650 = vmatprep.subr.mxu0 %v4587
    %4651 = vmatpush1.msra.mxu0 %v4586
    %4652 = vmatprep.subr.mxu0 %v4589
    %4653 = vmatpush1.msra.mxu0 %v4588
    %4654 = vmatprep.subr.mxu0 %v4591
    %4655 = vmatpush1.msra.mxu0 %v4590
    %4656 = vmatprep.subr.mxu0 %v4593
    %4657 = vmatpush1.msra.mxu0 %v4592
    %4658 = vmatprep.subr.mxu0 %v4595
    %4659 = vmatpush1.msra.mxu0 %v4594
    %4660 = vmatprep.subr.mxu0 %v4597
    %4661 = vmatpush1.msra.mxu0 %v4596
    %4662 = vmatprep.subr.mxu0 %v4599
    %4663 = vmatpush1.msra.mxu0 %v4598
    %4664 = vmatprep.subr.mxu0 %v4601
    %4665 = vmatpush1.msra.mxu0 %v4600
    %4666 = vmatprep.subr.mxu0 %v4603
    %4667 = vmatpush1.msra.mxu0 %v4602
    %4668 = vmatprep.subr.mxu0 %v4605
    %4669 = vmatpush1.msra.mxu0 %v4604
    %4670 = vmatprep.subr.mxu0 %v4607
    %4671 = vmatpush1.msra.mxu0 %v4606
    %4672 = vmatprep.subr.mxu0 %v4609
    %4673 = vmatpush1.msra.mxu0 %v4608
    %4674 = vmatprep.subr.mxu0 %v4611
    %4675 = vmatpush1.msra.mxu0 %v4610
    %4676 = vmatprep.subr.mxu0 %v4613
    %4677 = vmatpush1.msra.mxu0 %v4612
    %4678 = vmatprep.subr.mxu0 %v4615
    %4679 = vmatpush1.msra.mxu0 %v4614
    %4680 = vmatprep.subr.mxu0 %v4617
    %4681 = vmatpush1.msra.mxu0 %v4616
    %4682 = vmatprep.subr.mxu0 %v4619
    %4683 = vmatpush1.msra.mxu0 %v4618
    %4684 = vmatprep.subr.mxu0 %v4621
    %4685 = vmatpush1.msra.mxu0 %v4620
    %4686 = vmatprep.subr.mxu0 %v4623
    %4687 = vmatpush1.msra.mxu0 %v4622
    %4688 = vmatprep.subr.mxu0 %v4625
    %4689 = vmatpush1.msra.mxu0 %v4624
    %4690 = vmatprep.subr.mxu0 %v4627
    %4691 = vmatpush1.msra.mxu0 %v4626
    %4692 = vmatprep.subr.mxu0 %v4629
    %4693 = vmatpush1.msra.mxu0 %v4628
    %4694 = vmatprep.mubr.f32.mxu0 %v4108
    %4695 = vmatmul.mubr.f32.gmra.mrb[0].mxu0 %v4107
    %v4696 = vpop.f32.mrb[0].mxu0
    %v4697 = vadd.f32 0.0, %v4696
    %v4698 = vpop.f32.mrb[0].mxu0
    %v4699 = vadd.f32 0.0, %v4698
    %4700 = vmatprep.mubr.f32.mxu0 %v4110
    %4701 = vmatmul.mubr.f32.gmra.mrb[0].mxu0 %v4109
    %v4702 = vpop.f32.mrb[0].mxu0
    %v4703 = vadd.f32 0.0, %v4702
    %v4704 = vpop.f32.mrb[0].mxu0
    %v4705 = vadd.f32 0.0, %v4704
    %4706 = vdwg.mxu0
    %s4707 = scalar_lea.vmem [#allocation12], 32
    %v4708 = vld [vmem:[%s4707] sm:$0xff]
    %v4709 = vld [vmem:[%s4707 + $0x8] sm:$0xff]
    %v4711 = vsel %vm3686, %v4708, 0
    %v4714 = vsel %vm3686, %v4709, 0
    %4716 = vmatprep.subr.mxu0 %v4699
    %4717 = vmatpush1.msra.mxu0 %v4697
    %4718 = vmatprep.subr.mxu0 %v4705
    %4719 = vmatpush1.msra.mxu0 %v4703
    %4720 = vmatprep.subr.mxu0 0.0
    %4721 = vmatpush1.msra.mxu0 0.0
    %4722 = vmatprep.subr.mxu0 0.0
    %4723 = vmatpush1.msra.mxu0 0.0
    %4724 = vmatprep.subr.mxu0 0.0
    %4725 = vmatpush1.msra.mxu0 0.0
    %4726 = vmatprep.subr.mxu0 0.0
    %4727 = vmatpush1.msra.mxu0 0.0
    %4728 = vmatprep.subr.mxu0 0.0
    %4729 = vmatpush1.msra.mxu0 0.0
    %4730 = vmatprep.subr.mxu0 0.0
    %4731 = vmatpush1.msra.mxu0 0.0
    %4732 = vmatprep.subr.mxu0 0.0
    %4733 = vmatpush1.msra.mxu0 0.0
    %4734 = vmatprep.subr.mxu0 0.0
    %4735 = vmatpush1.msra.mxu0 0.0
    %4736 = vmatprep.subr.mxu0 0.0
    %4737 = vmatpush1.msra.mxu0 0.0
    %4738 = vmatprep.subr.mxu0 0.0
    %4739 = vmatpush1.msra.mxu0 0.0
    %4740 = vmatprep.subr.mxu0 0.0
    %4741 = vmatpush1.msra.mxu0 0.0
    %4742 = vmatprep.subr.mxu0 0.0
    %4743 = vmatpush1.msra.mxu0 0.0
    %4744 = vmatprep.subr.mxu0 0.0
    %4745 = vmatpush1.msra.mxu0 0.0
    %4746 = vmatprep.subr.mxu0 0.0
    %4747 = vmatpush1.msra.mxu0 0.0
    %4748 = vmatprep.subr.mxu0 0.0
    %4749 = vmatpush1.msra.mxu0 0.0
    %4750 = vmatprep.subr.mxu0 0.0
    %4751 = vmatpush1.msra.mxu0 0.0
    %4752 = vmatprep.subr.mxu0 0.0
    %4753 = vmatpush1.msra.mxu0 0.0
    %4754 = vmatprep.subr.mxu0 0.0
    %4755 = vmatpush1.msra.mxu0 0.0
    %4756 = vmatprep.subr.mxu0 0.0
    %4757 = vmatpush1.msra.mxu0 0.0
    %4758 = vmatprep.subr.mxu0 0.0
    %4759 = vmatpush1.msra.mxu0 0.0
    %4760 = vmatprep.subr.mxu0 0.0
    %4761 = vmatpush1.msra.mxu0 0.0
    %4762 = vmatprep.subr.mxu0 0.0
    %4763 = vmatpush1.msra.mxu0 0.0
    %4764 = vmatprep.subr.mxu0 0.0
    %4765 = vmatpush1.msra.mxu0 0.0
    %4766 = vmatprep.subr.mxu0 0.0
    %4767 = vmatpush1.msra.mxu0 0.0
    %4768 = vmatprep.subr.mxu0 0.0
    %4769 = vmatpush1.msra.mxu0 0.0
    %4770 = vmatprep.subr.mxu0 0.0
    %4771 = vmatpush1.msra.mxu0 0.0
    %4772 = vmatprep.subr.mxu0 0.0
    %4773 = vmatpush1.msra.mxu0 0.0
    %4774 = vmatprep.subr.mxu0 0.0
    %4775 = vmatpush1.msra.mxu0 0.0
    %4776 = vmatprep.subr.mxu0 0.0
    %4777 = vmatpush1.msra.mxu0 0.0
    %4778 = vmatprep.subr.mxu0 0.0
    %4779 = vmatpush1.msra.mxu0 0.0
    %4780 = vmatprep.mubr.f32.mxu0 0.0
    %4781 = vmatmul.mubr.f32.gmra.mrb[0].mxu0 %v4711
    %v4782 = vpop.f32.mrb[0].mxu0
    %v4783 = vadd.f32 0.0, %v4782
    %v4784 = vpop.f32.mrb[0].mxu0
    %v4785 = vadd.f32 0.0, %v4784
    %4786 = vmatprep.mubr.f32.mxu0 0.0
    %4787 = vmatmul.mubr.f32.gmra.mrb[0].mxu0 %v4714
    %v4788 = vpop.f32.mrb[0].mxu0
    %v4789 = vadd.f32 0.0, %v4788
    %v4790 = vpop.f32.mrb[0].mxu0
    %v4791 = vadd.f32 0.0, %v4790
    %4792 = vdwg.mxu0
    %v4793 = vadd.f32 %v4556, %v4783
    %v4794 = vadd.f32 %v4558, %v4785
    %v4795 = vadd.f32 %v4562, %v4789
    %v4796 = vadd.f32 %v4564, %v4791
    %v4797 = vlaneseq
    %v4798 = vshrl.u32 %v4797, 7
    %v4799 = vsub.s32 0, %v4798
    %v4800 = vrot.slane %v4111, %v4799
    %v4801 = vlaneseq
    %v4802 = vshrl.u32 %v4801, 7
    %v4803 = vsub.s32 0, %v4802
    %v4804 = vrot.slane %v4112, %v4803
    %v4805 = vadd.f32 %v4793, %v4800
    %v4806 = vadd.f32 %v4794, %v4804
    %v4807 = vadd.f32 %v4795, %v4800
    %v4808 = vadd.f32 %v4796, %v4804
    %v4809 = vld [vmem:[#allocation24] sm:$0x3]
    %v4811 = vsel %vm3686, %v4809, 0
    %4813 = vmatprep.subr.mxu0 %v4806
    %4814 = vmatpush1.msra.mxu0 %v4805
    %4815 = vmatprep.subr.mxu0 %v4808
    %4816 = vmatpush1.msra.mxu0 %v4807
    %4817 = vmatprep.subr.mxu0 0.0
    %4818 = vmatpush1.msra.mxu0 0.0
    %4819 = vmatprep.subr.mxu0 0.0
    %4820 = vmatpush1.msra.mxu0 0.0
    %4821 = vmatprep.subr.mxu0 0.0
    %4822 = vmatpush1.msra.mxu0 0.0
    %4823 = vmatprep.subr.mxu0 0.0
    %4824 = vmatpush1.msra.mxu0 0.0
    %4825 = vmatprep.subr.mxu0 0.0
    %4826 = vmatpush1.msra.mxu0 0.0
    %4827 = vmatprep.subr.mxu0 0.0
    %4828 = vmatpush1.msra.mxu0 0.0
    %4829 = vmatprep.subr.mxu0 0.0
    %4830 = vmatpush1.msra.mxu0 0.0
    %4831 = vmatprep.subr.mxu0 0.0
    %4832 = vmatpush1.msra.mxu0 0.0
    %4833 = vmatprep.subr.mxu0 0.0
    %4834 = vmatpush1.msra.mxu0 0.0
    %4835 = vmatprep.subr.mxu0 0.0
    %4836 = vmatpush1.msra.mxu0 0.0
    %4837 = vmatprep.subr.mxu0 0.0
    %4838 = vmatpush1.msra.mxu0 0.0
    %4839 = vmatprep.subr.mxu0 0.0
    %4840 = vmatpush1.msra.mxu0 0.0
    %4841 = vmatprep.subr.mxu0 0.0
    %4842 = vmatpush1.msra.mxu0 0.0
    %4843 = vmatprep.subr.mxu0 0.0
    %4844 = vmatpush1.msra.mxu0 0.0
    %4845 = vmatprep.subr.mxu0 0.0
    %4846 = vmatpush1.msra.mxu0 0.0
    %4847 = vmatprep.subr.mxu0 0.0
    %4848 = vmatpush1.msra.mxu0 0.0
    %4849 = vmatprep.subr.mxu0 0.0
    %4850 = vmatpush1.msra.mxu0 0.0
    %4851 = vmatprep.subr.mxu0 0.0
    %4852 = vmatpush1.msra.mxu0 0.0
    %4853 = vmatprep.subr.mxu0 0.0
    %4854 = vmatpush1.msra.mxu0 0.0
    %4855 = vmatprep.subr.mxu0 0.0
    %4856 = vmatpush1.msra.mxu0 0.0
    %4857 = vmatprep.subr.mxu0 0.0
    %4858 = vmatpush1.msra.mxu0 0.0
    %4859 = vmatprep.subr.mxu0 0.0
    %4860 = vmatpush1.msra.mxu0 0.0
    %4861 = vmatprep.subr.mxu0 0.0
    %4862 = vmatpush1.msra.mxu0 0.0
    %4863 = vmatprep.subr.mxu0 0.0
    %4864 = vmatpush1.msra.mxu0 0.0
    %4865 = vmatprep.subr.mxu0 0.0
    %4866 = vmatpush1.msra.mxu0 0.0
    %4867 = vmatprep.subr.mxu0 0.0
    %4868 = vmatpush1.msra.mxu0 0.0
    %4869 = vmatprep.subr.mxu0 0.0
    %4870 = vmatpush1.msra.mxu0 0.0
    %4871 = vmatprep.subr.mxu0 0.0
    %4872 = vmatpush1.msra.mxu0 0.0
    %4873 = vmatprep.subr.mxu0 0.0
    %4874 = vmatpush1.msra.mxu0 0.0
    %4875 = vmatprep.subr.mxu0 0.0
    %4876 = vmatpush1.msra.mxu0 0.0
    %4877 = vmatprep.mubr.f32.mxu0 0.0
    %4878 = vmatmul.mubr.f32.gmra.mrb[0].mxu0 %v4811
    %v4879 = vpop.f32.mrb[0].mxu0
    %v4880 = vadd.f32 0.0, %v4879
    %v4881 = vpop.f32.mrb[0].mxu0
    %v4882 = vadd.f32 0.0, %v4881
    %4883 = vdwg.mxu0
    %v4884 = vmul.f32 %v4805, %v4805
    %v4885 = vmul.f32 %v4806, %v4806
    %v4886 = vmul.f32 %v4807, %v4807
    %v4887 = vmul.f32 %v4808, %v4808
    %4888 = vmatprep.subr.mxu0 %v4885
    %4889 = vmatpush1.msra.mxu0 %v4884
    %4890 = vmatprep.subr.mxu0 %v4887
    %4891 = vmatpush1.msra.mxu0 %v4886
    %4892 = vmatprep.subr.mxu0 0.0
    %4893 = vmatpush1.msra.mxu0 0.0
    %4894 = vmatprep.subr.mxu0 0.0
    %4895 = vmatpush1.msra.mxu0 0.0
    %4896 = vmatprep.subr.mxu0 0.0
    %4897 = vmatpush1.msra.mxu0 0.0
    %4898 = vmatprep.subr.mxu0 0.0
    %4899 = vmatpush1.msra.mxu0 0.0
    %4900 = vmatprep.subr.mxu0 0.0
    %4901 = vmatpush1.msra.mxu0 0.0
    %4902 = vmatprep.subr.mxu0 0.0
    %4903 = vmatpush1.msra.mxu0 0.0
    %4904 = vmatprep.subr.mxu0 0.0
    %4905 = vmatpush1.msra.mxu0 0.0
    %4906 = vmatprep.subr.mxu0 0.0
    %4907 = vmatpush1.msra.mxu0 0.0
    %4908 = vmatprep.subr.mxu0 0.0
    %4909 = vmatpush1.msra.mxu0 0.0
    %4910 = vmatprep.subr.mxu0 0.0
    %4911 = vmatpush1.msra.mxu0 0.0
    %4912 = vmatprep.subr.mxu0 0.0
    %4913 = vmatpush1.msra.mxu0 0.0
    %4914 = vmatprep.subr.mxu0 0.0
    %4915 = vmatpush1.msra.mxu0 0.0
    %4916 = vmatprep.subr.mxu0 0.0
    %4917 = vmatpush1.msra.mxu0 0.0
    %4918 = vmatprep.subr.mxu0 0.0
    %4919 = vmatpush1.msra.mxu0 0.0
    %4920 = vmatprep.subr.mxu0 0.0
    %4921 = vmatpush1.msra.mxu0 0.0
    %4922 = vmatprep.subr.mxu0 0.0
    %4923 = vmatpush1.msra.mxu0 0.0
    %4924 = vmatprep.subr.mxu0 0.0
    %4925 = vmatpush1.msra.mxu0 0.0
    %4926 = vmatprep.subr.mxu0 0.0
    %4927 = vmatpush1.msra.mxu0 0.0
    %4928 = vmatprep.subr.mxu0 0.0
    %4929 = vmatpush1.msra.mxu0 0.0
    %4930 = vmatprep.subr.mxu0 0.0
    %4931 = vmatpush1.msra.mxu0 0.0
    %4932 = vmatprep.subr.mxu0 0.0
    %4933 = vmatpush1.msra.mxu0 0.0
    %4934 = vmatprep.subr.mxu0 0.0
    %4935 = vmatpush1.msra.mxu0 0.0
    %4936 = vmatprep.subr.mxu0 0.0
    %4937 = vmatpush1.msra.mxu0 0.0
    %4938 = vmatprep.subr.mxu0 0.0
    %4939 = vmatpush1.msra.mxu0 0.0
    %4940 = vmatprep.subr.mxu0 0.0
    %4941 = vmatpush1.msra.mxu0 0.0
    %4942 = vmatprep.subr.mxu0 0.0
    %4943 = vmatpush1.msra.mxu0 0.0
    %4944 = vmatprep.subr.mxu0 0.0
    %4945 = vmatpush1.msra.mxu0 0.0
    %4946 = vmatprep.subr.mxu0 0.0
    %4947 = vmatpush1.msra.mxu0 0.0
    %4948 = vmatprep.subr.mxu0 0.0
    %4949 = vmatpush1.msra.mxu0 0.0
    %4950 = vmatprep.subr.mxu0 0.0
    %4951 = vmatpush1.msra.mxu0 0.0
    %4952 = vmatprep.mubr.f32.mxu0 0.0
    %4953 = vmatmul.mubr.f32.gmra.mrb[0].mxu0 %v4811
    %v4954 = vpop.f32.mrb[0].mxu0
    %v4955 = vadd.f32 0.0, %v4954
    %v4956 = vpop.f32.mrb[0].mxu0
    %v4957 = vadd.f32 0.0, %v4956
    %4958 = vdwg.mxu0
    %v4959 = vlaneseq
    %v4960 = vshrl.u32 %v4959, 7
    %v4961 = vsub.s32 3, %v4960
    %v4962 = vrot.slane %v4111, %v4961
    %v4963 = vlaneseq
    %v4964 = vshrl.u32 %v4963, 7
    %v4965 = vsub.s32 3, %v4964
    %v4966 = vrot.slane %v4112, %v4965
    %v4967 = vmul.f32 %v4880, %v4962
    %v4968 = vmul.f32 %v4882, %v4966
    %v4969 = vsel %vm1879, %v4967, 0.0
    %v4970 = vsel %vm1879, %v4968, 0.0
    %v4971 = vadd.f32 %v4969, %v4970
    %4972 = vadd.xlane.f32.xlu0 %v4971
    %v4973 = vpop.xlane.xlu0 %4972
    %v4974 = vmul.f32 %v4955, %v4962
    %v4975 = vmul.f32 %v4957, %v4966
    %v4976 = vsel %vm1879, %v4974, 0.0
    %v4977 = vsel %vm1879, %v4975, 0.0
    %v4978 = vadd.f32 %v4976, %v4977
    %4979 = vadd.xlane.f32.xlu0 %v4978
    %v4980 = vpop.xlane.xlu0 %4979
    %v4981 = vsel %vm1879, %v4880, 0.0
    %v4982 = vsel %vm1879, %v4882, 0.0
    %v4983 = vadd.f32 %v4981, %v4982
    %4984 = vadd.xlane.f32.xlu0 %v4983
    %v4985 = vpop.xlane.xlu0 %4984
    %v4986 = vsub.f32 %v4985, %v4973
    %v4987 = vsel %vm1879, %v4955, 0.0
    %v4988 = vsel %vm1879, %v4957, 0.0
    %v4989 = vadd.f32 %v4987, %v4988
    %4990 = vadd.xlane.f32.xlu0 %v4989
    %v4991 = vpop.xlane.xlu0 %4990
    %v4992 = vsub.f32 %v4991, %v4980
    %v4993 = vmul.f32 %v4986, %v3870
    %v4994 = vmul.f32 %v4973, %v3870
    %v4995 = vmul.f32 %v4992, %v3870
    %v4996 = vmul.f32 %v4993, %v4993
    %v4997 = vsub.f32 %v4995, %v4996
    %v4998 = vmax.f32 %v4997, 0.0
    %v4999 = vmul.f32 %v4980, %v3870
    %v5000 = vmul.f32 %v4994, %v4994
    %v5001 = vsub.f32 %v4999, %v5000
    %v5002 = vmax.f32 %v5001, 0.0
    %v5003 = vadd.f32 %v4998, 1e-05
    %v5004 = vrsqrt.pop %v5003
    %v5005 = vadd.f32 %v5002, 1e-05
    %v5006 = vrsqrt.pop %v5005
    %v5007 = vsub.f32 %v5006, %v5004
    %v5008 = vmul.f32 %v5007, %v4962
    %v5009 = vmul.f32 %v5007, %v4966
    %v5010 = vadd.f32 %v5004, %v5008
    %v5011 = vadd.f32 %v5004, %v5009
    %v5012 = vsub.f32 %v4994, %v4993
    %v5013 = vmul.f32 %v5012, %v4962
    %v5014 = vmul.f32 %v5012, %v4966
    %v5015 = vadd.f32 %v4993, %v5013
    %v5016 = vadd.f32 %v4993, %v5014
    %v5017 = vlaneseq
    %v5018 = vshrl.u32 %v5017, 7
    %v5019 = vsub.s32 1, %v5018
    %v5020 = vrot.slane %v4111, %v5019
    %v5021 = vlaneseq
    %v5022 = vshrl.u32 %v5021, 7
    %v5023 = vsub.s32 1, %v5022
    %v5024 = vrot.slane %v4112, %v5023
    %v5025 = vmul.f32 %v5020, %v5010
    %v5026 = vmul.f32 %v5024, %v5011
    %v5027 = vmul.f32 %v5015, %v5025
    %v5028 = vmul.f32 %v5016, %v5026
    %v5029 = vlaneseq
    %v5030 = vshrl.u32 %v5029, 7
    %v5031 = vsub.s32 2, %v5030
    %v5032 = vrot.slane %v4111, %v5031
    %v5033 = vlaneseq
    %v5034 = vshrl.u32 %v5033, 7
    %v5035 = vsub.s32 2, %v5034
    %v5036 = vrot.slane %v4112, %v5035
    %v5037 = vsub.f32 %v5032, %v5027
    %v5038 = vsub.f32 %v5036, %v5028
    %v5039 = vld [vmem:[%s19] sm:$0xff]
    %v5040 = vld [vmem:[%s19 + $0x8] sm:$0xff]
    %v5042 = vsel %vm2003, %v5039, 0
    %v5045 = vsel %vm2003, %v5040, 0
    %v5048 = vsel %vm1879, %v5025, 0
    %v5051 = vsel %vm1879, %v5026, 0
    %5053 = vmatprep.subr.mxu0 %v5051
    %5054 = vmatpush1.msra.mxu0 %v5048
    %5055 = vmatprep.subr.mxu0 0.0
    %5056 = vmatpush1.msra.mxu0 0.0
    %5057 = vmatprep.subr.mxu0 0.0
    %5058 = vmatpush1.msra.mxu0 0.0
    %5059 = vmatprep.subr.mxu0 0.0
    %5060 = vmatpush1.msra.mxu0 0.0
    %5061 = vmatprep.subr.mxu0 0.0
    %5062 = vmatpush1.msra.mxu0 0.0
    %5063 = vmatprep.subr.mxu0 0.0
    %5064 = vmatpush1.msra.mxu0 0.0
    %5065 = vmatprep.subr.mxu0 0.0
    %5066 = vmatpush1.msra.mxu0 0.0
    %5067 = vmatprep.subr.mxu0 0.0
    %5068 = vmatpush1.msra.mxu0 0.0
    %5069 = vmatprep.subr.mxu0 0.0
    %5070 = vmatpush1.msra.mxu0 0.0
    %5071 = vmatprep.subr.mxu0 0.0
    %5072 = vmatpush1.msra.mxu0 0.0
    %5073 = vmatprep.subr.mxu0 0.0
    %5074 = vmatpush1.msra.mxu0 0.0
    %5075 = vmatprep.subr.mxu0 0.0
    %5076 = vmatpush1.msra.mxu0 0.0
    %5077 = vmatprep.subr.mxu0 0.0
    %5078 = vmatpush1.msra.mxu0 0.0
    %5079 = vmatprep.subr.mxu0 0.0
    %5080 = vmatpush1.msra.mxu0 0.0
    %5081 = vmatprep.subr.mxu0 0.0
    %5082 = vmatpush1.msra.mxu0 0.0
    %5083 = vmatprep.subr.mxu0 0.0
    %5084 = vmatpush1.msra.mxu0 0.0
    %5085 = vmatprep.subr.mxu0 0.0
    %5086 = vmatpush1.msra.mxu0 0.0
    %5087 = vmatprep.subr.mxu0 0.0
    %5088 = vmatpush1.msra.mxu0 0.0
    %5089 = vmatprep.subr.mxu0 0.0
    %5090 = vmatpush1.msra.mxu0 0.0
    %5091 = vmatprep.subr.mxu0 0.0
    %5092 = vmatpush1.msra.mxu0 0.0
    %5093 = vmatprep.subr.mxu0 0.0
    %5094 = vmatpush1.msra.mxu0 0.0
    %5095 = vmatprep.subr.mxu0 0.0
    %5096 = vmatpush1.msra.mxu0 0.0
    %5097 = vmatprep.subr.mxu0 0.0
    %5098 = vmatpush1.msra.mxu0 0.0
    %5099 = vmatprep.subr.mxu0 0.0
    %5100 = vmatpush1.msra.mxu0 0.0
    %5101 = vmatprep.subr.mxu0 0.0
    %5102 = vmatpush1.msra.mxu0 0.0
    %5103 = vmatprep.subr.mxu0 0.0
    %5104 = vmatpush1.msra.mxu0 0.0
    %5105 = vmatprep.subr.mxu0 0.0
    %5106 = vmatpush1.msra.mxu0 0.0
    %5107 = vmatprep.subr.mxu0 0.0
    %5108 = vmatpush1.msra.mxu0 0.0
    %5109 = vmatprep.subr.mxu0 0.0
    %5110 = vmatpush1.msra.mxu0 0.0
    %5111 = vmatprep.subr.mxu0 0.0
    %5112 = vmatpush1.msra.mxu0 0.0
    %5113 = vmatprep.subr.mxu0 0.0
    %5114 = vmatpush1.msra.mxu0 0.0
    %5115 = vmatprep.subr.mxu0 0.0
    %5116 = vmatpush1.msra.mxu0 0.0
    %5117 = vmatprep.mubr.f32.mxu0 0.0
    %5118 = vmatmul.mubr.f32.gmra.mrb[0].mxu0 %v5042
    %v5119 = vpop.f32.mrb[0].mxu0
    %v5120 = vadd.f32 0.0, %v5119
    %v5121 = vpop.f32.mrb[0].mxu0
    %v5122 = vadd.f32 0.0, %v5121
    %5123 = vmatprep.mubr.f32.mxu0 0.0
    %5124 = vmatmul.mubr.f32.gmra.mrb[0].mxu0 %v5045
    %v5125 = vpop.f32.mrb[0].mxu0
    %v5126 = vadd.f32 0.0, %v5125
    %v5127 = vpop.f32.mrb[0].mxu0
    %v5128 = vadd.f32 0.0, %v5127
    %5129 = vdwg.mxu0
    %v5131 = vsel %vm1879, %v5037, 0
    %v5134 = vsel %vm1879, %v5038, 0
    %5136 = vmatprep.subr.mxu0 %v5134
    %5137 = vmatpush1.msra.mxu0 %v5131
    %5138 = vmatprep.subr.mxu0 0.0
    %5139 = vmatpush1.msra.mxu0 0.0
    %5140 = vmatprep.subr.mxu0 0.0
    %5141 = vmatpush1.msra.mxu0 0.0
    %5142 = vmatprep.subr.mxu0 0.0
    %5143 = vmatpush1.msra.mxu0 0.0
    %5144 = vmatprep.subr.mxu0 0.0
    %5145 = vmatpush1.msra.mxu0 0.0
    %5146 = vmatprep.subr.mxu0 0.0
    %5147 = vmatpush1.msra.mxu0 0.0
    %5148 = vmatprep.subr.mxu0 0.0
    %5149 = vmatpush1.msra.mxu0 0.0
    %5150 = vmatprep.subr.mxu0 0.0
    %5151 = vmatpush1.msra.mxu0 0.0
    %5152 = vmatprep.subr.mxu0 0.0
    %5153 = vmatpush1.msra.mxu0 0.0
    %5154 = vmatprep.subr.mxu0 0.0
    %5155 = vmatpush1.msra.mxu0 0.0
    %5156 = vmatprep.subr.mxu0 0.0
    %5157 = vmatpush1.msra.mxu0 0.0
    %5158 = vmatprep.subr.mxu0 0.0
    %5159 = vmatpush1.msra.mxu0 0.0
    %5160 = vmatprep.subr.mxu0 0.0
    %5161 = vmatpush1.msra.mxu0 0.0
    %5162 = vmatprep.subr.mxu0 0.0
    %5163 = vmatpush1.msra.mxu0 0.0
    %5164 = vmatprep.subr.mxu0 0.0
    %5165 = vmatpush1.msra.mxu0 0.0
    %5166 = vmatprep.subr.mxu0 0.0
    %5167 = vmatpush1.msra.mxu0 0.0
    %5168 = vmatprep.subr.mxu0 0.0
    %5169 = vmatpush1.msra.mxu0 0.0
    %5170 = vmatprep.subr.mxu0 0.0
    %5171 = vmatpush1.msra.mxu0 0.0
    %5172 = vmatprep.subr.mxu0 0.0
    %5173 = vmatpush1.msra.mxu0 0.0
    %5174 = vmatprep.subr.mxu0 0.0
    %5175 = vmatpush1.msra.mxu0 0.0
    %5176 = vmatprep.subr.mxu0 0.0
    %5177 = vmatpush1.msra.mxu0 0.0
    %5178 = vmatprep.subr.mxu0 0.0
    %5179 = vmatpush1.msra.mxu0 0.0
    %5180 = vmatprep.subr.mxu0 0.0
    %5181 = vmatpush1.msra.mxu0 0.0
    %5182 = vmatprep.subr.mxu0 0.0
    %5183 = vmatpush1.msra.mxu0 0.0
    %5184 = vmatprep.subr.mxu0 0.0
    %5185 = vmatpush1.msra.mxu0 0.0
    %5186 = vmatprep.subr.mxu0 0.0
    %5187 = vmatpush1.msra.mxu0 0.0
    %5188 = vmatprep.subr.mxu0 0.0
    %5189 = vmatpush1.msra.mxu0 0.0
    %5190 = vmatprep.subr.mxu0 0.0
    %5191 = vmatpush1.msra.mxu0 0.0
    %5192 = vmatprep.subr.mxu0 0.0
    %5193 = vmatpush1.msra.mxu0 0.0
    %5194 = vmatprep.subr.mxu0 0.0
    %5195 = vmatpush1.msra.mxu0 0.0
    %5196 = vmatprep.subr.mxu0 0.0
    %5197 = vmatpush1.msra.mxu0 0.0
    %5198 = vmatprep.subr.mxu0 0.0
    %5199 = vmatpush1.msra.mxu0 0.0
    %5200 = vmatprep.mubr.f32.mxu0 0.0
    %5201 = vmatmul.mubr.f32.gmra.mrb[0].mxu0 %v5042
    %v5202 = vpop.f32.mrb[0].mxu0
    %v5203 = vadd.f32 0.0, %v5202
    %v5204 = vpop.f32.mrb[0].mxu0
    %v5205 = vadd.f32 0.0, %v5204
    %5206 = vmatprep.mubr.f32.mxu0 0.0
    %5207 = vmatmul.mubr.f32.gmra.mrb[0].mxu0 %v5045
    %v5208 = vpop.f32.mrb[0].mxu0
    %v5209 = vadd.f32 0.0, %v5208
    %v5210 = vpop.f32.mrb[0].mxu0
    %v5211 = vadd.f32 0.0, %v5210
    %5212 = vdwg.mxu0
    %v5213 = vmul.f32 %v4805, %v5120
    %v5214 = vmul.f32 %v4806, %v5122
    %v5215 = vmul.f32 %v4807, %v5126
    %v5216 = vmul.f32 %v4808, %v5128
    %v5217 = vadd.f32 %v5213, %v5203
    %v5218 = vadd.f32 %v5214, %v5205
    %v5219 = vadd.f32 %v5215, %v5209
    %v5220 = vadd.f32 %v5216, %v5211
    %vm5221 = vcmp.ge.f32.partialorder %v5217, 0.0
    %vm5222 = vcmp.ge.f32.partialorder %v5218, 0.0
    %vm5223 = vcmp.ge.f32.partialorder %v5219, 0.0
    %vm5224 = vcmp.ge.f32.partialorder %v5220, 0.0
    %v5225 = vmul.f32 %v5217, 0.2
    %v5226 = vmul.f32 %v5218, 0.2
    %v5227 = vmul.f32 %v5219, 0.2
    %v5228 = vmul.f32 %v5220, 0.2
    %v5229 = vsel %vm5221, %v5217, %v5225
    %v5230 = vsel %vm5222, %v5218, %v5226
    %v5231 = vsel %vm5223, %v5219, %v5227
    %v5232 = vsel %vm5224, %v5220, %v5228
    %v5233 = vld [vmem:[#allocation19] sm:$0xff]
    %v5234 = vld [vmem:[#allocation7] sm:$0xff]
    %v5235 = vld [vmem:[#allocation7 + $0x18] sm:$0xff]
    %v5236 = vld [vmem:[#allocation7 + $0x30] sm:$0xff]
    %v5237 = vld [vmem:[#allocation7 + $0x48] sm:$0xff]
    %v5238 = vld [vmem:[#allocation7 + $0x60] sm:$0xff]
    %v5239 = vld [vmem:[#allocation7 + $0x78] sm:$0xff]
    %v5240 = vld [vmem:[#allocation7 + $0x90] sm:$0xff]
    %v5241 = vld [vmem:[#allocation7 + $0xa8] sm:$0xff]
    %v5242 = vld [vmem:[#allocation7 + $0xc0] sm:$0xff]
    %v5243 = vld [vmem:[#allocation7 + $0xd8] sm:$0xff]
    %v5244 = vld [vmem:[#allocation7 + $0xf0] sm:$0xff]
    %v5245 = vld [vmem:[#allocation7 + $0x108] sm:$0xff]
    %v5246 = vld [vmem:[#allocation7 + $0x120] sm:$0xff]
    %v5247 = vld [vmem:[#allocation7 + $0x138] sm:$0xff]
    %v5248 = vld [vmem:[#allocation7 + $0x150] sm:$0xff]
    %v5249 = vld [vmem:[#allocation7 + $0x168] sm:$0xff]
    %v5250 = vld [vmem:[#allocation7 + $0x180] sm:$0xff]
    %v5251 = vld [vmem:[#allocation7 + $0x198] sm:$0xff]
    %v5252 = vld [vmem:[#allocation7 + $0x1b0] sm:$0xff]
    %v5253 = vld [vmem:[#allocation7 + $0x1c8] sm:$0xff]
    %v5254 = vld [vmem:[#allocation7 + $0x1e0] sm:$0xff]
    %v5255 = vld [vmem:[#allocation7 + $0x1f8] sm:$0xff]
    %v5256 = vld [vmem:[#allocation7 + $0x210] sm:$0xff]
    %v5257 = vld [vmem:[#allocation7 + $0x228] sm:$0xff]
    %v5258 = vld [vmem:[#allocation7 + $0x240] sm:$0xff]
    %v5259 = vld [vmem:[#allocation7 + $0x258] sm:$0xff]
    %v5260 = vld [vmem:[#allocation7 + $0x270] sm:$0xff]
    %v5261 = vld [vmem:[#allocation7 + $0x288] sm:$0xff]
    %v5262 = vld [vmem:[#allocation7 + $0x2a0] sm:$0xff]
    %v5263 = vld [vmem:[#allocation7 + $0x2b8] sm:$0xff]
    %v5264 = vld [vmem:[#allocation7 + $0x2d0] sm:$0xff]
    %v5265 = vld [vmem:[#allocation7 + $0x2e8] sm:$0xff]
    %5266 = vmatprep.subr.mxu0 0.0
    %5267 = vmatpush1.msra.mxu0 %v5234
    %5268 = vmatprep.subr.mxu0 0.0
    %5269 = vmatpush1.msra.mxu0 %v5235
    %5270 = vmatprep.subr.mxu0 0.0
    %5271 = vmatpush1.msra.mxu0 %v5236
    %5272 = vmatprep.subr.mxu0 0.0
    %5273 = vmatpush1.msra.mxu0 %v5237
    %5274 = vmatprep.subr.mxu0 0.0
    %5275 = vmatpush1.msra.mxu0 %v5238
    %5276 = vmatprep.subr.mxu0 0.0
    %5277 = vmatpush1.msra.mxu0 %v5239
    %5278 = vmatprep.subr.mxu0 0.0
    %5279 = vmatpush1.msra.mxu0 %v5240
    %5280 = vmatprep.subr.mxu0 0.0
    %5281 = vmatpush1.msra.mxu0 %v5241
    %5282 = vmatprep.subr.mxu0 0.0
    %5283 = vmatpush1.msra.mxu0 %v5242
    %5284 = vmatprep.subr.mxu0 0.0
    %5285 = vmatpush1.msra.mxu0 %v5243
    %5286 = vmatprep.subr.mxu0 0.0
    %5287 = vmatpush1.msra.mxu0 %v5244
    %5288 = vmatprep.subr.mxu0 0.0
    %5289 = vmatpush1.msra.mxu0 %v5245
    %5290 = vmatprep.subr.mxu0 0.0
    %5291 = vmatpush1.msra.mxu0 %v5246
    %5292 = vmatprep.subr.mxu0 0.0
    %5293 = vmatpush1.msra.mxu0 %v5247
    %5294 = vmatprep.subr.mxu0 0.0
    %5295 = vmatpush1.msra.mxu0 %v5248
    %5296 = vmatprep.subr.mxu0 0.0
    %5297 = vmatpush1.msra.mxu0 %v5249
    %5298 = vmatprep.subr.mxu0 0.0
    %5299 = vmatpush1.msra.mxu0 %v5250
    %5300 = vmatprep.subr.mxu0 0.0
    %5301 = vmatpush1.msra.mxu0 %v5251
    %5302 = vmatprep.subr.mxu0 0.0
    %5303 = vmatpush1.msra.mxu0 %v5252
    %5304 = vmatprep.subr.mxu0 0.0
    %5305 = vmatpush1.msra.mxu0 %v5253
    %5306 = vmatprep.subr.mxu0 0.0
    %5307 = vmatpush1.msra.mxu0 %v5254
    %5308 = vmatprep.subr.mxu0 0.0
    %5309 = vmatpush1.msra.mxu0 %v5255
    %5310 = vmatprep.subr.mxu0 0.0
    %5311 = vmatpush1.msra.mxu0 %v5256
    %5312 = vmatprep.subr.mxu0 0.0
    %5313 = vmatpush1.msra.mxu0 %v5257
    %5314 = vmatprep.subr.mxu0 0.0
    %5315 = vmatpush1.msra.mxu0 %v5258
    %5316 = vmatprep.subr.mxu0 0.0
    %5317 = vmatpush1.msra.mxu0 %v5259
    %5318 = vmatprep.subr.mxu0 0.0
    %5319 = vmatpush1.msra.mxu0 %v5260
    %5320 = vmatprep.subr.mxu0 0.0
    %5321 = vmatpush1.msra.mxu0 %v5261
    %5322 = vmatprep.subr.mxu0 0.0
    %5323 = vmatpush1.msra.mxu0 %v5262
    %5324 = vmatprep.subr.mxu0 0.0
    %5325 = vmatpush1.msra.mxu0 %v5263
    %5326 = vmatprep.subr.mxu0 0.0
    %5327 = vmatpush1.msra.mxu0 %v5264
    %5328 = vmatprep.subr.mxu0 0.0
    %5329 = vmatpush1.msra.mxu0 %v5265
    %5330 = vmatprep.mubr.f32.mxu0 %v5230
    %5331 = vmatmul.mubr.f32.gmra.mrb[0].mxu0 %v5229
    %v5332 = vpop.f32.mrb[0].mxu0
    %v5333 = vadd.f32 0.0, %v5332
    %v5334 = vpop.f32.mrb[0].mxu0
    %5335 = vmatprep.mubr.f32.mxu0 %v5232
    %5336 = vmatmul.mubr.f32.gmra.mrb[0].mxu0 %v5231
    %v5337 = vpop.f32.mrb[0].mxu0
    %v5338 = vadd.f32 0.0, %v5337
    %v5339 = vpop.f32.mrb[0].mxu0
    %5340 = vdwg.mxu0
    %v5341 = vld [vmem:[#allocation13] sm:$0xff]
    %v5342 = vld [vmem:[#allocation7 + $0x8] sm:$0xff]
    %v5343 = vld [vmem:[#allocation7 + $0x20] sm:$0xff]
    %v5344 = vld [vmem:[#allocation7 + $0x38] sm:$0xff]
    %v5345 = vld [vmem:[#allocation7 + $0x50] sm:$0xff]
    %v5346 = vld [vmem:[#allocation7 + $0x68] sm:$0xff]
    %v5347 = vld [vmem:[#allocation7 + $0x80] sm:$0xff]
    %v5348 = vld [vmem:[#allocation7 + $0x98] sm:$0xff]
    %v5349 = vld [vmem:[#allocation7 + $0xb0] sm:$0xff]
    %v5350 = vld [vmem:[#allocation7 + $0xc8] sm:$0xff]
    %v5351 = vld [vmem:[#allocation7 + $0xe0] sm:$0xff]
    %v5352 = vld [vmem:[#allocation7 + $0xf8] sm:$0xff]
    %v5353 = vld [vmem:[#allocation7 + $0x110] sm:$0xff]
    %v5354 = vld [vmem:[#allocation7 + $0x128] sm:$0xff]
    %v5355 = vld [vmem:[#allocation7 + $0x140] sm:$0xff]
    %v5356 = vld [vmem:[#allocation7 + $0x158] sm:$0xff]
    %v5357 = vld [vmem:[#allocation7 + $0x170] sm:$0xff]
    %v5358 = vld [vmem:[#allocation7 + $0x188] sm:$0xff]
    %v5359 = vld [vmem:[#allocation7 + $0x1a0] sm:$0xff]
    %v5360 = vld [vmem:[#allocation7 + $0x1b8] sm:$0xff]
    %v5361 = vld [vmem:[#allocation7 + $0x1d0] sm:$0xff]
    %v5362 = vld [vmem:[#allocation7 + $0x1e8] sm:$0xff]
    %v5363 = vld [vmem:[#allocation7 + $0x200] sm:$0xff]
    %v5364 = vld [vmem:[#allocation7 + $0x218] sm:$0xff]
    %v5365 = vld [vmem:[#allocation7 + $0x230] sm:$0xff]
    %v5366 = vld [vmem:[#allocation7 + $0x248] sm:$0xff]
    %v5367 = vld [vmem:[#allocation7 + $0x260] sm:$0xff]
    %v5368 = vld [vmem:[#allocation7 + $0x278] sm:$0xff]
    %v5369 = vld [vmem:[#allocation7 + $0x290] sm:$0xff]
    %v5370 = vld [vmem:[#allocation7 + $0x2a8] sm:$0xff]
    %v5371 = vld [vmem:[#allocation7 + $0x2c0] sm:$0xff]
    %v5372 = vld [vmem:[#allocation7 + $0x2d8] sm:$0xff]
    %v5373 = vld [vmem:[#allocation7 + $0x2f0] sm:$0xff]
    %5374 = vmatprep.subr.mxu0 0.0
    %5375 = vmatpush1.msra.mxu0 %v5342
    %5376 = vmatprep.subr.mxu0 0.0
    %5377 = vmatpush1.msra.mxu0 %v5343
    %5378 = vmatprep.subr.mxu0 0.0
    %5379 = vmatpush1.msra.mxu0 %v5344
    %5380 = vmatprep.subr.mxu0 0.0
    %5381 = vmatpush1.msra.mxu0 %v5345
    %5382 = vmatprep.subr.mxu0 0.0
    %5383 = vmatpush1.msra.mxu0 %v5346
    %5384 = vmatprep.subr.mxu0 0.0
    %5385 = vmatpush1.msra.mxu0 %v5347
    %5386 = vmatprep.subr.mxu0 0.0
    %5387 = vmatpush1.msra.mxu0 %v5348
    %5388 = vmatprep.subr.mxu0 0.0
    %5389 = vmatpush1.msra.mxu0 %v5349
    %5390 = vmatprep.subr.mxu0 0.0
    %5391 = vmatpush1.msra.mxu0 %v5350
    %5392 = vmatprep.subr.mxu0 0.0
    %5393 = vmatpush1.msra.mxu0 %v5351
    %5394 = vmatprep.subr.mxu0 0.0
    %5395 = vmatpush1.msra.mxu0 %v5352
    %5396 = vmatprep.subr.mxu0 0.0
    %5397 = vmatpush1.msra.mxu0 %v5353
    %5398 = vmatprep.subr.mxu0 0.0
    %5399 = vmatpush1.msra.mxu0 %v5354
    %5400 = vmatprep.subr.mxu0 0.0
    %5401 = vmatpush1.msra.mxu0 %v5355
    %5402 = vmatprep.subr.mxu0 0.0
    %5403 = vmatpush1.msra.mxu0 %v5356
    %5404 = vmatprep.subr.mxu0 0.0
    %5405 = vmatpush1.msra.mxu0 %v5357
    %5406 = vmatprep.subr.mxu0 0.0
    %5407 = vmatpush1.msra.mxu0 %v5358
    %5408 = vmatprep.subr.mxu0 0.0
    %5409 = vmatpush1.msra.mxu0 %v5359
    %5410 = vmatprep.subr.mxu0 0.0
    %5411 = vmatpush1.msra.mxu0 %v5360
    %5412 = vmatprep.subr.mxu0 0.0
    %5413 = vmatpush1.msra.mxu0 %v5361
    %5414 = vmatprep.subr.mxu0 0.0
    %5415 = vmatpush1.msra.mxu0 %v5362
    %5416 = vmatprep.subr.mxu0 0.0
    %5417 = vmatpush1.msra.mxu0 %v5363
    %5418 = vmatprep.subr.mxu0 0.0
    %5419 = vmatpush1.msra.mxu0 %v5364
    %5420 = vmatprep.subr.mxu0 0.0
    %5421 = vmatpush1.msra.mxu0 %v5365
    %5422 = vmatprep.subr.mxu0 0.0
    %5423 = vmatpush1.msra.mxu0 %v5366
    %5424 = vmatprep.subr.mxu0 0.0
    %5425 = vmatpush1.msra.mxu0 %v5367
    %5426 = vmatprep.subr.mxu0 0.0
    %5427 = vmatpush1.msra.mxu0 %v5368
    %5428 = vmatprep.subr.mxu0 0.0
    %5429 = vmatpush1.msra.mxu0 %v5369
    %5430 = vmatprep.subr.mxu0 0.0
    %5431 = vmatpush1.msra.mxu0 %v5370
    %5432 = vmatprep.subr.mxu0 0.0
    %5433 = vmatpush1.msra.mxu0 %v5371
    %5434 = vmatprep.subr.mxu0 0.0
    %5435 = vmatpush1.msra.mxu0 %v5372
    %5436 = vmatprep.subr.mxu0 0.0
    %5437 = vmatpush1.msra.mxu0 %v5373
    %5438 = vmatprep.mubr.f32.mxu0 %v5230
    %5439 = vmatmul.mubr.f32.gmra.mrb[0].mxu0 %v5229
    %v5440 = vpop.f32.mrb[0].mxu0
    %v5441 = vadd.f32 0.0, %v5440
    %v5442 = vpop.f32.mrb[0].mxu0
    %5443 = vmatprep.mubr.f32.mxu0 %v5232
    %5444 = vmatmul.mubr.f32.gmra.mrb[0].mxu0 %v5231
    %v5445 = vpop.f32.mrb[0].mxu0
    %v5446 = vadd.f32 0.0, %v5445
    %v5447 = vpop.f32.mrb[0].mxu0
    %5448 = vdwg.mxu0
    %s5449 = scalar_lea.vmem [#allocation13], 8
    %v5450 = vld [vmem:[%s5449] sm:$0xff]
    %v5452 = vsel %vm3686, %v5450, 0
    %5454 = vmatprep.subr.mxu0 0.0
    %5455 = vmatpush1.msra.mxu0 %v5441
    %5456 = vmatprep.subr.mxu0 0.0
    %5457 = vmatpush1.msra.mxu0 %v5446
    %5458 = vmatprep.subr.mxu0 0.0
    %5459 = vmatpush1.msra.mxu0 0.0
    %5460 = vmatprep.subr.mxu0 0.0
    %5461 = vmatpush1.msra.mxu0 0.0
    %5462 = vmatprep.subr.mxu0 0.0
    %5463 = vmatpush1.msra.mxu0 0.0
    %5464 = vmatprep.subr.mxu0 0.0
    %5465 = vmatpush1.msra.mxu0 0.0
    %5466 = vmatprep.subr.mxu0 0.0
    %5467 = vmatpush1.msra.mxu0 0.0
    %5468 = vmatprep.subr.mxu0 0.0
    %5469 = vmatpush1.msra.mxu0 0.0
    %5470 = vmatprep.subr.mxu0 0.0
    %5471 = vmatpush1.msra.mxu0 0.0
    %5472 = vmatprep.subr.mxu0 0.0
    %5473 = vmatpush1.msra.mxu0 0.0
    %5474 = vmatprep.subr.mxu0 0.0
    %5475 = vmatpush1.msra.mxu0 0.0
    %5476 = vmatprep.subr.mxu0 0.0
    %5477 = vmatpush1.msra.mxu0 0.0
    %5478 = vmatprep.subr.mxu0 0.0
    %5479 = vmatpush1.msra.mxu0 0.0
    %5480 = vmatprep.subr.mxu0 0.0
    %5481 = vmatpush1.msra.mxu0 0.0
    %5482 = vmatprep.subr.mxu0 0.0
    %5483 = vmatpush1.msra.mxu0 0.0
    %5484 = vmatprep.subr.mxu0 0.0
    %5485 = vmatpush1.msra.mxu0 0.0
    %5486 = vmatprep.subr.mxu0 0.0
    %5487 = vmatpush1.msra.mxu0 0.0
    %5488 = vmatprep.subr.mxu0 0.0
    %5489 = vmatpush1.msra.mxu0 0.0
    %5490 = vmatprep.subr.mxu0 0.0
    %5491 = vmatpush1.msra.mxu0 0.0
    %5492 = vmatprep.subr.mxu0 0.0
    %5493 = vmatpush1.msra.mxu0 0.0
    %5494 = vmatprep.subr.mxu0 0.0
    %5495 = vmatpush1.msra.mxu0 0.0
    %5496 = vmatprep.subr.mxu0 0.0
    %5497 = vmatpush1.msra.mxu0 0.0
    %5498 = vmatprep.subr.mxu0 0.0
    %5499 = vmatpush1.msra.mxu0 0.0
    %5500 = vmatprep.subr.mxu0 0.0
    %5501 = vmatpush1.msra.mxu0 0.0
    %5502 = vmatprep.subr.mxu0 0.0
    %5503 = vmatpush1.msra.mxu0 0.0
    %5504 = vmatprep.subr.mxu0 0.0
    %5505 = vmatpush1.msra.mxu0 0.0
    %5506 = vmatprep.subr.mxu0 0.0
    %5507 = vmatpush1.msra.mxu0 0.0
    %5508 = vmatprep.subr.mxu0 0.0
    %5509 = vmatpush1.msra.mxu0 0.0
    %5510 = vmatprep.subr.mxu0 0.0
    %5511 = vmatpush1.msra.mxu0 0.0
    %5512 = vmatprep.subr.mxu0 0.0
    %5513 = vmatpush1.msra.mxu0 0.0
    %5514 = vmatprep.subr.mxu0 0.0
    %5515 = vmatpush1.msra.mxu0 0.0
    %5516 = vmatprep.subr.mxu0 0.0
    %5517 = vmatpush1.msra.mxu0 0.0
    %5518 = vmatprep.mubr.f32.mxu0 0.0
    %5519 = vmatmul.mubr.f32.gmra.mrb[0].mxu0 %v5452
    %v5520 = vpop.f32.mrb[0].mxu0
    %v5521 = vadd.f32 0.0, %v5520
    %v5522 = vpop.f32.mrb[0].mxu0
    %5523 = vdwg.mxu0
    %v5525 = vsel %vm3686, %v5341, 0
    %5527 = vmatprep.subr.mxu0 0.0
    %5528 = vmatpush1.msra.mxu0 %v5333
    %5529 = vmatprep.subr.mxu0 0.0
    %5530 = vmatpush1.msra.mxu0 %v5338
    %5531 = vmatprep.subr.mxu0 0.0
    %5532 = vmatpush1.msra.mxu0 0.0
    %5533 = vmatprep.subr.mxu0 0.0
    %5534 = vmatpush1.msra.mxu0 0.0
    %5535 = vmatprep.subr.mxu0 0.0
    %5536 = vmatpush1.msra.mxu0 0.0
    %5537 = vmatprep.subr.mxu0 0.0
    %5538 = vmatpush1.msra.mxu0 0.0
    %5539 = vmatprep.subr.mxu0 0.0
    %5540 = vmatpush1.msra.mxu0 0.0
    %5541 = vmatprep.subr.mxu0 0.0
    %5542 = vmatpush1.msra.mxu0 0.0
    %5543 = vmatprep.subr.mxu0 0.0
    %5544 = vmatpush1.msra.mxu0 0.0
    %5545 = vmatprep.subr.mxu0 0.0
    %5546 = vmatpush1.msra.mxu0 0.0
    %5547 = vmatprep.subr.mxu0 0.0
    %5548 = vmatpush1.msra.mxu0 0.0
    %5549 = vmatprep.subr.mxu0 0.0
    %5550 = vmatpush1.msra.mxu0 0.0
    %5551 = vmatprep.subr.mxu0 0.0
    %5552 = vmatpush1.msra.mxu0 0.0
    %5553 = vmatprep.subr.mxu0 0.0
    %5554 = vmatpush1.msra.mxu0 0.0
    %5555 = vmatprep.subr.mxu0 0.0
    %5556 = vmatpush1.msra.mxu0 0.0
    %5557 = vmatprep.subr.mxu0 0.0
    %5558 = vmatpush1.msra.mxu0 0.0
    %5559 = vmatprep.subr.mxu0 0.0
    %5560 = vmatpush1.msra.mxu0 0.0
    %5561 = vmatprep.subr.mxu0 0.0
    %5562 = vmatpush1.msra.mxu0 0.0
    %5563 = vmatprep.subr.mxu0 0.0
    %5564 = vmatpush1.msra.mxu0 0.0
    %5565 = vmatprep.subr.mxu0 0.0
    %5566 = vmatpush1.msra.mxu0 0.0
    %5567 = vmatprep.subr.mxu0 0.0
    %5568 = vmatpush1.msra.mxu0 0.0
    %5569 = vmatprep.subr.mxu0 0.0
    %5570 = vmatpush1.msra.mxu0 0.0
    %5571 = vmatprep.subr.mxu0 0.0
    %5572 = vmatpush1.msra.mxu0 0.0
    %5573 = vmatprep.subr.mxu0 0.0
    %5574 = vmatpush1.msra.mxu0 0.0
    %5575 = vmatprep.subr.mxu0 0.0
    %5576 = vmatpush1.msra.mxu0 0.0
    %5577 = vmatprep.subr.mxu0 0.0
    %5578 = vmatpush1.msra.mxu0 0.0
    %5579 = vmatprep.subr.mxu0 0.0
    %5580 = vmatpush1.msra.mxu0 0.0
    %5581 = vmatprep.subr.mxu0 0.0
    %5582 = vmatpush1.msra.mxu0 0.0
    %5583 = vmatprep.subr.mxu0 0.0
    %5584 = vmatpush1.msra.mxu0 0.0
    %5585 = vmatprep.subr.mxu0 0.0
    %5586 = vmatpush1.msra.mxu0 0.0
    %5587 = vmatprep.subr.mxu0 0.0
    %5588 = vmatpush1.msra.mxu0 0.0
    %5589 = vmatprep.subr.mxu0 0.0
    %5590 = vmatpush1.msra.mxu0 0.0
    %5591 = vmatprep.mubr.f32.mxu0 0.0
    %5592 = vmatmul.mubr.f32.gmra.mrb[0].mxu0 %v5525
    %v5593 = vpop.f32.mrb[0].mxu0
    %v5594 = vadd.f32 %v5521, %v5593
    %v5595 = vpop.f32.mrb[0].mxu0
    %5596 = vdwg.mxu0
    %v5597 = vld [vmem:[#allocation7 + $0x10] sm:$0xff]
    %v5598 = vld [vmem:[#allocation7 + $0x28] sm:$0xff]
    %v5599 = vld [vmem:[#allocation7 + $0x40] sm:$0xff]
    %v5600 = vld [vmem:[#allocation7 + $0x58] sm:$0xff]
    %v5601 = vld [vmem:[#allocation7 + $0x70] sm:$0xff]
    %v5602 = vld [vmem:[#allocation7 + $0x88] sm:$0xff]
    %v5603 = vld [vmem:[#allocation7 + $0xa0] sm:$0xff]
    %v5604 = vld [vmem:[#allocation7 + $0xb8] sm:$0xff]
    %v5605 = vld [vmem:[#allocation7 + $0xd0] sm:$0xff]
    %v5606 = vld [vmem:[#allocation7 + $0xe8] sm:$0xff]
    %v5607 = vld [vmem:[#allocation7 + $0x100] sm:$0xff]
    %v5608 = vld [vmem:[#allocation7 + $0x118] sm:$0xff]
    %v5609 = vld [vmem:[#allocation7 + $0x130] sm:$0xff]
    %v5610 = vld [vmem:[#allocation7 + $0x148] sm:$0xff]
    %v5611 = vld [vmem:[#allocation7 + $0x160] sm:$0xff]
    %v5612 = vld [vmem:[#allocation7 + $0x178] sm:$0xff]
    %v5613 = vld [vmem:[#allocation7 + $0x190] sm:$0xff]
    %v5614 = vld [vmem:[#allocation7 + $0x1a8] sm:$0xff]
    %v5615 = vld [vmem:[#allocation7 + $0x1c0] sm:$0xff]
    %v5616 = vld [vmem:[#allocation7 + $0x1d8] sm:$0xff]
    %v5617 = vld [vmem:[#allocation7 + $0x1f0] sm:$0xff]
    %v5618 = vld [vmem:[#allocation7 + $0x208] sm:$0xff]
    %v5619 = vld [vmem:[#allocation7 + $0x220] sm:$0xff]
    %v5620 = vld [vmem:[#allocation7 + $0x238] sm:$0xff]
    %v5621 = vld [vmem:[#allocation7 + $0x250] sm:$0xff]
    %v5622 = vld [vmem:[#allocation7 + $0x268] sm:$0xff]
    %v5623 = vld [vmem:[#allocation7 + $0x280] sm:$0xff]
    %v5624 = vld [vmem:[#allocation7 + $0x298] sm:$0xff]
    %v5625 = vld [vmem:[#allocation7 + $0x2b0] sm:$0xff]
    %v5626 = vld [vmem:[#allocation7 + $0x2c8] sm:$0xff]
    %v5627 = vld [vmem:[#allocation7 + $0x2e0] sm:$0xff]
    %v5628 = vld [vmem:[#allocation7 + $0x2f8] sm:$0xff]
    %5629 = vmatprep.subr.mxu0 0.0
    %5630 = vmatpush1.msra.mxu0 %v5597
    %5631 = vmatprep.subr.mxu0 0.0
    %5632 = vmatpush1.msra.mxu0 %v5598
    %5633 = vmatprep.subr.mxu0 0.0
    %5634 = vmatpush1.msra.mxu0 %v5599
    %5635 = vmatprep.subr.mxu0 0.0
    %5636 = vmatpush1.msra.mxu0 %v5600
    %5637 = vmatprep.subr.mxu0 0.0
    %5638 = vmatpush1.msra.mxu0 %v5601
    %5639 = vmatprep.subr.mxu0 0.0
    %5640 = vmatpush1.msra.mxu0 %v5602
    %5641 = vmatprep.subr.mxu0 0.0
    %5642 = vmatpush1.msra.mxu0 %v5603
    %5643 = vmatprep.subr.mxu0 0.0
    %5644 = vmatpush1.msra.mxu0 %v5604
    %5645 = vmatprep.subr.mxu0 0.0
    %5646 = vmatpush1.msra.mxu0 %v5605
    %5647 = vmatprep.subr.mxu0 0.0
    %5648 = vmatpush1.msra.mxu0 %v5606
    %5649 = vmatprep.subr.mxu0 0.0
    %5650 = vmatpush1.msra.mxu0 %v5607
    %5651 = vmatprep.subr.mxu0 0.0
    %5652 = vmatpush1.msra.mxu0 %v5608
    %5653 = vmatprep.subr.mxu0 0.0
    %5654 = vmatpush1.msra.mxu0 %v5609
    %5655 = vmatprep.subr.mxu0 0.0
    %5656 = vmatpush1.msra.mxu0 %v5610
    %5657 = vmatprep.subr.mxu0 0.0
    %5658 = vmatpush1.msra.mxu0 %v5611
    %5659 = vmatprep.subr.mxu0 0.0
    %5660 = vmatpush1.msra.mxu0 %v5612
    %5661 = vmatprep.subr.mxu0 0.0
    %5662 = vmatpush1.msra.mxu0 %v5613
    %5663 = vmatprep.subr.mxu0 0.0
    %5664 = vmatpush1.msra.mxu0 %v5614
    %5665 = vmatprep.subr.mxu0 0.0
    %5666 = vmatpush1.msra.mxu0 %v5615
    %5667 = vmatprep.subr.mxu0 0.0
    %5668 = vmatpush1.msra.mxu0 %v5616
    %5669 = vmatprep.subr.mxu0 0.0
    %5670 = vmatpush1.msra.mxu0 %v5617
    %5671 = vmatprep.subr.mxu0 0.0
    %5672 = vmatpush1.msra.mxu0 %v5618
    %5673 = vmatprep.subr.mxu0 0.0
    %5674 = vmatpush1.msra.mxu0 %v5619
    %5675 = vmatprep.subr.mxu0 0.0
    %5676 = vmatpush1.msra.mxu0 %v5620
    %5677 = vmatprep.subr.mxu0 0.0
    %5678 = vmatpush1.msra.mxu0 %v5621
    %5679 = vmatprep.subr.mxu0 0.0
    %5680 = vmatpush1.msra.mxu0 %v5622
    %5681 = vmatprep.subr.mxu0 0.0
    %5682 = vmatpush1.msra.mxu0 %v5623
    %5683 = vmatprep.subr.mxu0 0.0
    %5684 = vmatpush1.msra.mxu0 %v5624
    %5685 = vmatprep.subr.mxu0 0.0
    %5686 = vmatpush1.msra.mxu0 %v5625
    %5687 = vmatprep.subr.mxu0 0.0
    %5688 = vmatpush1.msra.mxu0 %v5626
    %5689 = vmatprep.subr.mxu0 0.0
    %5690 = vmatpush1.msra.mxu0 %v5627
    %5691 = vmatprep.subr.mxu0 0.0
    %5692 = vmatpush1.msra.mxu0 %v5628
    %5693 = vmatprep.mubr.f32.mxu0 %v5230
    %5694 = vmatmul.mubr.f32.gmra.mrb[0].mxu0 %v5229
    %v5695 = vpop.f32.mrb[0].mxu0
    %v5696 = vadd.f32 0.0, %v5695
    %v5697 = vpop.f32.mrb[0].mxu0
    %5698 = vmatprep.mubr.f32.mxu0 %v5232
    %5699 = vmatmul.mubr.f32.gmra.mrb[0].mxu0 %v5231
    %v5700 = vpop.f32.mrb[0].mxu0
    %v5701 = vadd.f32 0.0, %v5700
    %v5702 = vpop.f32.mrb[0].mxu0
    %5703 = vdwg.mxu0
    %s5704 = scalar_lea.vmem [#allocation13], 16
    %v5705 = vld [vmem:[%s5704] sm:$0xff]
    %v5707 = vsel %vm3686, %v5705, 0
    %5709 = vmatprep.subr.mxu0 0.0
    %5710 = vmatpush1.msra.mxu0 %v5696
    %5711 = vmatprep.subr.mxu0 0.0
    %5712 = vmatpush1.msra.mxu0 %v5701
    %5713 = vmatprep.subr.mxu0 0.0
    %5714 = vmatpush1.msra.mxu0 0.0
    %5715 = vmatprep.subr.mxu0 0.0
    %5716 = vmatpush1.msra.mxu0 0.0
    %5717 = vmatprep.subr.mxu0 0.0
    %5718 = vmatpush1.msra.mxu0 0.0
    %5719 = vmatprep.subr.mxu0 0.0
    %5720 = vmatpush1.msra.mxu0 0.0
    %5721 = vmatprep.subr.mxu0 0.0
    %5722 = vmatpush1.msra.mxu0 0.0
    %5723 = vmatprep.subr.mxu0 0.0
    %5724 = vmatpush1.msra.mxu0 0.0
    %5725 = vmatprep.subr.mxu0 0.0
    %5726 = vmatpush1.msra.mxu0 0.0
    %5727 = vmatprep.subr.mxu0 0.0
    %5728 = vmatpush1.msra.mxu0 0.0
    %5729 = vmatprep.subr.mxu0 0.0
    %5730 = vmatpush1.msra.mxu0 0.0
    %5731 = vmatprep.subr.mxu0 0.0
    %5732 = vmatpush1.msra.mxu0 0.0
    %5733 = vmatprep.subr.mxu0 0.0
    %5734 = vmatpush1.msra.mxu0 0.0
    %5735 = vmatprep.subr.mxu0 0.0
    %5736 = vmatpush1.msra.mxu0 0.0
    %5737 = vmatprep.subr.mxu0 0.0
    %5738 = vmatpush1.msra.mxu0 0.0
    %5739 = vmatprep.subr.mxu0 0.0
    %5740 = vmatpush1.msra.mxu0 0.0
    %5741 = vmatprep.subr.mxu0 0.0
    %5742 = vmatpush1.msra.mxu0 0.0
    %5743 = vmatprep.subr.mxu0 0.0
    %5744 = vmatpush1.msra.mxu0 0.0
    %5745 = vmatprep.subr.mxu0 0.0
    %5746 = vmatpush1.msra.mxu0 0.0
    %5747 = vmatprep.subr.mxu0 0.0
    %5748 = vmatpush1.msra.mxu0 0.0
    %5749 = vmatprep.subr.mxu0 0.0
    %5750 = vmatpush1.msra.mxu0 0.0
    %5751 = vmatprep.subr.mxu0 0.0
    %5752 = vmatpush1.msra.mxu0 0.0
    %5753 = vmatprep.subr.mxu0 0.0
    %5754 = vmatpush1.msra.mxu0 0.0
    %5755 = vmatprep.subr.mxu0 0.0
    %5756 = vmatpush1.msra.mxu0 0.0
    %5757 = vmatprep.subr.mxu0 0.0
    %5758 = vmatpush1.msra.mxu0 0.0
    %5759 = vmatprep.subr.mxu0 0.0
    %5760 = vmatpush1.msra.mxu0 0.0
    %5761 = vmatprep.subr.mxu0 0.0
    %5762 = vmatpush1.msra.mxu0 0.0
    %5763 = vmatprep.subr.mxu0 0.0
    %5764 = vmatpush1.msra.mxu0 0.0
    %5765 = vmatprep.subr.mxu0 0.0
    %5766 = vmatpush1.msra.mxu0 0.0
    %5767 = vmatprep.subr.mxu0 0.0
    %5768 = vmatpush1.msra.mxu0 0.0
    %5769 = vmatprep.subr.mxu0 0.0
    %5770 = vmatpush1.msra.mxu0 0.0
    %5771 = vmatprep.subr.mxu0 0.0
    %5772 = vmatpush1.msra.mxu0 0.0
    %5773 = vmatprep.mubr.f32.mxu0 0.0
    %5774 = vmatmul.mubr.f32.gmra.mrb[0].mxu0 %v5707
    %v5775 = vpop.f32.mrb[0].mxu0
    %v5776 = vadd.f32 0.0, %v5775
    %v5777 = vpop.f32.mrb[0].mxu0
    %5778 = vdwg.mxu0
    %v5779 = vadd.f32 %v5594, %v5776
    %v5780 = vlaneseq
    %v5781 = vshrl.u32 %v5780, 7
    %v5782 = vsub.s32 0, %v5781
    %v5783 = vrot.slane %v5233, %v5782
    %v5784 = vadd.f32 %v5779, %v5783
    %v5785 = vld [vmem:[#allocation25] sm:$0x3]
    %vm5786 = vcmask 64512
    %v5788 = vsel %vm5786, %v5785, 0
    %5790 = vmatprep.subr.mxu0 0.0
    %5791 = vmatpush1.msra.mxu0 %v5784
    %5792 = vmatprep.subr.mxu0 0.0
    %5793 = vmatpush1.msra.mxu0 0.0
    %5794 = vmatprep.subr.mxu0 0.0
    %5795 = vmatpush1.msra.mxu0 0.0
    %5796 = vmatprep.subr.mxu0 0.0
    %5797 = vmatpush1.msra.mxu0 0.0
    %5798 = vmatprep.subr.mxu0 0.0
    %5799 = vmatpush1.msra.mxu0 0.0
    %5800 = vmatprep.subr.mxu0 0.0
    %5801 = vmatpush1.msra.mxu0 0.0
    %5802 = vmatprep.subr.mxu0 0.0
    %5803 = vmatpush1.msra.mxu0 0.0
    %5804 = vmatprep.subr.mxu0 0.0
    %5805 = vmatpush1.msra.mxu0 0.0
    %5806 = vmatprep.subr.mxu0 0.0
    %5807 = vmatpush1.msra.mxu0 0.0
    %5808 = vmatprep.subr.mxu0 0.0
    %5809 = vmatpush1.msra.mxu0 0.0
    %5810 = vmatprep.subr.mxu0 0.0
    %5811 = vmatpush1.msra.mxu0 0.0
    %5812 = vmatprep.subr.mxu0 0.0
    %5813 = vmatpush1.msra.mxu0 0.0
    %5814 = vmatprep.subr.mxu0 0.0
    %5815 = vmatpush1.msra.mxu0 0.0
    %5816 = vmatprep.subr.mxu0 0.0
    %5817 = vmatpush1.msra.mxu0 0.0
    %5818 = vmatprep.subr.mxu0 0.0
    %5819 = vmatpush1.msra.mxu0 0.0
    %5820 = vmatprep.subr.mxu0 0.0
    %5821 = vmatpush1.msra.mxu0 0.0
    %5822 = vmatprep.subr.mxu0 0.0
    %5823 = vmatpush1.msra.mxu0 0.0
    %5824 = vmatprep.subr.mxu0 0.0
    %5825 = vmatpush1.msra.mxu0 0.0
    %5826 = vmatprep.subr.mxu0 0.0
    %5827 = vmatpush1.msra.mxu0 0.0
    %5828 = vmatprep.subr.mxu0 0.0
    %5829 = vmatpush1.msra.mxu0 0.0
    %5830 = vmatprep.subr.mxu0 0.0
    %5831 = vmatpush1.msra.mxu0 0.0
    %5832 = vmatprep.subr.mxu0 0.0
    %5833 = vmatpush1.msra.mxu0 0.0
    %5834 = vmatprep.subr.mxu0 0.0
    %5835 = vmatpush1.msra.mxu0 0.0
    %5836 = vmatprep.subr.mxu0 0.0
    %5837 = vmatpush1.msra.mxu0 0.0
    %5838 = vmatprep.subr.mxu0 0.0
    %5839 = vmatpush1.msra.mxu0 0.0
    %5840 = vmatprep.subr.mxu0 0.0
    %5841 = vmatpush1.msra.mxu0 0.0
    %5842 = vmatprep.subr.mxu0 0.0
    %5843 = vmatpush1.msra.mxu0 0.0
    %5844 = vmatprep.subr.mxu0 0.0
    %5845 = vmatpush1.msra.mxu0 0.0
    %5846 = vmatprep.subr.mxu0 0.0
    %5847 = vmatpush1.msra.mxu0 0.0
    %5848 = vmatprep.subr.mxu0 0.0
    %5849 = vmatpush1.msra.mxu0 0.0
    %5850 = vmatprep.subr.mxu0 0.0
    %5851 = vmatpush1.msra.mxu0 0.0
    %5852 = vmatprep.subr.mxu0 0.0
    %5853 = vmatpush1.msra.mxu0 0.0
    %5854 = vmatprep.mubr.f32.mxu0 0.0
    %5855 = vmatmul.mubr.f32.gmra.mrb[0].mxu0 %v5788
    %v5856 = vpop.f32.mrb[0].mxu0
    %v5857 = vadd.f32 0.0, %v5856
    %v5858 = vpop.f32.mrb[0].mxu0
    %5859 = vdwg.mxu0
    %v5860 = vmul.f32 %v5784, %v5784
    %5861 = vmatprep.subr.mxu0 0.0
    %5862 = vmatpush1.msra.mxu0 %v5860
    %5863 = vmatprep.subr.mxu0 0.0
    %5864 = vmatpush1.msra.mxu0 0.0
    %5865 = vmatprep.subr.mxu0 0.0
    %5866 = vmatpush1.msra.mxu0 0.0
    %5867 = vmatprep.subr.mxu0 0.0
    %5868 = vmatpush1.msra.mxu0 0.0
    %5869 = vmatprep.subr.mxu0 0.0
    %5870 = vmatpush1.msra.mxu0 0.0
    %5871 = vmatprep.subr.mxu0 0.0
    %5872 = vmatpush1.msra.mxu0 0.0
    %5873 = vmatprep.subr.mxu0 0.0
    %5874 = vmatpush1.msra.mxu0 0.0
    %5875 = vmatprep.subr.mxu0 0.0
    %5876 = vmatpush1.msra.mxu0 0.0
    %5877 = vmatprep.subr.mxu0 0.0
    %5878 = vmatpush1.msra.mxu0 0.0
    %5879 = vmatprep.subr.mxu0 0.0
    %5880 = vmatpush1.msra.mxu0 0.0
    %5881 = vmatprep.subr.mxu0 0.0
    %5882 = vmatpush1.msra.mxu0 0.0
    %5883 = vmatprep.subr.mxu0 0.0
    %5884 = vmatpush1.msra.mxu0 0.0
    %5885 = vmatprep.subr.mxu0 0.0
    %5886 = vmatpush1.msra.mxu0 0.0
    %5887 = vmatprep.subr.mxu0 0.0
    %5888 = vmatpush1.msra.mxu0 0.0
    %5889 = vmatprep.subr.mxu0 0.0
    %5890 = vmatpush1.msra.mxu0 0.0
    %5891 = vmatprep.subr.mxu0 0.0
    %5892 = vmatpush1.msra.mxu0 0.0
    %5893 = vmatprep.subr.mxu0 0.0
    %5894 = vmatpush1.msra.mxu0 0.0
    %5895 = vmatprep.subr.mxu0 0.0
    %5896 = vmatpush1.msra.mxu0 0.0
    %5897 = vmatprep.subr.mxu0 0.0
    %5898 = vmatpush1.msra.mxu0 0.0
    %5899 = vmatprep.subr.mxu0 0.0
    %5900 = vmatpush1.msra.mxu0 0.0
    %5901 = vmatprep.subr.mxu0 0.0
    %5902 = vmatpush1.msra.mxu0 0.0
    %5903 = vmatprep.subr.mxu0 0.0
    %5904 = vmatpush1.msra.mxu0 0.0
    %5905 = vmatprep.subr.mxu0 0.0
    %5906 = vmatpush1.msra.mxu0 0.0
    %5907 = vmatprep.subr.mxu0 0.0
    %5908 = vmatpush1.msra.mxu0 0.0
    %5909 = vmatprep.subr.mxu0 0.0
    %5910 = vmatpush1.msra.mxu0 0.0
    %5911 = vmatprep.subr.mxu0 0.0
    %5912 = vmatpush1.msra.mxu0 0.0
    %5913 = vmatprep.subr.mxu0 0.0
    %5914 = vmatpush1.msra.mxu0 0.0
    %5915 = vmatprep.subr.mxu0 0.0
    %5916 = vmatpush1.msra.mxu0 0.0
    %5917 = vmatprep.subr.mxu0 0.0
    %5918 = vmatpush1.msra.mxu0 0.0
    %5919 = vmatprep.subr.mxu0 0.0
    %5920 = vmatpush1.msra.mxu0 0.0
    %5921 = vmatprep.subr.mxu0 0.0
    %5922 = vmatpush1.msra.mxu0 0.0
    %5923 = vmatprep.subr.mxu0 0.0
    %5924 = vmatpush1.msra.mxu0 0.0
    %5925 = vmatprep.mubr.f32.mxu0 0.0
    %5926 = vmatmul.mubr.f32.gmra.mrb[0].mxu0 %v5788
    %v5927 = vpop.f32.mrb[0].mxu0
    %v5928 = vadd.f32 0.0, %v5927
    %v5929 = vpop.f32.mrb[0].mxu0
    %5930 = vdwg.mxu0
    %v5931 = vlaneseq
    %v5932 = vshrl.u32 %v5931, 7
    %v5933 = vsub.s32 3, %v5932
    %v5934 = vrot.slane %v5233, %v5933
    %v5935 = vmul.f32 %v5857, %v5934
    %v5936 = vsel %vm1879, %v5935, 0.0
    %5937 = vadd.xlane.f32.xlu0 %v5936
    %v5938 = vpop.xlane.xlu0 %5937
    %v5939 = vmul.f32 %v5928, %v5934
    %v5940 = vsel %vm1879, %v5939, 0.0
    %5941 = vadd.xlane.f32.xlu0 %v5940
    %v5942 = vpop.xlane.xlu0 %5941
    %v5943 = vsel %vm1879, %v5857, 0.0
    %5944 = vadd.xlane.f32.xlu0 %v5943
    %v5945 = vpop.xlane.xlu0 %5944
    %v5946 = vsub.f32 %v5945, %v5938
    %v5947 = vsel %vm1879, %v5928, 0.0
    %5948 = vadd.xlane.f32.xlu0 %v5947
    %v5949 = vpop.xlane.xlu0 %5948
    %v5950 = vsub.f32 %v5949, %v5942
    %v5951 = vrcp.pop 256.0
    %v5952 = vmul.f32 %v5946, %v5951
    %v5953 = vmul.f32 %v5938, %v5951
    %v5954 = vmul.f32 %v5950, %v5951
    %v5955 = vmul.f32 %v5952, %v5952
    %v5956 = vsub.f32 %v5954, %v5955
    %v5957 = vmax.f32 %v5956, 0.0
    %v5958 = vmul.f32 %v5942, %v5951
    %v5959 = vmul.f32 %v5953, %v5953
    %v5960 = vsub.f32 %v5958, %v5959
    %v5961 = vmax.f32 %v5960, 0.0
    %v5962 = vadd.f32 %v5957, 1e-05
    %v5963 = vrsqrt.pop %v5962
    %v5964 = vadd.f32 %v5961, 1e-05
    %v5965 = vrsqrt.pop %v5964
    %v5966 = vsub.f32 %v5965, %v5963
    %v5967 = vmul.f32 %v5966, %v5934
    %v5968 = vadd.f32 %v5963, %v5967
    %v5969 = vsub.f32 %v5953, %v5952
    %v5970 = vmul.f32 %v5969, %v5934
    %v5971 = vadd.f32 %v5952, %v5970
    %v5972 = vlaneseq
    %v5973 = vshrl.u32 %v5972, 7
    %v5974 = vsub.s32 1, %v5973
    %v5975 = vrot.slane %v5233, %v5974
    %v5976 = vmul.f32 %v5975, %v5968
    %v5977 = vmul.f32 %v5971, %v5976
    %v5978 = vlaneseq
    %v5979 = vshrl.u32 %v5978, 7
    %v5980 = vsub.s32 2, %v5979
    %v5981 = vrot.slane %v5233, %v5980
    %v5982 = vsub.f32 %v5981, %v5977
    %v5983 = vld [vmem:[%s20] sm:$0xff]
    %v5985 = vsel %vm2003, %v5983, 0
    %v5988 = vsel %vm1879, %v5976, 0
    %5990 = vmatprep.subr.mxu0 0.0
    %5991 = vmatpush1.msra.mxu0 %v5988
    %5992 = vmatprep.subr.mxu0 0.0
    %5993 = vmatpush1.msra.mxu0 0.0
    %5994 = vmatprep.subr.mxu0 0.0
    %5995 = vmatpush1.msra.mxu0 0.0
    %5996 = vmatprep.subr.mxu0 0.0
    %5997 = vmatpush1.msra.mxu0 0.0
    %5998 = vmatprep.subr.mxu0 0.0
    %5999 = vmatpush1.msra.mxu0 0.0
    %6000 = vmatprep.subr.mxu0 0.0
    %6001 = vmatpush1.msra.mxu0 0.0
    %6002 = vmatprep.subr.mxu0 0.0
    %6003 = vmatpush1.msra.mxu0 0.0
    %6004 = vmatprep.subr.mxu0 0.0
    %6005 = vmatpush1.msra.mxu0 0.0
    %6006 = vmatprep.subr.mxu0 0.0
    %6007 = vmatpush1.msra.mxu0 0.0
    %6008 = vmatprep.subr.mxu0 0.0
    %6009 = vmatpush1.msra.mxu0 0.0
    %6010 = vmatprep.subr.mxu0 0.0
    %6011 = vmatpush1.msra.mxu0 0.0
    %6012 = vmatprep.subr.mxu0 0.0
    %6013 = vmatpush1.msra.mxu0 0.0
    %6014 = vmatprep.subr.mxu0 0.0
    %6015 = vmatpush1.msra.mxu0 0.0
    %6016 = vmatprep.subr.mxu0 0.0
    %6017 = vmatpush1.msra.mxu0 0.0
    %6018 = vmatprep.subr.mxu0 0.0
    %6019 = vmatpush1.msra.mxu0 0.0
    %6020 = vmatprep.subr.mxu0 0.0
    %6021 = vmatpush1.msra.mxu0 0.0
    %6022 = vmatprep.subr.mxu0 0.0
    %6023 = vmatpush1.msra.mxu0 0.0
    %6024 = vmatprep.subr.mxu0 0.0
    %6025 = vmatpush1.msra.mxu0 0.0
    %6026 = vmatprep.subr.mxu0 0.0
    %6027 = vmatpush1.msra.mxu0 0.0
    %6028 = vmatprep.subr.mxu0 0.0
    %6029 = vmatpush1.msra.mxu0 0.0
    %6030 = vmatprep.subr.mxu0 0.0
    %6031 = vmatpush1.msra.mxu0 0.0
    %6032 = vmatprep.subr.mxu0 0.0
    %6033 = vmatpush1.msra.mxu0 0.0
    %6034 = vmatprep.subr.mxu0 0.0
    %6035 = vmatpush1.msra.mxu0 0.0
    %6036 = vmatprep.subr.mxu0 0.0
    %6037 = vmatpush1.msra.mxu0 0.0
    %6038 = vmatprep.subr.mxu0 0.0
    %6039 = vmatpush1.msra.mxu0 0.0
    %6040 = vmatprep.subr.mxu0 0.0
    %6041 = vmatpush1.msra.mxu0 0.0
    %6042 = vmatprep.subr.mxu0 0.0
    %6043 = vmatpush1.msra.mxu0 0.0
    %6044 = vmatprep.subr.mxu0 0.0
    %6045 = vmatpush1.msra.mxu0 0.0
    %6046 = vmatprep.subr.mxu0 0.0
    %6047 = vmatpush1.msra.mxu0 0.0
    %6048 = vmatprep.subr.mxu0 0.0
    %6049 = vmatpush1.msra.mxu0 0.0
    %6050 = vmatprep.subr.mxu0 0.0
    %6051 = vmatpush1.msra.mxu0 0.0
    %6052 = vmatprep.subr.mxu0 0.0
    %6053 = vmatpush1.msra.mxu0 0.0
    %6054 = vmatprep.mubr.f32.mxu0 0.0
    %6055 = vmatmul.mubr.f32.gmra.mrb[0].mxu0 %v5985
    %v6056 = vpop.f32.mrb[0].mxu0
    %v6057 = vadd.f32 0.0, %v6056
    %v6058 = vpop.f32.mrb[0].mxu0
    %6059 = vdwg.mxu0
    %v6061 = vsel %vm1879, %v5982, 0
    %6063 = vmatprep.subr.mxu0 0.0
    %6064 = vmatpush1.msra.mxu0 %v6061
    %6065 = vmatprep.subr.mxu0 0.0
    %6066 = vmatpush1.msra.mxu0 0.0
    %6067 = vmatprep.subr.mxu0 0.0
    %6068 = vmatpush1.msra.mxu0 0.0
    %6069 = vmatprep.subr.mxu0 0.0
    %6070 = vmatpush1.msra.mxu0 0.0
    %6071 = vmatprep.subr.mxu0 0.0
    %6072 = vmatpush1.msra.mxu0 0.0
    %6073 = vmatprep.subr.mxu0 0.0
    %6074 = vmatpush1.msra.mxu0 0.0
    %6075 = vmatprep.subr.mxu0 0.0
    %6076 = vmatpush1.msra.mxu0 0.0
    %6077 = vmatprep.subr.mxu0 0.0
    %6078 = vmatpush1.msra.mxu0 0.0
    %6079 = vmatprep.subr.mxu0 0.0
    %6080 = vmatpush1.msra.mxu0 0.0
    %6081 = vmatprep.subr.mxu0 0.0
    %6082 = vmatpush1.msra.mxu0 0.0
    %6083 = vmatprep.subr.mxu0 0.0
    %6084 = vmatpush1.msra.mxu0 0.0
    %6085 = vmatprep.subr.mxu0 0.0
    %6086 = vmatpush1.msra.mxu0 0.0
    %6087 = vmatprep.subr.mxu0 0.0
    %6088 = vmatpush1.msra.mxu0 0.0
    %6089 = vmatprep.subr.mxu0 0.0
    %6090 = vmatpush1.msra.mxu0 0.0
    %6091 = vmatprep.subr.mxu0 0.0
    %6092 = vmatpush1.msra.mxu0 0.0
    %6093 = vmatprep.subr.mxu0 0.0
    %6094 = vmatpush1.msra.mxu0 0.0
    %6095 = vmatprep.subr.mxu0 0.0
    %6096 = vmatpush1.msra.mxu0 0.0
    %6097 = vmatprep.subr.mxu0 0.0
    %6098 = vmatpush1.msra.mxu0 0.0
    %6099 = vmatprep.subr.mxu0 0.0
    %6100 = vmatpush1.msra.mxu0 0.0
    %6101 = vmatprep.subr.mxu0 0.0
    %6102 = vmatpush1.msra.mxu0 0.0
    %6103 = vmatprep.subr.mxu0 0.0
    %6104 = vmatpush1.msra.mxu0 0.0
    %6105 = vmatprep.subr.mxu0 0.0
    %6106 = vmatpush1.msra.mxu0 0.0
    %6107 = vmatprep.subr.mxu0 0.0
    %6108 = vmatpush1.msra.mxu0 0.0
    %6109 = vmatprep.subr.mxu0 0.0
    %6110 = vmatpush1.msra.mxu0 0.0
    %6111 = vmatprep.subr.mxu0 0.0
    %6112 = vmatpush1.msra.mxu0 0.0
    %6113 = vmatprep.subr.mxu0 0.0
    %6114 = vmatpush1.msra.mxu0 0.0
    %6115 = vmatprep.subr.mxu0 0.0
    %6116 = vmatpush1.msra.mxu0 0.0
    %6117 = vmatprep.subr.mxu0 0.0
    %6118 = vmatpush1.msra.mxu0 0.0
    %6119 = vmatprep.subr.mxu0 0.0
    %6120 = vmatpush1.msra.mxu0 0.0
    %6121 = vmatprep.subr.mxu0 0.0
    %6122 = vmatpush1.msra.mxu0 0.0
    %6123 = vmatprep.subr.mxu0 0.0
    %6124 = vmatpush1.msra.mxu0 0.0
    %6125 = vmatprep.subr.mxu0 0.0
    %6126 = vmatpush1.msra.mxu0 0.0
    %6127 = vmatprep.mubr.f32.mxu0 0.0
    %6128 = vmatmul.mubr.f32.gmra.mrb[0].mxu0 %v5985
    %v6129 = vpop.f32.mrb[0].mxu0
    %v6130 = vadd.f32 0.0, %v6129
    %v6131 = vpop.f32.mrb[0].mxu0
    %6132 = vdwg.mxu0
    %v6133 = vmul.f32 %v5784, %v6057
    %v6134 = vadd.f32 %v6133, %v6130
    %vm6135 = vcmp.ge.f32.partialorder %v6134, 0.0
    %v6136 = vmul.f32 %v6134, 0.2
    %v6137 = vsel %vm6135, %v6134, %v6136
    %6138 = vst [vmem:[%s22] sm:$0xff] %v6137
    // Predicated region
    $region150: #{encoder_forward.1} parent=1 // pred_check
      _
    $region151: #{encoder_forward.1} parent=1 // pred_check_branch
      %6140 = sbr.rel (0) target = $region153
    $region152: #{encoder_forward.1} parent=1 // pred_region
      _
    $region153: #{encoder_forward.1} parent=1 // pred_fallthru
      _
    // Predicated region
    $region154: #{encoder_forward.1} parent=1 // pred_check
      _
    $region155: #{encoder_forward.1} parent=1 // pred_check_branch
      %6142 = sbr.rel (0) target = $region157
    $region156: #{encoder_forward.1} parent=1 // pred_region
      _
    $region157: #{encoder_forward.1} parent=1 // pred_fallthru
      _
    // Predicated region
    $region158: #{encoder_forward.1} parent=1 // pred_check
      _
    $region159: #{encoder_forward.1} parent=1 // pred_check_branch
      %6144 = sbr.rel (0) target = $region161
    $region160: #{encoder_forward.1} parent=1 // pred_region
      _
    $region161: #{encoder_forward.1} parent=1 // pred_fallthru
      _
    // Predicated region
    $region162: #{encoder_forward.1} parent=1 // pred_check
      _
    $region163: #{encoder_forward.1} parent=1 // pred_check_branch
      %6146 = sbr.rel (0) target = $region165
    $region164: #{encoder_forward.1} parent=1 // pred_region
      _
    $region165: #{encoder_forward.1} parent=1 // pred_fallthru
      _
    %6147 = vsyncpa [#allocation3], 1
    %6148 = vsyncpa [#allocation5], 1
    %6149 = vsyncpa [#allocation8], 1
    %6150 = vsyncpa [#allocation11], 1
    %6151 = vsyncpa [#allocation14], 1
    %6152 = vsyncpa [#allocation17], 1
    %6153 = vsyncpa [#allocation20], 1
    %6154 = vsyncpa [#allocation23], 1
    %6155 = vsyncpa [#allocation26], 1

</llo_original>
